<compile_context>
chip_gen: v7x
topology: tpu7x:2x2x1
jax: 0.10.0
libtpu: 0.0.40
codegen_flags: <defaults>
</compile_context>

<pallas_src>
from functools import partial

import numpy as np
import jax
import jax.numpy as jnp
from jax.experimental import pallas as pl
from jax.experimental.pallas import tpu as pltpu


# ---------------- trace-time constants (tiny numpy/XLA layout prep) ----------------

def _conv1_tap_planes(x_nchw):
    """(N, 1, H, W) -> (N*(H//2)*(W//2), 9) tap planes of the zero-padded input.

    Column t = kh*3 + kw holds x_pad[2*oh + kh, 2*ow + kw];
    row = n*(H//2)*(W//2) + oh*(W//2) + ow.  Lets conv1 run as one (rows, 9)@(9, 32) MXU dot.
    """
    n, _, h, w = x_nchw.shape
    ho, wo = h // 2, w // 2
    xp = jnp.pad(x_nchw[:, 0], ((0, 0), (1, 1), (1, 1)))
    planes = [xp[:, kh:kh + 2 * ho:2, kw:kw + 2 * wo:2]
              for kh in range(3) for kw in range(3)]
    return jnp.stack(planes, axis=-1).reshape(n * ho * wo, 9)


def _batched_selection_matrix(hi, wi, ho, wo, p_in, p_out_b, bt):
    """0/1 gather matrix for a 3x3 / stride-2 / pad-1 conv, block-diagonal over bt samples.

    Row  t*(bt*p_out_b) + b*p_out_b + (oh*wo + ow)  (tap t = kh*3 + kw) selects input pixel
    (2*oh+kh-1, 2*ow+kw-1) of sample b (column b*p_in + h*wi + w).  Out-of-range taps
    (zero padding) and sublane-pad output rows (oh*wo+ow >= ho*wo) stay all-zero, so they
    contribute nothing downstream.
    """
    s = np.zeros((9 * bt * p_out_b, bt * p_in), np.float32)
    for kh in range(3):
        for kw in range(3):
            t = kh * 3 + kw
            for b in range(bt):
                for oh in range(ho):
                    for ow in range(wo):
                        h = 2 * oh + kh - 1
                        w = 2 * ow + kw - 1
                        if 0 <= h < hi and 0 <= w < wi:
                            s[t * bt * p_out_b + b * p_out_b + oh * wo + ow,
                              b * p_in + h * wi + w] = 1.0
    return s


def _pool_matrix(p3, p3b, bt):
    """(bt, bt*p3b) averaging matrix: row b averages the p3 REAL spatial rows of sample b,
    excluding the sublane-pad rows (which hold relu(b3) garbage)."""
    p = np.zeros((bt, bt * p3b), np.float32)
    for b in range(bt):
        p[b, b * p3b:b * p3b + p3] = 1.0 / p3
    return p


# ---------------- fused Pallas kernel: whole forward, BT samples per grid step ----------------

def _make_fused_kernel(bt, p2b, p3b, dim, width):
    bp2 = bt * p2b
    bp3 = bt * p3b

    def kernel(xt_ref, s2_ref, s3_ref, pool_ref, w1_ref, b1_ref, w2_ref, b2_ref,
               w3_ref, b3_ref, wpr_ref, bpr_ref, o_ref):
        f32 = jnp.float32

        # ---- conv1 + ReLU: one MXU dot over the whole batch tile (M = bt*p1) ----
        h1 = jnp.maximum(
            jnp.dot(xt_ref[...], w1_ref[...], preferred_element_type=f32) + b1_ref[...],
            0.0)                                                        # (bt*p1, 32)

        # ---- conv2 + ReLU: one block-diag tap-gather dot, then 9 per-tap MXU dots ----
        g2 = jnp.dot(s2_ref[...], h1, preferred_element_type=f32)       # (9*bt*p2b, 32)
        acc2 = jnp.dot(g2[0:bp2, :], w2_ref[0], preferred_element_type=f32)
        for t in range(1, 9):
            acc2 = acc2 + jnp.dot(g2[t * bp2:(t + 1) * bp2, :], w2_ref[t],
                                  preferred_element_type=f32)
        h2 = jnp.maximum(acc2 + b2_ref[...], 0.0)                       # (bt*p2b, 64)
        # NOTE: sublane-pad rows of h2 hold relu(b2) != 0; correctness relies on the
        # corresponding columns of s3 being all-zero (guaranteed at construction time).

        # ---- conv3 + ReLU ----
        g3 = jnp.dot(s3_ref[...], h2, preferred_element_type=f32)       # (9*bt*p3b, 64)
        acc3 = jnp.dot(g3[0:bp3, :], w3_ref[0], preferred_element_type=f32)
        for t in range(1, 9):
            acc3 = acc3 + jnp.dot(g3[t * bp3:(t + 1) * bp3, :], w3_ref[t],
                                  preferred_element_type=f32)
        h3 = jnp.maximum(acc3 + b3_ref[...], 0.0)                       # (bt*p3b, 128)

        # ---- AdaptiveAvgPool2d(1): constant averaging matmul (pad rows excluded) ----
        f = jnp.dot(pool_ref[...], h3, preferred_element_type=f32)      # (bt, 128)

        # ---- fused proj + reg head (wr folded into lane `dim`); L2-normalize proj lanes ----
        y = jnp.dot(f, wpr_ref[...], preferred_element_type=f32) + bpr_ref[...]   # (bt, width)
        proj = y[:, :dim]
        ss = jnp.sum(proj * proj, axis=-1, keepdims=True)               # (bt, 1)
        inv = jax.lax.rsqrt(jnp.maximum(ss, 1e-24))    # == 1/max(||proj||, 1e-12), on the EUP
        if dim % 128 == 0:
            # dim is lane-tile aligned: two dense, unmasked lane-slice stores
            o_ref[:, 0:dim] = proj * inv
            o_ref[:, dim:width] = y[:, dim:width]
        else:
            lane = jax.lax.broadcasted_iota(jnp.int32, (bt, width), 1)
            scale = jnp.where(lane < dim, inv, jnp.ones_like(inv))
            o_ref[...] = y * scale
    return kernel


# ---------------- public wrapper ----------------

@partial(jax.jit, static_argnames=("bt",))
def water_encoder_forward(x_nchw, params, *, bt=8):
    n, cin, h, w = x_nchw.shape
    assert cin == 1 and h % 8 == 0 and w % 8 == 0
    dim = params["wp"].shape[1]
    width = ((dim + 1 + 127) // 128) * 128       # lane-dense output slab: proj | reg | pad

    h1o, w1o = h // 2, w // 2
    h2o, w2o = h // 4, w // 4
    h3o, w3o = h // 8, w // 8
    p1 = h1o * w1o
    p2 = h2o * w2o
    p2b = -(-p2 // 8) * 8                        # padded to sublane tile
    p3 = h3o * w3o
    p3b = -(-p3 // 8) * 8

    # batch tile: BT samples per grid step (keep >=2 steps so v7x's 2 TCs split the batch)
    bt = max(1, min(bt, n))
    n_pad = -(-n // bt) * bt
    steps = n_pad // bt

    xt = _conv1_tap_planes(x_nchw.astype(jnp.float32))        # (n*p1, 9)
    if n_pad != n:
        xt = jnp.pad(xt, ((0, (n_pad - n) * p1), (0, 0)))

    # weights in kernel layout: HWIO -> (tap, Cin, Cout); reg head folded into proj matrix
    w1 = params["w1"].reshape(9, 32).astype(jnp.float32)
    b1 = params["b1"].reshape(1, 32).astype(jnp.float32)
    w2 = params["w2"].reshape(9, 32, 64).astype(jnp.float32)
    b2 = params["b2"].reshape(1, 64).astype(jnp.float32)
    w3 = params["w3"].reshape(9, 64, 128).astype(jnp.float32)
    b3 = params["b3"].reshape(1, 128).astype(jnp.float32)
    wpr = (jnp.zeros((128, width), jnp.float32)
           .at[:, :dim].set(params["wp"].astype(jnp.float32))
           .at[:, dim].set(params["wr"][:, 0].astype(jnp.float32)))
    bpr = (jnp.zeros((1, width), jnp.float32)
           .at[0, :dim].set(params["bp"].astype(jnp.float32))
           .at[0, dim].set(params["br"][0].astype(jnp.float32)))

    # constant 0/1 block-diagonal tap-gather matrices + pooling matrix (trace-time constants;
    # at bt=8 / 16x16 input: S2 ~2.3 MB, S3 ~0.3 MB -> double-buffered they fit every
    # generation's default scoped-VMEM limit, so no Buffered(1) / vmem_limit tuning needed)
    s2 = jnp.asarray(_batched_selection_matrix(h1o, w1o, h2o, w2o, p1, p2b, bt))
    s3 = jnp.asarray(_batched_selection_matrix(h2o, w2o, h3o, w3o, p2b, p3b, bt))
    pool = jnp.asarray(_pool_matrix(p3, p3b, bt))

    out = pl.pallas_call(
        _make_fused_kernel(bt, p2b, p3b, dim, width),
        out_shape=jax.ShapeDtypeStruct((n_pad, width), jnp.float32),
        grid=(steps,),
        in_specs=[
            pl.BlockSpec((bt * p1, 9), lambda i: (i, 0)),             # conv1 tap planes (per step)
            pl.BlockSpec((9 * bt * p2b, bt * p1), lambda i: (0, 0)),  # S2 (grid-invariant)
            pl.BlockSpec((9 * bt * p3b, bt * p2b), lambda i: (0, 0)), # S3 (grid-invariant)
            pl.BlockSpec((bt, bt * p3b), lambda i: (0, 0)),           # pooling matrix
            pl.BlockSpec((9, 32), lambda i: (0, 0)),                  # w1 taps
            pl.BlockSpec((1, 32), lambda i: (0, 0)),                  # b1
            pl.BlockSpec((9, 32, 64), lambda i: (0, 0, 0)),           # w2 taps
            pl.BlockSpec((1, 64), lambda i: (0, 0)),                  # b2
            pl.BlockSpec((9, 64, 128), lambda i: (0, 0, 0)),          # w3 taps
            pl.BlockSpec((1, 128), lambda i: (0, 0)),                 # b3
            pl.BlockSpec((128, width), lambda i: (0, 0)),             # [wp | wr | pad]
            pl.BlockSpec((1, width), lambda i: (0, 0)),               # [bp | br | pad]
        ],
        out_specs=pl.BlockSpec((bt, width), lambda i: (i, 0)),        # dense (BT, 256) tile
        compiler_params=pltpu.CompilerParams(
            dimension_semantics=("parallel",)),                       # v7x: shard steps over 2 TCs
    )(xt, s2, s3, pool, w1, b1, w2, b2, w3, b3, wpr, bpr)

    emb = out[:n, :dim]                                               # L2-normalized projection
    reg = out[:n, dim]                                                # regression head, squeezed
    return emb, reg


# ---------------- params + pure-XLA reference (sanity check only) ----------------

def init_params(key, dim=128):
    ks = jax.random.split(key, 10)

    def conv_w(k, cin, cout):
        return (jax.random.normal(k, (3, 3, cin, cout), jnp.float32)
                * (1.0 / jnp.sqrt(9.0 * cin)))

    return {
        "w1": conv_w(ks[0], 1, 32),
        "b1": jax.random.normal(ks[1], (32,), jnp.float32) * 0.01,
        "w2": conv_w(ks[2], 32, 64),
        "b2": jax.random.normal(ks[3], (64,), jnp.float32) * 0.01,
        "w3": conv_w(ks[4], 64, 128),
        "b3": jax.random.normal(ks[5], (128,), jnp.float32) * 0.01,
        "wp": jax.random.normal(ks[6], (128, dim), jnp.float32) * (1.0 / jnp.sqrt(128.0)),
        "bp": jax.random.normal(ks[7], (dim,), jnp.float32) * 0.01,
        "wr": jax.random.normal(ks[8], (128, 1), jnp.float32) * (1.0 / jnp.sqrt(128.0)),
        "br": jax.random.normal(ks[9], (1,), jnp.float32) * 0.01,
    }


def _reference_forward(x_nchw, params):
    hact = x_nchw.astype(jnp.float32)
    for wk, bk in (("w1", "b1"), ("w2", "b2"), ("w3", "b3")):
        wgt = params[wk]
        dn = jax.lax.conv_dimension_numbers(hact.shape, wgt.shape, ("NCHW", "HWIO", "NCHW"))
        hact = jax.lax.conv_general_dilated(hact, wgt, (2, 2), ((1, 1), (1, 1)),
                                            dimension_numbers=dn)
        hact = jnp.maximum(hact + params[bk][None, :, None, None], 0.0)
    f = jnp.mean(hact, axis=(2, 3))
    proj = f @ params["wp"] + params["bp"]
    emb = proj / jnp.maximum(jnp.linalg.norm(proj, axis=-1, keepdims=True), 1e-12)
    reg = f @ params["wr"][:, 0] + params["br"][0]
    return emb, reg


if __name__ == "__main__":
    key = jax.random.PRNGKey(0)
    k_x, k_p = jax.random.split(key)
    x = jax.random.normal(k_x, (16, 1, 16, 16), jnp.float32)   # NCHW, 1 input channel
    params = init_params(k_p, dim=128)

    emb, reg = water_encoder_forward(x, params, bt=8)          # 2 grid steps of 8 samples
    jax.block_until_ready((emb, reg))
    assert emb.shape == (16, 128) and reg.shape == (16,)

    # loose sanity check vs. a pure-XLA reference (tolerant of default MXU matmul precision)
    emb_ref, reg_ref = _reference_forward(x, params)
    assert float(jnp.max(jnp.abs(emb - emb_ref))) < 8e-2
    assert float(jnp.max(jnp.abs(reg - reg_ref))) < 1.5e-1

    print("KERNEL_OK")
</pallas_src>

<mosaic_0001>
module attributes {stable_mosaic.version = 11 : i64} {
  func.func @kernel(%arg0: i32, %arg1: memref<512x9xf32, #tpu.memory_space<vmem>>, %arg2: memref<1152x512xf32, #tpu.memory_space<vmem>>, %arg3: memref<576x128xf32, #tpu.memory_space<vmem>>, %arg4: memref<8x64xf32, #tpu.memory_space<vmem>>, %arg5: memref<9x32xf32, #tpu.memory_space<vmem>>, %arg6: memref<1x32xf32, #tpu.memory_space<vmem>>, %arg7: memref<9x32x64xf32, #tpu.memory_space<vmem>>, %arg8: memref<1x64xf32, #tpu.memory_space<vmem>>, %arg9: memref<9x64x128xf32, #tpu.memory_space<vmem>>, %arg10: memref<1x128xf32, #tpu.memory_space<vmem>>, %arg11: memref<128x256xf32, #tpu.memory_space<vmem>>, %arg12: memref<1x256xf32, #tpu.memory_space<vmem>>, %arg13: memref<8x256xf32, #tpu.memory_space<vmem>>) attributes {dimension_semantics = [#tpu.dimension_semantics<parallel>], iteration_bounds = array<i64: 2>, scalar_prefetch = 0 : i64, scratch_operands = 0 : i64, tpu.core_type = #tpu.core_type<tc>, window_params = [{transform_indices = @transform_0, window_bounds = array<i64: 512, 9>}, {pipeline_mode = #tpu.pipeline_mode<synchronous>, transform_indices = @transform_1, window_bounds = array<i64: 1152, 512>}, {pipeline_mode = #tpu.pipeline_mode<synchronous>, transform_indices = @transform_2, window_bounds = array<i64: 576, 128>}, {pipeline_mode = #tpu.pipeline_mode<synchronous>, transform_indices = @transform_3, window_bounds = array<i64: 8, 64>}, {pipeline_mode = #tpu.pipeline_mode<synchronous>, transform_indices = @transform_4, window_bounds = array<i64: 9, 32>}, {pipeline_mode = #tpu.pipeline_mode<synchronous>, transform_indices = @transform_5, window_bounds = array<i64: 1, 32>}, {pipeline_mode = #tpu.pipeline_mode<synchronous>, transform_indices = @transform_6, window_bounds = array<i64: 9, 32, 64>}, {pipeline_mode = #tpu.pipeline_mode<synchronous>, transform_indices = @transform_7, window_bounds = array<i64: 1, 64>}, {pipeline_mode = #tpu.pipeline_mode<synchronous>, transform_indices = @transform_8, window_bounds = array<i64: 9, 64, 128>}, {pipeline_mode = #tpu.pipeline_mode<synchronous>, transform_indices = @transform_9, window_bounds = array<i64: 1, 128>}, {pipeline_mode = #tpu.pipeline_mode<synchronous>, transform_indices = @transform_10, window_bounds = array<i64: 128, 256>}, {pipeline_mode = #tpu.pipeline_mode<synchronous>, transform_indices = @transform_11, window_bounds = array<i64: 1, 256>}, {transform_indices = @transform_12, window_bounds = array<i64: 8, 256>}]} {
    %c0 = arith.constant 0 : index
    %c0_0 = arith.constant 0 : index
    %0 = vector.load %arg1[%c0, %c0_0] : memref<512x9xf32, #tpu.memory_space<vmem>>, vector<512x9xf32>
    %c0_1 = arith.constant 0 : index
    %c0_2 = arith.constant 0 : index
    %1 = vector.load %arg5[%c0_1, %c0_2] : memref<9x32xf32, #tpu.memory_space<vmem>>, vector<9x32xf32>
    %cst = arith.constant dense<0.000000e+00> : vector<512x32xf32>
    %2 = tpu.matmul %0, %1, %cst {dimension_numbers = #tpu.dot_dimension_numbers<[1], [0], [0], [1], [0, 0, 1, 1], [], []>} : vector<512x9xf32>, vector<9x32xf32>, vector<512x32xf32> -> vector<512x32xf32>
    %c0_3 = arith.constant 0 : index
    %c0_4 = arith.constant 0 : index
    %3 = vector.load %arg6[%c0_3, %c0_4] : memref<1x32xf32, #tpu.memory_space<vmem>>, vector<1x32xf32>
    %4 = vector.broadcast %3 : vector<1x32xf32> to vector<512x32xf32>
    %5 = arith.addf %2, %4 : vector<512x32xf32>
    %cst_5 = arith.constant 0.000000e+00 : f32
    %6 = vector.broadcast %cst_5 : f32 to vector<512x32xf32>
    %7 = arith.maximumf %5, %6 : vector<512x32xf32>
    %c0_6 = arith.constant 0 : index
    %c0_7 = arith.constant 0 : index
    %8 = vector.load %arg2[%c0_6, %c0_7] : memref<1152x512xf32, #tpu.memory_space<vmem>>, vector<1152x512xf32>
    %cst_8 = arith.constant dense<0.000000e+00> : vector<1152x32xf32>
    %9 = tpu.matmul %8, %7, %cst_8 {dimension_numbers = #tpu.dot_dimension_numbers<[1], [0], [0], [1], [0, 0, 1, 1], [], []>} : vector<1152x512xf32>, vector<512x32xf32>, vector<1152x32xf32> -> vector<1152x32xf32>
    %10 = vector.extract_strided_slice %9 {offsets = [0, 0], sizes = [128, 32], strides = [1, 1]} : vector<1152x32xf32> to vector<128x32xf32>
    %c0_9 = arith.constant 0 : index
    %c0_10 = arith.constant 0 : index
    %c0_11 = arith.constant 0 : index
    %11 = vector.load %arg7[%c0_9, %c0_10, %c0_11] : memref<9x32x64xf32, #tpu.memory_space<vmem>>, vector<1x32x64xf32>
    %12 = vector.shape_cast %11 : vector<1x32x64xf32> to vector<32x64xf32>
    %cst_12 = arith.constant dense<0.000000e+00> : vector<128x64xf32>
    %13 = tpu.matmul %10, %12, %cst_12 {dimension_numbers = #tpu.dot_dimension_numbers<[1], [0], [0], [1], [0, 0, 1, 1], [], []>} : vector<128x32xf32>, vector<32x64xf32>, vector<128x64xf32> -> vector<128x64xf32>
    %14 = vector.extract_strided_slice %9 {offsets = [128, 0], sizes = [128, 32], strides = [1, 1]} : vector<1152x32xf32> to vector<128x32xf32>
    %c1 = arith.constant 1 : index
    %c0_13 = arith.constant 0 : index
    %c0_14 = arith.constant 0 : index
    %15 = vector.load %arg7[%c1, %c0_13, %c0_14] : memref<9x32x64xf32, #tpu.memory_space<vmem>>, vector<1x32x64xf32>
    %16 = vector.shape_cast %15 : vector<1x32x64xf32> to vector<32x64xf32>
    %cst_15 = arith.constant dense<0.000000e+00> : vector<128x64xf32>
    %17 = tpu.matmul %14, %16, %cst_15 {dimension_numbers = #tpu.dot_dimension_numbers<[1], [0], [0], [1], [0, 0, 1, 1], [], []>} : vector<128x32xf32>, vector<32x64xf32>, vector<128x64xf32> -> vector<128x64xf32>
    %18 = arith.addf %13, %17 : vector<128x64xf32>
    %19 = vector.extract_strided_slice %9 {offsets = [256, 0], sizes = [128, 32], strides = [1, 1]} : vector<1152x32xf32> to vector<128x32xf32>
    %c2 = arith.constant 2 : index
    %c0_16 = arith.constant 0 : index
    %c0_17 = arith.constant 0 : index
    %20 = vector.load %arg7[%c2, %c0_16, %c0_17] : memref<9x32x64xf32, #tpu.memory_space<vmem>>, vector<1x32x64xf32>
    %21 = vector.shape_cast %20 : vector<1x32x64xf32> to vector<32x64xf32>
    %cst_18 = arith.constant dense<0.000000e+00> : vector<128x64xf32>
    %22 = tpu.matmul %19, %21, %cst_18 {dimension_numbers = #tpu.dot_dimension_numbers<[1], [0], [0], [1], [0, 0, 1, 1], [], []>} : vector<128x32xf32>, vector<32x64xf32>, vector<128x64xf32> -> vector<128x64xf32>
    %23 = arith.addf %18, %22 : vector<128x64xf32>
    %24 = vector.extract_strided_slice %9 {offsets = [384, 0], sizes = [128, 32], strides = [1, 1]} : vector<1152x32xf32> to vector<128x32xf32>
    %c3 = arith.constant 3 : index
    %c0_19 = arith.constant 0 : index
    %c0_20 = arith.constant 0 : index
    %25 = vector.load %arg7[%c3, %c0_19, %c0_20] : memref<9x32x64xf32, #tpu.memory_space<vmem>>, vector<1x32x64xf32>
    %26 = vector.shape_cast %25 : vector<1x32x64xf32> to vector<32x64xf32>
    %cst_21 = arith.constant dense<0.000000e+00> : vector<128x64xf32>
    %27 = tpu.matmul %24, %26, %cst_21 {dimension_numbers = #tpu.dot_dimension_numbers<[1], [0], [0], [1], [0, 0, 1, 1], [], []>} : vector<128x32xf32>, vector<32x64xf32>, vector<128x64xf32> -> vector<128x64xf32>
    %28 = arith.addf %23, %27 : vector<128x64xf32>
    %29 = vector.extract_strided_slice %9 {offsets = [512, 0], sizes = [128, 32], strides = [1, 1]} : vector<1152x32xf32> to vector<128x32xf32>
    %c4 = arith.constant 4 : index
    %c0_22 = arith.constant 0 : index
    %c0_23 = arith.constant 0 : index
    %30 = vector.load %arg7[%c4, %c0_22, %c0_23] : memref<9x32x64xf32, #tpu.memory_space<vmem>>, vector<1x32x64xf32>
    %31 = vector.shape_cast %30 : vector<1x32x64xf32> to vector<32x64xf32>
    %cst_24 = arith.constant dense<0.000000e+00> : vector<128x64xf32>
    %32 = tpu.matmul %29, %31, %cst_24 {dimension_numbers = #tpu.dot_dimension_numbers<[1], [0], [0], [1], [0, 0, 1, 1], [], []>} : vector<128x32xf32>, vector<32x64xf32>, vector<128x64xf32> -> vector<128x64xf32>
    %33 = arith.addf %28, %32 : vector<128x64xf32>
    %34 = vector.extract_strided_slice %9 {offsets = [640, 0], sizes = [128, 32], strides = [1, 1]} : vector<1152x32xf32> to vector<128x32xf32>
    %c5 = arith.constant 5 : index
    %c0_25 = arith.constant 0 : index
    %c0_26 = arith.constant 0 : index
    %35 = vector.load %arg7[%c5, %c0_25, %c0_26] : memref<9x32x64xf32, #tpu.memory_space<vmem>>, vector<1x32x64xf32>
    %36 = vector.shape_cast %35 : vector<1x32x64xf32> to vector<32x64xf32>
    %cst_27 = arith.constant dense<0.000000e+00> : vector<128x64xf32>
    %37 = tpu.matmul %34, %36, %cst_27 {dimension_numbers = #tpu.dot_dimension_numbers<[1], [0], [0], [1], [0, 0, 1, 1], [], []>} : vector<128x32xf32>, vector<32x64xf32>, vector<128x64xf32> -> vector<128x64xf32>
    %38 = arith.addf %33, %37 : vector<128x64xf32>
    %39 = vector.extract_strided_slice %9 {offsets = [768, 0], sizes = [128, 32], strides = [1, 1]} : vector<1152x32xf32> to vector<128x32xf32>
    %c6 = arith.constant 6 : index
    %c0_28 = arith.constant 0 : index
    %c0_29 = arith.constant 0 : index
    %40 = vector.load %arg7[%c6, %c0_28, %c0_29] : memref<9x32x64xf32, #tpu.memory_space<vmem>>, vector<1x32x64xf32>
    %41 = vector.shape_cast %40 : vector<1x32x64xf32> to vector<32x64xf32>
    %cst_30 = arith.constant dense<0.000000e+00> : vector<128x64xf32>
    %42 = tpu.matmul %39, %41, %cst_30 {dimension_numbers = #tpu.dot_dimension_numbers<[1], [0], [0], [1], [0, 0, 1, 1], [], []>} : vector<128x32xf32>, vector<32x64xf32>, vector<128x64xf32> -> vector<128x64xf32>
    %43 = arith.addf %38, %42 : vector<128x64xf32>
    %44 = vector.extract_strided_slice %9 {offsets = [896, 0], sizes = [128, 32], strides = [1, 1]} : vector<1152x32xf32> to vector<128x32xf32>
    %c7 = arith.constant 7 : index
    %c0_31 = arith.constant 0 : index
    %c0_32 = arith.constant 0 : index
    %45 = vector.load %arg7[%c7, %c0_31, %c0_32] : memref<9x32x64xf32, #tpu.memory_space<vmem>>, vector<1x32x64xf32>
    %46 = vector.shape_cast %45 : vector<1x32x64xf32> to vector<32x64xf32>
    %cst_33 = arith.constant dense<0.000000e+00> : vector<128x64xf32>
    %47 = tpu.matmul %44, %46, %cst_33 {dimension_numbers = #tpu.dot_dimension_numbers<[1], [0], [0], [1], [0, 0, 1, 1], [], []>} : vector<128x32xf32>, vector<32x64xf32>, vector<128x64xf32> -> vector<128x64xf32>
    %48 = arith.addf %43, %47 : vector<128x64xf32>
    %49 = vector.extract_strided_slice %9 {offsets = [1024, 0], sizes = [128, 32], strides = [1, 1]} : vector<1152x32xf32> to vector<128x32xf32>
    %c8 = arith.constant 8 : index
    %c0_34 = arith.constant 0 : index
    %c0_35 = arith.constant 0 : index
    %50 = vector.load %arg7[%c8, %c0_34, %c0_35] : memref<9x32x64xf32, #tpu.memory_space<vmem>>, vector<1x32x64xf32>
    %51 = vector.shape_cast %50 : vector<1x32x64xf32> to vector<32x64xf32>
    %cst_36 = arith.constant dense<0.000000e+00> : vector<128x64xf32>
    %52 = tpu.matmul %49, %51, %cst_36 {dimension_numbers = #tpu.dot_dimension_numbers<[1], [0], [0], [1], [0, 0, 1, 1], [], []>} : vector<128x32xf32>, vector<32x64xf32>, vector<128x64xf32> -> vector<128x64xf32>
    %53 = arith.addf %48, %52 : vector<128x64xf32>
    %c0_37 = arith.constant 0 : index
    %c0_38 = arith.constant 0 : index
    %54 = vector.load %arg8[%c0_37, %c0_38] : memref<1x64xf32, #tpu.memory_space<vmem>>, vector<1x64xf32>
    %55 = vector.broadcast %54 : vector<1x64xf32> to vector<128x64xf32>
    %56 = arith.addf %53, %55 : vector<128x64xf32>
    %cst_39 = arith.constant 0.000000e+00 : f32
    %57 = vector.broadcast %cst_39 : f32 to vector<128x64xf32>
    %58 = arith.maximumf %56, %57 : vector<128x64xf32>
    %c0_40 = arith.constant 0 : index
    %c0_41 = arith.constant 0 : index
    %59 = vector.load %arg3[%c0_40, %c0_41] : memref<576x128xf32, #tpu.memory_space<vmem>>, vector<576x128xf32>
    %cst_42 = arith.constant dense<0.000000e+00> : vector<576x64xf32>
    %60 = tpu.matmul %59, %58, %cst_42 {dimension_numbers = #tpu.dot_dimension_numbers<[1], [0], [0], [1], [0, 0, 1, 1], [], []>} : vector<576x128xf32>, vector<128x64xf32>, vector<576x64xf32> -> vector<576x64xf32>
    %61 = vector.extract_strided_slice %60 {offsets = [0, 0], sizes = [64, 64], strides = [1, 1]} : vector<576x64xf32> to vector<64x64xf32>
    %c0_43 = arith.constant 0 : index
    %c0_44 = arith.constant 0 : index
    %c0_45 = arith.constant 0 : index
    %62 = vector.load %arg9[%c0_43, %c0_44, %c0_45] : memref<9x64x128xf32, #tpu.memory_space<vmem>>, vector<1x64x128xf32>
    %63 = vector.shape_cast %62 : vector<1x64x128xf32> to vector<64x128xf32>
    %cst_46 = arith.constant dense<0.000000e+00> : vector<64x128xf32>
    %64 = tpu.matmul %61, %63, %cst_46 {dimension_numbers = #tpu.dot_dimension_numbers<[1], [0], [0], [1], [0, 0, 1, 1], [], []>} : vector<64x64xf32>, vector<64x128xf32>, vector<64x128xf32> -> vector<64x128xf32>
    %65 = vector.extract_strided_slice %60 {offsets = [64, 0], sizes = [64, 64], strides = [1, 1]} : vector<576x64xf32> to vector<64x64xf32>
    %c1_47 = arith.constant 1 : index
    %c0_48 = arith.constant 0 : index
    %c0_49 = arith.constant 0 : index
    %66 = vector.load %arg9[%c1_47, %c0_48, %c0_49] : memref<9x64x128xf32, #tpu.memory_space<vmem>>, vector<1x64x128xf32>
    %67 = vector.shape_cast %66 : vector<1x64x128xf32> to vector<64x128xf32>
    %cst_50 = arith.constant dense<0.000000e+00> : vector<64x128xf32>
    %68 = tpu.matmul %65, %67, %cst_50 {dimension_numbers = #tpu.dot_dimension_numbers<[1], [0], [0], [1], [0, 0, 1, 1], [], []>} : vector<64x64xf32>, vector<64x128xf32>, vector<64x128xf32> -> vector<64x128xf32>
    %69 = arith.addf %64, %68 : vector<64x128xf32>
    %70 = vector.extract_strided_slice %60 {offsets = [128, 0], sizes = [64, 64], strides = [1, 1]} : vector<576x64xf32> to vector<64x64xf32>
    %c2_51 = arith.constant 2 : index
    %c0_52 = arith.constant 0 : index
    %c0_53 = arith.constant 0 : index
    %71 = vector.load %arg9[%c2_51, %c0_52, %c0_53] : memref<9x64x128xf32, #tpu.memory_space<vmem>>, vector<1x64x128xf32>
    %72 = vector.shape_cast %71 : vector<1x64x128xf32> to vector<64x128xf32>
    %cst_54 = arith.constant dense<0.000000e+00> : vector<64x128xf32>
    %73 = tpu.matmul %70, %72, %cst_54 {dimension_numbers = #tpu.dot_dimension_numbers<[1], [0], [0], [1], [0, 0, 1, 1], [], []>} : vector<64x64xf32>, vector<64x128xf32>, vector<64x128xf32> -> vector<64x128xf32>
    %74 = arith.addf %69, %73 : vector<64x128xf32>
    %75 = vector.extract_strided_slice %60 {offsets = [192, 0], sizes = [64, 64], strides = [1, 1]} : vector<576x64xf32> to vector<64x64xf32>
    %c3_55 = arith.constant 3 : index
    %c0_56 = arith.constant 0 : index
    %c0_57 = arith.constant 0 : index
    %76 = vector.load %arg9[%c3_55, %c0_56, %c0_57] : memref<9x64x128xf32, #tpu.memory_space<vmem>>, vector<1x64x128xf32>
    %77 = vector.shape_cast %76 : vector<1x64x128xf32> to vector<64x128xf32>
    %cst_58 = arith.constant dense<0.000000e+00> : vector<64x128xf32>
    %78 = tpu.matmul %75, %77, %cst_58 {dimension_numbers = #tpu.dot_dimension_numbers<[1], [0], [0], [1], [0, 0, 1, 1], [], []>} : vector<64x64xf32>, vector<64x128xf32>, vector<64x128xf32> -> vector<64x128xf32>
    %79 = arith.addf %74, %78 : vector<64x128xf32>
    %80 = vector.extract_strided_slice %60 {offsets = [256, 0], sizes = [64, 64], strides = [1, 1]} : vector<576x64xf32> to vector<64x64xf32>
    %c4_59 = arith.constant 4 : index
    %c0_60 = arith.constant 0 : index
    %c0_61 = arith.constant 0 : index
    %81 = vector.load %arg9[%c4_59, %c0_60, %c0_61] : memref<9x64x128xf32, #tpu.memory_space<vmem>>, vector<1x64x128xf32>
    %82 = vector.shape_cast %81 : vector<1x64x128xf32> to vector<64x128xf32>
    %cst_62 = arith.constant dense<0.000000e+00> : vector<64x128xf32>
    %83 = tpu.matmul %80, %82, %cst_62 {dimension_numbers = #tpu.dot_dimension_numbers<[1], [0], [0], [1], [0, 0, 1, 1], [], []>} : vector<64x64xf32>, vector<64x128xf32>, vector<64x128xf32> -> vector<64x128xf32>
    %84 = arith.addf %79, %83 : vector<64x128xf32>
    %85 = vector.extract_strided_slice %60 {offsets = [320, 0], sizes = [64, 64], strides = [1, 1]} : vector<576x64xf32> to vector<64x64xf32>
    %c5_63 = arith.constant 5 : index
    %c0_64 = arith.constant 0 : index
    %c0_65 = arith.constant 0 : index
    %86 = vector.load %arg9[%c5_63, %c0_64, %c0_65] : memref<9x64x128xf32, #tpu.memory_space<vmem>>, vector<1x64x128xf32>
    %87 = vector.shape_cast %86 : vector<1x64x128xf32> to vector<64x128xf32>
    %cst_66 = arith.constant dense<0.000000e+00> : vector<64x128xf32>
    %88 = tpu.matmul %85, %87, %cst_66 {dimension_numbers = #tpu.dot_dimension_numbers<[1], [0], [0], [1], [0, 0, 1, 1], [], []>} : vector<64x64xf32>, vector<64x128xf32>, vector<64x128xf32> -> vector<64x128xf32>
    %89 = arith.addf %84, %88 : vector<64x128xf32>
    %90 = vector.extract_strided_slice %60 {offsets = [384, 0], sizes = [64, 64], strides = [1, 1]} : vector<576x64xf32> to vector<64x64xf32>
    %c6_67 = arith.constant 6 : index
    %c0_68 = arith.constant 0 : index
    %c0_69 = arith.constant 0 : index
    %91 = vector.load %arg9[%c6_67, %c0_68, %c0_69] : memref<9x64x128xf32, #tpu.memory_space<vmem>>, vector<1x64x128xf32>
    %92 = vector.shape_cast %91 : vector<1x64x128xf32> to vector<64x128xf32>
    %cst_70 = arith.constant dense<0.000000e+00> : vector<64x128xf32>
    %93 = tpu.matmul %90, %92, %cst_70 {dimension_numbers = #tpu.dot_dimension_numbers<[1], [0], [0], [1], [0, 0, 1, 1], [], []>} : vector<64x64xf32>, vector<64x128xf32>, vector<64x128xf32> -> vector<64x128xf32>
    %94 = arith.addf %89, %93 : vector<64x128xf32>
    %95 = vector.extract_strided_slice %60 {offsets = [448, 0], sizes = [64, 64], strides = [1, 1]} : vector<576x64xf32> to vector<64x64xf32>
    %c7_71 = arith.constant 7 : index
    %c0_72 = arith.constant 0 : index
    %c0_73 = arith.constant 0 : index
    %96 = vector.load %arg9[%c7_71, %c0_72, %c0_73] : memref<9x64x128xf32, #tpu.memory_space<vmem>>, vector<1x64x128xf32>
    %97 = vector.shape_cast %96 : vector<1x64x128xf32> to vector<64x128xf32>
    %cst_74 = arith.constant dense<0.000000e+00> : vector<64x128xf32>
    %98 = tpu.matmul %95, %97, %cst_74 {dimension_numbers = #tpu.dot_dimension_numbers<[1], [0], [0], [1], [0, 0, 1, 1], [], []>} : vector<64x64xf32>, vector<64x128xf32>, vector<64x128xf32> -> vector<64x128xf32>
    %99 = arith.addf %94, %98 : vector<64x128xf32>
    %100 = vector.extract_strided_slice %60 {offsets = [512, 0], sizes = [64, 64], strides = [1, 1]} : vector<576x64xf32> to vector<64x64xf32>
    %c8_75 = arith.constant 8 : index
    %c0_76 = arith.constant 0 : index
    %c0_77 = arith.constant 0 : index
    %101 = vector.load %arg9[%c8_75, %c0_76, %c0_77] : memref<9x64x128xf32, #tpu.memory_space<vmem>>, vector<1x64x128xf32>
    %102 = vector.shape_cast %101 : vector<1x64x128xf32> to vector<64x128xf32>
    %cst_78 = arith.constant dense<0.000000e+00> : vector<64x128xf32>
    %103 = tpu.matmul %100, %102, %cst_78 {dimension_numbers = #tpu.dot_dimension_numbers<[1], [0], [0], [1], [0, 0, 1, 1], [], []>} : vector<64x64xf32>, vector<64x128xf32>, vector<64x128xf32> -> vector<64x128xf32>
    %104 = arith.addf %99, %103 : vector<64x128xf32>
    %c0_79 = arith.constant 0 : index
    %c0_80 = arith.constant 0 : index
    %105 = vector.load %arg10[%c0_79, %c0_80] : memref<1x128xf32, #tpu.memory_space<vmem>>, vector<1x128xf32>
    %106 = vector.broadcast %105 : vector<1x128xf32> to vector<64x128xf32>
    %107 = arith.addf %104, %106 : vector<64x128xf32>
    %cst_81 = arith.constant 0.000000e+00 : f32
    %108 = vector.broadcast %cst_81 : f32 to vector<64x128xf32>
    %109 = arith.maximumf %107, %108 : vector<64x128xf32>
    %c0_82 = arith.constant 0 : index
    %c0_83 = arith.constant 0 : index
    %110 = vector.load %arg4[%c0_82, %c0_83] : memref<8x64xf32, #tpu.memory_space<vmem>>, vector<8x64xf32>
    %cst_84 = arith.constant dense<0.000000e+00> : vector<8x128xf32>
    %111 = tpu.matmul %110, %109, %cst_84 {dimension_numbers = #tpu.dot_dimension_numbers<[1], [0], [0], [1], [0, 0, 1, 1], [], []>} : vector<8x64xf32>, vector<64x128xf32>, vector<8x128xf32> -> vector<8x128xf32>
    %c0_85 = arith.constant 0 : index
    %c0_86 = arith.constant 0 : index
    %112 = vector.load %arg11[%c0_85, %c0_86] : memref<128x256xf32, #tpu.memory_space<vmem>>, vector<128x256xf32>
    %cst_87 = arith.constant dense<0.000000e+00> : vector<8x256xf32>
    %113 = tpu.matmul %111, %112, %cst_87 {dimension_numbers = #tpu.dot_dimension_numbers<[1], [0], [0], [1], [0, 0, 1, 1], [], []>} : vector<8x128xf32>, vector<128x256xf32>, vector<8x256xf32> -> vector<8x256xf32>
    %c0_88 = arith.constant 0 : index
    %c0_89 = arith.constant 0 : index
    %114 = vector.load %arg12[%c0_88, %c0_89] : memref<1x256xf32, #tpu.memory_space<vmem>>, vector<1x256xf32>
    %115 = vector.broadcast %114 : vector<1x256xf32> to vector<8x256xf32>
    %116 = arith.addf %113, %115 : vector<8x256xf32>
    %117 = vector.extract_strided_slice %116 {offsets = [0, 0], sizes = [8, 128], strides = [1, 1]} : vector<8x256xf32> to vector<8x128xf32>
    %118 = arith.mulf %117, %117 : vector<8x128xf32>
    %cst_90 = arith.constant dense<0.000000e+00> : vector<8xf32>
    %119 = vector.multi_reduction <add>, %118, %cst_90 [1] : vector<8x128xf32> to vector<8xf32>
    %120 = vector.shape_cast %119 : vector<8xf32> to vector<8x1xf32>
    %cst_91 = arith.constant 1.000000e-24 : f32
    %121 = vector.broadcast %cst_91 : f32 to vector<8x1xf32>
    %122 = arith.maximumf %120, %121 : vector<8x1xf32>
    %123 = math.rsqrt %122 : vector<8x1xf32>
    %124 = vector.broadcast %123 : vector<8x1xf32> to vector<8x128xf32>
    %125 = arith.mulf %117, %124 : vector<8x128xf32>
    %c0_92 = arith.constant 0 : index
    %c0_93 = arith.constant 0 : index
    %126 = vector.load %arg13[%c0_92, %c0_93] : memref<8x256xf32, #tpu.memory_space<vmem>>, vector<8x128xf32>
    tpu.vector_store %arg13[%c0_92, %c0_93], %125 {strides = array<i32>} : memref<8x256xf32, #tpu.memory_space<vmem>>, vector<8x128xf32>,
    %127 = vector.extract_strided_slice %116 {offsets = [0, 128], sizes = [8, 128], strides = [1, 1]} : vector<8x256xf32> to vector<8x128xf32>
    %c0_94 = arith.constant 0 : index
    %c128 = arith.constant 128 : index
    %128 = vector.load %arg13[%c0_94, %c128] : memref<8x256xf32, #tpu.memory_space<vmem>>, vector<8x128xf32>
    tpu.vector_store %arg13[%c0_94, %c128], %127 {strides = array<i32>} : memref<8x256xf32, #tpu.memory_space<vmem>>, vector<8x128xf32>,
    return
  }
  func.func @transform_0(%arg0: i32) -> (i32, i32) {
    %c0_i32 = arith.constant 0 : i32
    %c0_i32_0 = arith.constant 0 : i32
    return %arg0, %c0_i32 : i32, i32
  }
  func.func @transform_1(%arg0: i32) -> (i32, i32) {
    %c0_i32 = arith.constant 0 : i32
    %c0_i32_0 = arith.constant 0 : i32
    %c0_i32_1 = arith.constant 0 : i32
    return %c0_i32, %c0_i32_0 : i32, i32
  }
  func.func @transform_2(%arg0: i32) -> (i32, i32) {
    %c0_i32 = arith.constant 0 : i32
    %c0_i32_0 = arith.constant 0 : i32
    %c0_i32_1 = arith.constant 0 : i32
    return %c0_i32, %c0_i32_0 : i32, i32
  }
  func.func @transform_3(%arg0: i32) -> (i32, i32) {
    %c0_i32 = arith.constant 0 : i32
    %c0_i32_0 = arith.constant 0 : i32
    %c0_i32_1 = arith.constant 0 : i32
    return %c0_i32, %c0_i32_0 : i32, i32
  }
  func.func @transform_4(%arg0: i32) -> (i32, i32) {
    %c0_i32 = arith.constant 0 : i32
    %c0_i32_0 = arith.constant 0 : i32
    %c0_i32_1 = arith.constant 0 : i32
    return %c0_i32, %c0_i32_0 : i32, i32
  }
  func.func @transform_5(%arg0: i32) -> (i32, i32) {
    %c0_i32 = arith.constant 0 : i32
    %c0_i32_0 = arith.constant 0 : i32
    %c0_i32_1 = arith.constant 0 : i32
    return %c0_i32, %c0_i32_0 : i32, i32
  }
  func.func @transform_6(%arg0: i32) -> (i32, i32, i32) {
    %c0_i32 = arith.constant 0 : i32
    %c0_i32_0 = arith.constant 0 : i32
    %c0_i32_1 = arith.constant 0 : i32
    %c0_i32_2 = arith.constant 0 : i32
    return %c0_i32, %c0_i32_0, %c0_i32_1 : i32, i32, i32
  }
  func.func @transform_7(%arg0: i32) -> (i32, i32) {
    %c0_i32 = arith.constant 0 : i32
    %c0_i32_0 = arith.constant 0 : i32
    %c0_i32_1 = arith.constant 0 : i32
    return %c0_i32, %c0_i32_0 : i32, i32
  }
  func.func @transform_8(%arg0: i32) -> (i32, i32, i32) {
    %c0_i32 = arith.constant 0 : i32
    %c0_i32_0 = arith.constant 0 : i32
    %c0_i32_1 = arith.constant 0 : i32
    %c0_i32_2 = arith.constant 0 : i32
    return %c0_i32, %c0_i32_0, %c0_i32_1 : i32, i32, i32
  }
  func.func @transform_9(%arg0: i32) -> (i32, i32) {
    %c0_i32 = arith.constant 0 : i32
    %c0_i32_0 = arith.constant 0 : i32
    %c0_i32_1 = arith.constant 0 : i32
    return %c0_i32, %c0_i32_0 : i32, i32
  }
  func.func @transform_10(%arg0: i32) -> (i32, i32) {
    %c0_i32 = arith.constant 0 : i32
    %c0_i32_0 = arith.constant 0 : i32
    %c0_i32_1 = arith.constant 0 : i32
    return %c0_i32, %c0_i32_0 : i32, i32
  }
  func.func @transform_11(%arg0: i32) -> (i32, i32) {
    %c0_i32 = arith.constant 0 : i32
    %c0_i32_0 = arith.constant 0 : i32
    %c0_i32_1 = arith.constant 0 : i32
    return %c0_i32, %c0_i32_0 : i32, i32
  }
  func.func @transform_12(%arg0: i32) -> (i32, i32) {
    %c0_i32 = arith.constant 0 : i32
    %c0_i32_0 = arith.constant 0 : i32
    return %arg0, %c0_i32 : i32, i32
  }
}

</mosaic_0001>

<llo_original>
// kernel: water_encoder_forward.1
$region0: #{water_encoder_forward.1}
  #allocation0 [shape = 'u32[]', space=smem, size = 0x4, offset = 0x4, fixed_abs, tag = 'smem constant byte address 0x4 - core index']
  #allocation1 [shape = 'u32[144,128]{1,0:T(1,128)}', space=vmem, size = 0x12000, scoped, tag = 'internal scratch']
  %s0 = inlined_call_operand.vmem [shape: f32[1024,9], index: 0, kind: input, shape index: {}]
  %s1 = inlined_call_operand.vmem [shape: f32[1152,512], index: 1, kind: input, shape index: {}]
  %s2 = inlined_call_operand.vmem [shape: f32[576,128], index: 2, kind: input, shape index: {}]
  %s3 = inlined_call_operand.vmem [shape: f32[8,64], index: 3, kind: input, shape index: {}]
  %s4 = inlined_call_operand.vmem [shape: f32[9,32], index: 4, kind: input, shape index: {}]
  %s5 = inlined_call_operand.vmem [shape: f32[1,32], index: 5, kind: input, shape index: {}]
  %s6 = inlined_call_operand.vmem [shape: f32[9,32,64], index: 6, kind: input, shape index: {}]
  %s7 = inlined_call_operand.vmem [shape: f32[1,64], index: 7, kind: input, shape index: {}]
  %s8 = inlined_call_operand.vmem [shape: f32[9,64,128], index: 8, kind: input, shape index: {}]
  %s9 = inlined_call_operand.vmem [shape: f32[1,128], index: 9, kind: input, shape index: {}]
  %s10 = inlined_call_operand.vmem [shape: f32[128,256], index: 10, kind: input, shape index: {}]
  %s11 = inlined_call_operand.vmem [shape: f32[1,256], index: 11, kind: input, shape index: {}]
  %s12 = inlined_call_operand.vmem [shape: f32[16,256], index: 12, kind: output, shape index: {}]
  %s13 = sld [smem:[#allocation0]]
  $region81: #{water_encoder_forward.1} parent=0
    _
  %s15 = ssub.s32 1, %s13
  %s16 = scalar_select 0, %s15, %s13
  loop: start=0, step=1, limit=4
  $region2: #{water_encoder_forward.1} parent=0 // loop_pre_header
    _
  $region3: #{water_encoder_forward.1} parent=0 // loop_header
    %s18 = sphi 0, %s22
    %p19 = scmp.ge.s32.totalorder %s18, 4
    %s28 = sphi 0, %s30
    %s31 = sphi 0, %s28
    %s32 = sphi 0, %s31
    %s48 = sphi 0, %s32
    %s52 = sphi 0, %s52
    %s54 = sphi 0, %s52
    %s55 = sphi 0, %s54
    %s69 = sphi 0, %s55
    %s73 = sphi 0, %s73
    %s75 = sphi 0, %s73
    %s76 = sphi 0, %s75
    %s90 = sphi 0, %s76
    %s94 = sphi 0, %s94
    %s96 = sphi 0, %s94
    %s97 = sphi 0, %s96
    %s111 = sphi 0, %s97
    %s115 = sphi 0, %s115
    %s117 = sphi 0, %s115
    %s118 = sphi 0, %s117
    %s132 = sphi 0, %s118
    %s136 = sphi 0, %s136
    %s138 = sphi 0, %s136
    %s139 = sphi 0, %s138
    %s153 = sphi 0, %s139
    %s157 = sphi 0, %s157
    %s159 = sphi 0, %s157
    %s160 = sphi 0, %s159
    %s174 = sphi 0, %s160
    %s178 = sphi 0, %s178
    %s180 = sphi 0, %s178
    %s181 = sphi 0, %s180
    %s195 = sphi 0, %s181
    %s199 = sphi 0, %s199
    %s201 = sphi 0, %s199
    %s202 = sphi 0, %s201
    %s216 = sphi 0, %s202
    %s220 = sphi 0, %s220
    %s222 = sphi 0, %s220
    %s223 = sphi 0, %s222
    %s237 = sphi 0, %s223
    %s241 = sphi 0, %s241
    %s243 = sphi 0, %s241
    %s244 = sphi 0, %s243
    %s258 = sphi 0, %s244
    %s262 = sphi 0, %s262
    %s264 = sphi 0, %s262
    %s265 = sphi 0, %s264
    %s279 = sphi 0, %s265
    %s285 = sphi 0, %s287
    %s288 = sphi 0, %s285
    %s289 = sphi 0, %s288
    %s305 = sphi 0, %s289
  $region4: #{water_encoder_forward.1} parent=0 // loop_header_branch
    %21 = sbr.rel (%p19) target = $region8
  $region5: #{water_encoder_forward.1} parent=0 // loop_body
    %s23 = ssub.s32 %s18, 1
    %s24 = ssub.s32 %s18, 2
    %s25 = sadd.s32 %s18, 1
    %s26 = ssub.s32 %s18, %s25
    %p27 = scmp.eq.s32.totalorder %s26, 0
    %s29 = sadd.s32 %s28, 1
    %s30 = scalar_select %p27, %s28, %s29
    %p33 = pneg %p27
    %p34 = scmp.eq.s32.totalorder %s18, 1
    %p35 = por %p33, %p34
    %p36 = scmp.ne.s32.totalorder %s28, %s31
    %p37 = scmp.eq.s32.totalorder %s18, 0
    %p38 = por %p36, %p37
    %p39 = scmp.ne.s32.totalorder %s28, %s31
    %p40 = scmp.eq.s32.totalorder %s23, 1
    %p41 = por %p39, %p40
    %p42 = scmp.ne.s32.totalorder %s31, %s32
    %p43 = scmp.eq.s32.totalorder %s23, 0
    %p44 = por %p42, %p43
    %p45 = scmp.ne.s32.totalorder %s31, %s32
    %p46 = scmp.eq.s32.totalorder %s24, 1
    %p47 = por %p45, %p46
    %p49 = scmp.ne.s32.totalorder %s32, %s48
    %p50 = scmp.eq.s32.totalorder %s24, 0
    %p51 = por %p49, %p50
    %s53 = sadd.s32 %s52, 1
    %p56 = scmp.eq.s32.totalorder %s18, 1
    %p57 = scmp.ne.s32.totalorder %s52, %s54
    %p58 = scmp.eq.s32.totalorder %s18, 0
    %p59 = por %p57, %p58
    %p60 = scmp.ne.s32.totalorder %s52, %s54
    %p61 = scmp.eq.s32.totalorder %s23, 1
    %p62 = por %p60, %p61
    %p63 = scmp.ne.s32.totalorder %s54, %s55
    %p64 = scmp.eq.s32.totalorder %s23, 0
    %p65 = por %p63, %p64
    %p66 = scmp.ne.s32.totalorder %s54, %s55
    %p67 = scmp.eq.s32.totalorder %s24, 1
    %p68 = por %p66, %p67
    %p70 = scmp.ne.s32.totalorder %s55, %s69
    %p71 = scmp.eq.s32.totalorder %s24, 0
    %p72 = por %p70, %p71
    %s74 = sadd.s32 %s73, 1
    %p77 = scmp.eq.s32.totalorder %s18, 1
    %p78 = scmp.ne.s32.totalorder %s73, %s75
    %p79 = scmp.eq.s32.totalorder %s18, 0
    %p80 = por %p78, %p79
    %p81 = scmp.ne.s32.totalorder %s73, %s75
    %p82 = scmp.eq.s32.totalorder %s23, 1
    %p83 = por %p81, %p82
    %p84 = scmp.ne.s32.totalorder %s75, %s76
    %p85 = scmp.eq.s32.totalorder %s23, 0
    %p86 = por %p84, %p85
    %p87 = scmp.ne.s32.totalorder %s75, %s76
    %p88 = scmp.eq.s32.totalorder %s24, 1
    %p89 = por %p87, %p88
    %p91 = scmp.ne.s32.totalorder %s76, %s90
    %p92 = scmp.eq.s32.totalorder %s24, 0
    %p93 = por %p91, %p92
    %s95 = sadd.s32 %s94, 1
    %p98 = scmp.eq.s32.totalorder %s18, 1
    %p99 = scmp.ne.s32.totalorder %s94, %s96
    %p100 = scmp.eq.s32.totalorder %s18, 0
    %p101 = por %p99, %p100
    %p102 = scmp.ne.s32.totalorder %s94, %s96
    %p103 = scmp.eq.s32.totalorder %s23, 1
    %p104 = por %p102, %p103
    %p105 = scmp.ne.s32.totalorder %s96, %s97
    %p106 = scmp.eq.s32.totalorder %s23, 0
    %p107 = por %p105, %p106
    %p108 = scmp.ne.s32.totalorder %s96, %s97
    %p109 = scmp.eq.s32.totalorder %s24, 1
    %p110 = por %p108, %p109
    %p112 = scmp.ne.s32.totalorder %s97, %s111
    %p113 = scmp.eq.s32.totalorder %s24, 0
    %p114 = por %p112, %p113
    %s116 = sadd.s32 %s115, 1
    %p119 = scmp.eq.s32.totalorder %s18, 1
    %p120 = scmp.ne.s32.totalorder %s115, %s117
    %p121 = scmp.eq.s32.totalorder %s18, 0
    %p122 = por %p120, %p121
    %p123 = scmp.ne.s32.totalorder %s115, %s117
    %p124 = scmp.eq.s32.totalorder %s23, 1
    %p125 = por %p123, %p124
    %p126 = scmp.ne.s32.totalorder %s117, %s118
    %p127 = scmp.eq.s32.totalorder %s23, 0
    %p128 = por %p126, %p127
    %p129 = scmp.ne.s32.totalorder %s117, %s118
    %p130 = scmp.eq.s32.totalorder %s24, 1
    %p131 = por %p129, %p130
    %p133 = scmp.ne.s32.totalorder %s118, %s132
    %p134 = scmp.eq.s32.totalorder %s24, 0
    %p135 = por %p133, %p134
    %s137 = sadd.s32 %s136, 1
    %p140 = scmp.eq.s32.totalorder %s18, 1
    %p141 = scmp.ne.s32.totalorder %s136, %s138
    %p142 = scmp.eq.s32.totalorder %s18, 0
    %p143 = por %p141, %p142
    %p144 = scmp.ne.s32.totalorder %s136, %s138
    %p145 = scmp.eq.s32.totalorder %s23, 1
    %p146 = por %p144, %p145
    %p147 = scmp.ne.s32.totalorder %s138, %s139
    %p148 = scmp.eq.s32.totalorder %s23, 0
    %p149 = por %p147, %p148
    %p150 = scmp.ne.s32.totalorder %s138, %s139
    %p151 = scmp.eq.s32.totalorder %s24, 1
    %p152 = por %p150, %p151
    %p154 = scmp.ne.s32.totalorder %s139, %s153
    %p155 = scmp.eq.s32.totalorder %s24, 0
    %p156 = por %p154, %p155
    %s158 = sadd.s32 %s157, 1
    %p161 = scmp.eq.s32.totalorder %s18, 1
    %p162 = scmp.ne.s32.totalorder %s157, %s159
    %p163 = scmp.eq.s32.totalorder %s18, 0
    %p164 = por %p162, %p163
    %p165 = scmp.ne.s32.totalorder %s157, %s159
    %p166 = scmp.eq.s32.totalorder %s23, 1
    %p167 = por %p165, %p166
    %p168 = scmp.ne.s32.totalorder %s159, %s160
    %p169 = scmp.eq.s32.totalorder %s23, 0
    %p170 = por %p168, %p169
    %p171 = scmp.ne.s32.totalorder %s159, %s160
    %p172 = scmp.eq.s32.totalorder %s24, 1
    %p173 = por %p171, %p172
    %p175 = scmp.ne.s32.totalorder %s160, %s174
    %p176 = scmp.eq.s32.totalorder %s24, 0
    %p177 = por %p175, %p176
    %s179 = sadd.s32 %s178, 1
    %p182 = scmp.eq.s32.totalorder %s18, 1
    %p183 = scmp.ne.s32.totalorder %s178, %s180
    %p184 = scmp.eq.s32.totalorder %s18, 0
    %p185 = por %p183, %p184
    %p186 = scmp.ne.s32.totalorder %s178, %s180
    %p187 = scmp.eq.s32.totalorder %s23, 1
    %p188 = por %p186, %p187
    %p189 = scmp.ne.s32.totalorder %s180, %s181
    %p190 = scmp.eq.s32.totalorder %s23, 0
    %p191 = por %p189, %p190
    %p192 = scmp.ne.s32.totalorder %s180, %s181
    %p193 = scmp.eq.s32.totalorder %s24, 1
    %p194 = por %p192, %p193
    %p196 = scmp.ne.s32.totalorder %s181, %s195
    %p197 = scmp.eq.s32.totalorder %s24, 0
    %p198 = por %p196, %p197
    %s200 = sadd.s32 %s199, 1
    %p203 = scmp.eq.s32.totalorder %s18, 1
    %p204 = scmp.ne.s32.totalorder %s199, %s201
    %p205 = scmp.eq.s32.totalorder %s18, 0
    %p206 = por %p204, %p205
    %p207 = scmp.ne.s32.totalorder %s199, %s201
    %p208 = scmp.eq.s32.totalorder %s23, 1
    %p209 = por %p207, %p208
    %p210 = scmp.ne.s32.totalorder %s201, %s202
    %p211 = scmp.eq.s32.totalorder %s23, 0
    %p212 = por %p210, %p211
    %p213 = scmp.ne.s32.totalorder %s201, %s202
    %p214 = scmp.eq.s32.totalorder %s24, 1
    %p215 = por %p213, %p214
    %p217 = scmp.ne.s32.totalorder %s202, %s216
    %p218 = scmp.eq.s32.totalorder %s24, 0
    %p219 = por %p217, %p218
    %s221 = sadd.s32 %s220, 1
    %p224 = scmp.eq.s32.totalorder %s18, 1
    %p225 = scmp.ne.s32.totalorder %s220, %s222
    %p226 = scmp.eq.s32.totalorder %s18, 0
    %p227 = por %p225, %p226
    %p228 = scmp.ne.s32.totalorder %s220, %s222
    %p229 = scmp.eq.s32.totalorder %s23, 1
    %p230 = por %p228, %p229
    %p231 = scmp.ne.s32.totalorder %s222, %s223
    %p232 = scmp.eq.s32.totalorder %s23, 0
    %p233 = por %p231, %p232
    %p234 = scmp.ne.s32.totalorder %s222, %s223
    %p235 = scmp.eq.s32.totalorder %s24, 1
    %p236 = por %p234, %p235
    %p238 = scmp.ne.s32.totalorder %s223, %s237
    %p239 = scmp.eq.s32.totalorder %s24, 0
    %p240 = por %p238, %p239
    %s242 = sadd.s32 %s241, 1
    %p245 = scmp.eq.s32.totalorder %s18, 1
    %p246 = scmp.ne.s32.totalorder %s241, %s243
    %p247 = scmp.eq.s32.totalorder %s18, 0
    %p248 = por %p246, %p247
    %p249 = scmp.ne.s32.totalorder %s241, %s243
    %p250 = scmp.eq.s32.totalorder %s23, 1
    %p251 = por %p249, %p250
    %p252 = scmp.ne.s32.totalorder %s243, %s244
    %p253 = scmp.eq.s32.totalorder %s23, 0
    %p254 = por %p252, %p253
    %p255 = scmp.ne.s32.totalorder %s243, %s244
    %p256 = scmp.eq.s32.totalorder %s24, 1
    %p257 = por %p255, %p256
    %p259 = scmp.ne.s32.totalorder %s244, %s258
    %p260 = scmp.eq.s32.totalorder %s24, 0
    %p261 = por %p259, %p260
    %s263 = sadd.s32 %s262, 1
    %p266 = scmp.eq.s32.totalorder %s18, 1
    %p267 = scmp.ne.s32.totalorder %s262, %s264
    %p268 = scmp.eq.s32.totalorder %s18, 0
    %p269 = por %p267, %p268
    %p270 = scmp.ne.s32.totalorder %s262, %s264
    %p271 = scmp.eq.s32.totalorder %s23, 1
    %p272 = por %p270, %p271
    %p273 = scmp.ne.s32.totalorder %s264, %s265
    %p274 = scmp.eq.s32.totalorder %s23, 0
    %p275 = por %p273, %p274
    %p276 = scmp.ne.s32.totalorder %s264, %s265
    %p277 = scmp.eq.s32.totalorder %s24, 1
    %p278 = por %p276, %p277
    %p280 = scmp.ne.s32.totalorder %s265, %s279
    %p281 = scmp.eq.s32.totalorder %s24, 0
    %p282 = por %p280, %p281
    %s283 = ssub.s32 %s18, %s25
    %p284 = scmp.eq.s32.totalorder %s283, 0
    %s286 = sadd.s32 %s285, 1
    %s287 = scalar_select %p284, %s285, %s286
    %p290 = pneg %p284
    %p291 = scmp.eq.s32.totalorder %s18, 1
    %p292 = por %p290, %p291
    %p293 = scmp.ne.s32.totalorder %s285, %s288
    %p294 = scmp.eq.s32.totalorder %s18, 0
    %p295 = por %p293, %p294
    %p296 = scmp.ne.s32.totalorder %s285, %s288
    %p297 = scmp.eq.s32.totalorder %s23, 1
    %p298 = por %p296, %p297
    %p299 = scmp.ne.s32.totalorder %s288, %s289
    %p300 = scmp.eq.s32.totalorder %s23, 0
    %p301 = por %p299, %p300
    %p302 = scmp.ne.s32.totalorder %s288, %s289
    %p303 = scmp.eq.s32.totalorder %s24, 1
    %p304 = por %p302, %p303
    %p306 = scmp.ne.s32.totalorder %s289, %s305
    %p307 = scmp.eq.s32.totalorder %s24, 0
    %p308 = por %p306, %p307
    %p309 = scmp.le.s32.totalorder 1, %s18
    %p310 = scmp.lt.s32.totalorder %s18, 3
    %p311 = pnand %p309, %p310
    %p312 = pneg %p311
    // Predicated region
    $region9: #{water_encoder_forward.1} parent=5 // pred_check
      _
    $region10: #{water_encoder_forward.1} parent=5 // pred_check_branch
      %314 = sbr.rel (%p311) target = $region12
    $region11: #{water_encoder_forward.1} parent=5 // pred_region
      %s315 = ssub.s32 %s18, 1
      // Predicated region
      $region13: #{water_encoder_forward.1} parent=11 // pred_check
        %p316 = pneg %p65
      $region14: #{water_encoder_forward.1} parent=11 // pred_check_branch
        %318 = sbr.rel (%p316) target = $region16
      $region15: #{water_encoder_forward.1} parent=11 // pred_region
        _
      $region16: #{water_encoder_forward.1} parent=11 // pred_fallthru
        _
      // Predicated region
      $region17: #{water_encoder_forward.1} parent=11 // pred_check
        %p319 = pneg %p86
      $region18: #{water_encoder_forward.1} parent=11 // pred_check_branch
        %321 = sbr.rel (%p319) target = $region20
      $region19: #{water_encoder_forward.1} parent=11 // pred_region
        _
      $region20: #{water_encoder_forward.1} parent=11 // pred_fallthru
        _
      // Predicated region
      $region21: #{water_encoder_forward.1} parent=11 // pred_check
        %p322 = pneg %p107
      $region22: #{water_encoder_forward.1} parent=11 // pred_check_branch
        %324 = sbr.rel (%p322) target = $region24
      $region23: #{water_encoder_forward.1} parent=11 // pred_region
        _
      $region24: #{water_encoder_forward.1} parent=11 // pred_fallthru
        _
      // Predicated region
      $region25: #{water_encoder_forward.1} parent=11 // pred_check
        %p325 = pneg %p128
      $region26: #{water_encoder_forward.1} parent=11 // pred_check_branch
        %327 = sbr.rel (%p325) target = $region28
      $region27: #{water_encoder_forward.1} parent=11 // pred_region
        _
      $region28: #{water_encoder_forward.1} parent=11 // pred_fallthru
        _
      // Predicated region
      $region29: #{water_encoder_forward.1} parent=11 // pred_check
        %p328 = pneg %p149
      $region30: #{water_encoder_forward.1} parent=11 // pred_check_branch
        %330 = sbr.rel (%p328) target = $region32
      $region31: #{water_encoder_forward.1} parent=11 // pred_region
        _
      $region32: #{water_encoder_forward.1} parent=11 // pred_fallthru
        _
      // Predicated region
      $region33: #{water_encoder_forward.1} parent=11 // pred_check
        %p331 = pneg %p170
      $region34: #{water_encoder_forward.1} parent=11 // pred_check_branch
        %333 = sbr.rel (%p331) target = $region36
      $region35: #{water_encoder_forward.1} parent=11 // pred_region
        _
      $region36: #{water_encoder_forward.1} parent=11 // pred_fallthru
        _
      // Predicated region
      $region37: #{water_encoder_forward.1} parent=11 // pred_check
        %p334 = pneg %p191
      $region38: #{water_encoder_forward.1} parent=11 // pred_check_branch
        %336 = sbr.rel (%p334) target = $region40
      $region39: #{water_encoder_forward.1} parent=11 // pred_region
        _
      $region40: #{water_encoder_forward.1} parent=11 // pred_fallthru
        _
      // Predicated region
      $region41: #{water_encoder_forward.1} parent=11 // pred_check
        %p337 = pneg %p212
      $region42: #{water_encoder_forward.1} parent=11 // pred_check_branch
        %339 = sbr.rel (%p337) target = $region44
      $region43: #{water_encoder_forward.1} parent=11 // pred_region
        _
      $region44: #{water_encoder_forward.1} parent=11 // pred_fallthru
        _
      // Predicated region
      $region45: #{water_encoder_forward.1} parent=11 // pred_check
        %p340 = pneg %p233
      $region46: #{water_encoder_forward.1} parent=11 // pred_check_branch
        %342 = sbr.rel (%p340) target = $region48
      $region47: #{water_encoder_forward.1} parent=11 // pred_region
        _
      $region48: #{water_encoder_forward.1} parent=11 // pred_fallthru
        _
      // Predicated region
      $region49: #{water_encoder_forward.1} parent=11 // pred_check
        %p343 = pneg %p254
      $region50: #{water_encoder_forward.1} parent=11 // pred_check_branch
        %345 = sbr.rel (%p343) target = $region52
      $region51: #{water_encoder_forward.1} parent=11 // pred_region
        _
      $region52: #{water_encoder_forward.1} parent=11 // pred_fallthru
        _
      // Predicated region
      $region53: #{water_encoder_forward.1} parent=11 // pred_check
        %p346 = pneg %p275
      $region54: #{water_encoder_forward.1} parent=11 // pred_check_branch
        %348 = sbr.rel (%p346) target = $region56
      $region55: #{water_encoder_forward.1} parent=11 // pred_region
        _
      $region56: #{water_encoder_forward.1} parent=11 // pred_fallthru
        _
    $region12: #{water_encoder_forward.1} parent=5 // pred_fallthru
      _
    %p349 = scmp.lt.s32.totalorder %s18, 2
    // Predicated region
    $region57: #{water_encoder_forward.1} parent=5 // pred_check
      %p350 = pneg %p349
    $region58: #{water_encoder_forward.1} parent=5 // pred_check_branch
      %352 = sbr.rel (%p350) target = $region60
    $region59: #{water_encoder_forward.1} parent=5 // pred_region
      // Predicated region
      $region61: #{water_encoder_forward.1} parent=59 // pred_check
        %p353 = pneg %p38
      $region62: #{water_encoder_forward.1} parent=59 // pred_check_branch
        %355 = sbr.rel (%p353) target = $region64
      $region63: #{water_encoder_forward.1} parent=59 // pred_region
        %s356 = smul.u32 64, %s18
        %p357 = scmp.lt.s32.totalorder %s356, 127
        %s358 = scalar_select %p357, %s356, 127
        %s359 = smul.addr %s358, 8
        %s360 = scalar_lea.vmem %s0, %s359
        %s361 = smul.u32 64, %s18
      $region64: #{water_encoder_forward.1} parent=59 // pred_fallthru
        _
    $region60: #{water_encoder_forward.1} parent=5 // pred_fallthru
      _
    %p362 = scmp.le.s32.totalorder 1, %s18
    %p363 = scmp.lt.s32.totalorder %s18, 3
    %p364 = pnand %p362, %p363
    %p365 = pneg %p364
    // Predicated region
    $region65: #{water_encoder_forward.1} parent=5 // pred_check
      _
    $region66: #{water_encoder_forward.1} parent=5 // pred_check_branch
      %367 = sbr.rel (%p364) target = $region68
    $region67: #{water_encoder_forward.1} parent=5 // pred_region
      %s368 = ssub.s32 %s18, 1
      %s369 = smul.u32 64, %s23
      %p370 = scmp.lt.s32.totalorder %s369, 127
      %s371 = scalar_select %p370, %s369, 127
      %s372 = smul.addr %s371, 8
      %s373 = scalar_lea.vmem %s0, %s372
      %p374 = pneg %p44
      %p375 = pneg %p41
      %p376 = pneg %p65
      %p377 = pneg %p62
      %p378 = pneg %p86
      %p379 = pneg %p83
      %p380 = pneg %p107
      %p381 = pneg %p104
      %p382 = pneg %p128
      %p383 = pneg %p125
      %p384 = pneg %p149
      %p385 = pneg %p146
      %p386 = pneg %p170
      %p387 = pneg %p167
      %p388 = pneg %p191
      %p389 = pneg %p188
      %p390 = pneg %p212
      %p391 = pneg %p209
      %p392 = pneg %p233
      %p393 = pneg %p230
      %p394 = pneg %p254
      %p395 = pneg %p251
      %p396 = pneg %p275
      %p397 = pneg %p272
      %p398 = pneg %p301
      %p399 = pneg %p298
      %p400 = scmp.lt.s32.totalorder %s23, 1
      %s401 = scalar_select %p400, %s23, 1
      %s402 = smul.addr %s401, 2
      %s403 = smul.addr %s402, 8
      %s404 = scalar_lea.vmem %s12, %s403
      %s405 = smul.u32 64, %s23
      %p406 = scmp.lt.s32.totalorder %s405, 127
      %s407 = scalar_select %p406, %s405, 127
      %s408 = smul.addr %s407, 8
      %s409 = scalar_lea.vmem %s0, %s408
      %s410 = smul.u32 64, %s23
      %p411 = scmp.lt.s32.totalorder %s23, 1
      %s412 = scalar_select %p411, %s23, 1
      %s413 = smul.addr %s412, 2
      %s414 = smul.addr %s413, 8
      %s415 = scalar_lea.vmem %s12, %s414
      %v416 = vld [vmem:[%s409] sm:$0xff]
      %v417 = vld [vmem:[%s409 + $0x8] sm:$0xff]
      %v418 = vld [vmem:[%s409 + $0x10] sm:$0xff]
      %v419 = vld [vmem:[%s409 + $0x18] sm:$0xff]
      %v420 = vld [vmem:[%s409 + $0x20] sm:$0xff]
      %v421 = vld [vmem:[%s409 + $0x28] sm:$0xff]
      %v422 = vld [vmem:[%s409 + $0x30] sm:$0xff]
      %v423 = vld [vmem:[%s409 + $0x38] sm:$0xff]
      %v424 = vld [vmem:[%s409 + $0x40] sm:$0xff]
      %v425 = vld [vmem:[%s409 + $0x48] sm:$0xff]
      %v426 = vld [vmem:[%s409 + $0x50] sm:$0xff]
      %v427 = vld [vmem:[%s409 + $0x58] sm:$0xff]
      %v428 = vld [vmem:[%s409 + $0x60] sm:$0xff]
      %v429 = vld [vmem:[%s409 + $0x68] sm:$0xff]
      %v430 = vld [vmem:[%s409 + $0x70] sm:$0xff]
      %v431 = vld [vmem:[%s409 + $0x78] sm:$0xff]
      %v432 = vld [vmem:[%s409 + $0x80] sm:$0xff]
      %v433 = vld [vmem:[%s409 + $0x88] sm:$0xff]
      %v434 = vld [vmem:[%s409 + $0x90] sm:$0xff]
      %v435 = vld [vmem:[%s409 + $0x98] sm:$0xff]
      %v436 = vld [vmem:[%s409 + $0xa0] sm:$0xff]
      %v437 = vld [vmem:[%s409 + $0xa8] sm:$0xff]
      %v438 = vld [vmem:[%s409 + $0xb0] sm:$0xff]
      %v439 = vld [vmem:[%s409 + $0xb8] sm:$0xff]
      %v440 = vld [vmem:[%s409 + $0xc0] sm:$0xff]
      %v441 = vld [vmem:[%s409 + $0xc8] sm:$0xff]
      %v442 = vld [vmem:[%s409 + $0xd0] sm:$0xff]
      %v443 = vld [vmem:[%s409 + $0xd8] sm:$0xff]
      %v444 = vld [vmem:[%s409 + $0xe0] sm:$0xff]
      %v445 = vld [vmem:[%s409 + $0xe8] sm:$0xff]
      %v446 = vld [vmem:[%s409 + $0xf0] sm:$0xff]
      %v447 = vld [vmem:[%s409 + $0xf8] sm:$0xff]
      %v448 = vld [vmem:[%s409 + $0x100] sm:$0xff]
      %v449 = vld [vmem:[%s409 + $0x108] sm:$0xff]
      %v450 = vld [vmem:[%s409 + $0x110] sm:$0xff]
      %v451 = vld [vmem:[%s409 + $0x118] sm:$0xff]
      %v452 = vld [vmem:[%s409 + $0x120] sm:$0xff]
      %v453 = vld [vmem:[%s409 + $0x128] sm:$0xff]
      %v454 = vld [vmem:[%s409 + $0x130] sm:$0xff]
      %v455 = vld [vmem:[%s409 + $0x138] sm:$0xff]
      %v456 = vld [vmem:[%s409 + $0x140] sm:$0xff]
      %v457 = vld [vmem:[%s409 + $0x148] sm:$0xff]
      %v458 = vld [vmem:[%s409 + $0x150] sm:$0xff]
      %v459 = vld [vmem:[%s409 + $0x158] sm:$0xff]
      %v460 = vld [vmem:[%s409 + $0x160] sm:$0xff]
      %v461 = vld [vmem:[%s409 + $0x168] sm:$0xff]
      %v462 = vld [vmem:[%s409 + $0x170] sm:$0xff]
      %v463 = vld [vmem:[%s409 + $0x178] sm:$0xff]
      %v464 = vld [vmem:[%s409 + $0x180] sm:$0xff]
      %v465 = vld [vmem:[%s409 + $0x188] sm:$0xff]
      %v466 = vld [vmem:[%s409 + $0x190] sm:$0xff]
      %v467 = vld [vmem:[%s409 + $0x198] sm:$0xff]
      %v468 = vld [vmem:[%s409 + $0x1a0] sm:$0xff]
      %v469 = vld [vmem:[%s409 + $0x1a8] sm:$0xff]
      %v470 = vld [vmem:[%s409 + $0x1b0] sm:$0xff]
      %v471 = vld [vmem:[%s409 + $0x1b8] sm:$0xff]
      %v472 = vld [vmem:[%s409 + $0x1c0] sm:$0xff]
      %v473 = vld [vmem:[%s409 + $0x1c8] sm:$0xff]
      %v474 = vld [vmem:[%s409 + $0x1d0] sm:$0xff]
      %v475 = vld [vmem:[%s409 + $0x1d8] sm:$0xff]
      %v476 = vld [vmem:[%s409 + $0x1e0] sm:$0xff]
      %v477 = vld [vmem:[%s409 + $0x1e8] sm:$0xff]
      %v478 = vld [vmem:[%s409 + $0x1f0] sm:$0xff]
      %v479 = vld [vmem:[%s409 + $0x1f8] sm:$0xff]
      %v480 = vld [vmem:[%s4] sm:$0xff]
      %v481 = vld [vmem:[%s4 + $0x8] sm:$0x1]
      %v482 = vld [vmem:[%s5] sm:$0x1]
      %v484 = vlaneseq
      %v485 = vshrl.u32 %v484, 7
      %v486 = vsub.s32 0, %v485
      %v487 = vrot.slane %v482, %v486
      %vm489 = vcmask 72704
      %v491 = vsel %vm489, %v416, 0
      %v494 = vsel %vm489, %v417, 0
      %v497 = vsel %vm489, %v418, 0
      %v500 = vsel %vm489, %v419, 0
      %v503 = vsel %vm489, %v420, 0
      %v506 = vsel %vm489, %v421, 0
      %v509 = vsel %vm489, %v422, 0
      %v512 = vsel %vm489, %v423, 0
      %v515 = vsel %vm489, %v424, 0
      %v518 = vsel %vm489, %v425, 0
      %v521 = vsel %vm489, %v426, 0
      %v524 = vsel %vm489, %v427, 0
      %v527 = vsel %vm489, %v428, 0
      %v530 = vsel %vm489, %v429, 0
      %v533 = vsel %vm489, %v430, 0
      %v536 = vsel %vm489, %v431, 0
      %v539 = vsel %vm489, %v432, 0
      %v542 = vsel %vm489, %v433, 0
      %v545 = vsel %vm489, %v434, 0
      %v548 = vsel %vm489, %v435, 0
      %v551 = vsel %vm489, %v436, 0
      %v554 = vsel %vm489, %v437, 0
      %v557 = vsel %vm489, %v438, 0
      %v560 = vsel %vm489, %v439, 0
      %v563 = vsel %vm489, %v440, 0
      %v566 = vsel %vm489, %v441, 0
      %v569 = vsel %vm489, %v442, 0
      %v572 = vsel %vm489, %v443, 0
      %v575 = vsel %vm489, %v444, 0
      %v578 = vsel %vm489, %v445, 0
      %v581 = vsel %vm489, %v446, 0
      %v584 = vsel %vm489, %v447, 0
      %v587 = vsel %vm489, %v448, 0
      %v590 = vsel %vm489, %v449, 0
      %v593 = vsel %vm489, %v450, 0
      %v596 = vsel %vm489, %v451, 0
      %v599 = vsel %vm489, %v452, 0
      %v602 = vsel %vm489, %v453, 0
      %v605 = vsel %vm489, %v454, 0
      %v608 = vsel %vm489, %v455, 0
      %v611 = vsel %vm489, %v456, 0
      %v614 = vsel %vm489, %v457, 0
      %v617 = vsel %vm489, %v458, 0
      %v620 = vsel %vm489, %v459, 0
      %v623 = vsel %vm489, %v460, 0
      %v626 = vsel %vm489, %v461, 0
      %v629 = vsel %vm489, %v462, 0
      %v632 = vsel %vm489, %v463, 0
      %v635 = vsel %vm489, %v464, 0
      %v638 = vsel %vm489, %v465, 0
      %v641 = vsel %vm489, %v466, 0
      %v644 = vsel %vm489, %v467, 0
      %v647 = vsel %vm489, %v468, 0
      %v650 = vsel %vm489, %v469, 0
      %v653 = vsel %vm489, %v470, 0
      %v656 = vsel %vm489, %v471, 0
      %v659 = vsel %vm489, %v472, 0
      %v662 = vsel %vm489, %v473, 0
      %v665 = vsel %vm489, %v474, 0
      %v668 = vsel %vm489, %v475, 0
      %v671 = vsel %vm489, %v476, 0
      %v674 = vsel %vm489, %v477, 0
      %v677 = vsel %vm489, %v478, 0
      %v680 = vsel %vm489, %v479, 0
      %vm682 = vcmask 1040384
      %v684 = vsel %vm682, %v481, 0
      %686 = vmatprep.subr.mxu0 0.0
      %687 = vmatpush1.msra.mxu0 %v480
      %688 = vmatprep.subr.mxu0 0.0
      %689 = vmatpush1.msra.mxu0 %v684
      %690 = vmatprep.subr.mxu0 0.0
      %691 = vmatpush1.msra.mxu0 0.0
      %692 = vmatprep.subr.mxu0 0.0
      %693 = vmatpush1.msra.mxu0 0.0
      %694 = vmatprep.subr.mxu0 0.0
      %695 = vmatpush1.msra.mxu0 0.0
      %696 = vmatprep.subr.mxu0 0.0
      %697 = vmatpush1.msra.mxu0 0.0
      %698 = vmatprep.subr.mxu0 0.0
      %699 = vmatpush1.msra.mxu0 0.0
      %700 = vmatprep.subr.mxu0 0.0
      %701 = vmatpush1.msra.mxu0 0.0
      %702 = vmatprep.subr.mxu0 0.0
      %703 = vmatpush1.msra.mxu0 0.0
      %704 = vmatprep.subr.mxu0 0.0
      %705 = vmatpush1.msra.mxu0 0.0
      %706 = vmatprep.subr.mxu0 0.0
      %707 = vmatpush1.msra.mxu0 0.0
      %708 = vmatprep.subr.mxu0 0.0
      %709 = vmatpush1.msra.mxu0 0.0
      %710 = vmatprep.subr.mxu0 0.0
      %711 = vmatpush1.msra.mxu0 0.0
      %712 = vmatprep.subr.mxu0 0.0
      %713 = vmatpush1.msra.mxu0 0.0
      %714 = vmatprep.subr.mxu0 0.0
      %715 = vmatpush1.msra.mxu0 0.0
      %716 = vmatprep.subr.mxu0 0.0
      %717 = vmatpush1.msra.mxu0 0.0
      %718 = vmatprep.subr.mxu0 0.0
      %719 = vmatpush1.msra.mxu0 0.0
      %720 = vmatprep.subr.mxu0 0.0
      %721 = vmatpush1.msra.mxu0 0.0
      %722 = vmatprep.subr.mxu0 0.0
      %723 = vmatpush1.msra.mxu0 0.0
      %724 = vmatprep.subr.mxu0 0.0
      %725 = vmatpush1.msra.mxu0 0.0
      %726 = vmatprep.subr.mxu0 0.0
      %727 = vmatpush1.msra.mxu0 0.0
      %728 = vmatprep.subr.mxu0 0.0
      %729 = vmatpush1.msra.mxu0 0.0
      %730 = vmatprep.subr.mxu0 0.0
      %731 = vmatpush1.msra.mxu0 0.0
      %732 = vmatprep.subr.mxu0 0.0
      %733 = vmatpush1.msra.mxu0 0.0
      %734 = vmatprep.subr.mxu0 0.0
      %735 = vmatpush1.msra.mxu0 0.0
      %736 = vmatprep.subr.mxu0 0.0
      %737 = vmatpush1.msra.mxu0 0.0
      %738 = vmatprep.subr.mxu0 0.0
      %739 = vmatpush1.msra.mxu0 0.0
      %740 = vmatprep.subr.mxu0 0.0
      %741 = vmatpush1.msra.mxu0 0.0
      %742 = vmatprep.subr.mxu0 0.0
      %743 = vmatpush1.msra.mxu0 0.0
      %744 = vmatprep.subr.mxu0 0.0
      %745 = vmatpush1.msra.mxu0 0.0
      %746 = vmatprep.subr.mxu0 0.0
      %747 = vmatpush1.msra.mxu0 0.0
      %748 = vmatprep.subr.mxu0 0.0
      %749 = vmatpush1.msra.mxu0 0.0
      %750 = vmatprep.mubr.f32.mxu0 0.0
      %751 = vmatmul.mubr.f32.gmra.mrb[0].mxu0 %v491
      %v752 = vpop.f32.mrb[0].mxu0
      %v753 = vadd.f32 %v487, %v752
      %v754 = vpop.f32.mrb[0].mxu0
      %755 = vmatprep.mubr.f32.mxu0 0.0
      %756 = vmatmul.mubr.f32.gmra.mrb[0].mxu0 %v494
      %v757 = vpop.f32.mrb[0].mxu0
      %v758 = vadd.f32 %v487, %v757
      %v759 = vpop.f32.mrb[0].mxu0
      %760 = vmatprep.mubr.f32.mxu0 0.0
      %761 = vmatmul.mubr.f32.gmra.mrb[0].mxu0 %v497
      %v762 = vpop.f32.mrb[0].mxu0
      %v763 = vadd.f32 %v487, %v762
      %v764 = vpop.f32.mrb[0].mxu0
      %765 = vmatprep.mubr.f32.mxu0 0.0
      %766 = vmatmul.mubr.f32.gmra.mrb[0].mxu0 %v500
      %v767 = vpop.f32.mrb[0].mxu0
      %v768 = vadd.f32 %v487, %v767
      %v769 = vpop.f32.mrb[0].mxu0
      %770 = vmatprep.mubr.f32.mxu0 0.0
      %771 = vmatmul.mubr.f32.gmra.mrb[0].mxu0 %v503
      %v772 = vpop.f32.mrb[0].mxu0
      %v773 = vadd.f32 %v487, %v772
      %v774 = vpop.f32.mrb[0].mxu0
      %775 = vmatprep.mubr.f32.mxu0 0.0
      %776 = vmatmul.mubr.f32.gmra.mrb[0].mxu0 %v506
      %v777 = vpop.f32.mrb[0].mxu0
      %v778 = vadd.f32 %v487, %v777
      %v779 = vpop.f32.mrb[0].mxu0
      %780 = vmatprep.mubr.f32.mxu0 0.0
      %781 = vmatmul.mubr.f32.gmra.mrb[0].mxu0 %v509
      %v782 = vpop.f32.mrb[0].mxu0
      %v783 = vadd.f32 %v487, %v782
      %v784 = vpop.f32.mrb[0].mxu0
      %785 = vmatprep.mubr.f32.mxu0 0.0
      %786 = vmatmul.mubr.f32.gmra.mrb[0].mxu0 %v512
      %v787 = vpop.f32.mrb[0].mxu0
      %v788 = vadd.f32 %v487, %v787
      %v789 = vpop.f32.mrb[0].mxu0
      %790 = vmatprep.mubr.f32.mxu0 0.0
      %791 = vmatmul.mubr.f32.gmra.mrb[0].mxu0 %v515
      %v792 = vpop.f32.mrb[0].mxu0
      %v793 = vadd.f32 %v487, %v792
      %v794 = vpop.f32.mrb[0].mxu0
      %795 = vmatprep.mubr.f32.mxu0 0.0
      %796 = vmatmul.mubr.f32.gmra.mrb[0].mxu0 %v518
      %v797 = vpop.f32.mrb[0].mxu0
      %v798 = vadd.f32 %v487, %v797
      %v799 = vpop.f32.mrb[0].mxu0
      %800 = vmatprep.mubr.f32.mxu0 0.0
      %801 = vmatmul.mubr.f32.gmra.mrb[0].mxu0 %v521
      %v802 = vpop.f32.mrb[0].mxu0
      %v803 = vadd.f32 %v487, %v802
      %v804 = vpop.f32.mrb[0].mxu0
      %805 = vmatprep.mubr.f32.mxu0 0.0
      %806 = vmatmul.mubr.f32.gmra.mrb[0].mxu0 %v524
      %v807 = vpop.f32.mrb[0].mxu0
      %v808 = vadd.f32 %v487, %v807
      %v809 = vpop.f32.mrb[0].mxu0
      %810 = vmatprep.mubr.f32.mxu0 0.0
      %811 = vmatmul.mubr.f32.gmra.mrb[0].mxu0 %v527
      %v812 = vpop.f32.mrb[0].mxu0
      %v813 = vadd.f32 %v487, %v812
      %v814 = vpop.f32.mrb[0].mxu0
      %815 = vmatprep.mubr.f32.mxu0 0.0
      %816 = vmatmul.mubr.f32.gmra.mrb[0].mxu0 %v530
      %v817 = vpop.f32.mrb[0].mxu0
      %v818 = vadd.f32 %v487, %v817
      %v819 = vpop.f32.mrb[0].mxu0
      %820 = vmatprep.mubr.f32.mxu0 0.0
      %821 = vmatmul.mubr.f32.gmra.mrb[0].mxu0 %v533
      %v822 = vpop.f32.mrb[0].mxu0
      %v823 = vadd.f32 %v487, %v822
      %v824 = vpop.f32.mrb[0].mxu0
      %825 = vmatprep.mubr.f32.mxu0 0.0
      %826 = vmatmul.mubr.f32.gmra.mrb[0].mxu0 %v536
      %v827 = vpop.f32.mrb[0].mxu0
      %v828 = vadd.f32 %v487, %v827
      %v829 = vpop.f32.mrb[0].mxu0
      %830 = vmatprep.mubr.f32.mxu0 0.0
      %831 = vmatmul.mubr.f32.gmra.mrb[0].mxu0 %v539
      %v832 = vpop.f32.mrb[0].mxu0
      %v833 = vadd.f32 %v487, %v832
      %v834 = vpop.f32.mrb[0].mxu0
      %835 = vmatprep.mubr.f32.mxu0 0.0
      %836 = vmatmul.mubr.f32.gmra.mrb[0].mxu0 %v542
      %v837 = vpop.f32.mrb[0].mxu0
      %v838 = vadd.f32 %v487, %v837
      %v839 = vpop.f32.mrb[0].mxu0
      %840 = vmatprep.mubr.f32.mxu0 0.0
      %841 = vmatmul.mubr.f32.gmra.mrb[0].mxu0 %v545
      %v842 = vpop.f32.mrb[0].mxu0
      %v843 = vadd.f32 %v487, %v842
      %v844 = vpop.f32.mrb[0].mxu0
      %845 = vmatprep.mubr.f32.mxu0 0.0
      %846 = vmatmul.mubr.f32.gmra.mrb[0].mxu0 %v548
      %v847 = vpop.f32.mrb[0].mxu0
      %v848 = vadd.f32 %v487, %v847
      %v849 = vpop.f32.mrb[0].mxu0
      %850 = vmatprep.mubr.f32.mxu0 0.0
      %851 = vmatmul.mubr.f32.gmra.mrb[0].mxu0 %v551
      %v852 = vpop.f32.mrb[0].mxu0
      %v853 = vadd.f32 %v487, %v852
      %v854 = vpop.f32.mrb[0].mxu0
      %855 = vmatprep.mubr.f32.mxu0 0.0
      %856 = vmatmul.mubr.f32.gmra.mrb[0].mxu0 %v554
      %v857 = vpop.f32.mrb[0].mxu0
      %v858 = vadd.f32 %v487, %v857
      %v859 = vpop.f32.mrb[0].mxu0
      %860 = vmatprep.mubr.f32.mxu0 0.0
      %861 = vmatmul.mubr.f32.gmra.mrb[0].mxu0 %v557
      %v862 = vpop.f32.mrb[0].mxu0
      %v863 = vadd.f32 %v487, %v862
      %v864 = vpop.f32.mrb[0].mxu0
      %865 = vmatprep.mubr.f32.mxu0 0.0
      %866 = vmatmul.mubr.f32.gmra.mrb[0].mxu0 %v560
      %v867 = vpop.f32.mrb[0].mxu0
      %v868 = vadd.f32 %v487, %v867
      %v869 = vpop.f32.mrb[0].mxu0
      %870 = vmatprep.mubr.f32.mxu0 0.0
      %871 = vmatmul.mubr.f32.gmra.mrb[0].mxu0 %v563
      %v872 = vpop.f32.mrb[0].mxu0
      %v873 = vadd.f32 %v487, %v872
      %v874 = vpop.f32.mrb[0].mxu0
      %875 = vmatprep.mubr.f32.mxu0 0.0
      %876 = vmatmul.mubr.f32.gmra.mrb[0].mxu0 %v566
      %v877 = vpop.f32.mrb[0].mxu0
      %v878 = vadd.f32 %v487, %v877
      %v879 = vpop.f32.mrb[0].mxu0
      %880 = vmatprep.mubr.f32.mxu0 0.0
      %881 = vmatmul.mubr.f32.gmra.mrb[0].mxu0 %v569
      %v882 = vpop.f32.mrb[0].mxu0
      %v883 = vadd.f32 %v487, %v882
      %v884 = vpop.f32.mrb[0].mxu0
      %885 = vmatprep.mubr.f32.mxu0 0.0
      %886 = vmatmul.mubr.f32.gmra.mrb[0].mxu0 %v572
      %v887 = vpop.f32.mrb[0].mxu0
      %v888 = vadd.f32 %v487, %v887
      %v889 = vpop.f32.mrb[0].mxu0
      %890 = vmatprep.mubr.f32.mxu0 0.0
      %891 = vmatmul.mubr.f32.gmra.mrb[0].mxu0 %v575
      %v892 = vpop.f32.mrb[0].mxu0
      %v893 = vadd.f32 %v487, %v892
      %v894 = vpop.f32.mrb[0].mxu0
      %895 = vmatprep.mubr.f32.mxu0 0.0
      %896 = vmatmul.mubr.f32.gmra.mrb[0].mxu0 %v578
      %v897 = vpop.f32.mrb[0].mxu0
      %v898 = vadd.f32 %v487, %v897
      %v899 = vpop.f32.mrb[0].mxu0
      %900 = vmatprep.mubr.f32.mxu0 0.0
      %901 = vmatmul.mubr.f32.gmra.mrb[0].mxu0 %v581
      %v902 = vpop.f32.mrb[0].mxu0
      %v903 = vadd.f32 %v487, %v902
      %v904 = vpop.f32.mrb[0].mxu0
      %905 = vmatprep.mubr.f32.mxu0 0.0
      %906 = vmatmul.mubr.f32.gmra.mrb[0].mxu0 %v584
      %v907 = vpop.f32.mrb[0].mxu0
      %v908 = vadd.f32 %v487, %v907
      %v909 = vpop.f32.mrb[0].mxu0
      %910 = vmatprep.mubr.f32.mxu0 0.0
      %911 = vmatmul.mubr.f32.gmra.mrb[0].mxu0 %v587
      %v912 = vpop.f32.mrb[0].mxu0
      %v913 = vadd.f32 %v487, %v912
      %v914 = vpop.f32.mrb[0].mxu0
      %915 = vmatprep.mubr.f32.mxu0 0.0
      %916 = vmatmul.mubr.f32.gmra.mrb[0].mxu0 %v590
      %v917 = vpop.f32.mrb[0].mxu0
      %v918 = vadd.f32 %v487, %v917
      %v919 = vpop.f32.mrb[0].mxu0
      %920 = vmatprep.mubr.f32.mxu0 0.0
      %921 = vmatmul.mubr.f32.gmra.mrb[0].mxu0 %v593
      %v922 = vpop.f32.mrb[0].mxu0
      %v923 = vadd.f32 %v487, %v922
      %v924 = vpop.f32.mrb[0].mxu0
      %925 = vmatprep.mubr.f32.mxu0 0.0
      %926 = vmatmul.mubr.f32.gmra.mrb[0].mxu0 %v596
      %v927 = vpop.f32.mrb[0].mxu0
      %v928 = vadd.f32 %v487, %v927
      %v929 = vpop.f32.mrb[0].mxu0
      %930 = vmatprep.mubr.f32.mxu0 0.0
      %931 = vmatmul.mubr.f32.gmra.mrb[0].mxu0 %v599
      %v932 = vpop.f32.mrb[0].mxu0
      %v933 = vadd.f32 %v487, %v932
      %v934 = vpop.f32.mrb[0].mxu0
      %935 = vmatprep.mubr.f32.mxu0 0.0
      %936 = vmatmul.mubr.f32.gmra.mrb[0].mxu0 %v602
      %v937 = vpop.f32.mrb[0].mxu0
      %v938 = vadd.f32 %v487, %v937
      %v939 = vpop.f32.mrb[0].mxu0
      %940 = vmatprep.mubr.f32.mxu0 0.0
      %941 = vmatmul.mubr.f32.gmra.mrb[0].mxu0 %v605
      %v942 = vpop.f32.mrb[0].mxu0
      %v943 = vadd.f32 %v487, %v942
      %v944 = vpop.f32.mrb[0].mxu0
      %945 = vmatprep.mubr.f32.mxu0 0.0
      %946 = vmatmul.mubr.f32.gmra.mrb[0].mxu0 %v608
      %v947 = vpop.f32.mrb[0].mxu0
      %v948 = vadd.f32 %v487, %v947
      %v949 = vpop.f32.mrb[0].mxu0
      %950 = vmatprep.mubr.f32.mxu0 0.0
      %951 = vmatmul.mubr.f32.gmra.mrb[0].mxu0 %v611
      %v952 = vpop.f32.mrb[0].mxu0
      %v953 = vadd.f32 %v487, %v952
      %v954 = vpop.f32.mrb[0].mxu0
      %955 = vmatprep.mubr.f32.mxu0 0.0
      %956 = vmatmul.mubr.f32.gmra.mrb[0].mxu0 %v614
      %v957 = vpop.f32.mrb[0].mxu0
      %v958 = vadd.f32 %v487, %v957
      %v959 = vpop.f32.mrb[0].mxu0
      %960 = vmatprep.mubr.f32.mxu0 0.0
      %961 = vmatmul.mubr.f32.gmra.mrb[0].mxu0 %v617
      %v962 = vpop.f32.mrb[0].mxu0
      %v963 = vadd.f32 %v487, %v962
      %v964 = vpop.f32.mrb[0].mxu0
      %965 = vmatprep.mubr.f32.mxu0 0.0
      %966 = vmatmul.mubr.f32.gmra.mrb[0].mxu0 %v620
      %v967 = vpop.f32.mrb[0].mxu0
      %v968 = vadd.f32 %v487, %v967
      %v969 = vpop.f32.mrb[0].mxu0
      %970 = vmatprep.mubr.f32.mxu0 0.0
      %971 = vmatmul.mubr.f32.gmra.mrb[0].mxu0 %v623
      %v972 = vpop.f32.mrb[0].mxu0
      %v973 = vadd.f32 %v487, %v972
      %v974 = vpop.f32.mrb[0].mxu0
      %975 = vmatprep.mubr.f32.mxu0 0.0
      %976 = vmatmul.mubr.f32.gmra.mrb[0].mxu0 %v626
      %v977 = vpop.f32.mrb[0].mxu0
      %v978 = vadd.f32 %v487, %v977
      %v979 = vpop.f32.mrb[0].mxu0
      %980 = vmatprep.mubr.f32.mxu0 0.0
      %981 = vmatmul.mubr.f32.gmra.mrb[0].mxu0 %v629
      %v982 = vpop.f32.mrb[0].mxu0
      %v983 = vadd.f32 %v487, %v982
      %v984 = vpop.f32.mrb[0].mxu0
      %985 = vmatprep.mubr.f32.mxu0 0.0
      %986 = vmatmul.mubr.f32.gmra.mrb[0].mxu0 %v632
      %v987 = vpop.f32.mrb[0].mxu0
      %v988 = vadd.f32 %v487, %v987
      %v989 = vpop.f32.mrb[0].mxu0
      %990 = vmatprep.mubr.f32.mxu0 0.0
      %991 = vmatmul.mubr.f32.gmra.mrb[0].mxu0 %v635
      %v992 = vpop.f32.mrb[0].mxu0
      %v993 = vadd.f32 %v487, %v992
      %v994 = vpop.f32.mrb[0].mxu0
      %995 = vmatprep.mubr.f32.mxu0 0.0
      %996 = vmatmul.mubr.f32.gmra.mrb[0].mxu0 %v638
      %v997 = vpop.f32.mrb[0].mxu0
      %v998 = vadd.f32 %v487, %v997
      %v999 = vpop.f32.mrb[0].mxu0
      %1000 = vmatprep.mubr.f32.mxu0 0.0
      %1001 = vmatmul.mubr.f32.gmra.mrb[0].mxu0 %v641
      %v1002 = vpop.f32.mrb[0].mxu0
      %v1003 = vadd.f32 %v487, %v1002
      %v1004 = vpop.f32.mrb[0].mxu0
      %1005 = vmatprep.mubr.f32.mxu0 0.0
      %1006 = vmatmul.mubr.f32.gmra.mrb[0].mxu0 %v644
      %v1007 = vpop.f32.mrb[0].mxu0
      %v1008 = vadd.f32 %v487, %v1007
      %v1009 = vpop.f32.mrb[0].mxu0
      %1010 = vmatprep.mubr.f32.mxu0 0.0
      %1011 = vmatmul.mubr.f32.gmra.mrb[0].mxu0 %v647
      %v1012 = vpop.f32.mrb[0].mxu0
      %v1013 = vadd.f32 %v487, %v1012
      %v1014 = vpop.f32.mrb[0].mxu0
      %1015 = vmatprep.mubr.f32.mxu0 0.0
      %1016 = vmatmul.mubr.f32.gmra.mrb[0].mxu0 %v650
      %v1017 = vpop.f32.mrb[0].mxu0
      %v1018 = vadd.f32 %v487, %v1017
      %v1019 = vpop.f32.mrb[0].mxu0
      %1020 = vmatprep.mubr.f32.mxu0 0.0
      %1021 = vmatmul.mubr.f32.gmra.mrb[0].mxu0 %v653
      %v1022 = vpop.f32.mrb[0].mxu0
      %v1023 = vadd.f32 %v487, %v1022
      %v1024 = vpop.f32.mrb[0].mxu0
      %1025 = vmatprep.mubr.f32.mxu0 0.0
      %1026 = vmatmul.mubr.f32.gmra.mrb[0].mxu0 %v656
      %v1027 = vpop.f32.mrb[0].mxu0
      %v1028 = vadd.f32 %v487, %v1027
      %v1029 = vpop.f32.mrb[0].mxu0
      %1030 = vmatprep.mubr.f32.mxu0 0.0
      %1031 = vmatmul.mubr.f32.gmra.mrb[0].mxu0 %v659
      %v1032 = vpop.f32.mrb[0].mxu0
      %v1033 = vadd.f32 %v487, %v1032
      %v1034 = vpop.f32.mrb[0].mxu0
      %1035 = vmatprep.mubr.f32.mxu0 0.0
      %1036 = vmatmul.mubr.f32.gmra.mrb[0].mxu0 %v662
      %v1037 = vpop.f32.mrb[0].mxu0
      %v1038 = vadd.f32 %v487, %v1037
      %v1039 = vpop.f32.mrb[0].mxu0
      %1040 = vmatprep.mubr.f32.mxu0 0.0
      %1041 = vmatmul.mubr.f32.gmra.mrb[0].mxu0 %v665
      %v1042 = vpop.f32.mrb[0].mxu0
      %v1043 = vadd.f32 %v487, %v1042
      %v1044 = vpop.f32.mrb[0].mxu0
      %1045 = vmatprep.mubr.f32.mxu0 0.0
      %1046 = vmatmul.mubr.f32.gmra.mrb[0].mxu0 %v668
      %v1047 = vpop.f32.mrb[0].mxu0
      %v1048 = vadd.f32 %v487, %v1047
      %v1049 = vpop.f32.mrb[0].mxu0
      %1050 = vmatprep.mubr.f32.mxu0 0.0
      %1051 = vmatmul.mubr.f32.gmra.mrb[0].mxu0 %v671
      %v1052 = vpop.f32.mrb[0].mxu0
      %v1053 = vadd.f32 %v487, %v1052
      %v1054 = vpop.f32.mrb[0].mxu0
      %1055 = vmatprep.mubr.f32.mxu0 0.0
      %1056 = vmatmul.mubr.f32.gmra.mrb[0].mxu0 %v674
      %v1057 = vpop.f32.mrb[0].mxu0
      %v1058 = vadd.f32 %v487, %v1057
      %v1059 = vpop.f32.mrb[0].mxu0
      %1060 = vmatprep.mubr.f32.mxu0 0.0
      %1061 = vmatmul.mubr.f32.gmra.mrb[0].mxu0 %v677
      %v1062 = vpop.f32.mrb[0].mxu0
      %v1063 = vadd.f32 %v487, %v1062
      %v1064 = vpop.f32.mrb[0].mxu0
      %1065 = vmatprep.mubr.f32.mxu0 0.0
      %1066 = vmatmul.mubr.f32.gmra.mrb[0].mxu0 %v680
      %v1067 = vpop.f32.mrb[0].mxu0
      %v1068 = vadd.f32 %v487, %v1067
      %v1069 = vpop.f32.mrb[0].mxu0
      %1070 = vdwg.mxu0
      %v1071 = vmax.f32 %v753, 0.0
      %v1072 = vmax.f32 %v758, 0.0
      %v1073 = vmax.f32 %v763, 0.0
      %v1074 = vmax.f32 %v768, 0.0
      %v1075 = vmax.f32 %v773, 0.0
      %v1076 = vmax.f32 %v778, 0.0
      %v1077 = vmax.f32 %v783, 0.0
      %v1078 = vmax.f32 %v788, 0.0
      %v1079 = vmax.f32 %v793, 0.0
      %v1080 = vmax.f32 %v798, 0.0
      %v1081 = vmax.f32 %v803, 0.0
      %v1082 = vmax.f32 %v808, 0.0
      %v1083 = vmax.f32 %v813, 0.0
      %v1084 = vmax.f32 %v818, 0.0
      %v1085 = vmax.f32 %v823, 0.0
      %v1086 = vmax.f32 %v828, 0.0
      %v1087 = vmax.f32 %v833, 0.0
      %v1088 = vmax.f32 %v838, 0.0
      %v1089 = vmax.f32 %v843, 0.0
      %v1090 = vmax.f32 %v848, 0.0
      %v1091 = vmax.f32 %v853, 0.0
      %v1092 = vmax.f32 %v858, 0.0
      %v1093 = vmax.f32 %v863, 0.0
      %v1094 = vmax.f32 %v868, 0.0
      %v1095 = vmax.f32 %v873, 0.0
      %v1096 = vmax.f32 %v878, 0.0
      %v1097 = vmax.f32 %v883, 0.0
      %v1098 = vmax.f32 %v888, 0.0
      %v1099 = vmax.f32 %v893, 0.0
      %v1100 = vmax.f32 %v898, 0.0
      %v1101 = vmax.f32 %v903, 0.0
      %v1102 = vmax.f32 %v908, 0.0
      %v1103 = vmax.f32 %v913, 0.0
      %v1104 = vmax.f32 %v918, 0.0
      %v1105 = vmax.f32 %v923, 0.0
      %v1106 = vmax.f32 %v928, 0.0
      %v1107 = vmax.f32 %v933, 0.0
      %v1108 = vmax.f32 %v938, 0.0
      %v1109 = vmax.f32 %v943, 0.0
      %v1110 = vmax.f32 %v948, 0.0
      %v1111 = vmax.f32 %v953, 0.0
      %v1112 = vmax.f32 %v958, 0.0
      %v1113 = vmax.f32 %v963, 0.0
      %v1114 = vmax.f32 %v968, 0.0
      %v1115 = vmax.f32 %v973, 0.0
      %v1116 = vmax.f32 %v978, 0.0
      %v1117 = vmax.f32 %v983, 0.0
      %v1118 = vmax.f32 %v988, 0.0
      %v1119 = vmax.f32 %v993, 0.0
      %v1120 = vmax.f32 %v998, 0.0
      %v1121 = vmax.f32 %v1003, 0.0
      %v1122 = vmax.f32 %v1008, 0.0
      %v1123 = vmax.f32 %v1013, 0.0
      %v1124 = vmax.f32 %v1018, 0.0
      %v1125 = vmax.f32 %v1023, 0.0
      %v1126 = vmax.f32 %v1028, 0.0
      %v1127 = vmax.f32 %v1033, 0.0
      %v1128 = vmax.f32 %v1038, 0.0
      %v1129 = vmax.f32 %v1043, 0.0
      %v1130 = vmax.f32 %v1048, 0.0
      %v1131 = vmax.f32 %v1053, 0.0
      %v1132 = vmax.f32 %v1058, 0.0
      %v1133 = vmax.f32 %v1063, 0.0
      %v1134 = vmax.f32 %v1068, 0.0
      %v1135 = vld [vmem:[%s1] sm:$0xff]
      %v1136 = vld [vmem:[%s1 + $0x8] sm:$0xff]
      %v1137 = vld [vmem:[%s1 + $0x10] sm:$0xff]
      %v1138 = vld [vmem:[%s1 + $0x18] sm:$0xff]
      %v1139 = vld [vmem:[%s1 + $0x20] sm:$0xff]
      %v1140 = vld [vmem:[%s1 + $0x28] sm:$0xff]
      %v1141 = vld [vmem:[%s1 + $0x30] sm:$0xff]
      %v1142 = vld [vmem:[%s1 + $0x38] sm:$0xff]
      %v1143 = vld [vmem:[%s1 + $0x40] sm:$0xff]
      %v1144 = vld [vmem:[%s1 + $0x48] sm:$0xff]
      %v1145 = vld [vmem:[%s1 + $0x50] sm:$0xff]
      %v1146 = vld [vmem:[%s1 + $0x58] sm:$0xff]
      %v1147 = vld [vmem:[%s1 + $0x60] sm:$0xff]
      %v1148 = vld [vmem:[%s1 + $0x68] sm:$0xff]
      %v1149 = vld [vmem:[%s1 + $0x70] sm:$0xff]
      %v1150 = vld [vmem:[%s1 + $0x78] sm:$0xff]
      %v1151 = vld [vmem:[%s1 + $0x80] sm:$0xff]
      %v1152 = vld [vmem:[%s1 + $0x88] sm:$0xff]
      %v1153 = vld [vmem:[%s1 + $0x90] sm:$0xff]
      %v1154 = vld [vmem:[%s1 + $0x98] sm:$0xff]
      %v1155 = vld [vmem:[%s1 + $0xa0] sm:$0xff]
      %v1156 = vld [vmem:[%s1 + $0xa8] sm:$0xff]
      %v1157 = vld [vmem:[%s1 + $0xb0] sm:$0xff]
      %v1158 = vld [vmem:[%s1 + $0xb8] sm:$0xff]
      %v1159 = vld [vmem:[%s1 + $0xc0] sm:$0xff]
      %v1160 = vld [vmem:[%s1 + $0xc8] sm:$0xff]
      %v1161 = vld [vmem:[%s1 + $0xd0] sm:$0xff]
      %v1162 = vld [vmem:[%s1 + $0xd8] sm:$0xff]
      %v1163 = vld [vmem:[%s1 + $0xe0] sm:$0xff]
      %v1164 = vld [vmem:[%s1 + $0xe8] sm:$0xff]
      %v1165 = vld [vmem:[%s1 + $0xf0] sm:$0xff]
      %v1166 = vld [vmem:[%s1 + $0xf8] sm:$0xff]
      %v1167 = vld [vmem:[%s1 + $0x100] sm:$0xff]
      %v1168 = vld [vmem:[%s1 + $0x108] sm:$0xff]
      %v1169 = vld [vmem:[%s1 + $0x110] sm:$0xff]
      %v1170 = vld [vmem:[%s1 + $0x118] sm:$0xff]
      %v1171 = vld [vmem:[%s1 + $0x120] sm:$0xff]
      %v1172 = vld [vmem:[%s1 + $0x128] sm:$0xff]
      %v1173 = vld [vmem:[%s1 + $0x130] sm:$0xff]
      %v1174 = vld [vmem:[%s1 + $0x138] sm:$0xff]
      %v1175 = vld [vmem:[%s1 + $0x140] sm:$0xff]
      %v1176 = vld [vmem:[%s1 + $0x148] sm:$0xff]
      %v1177 = vld [vmem:[%s1 + $0x150] sm:$0xff]
      %v1178 = vld [vmem:[%s1 + $0x158] sm:$0xff]
      %v1179 = vld [vmem:[%s1 + $0x160] sm:$0xff]
      %v1180 = vld [vmem:[%s1 + $0x168] sm:$0xff]
      %v1181 = vld [vmem:[%s1 + $0x170] sm:$0xff]
      %v1182 = vld [vmem:[%s1 + $0x178] sm:$0xff]
      %v1183 = vld [vmem:[%s1 + $0x180] sm:$0xff]
      %v1184 = vld [vmem:[%s1 + $0x188] sm:$0xff]
      %v1185 = vld [vmem:[%s1 + $0x190] sm:$0xff]
      %v1186 = vld [vmem:[%s1 + $0x198] sm:$0xff]
      %v1187 = vld [vmem:[%s1 + $0x1a0] sm:$0xff]
      %v1188 = vld [vmem:[%s1 + $0x1a8] sm:$0xff]
      %v1189 = vld [vmem:[%s1 + $0x1b0] sm:$0xff]
      %v1190 = vld [vmem:[%s1 + $0x1b8] sm:$0xff]
      %v1191 = vld [vmem:[%s1 + $0x1c0] sm:$0xff]
      %v1192 = vld [vmem:[%s1 + $0x1c8] sm:$0xff]
      %v1193 = vld [vmem:[%s1 + $0x1d0] sm:$0xff]
      %v1194 = vld [vmem:[%s1 + $0x1d8] sm:$0xff]
      %v1195 = vld [vmem:[%s1 + $0x1e0] sm:$0xff]
      %v1196 = vld [vmem:[%s1 + $0x1e8] sm:$0xff]
      %v1197 = vld [vmem:[%s1 + $0x1f0] sm:$0xff]
      %v1198 = vld [vmem:[%s1 + $0x1f8] sm:$0xff]
      %v1199 = vld [vmem:[%s1 + $0x200] sm:$0xff]
      %v1200 = vld [vmem:[%s1 + $0x208] sm:$0xff]
      %v1201 = vld [vmem:[%s1 + $0x210] sm:$0xff]
      %v1202 = vld [vmem:[%s1 + $0x218] sm:$0xff]
      %v1203 = vld [vmem:[%s1 + $0x220] sm:$0xff]
      %v1204 = vld [vmem:[%s1 + $0x228] sm:$0xff]
      %v1205 = vld [vmem:[%s1 + $0x230] sm:$0xff]
      %v1206 = vld [vmem:[%s1 + $0x238] sm:$0xff]
      %v1207 = vld [vmem:[%s1 + $0x240] sm:$0xff]
      %v1208 = vld [vmem:[%s1 + $0x248] sm:$0xff]
      %v1209 = vld [vmem:[%s1 + $0x250] sm:$0xff]
      %v1210 = vld [vmem:[%s1 + $0x258] sm:$0xff]
      %v1211 = vld [vmem:[%s1 + $0x260] sm:$0xff]
      %v1212 = vld [vmem:[%s1 + $0x268] sm:$0xff]
      %v1213 = vld [vmem:[%s1 + $0x270] sm:$0xff]
      %v1214 = vld [vmem:[%s1 + $0x278] sm:$0xff]
      %v1215 = vld [vmem:[%s1 + $0x280] sm:$0xff]
      %v1216 = vld [vmem:[%s1 + $0x288] sm:$0xff]
      %v1217 = vld [vmem:[%s1 + $0x290] sm:$0xff]
      %v1218 = vld [vmem:[%s1 + $0x298] sm:$0xff]
      %v1219 = vld [vmem:[%s1 + $0x2a0] sm:$0xff]
      %v1220 = vld [vmem:[%s1 + $0x2a8] sm:$0xff]
      %v1221 = vld [vmem:[%s1 + $0x2b0] sm:$0xff]
      %v1222 = vld [vmem:[%s1 + $0x2b8] sm:$0xff]
      %v1223 = vld [vmem:[%s1 + $0x2c0] sm:$0xff]
      %v1224 = vld [vmem:[%s1 + $0x2c8] sm:$0xff]
      %v1225 = vld [vmem:[%s1 + $0x2d0] sm:$0xff]
      %v1226 = vld [vmem:[%s1 + $0x2d8] sm:$0xff]
      %v1227 = vld [vmem:[%s1 + $0x2e0] sm:$0xff]
      %v1228 = vld [vmem:[%s1 + $0x2e8] sm:$0xff]
      %v1229 = vld [vmem:[%s1 + $0x2f0] sm:$0xff]
      %v1230 = vld [vmem:[%s1 + $0x2f8] sm:$0xff]
      %v1231 = vld [vmem:[%s1 + $0x300] sm:$0xff]
      %v1232 = vld [vmem:[%s1 + $0x308] sm:$0xff]
      %v1233 = vld [vmem:[%s1 + $0x310] sm:$0xff]
      %v1234 = vld [vmem:[%s1 + $0x318] sm:$0xff]
      %v1235 = vld [vmem:[%s1 + $0x320] sm:$0xff]
      %v1236 = vld [vmem:[%s1 + $0x328] sm:$0xff]
      %v1237 = vld [vmem:[%s1 + $0x330] sm:$0xff]
      %v1238 = vld [vmem:[%s1 + $0x338] sm:$0xff]
      %v1239 = vld [vmem:[%s1 + $0x340] sm:$0xff]
      %v1240 = vld [vmem:[%s1 + $0x348] sm:$0xff]
      %v1241 = vld [vmem:[%s1 + $0x350] sm:$0xff]
      %v1242 = vld [vmem:[%s1 + $0x358] sm:$0xff]
      %v1243 = vld [vmem:[%s1 + $0x360] sm:$0xff]
      %v1244 = vld [vmem:[%s1 + $0x368] sm:$0xff]
      %v1245 = vld [vmem:[%s1 + $0x370] sm:$0xff]
      %v1246 = vld [vmem:[%s1 + $0x378] sm:$0xff]
      %v1247 = vld [vmem:[%s1 + $0x380] sm:$0xff]
      %v1248 = vld [vmem:[%s1 + $0x388] sm:$0xff]
      %v1249 = vld [vmem:[%s1 + $0x390] sm:$0xff]
      %v1250 = vld [vmem:[%s1 + $0x398] sm:$0xff]
      %v1251 = vld [vmem:[%s1 + $0x3a0] sm:$0xff]
      %v1252 = vld [vmem:[%s1 + $0x3a8] sm:$0xff]
      %v1253 = vld [vmem:[%s1 + $0x3b0] sm:$0xff]
      %v1254 = vld [vmem:[%s1 + $0x3b8] sm:$0xff]
      %v1255 = vld [vmem:[%s1 + $0x3c0] sm:$0xff]
      %v1256 = vld [vmem:[%s1 + $0x3c8] sm:$0xff]
      %v1257 = vld [vmem:[%s1 + $0x3d0] sm:$0xff]
      %v1258 = vld [vmem:[%s1 + $0x3d8] sm:$0xff]
      %v1259 = vld [vmem:[%s1 + $0x3e0] sm:$0xff]
      %v1260 = vld [vmem:[%s1 + $0x3e8] sm:$0xff]
      %v1261 = vld [vmem:[%s1 + $0x3f0] sm:$0xff]
      %v1262 = vld [vmem:[%s1 + $0x3f8] sm:$0xff]
      %v1263 = vld [vmem:[%s1 + $0x400] sm:$0xff]
      %v1264 = vld [vmem:[%s1 + $0x408] sm:$0xff]
      %v1265 = vld [vmem:[%s1 + $0x410] sm:$0xff]
      %v1266 = vld [vmem:[%s1 + $0x418] sm:$0xff]
      %v1267 = vld [vmem:[%s1 + $0x420] sm:$0xff]
      %v1268 = vld [vmem:[%s1 + $0x428] sm:$0xff]
      %v1269 = vld [vmem:[%s1 + $0x430] sm:$0xff]
      %v1270 = vld [vmem:[%s1 + $0x438] sm:$0xff]
      %v1271 = vld [vmem:[%s1 + $0x440] sm:$0xff]
      %v1272 = vld [vmem:[%s1 + $0x448] sm:$0xff]
      %v1273 = vld [vmem:[%s1 + $0x450] sm:$0xff]
      %v1274 = vld [vmem:[%s1 + $0x458] sm:$0xff]
      %v1275 = vld [vmem:[%s1 + $0x460] sm:$0xff]
      %v1276 = vld [vmem:[%s1 + $0x468] sm:$0xff]
      %v1277 = vld [vmem:[%s1 + $0x470] sm:$0xff]
      %v1278 = vld [vmem:[%s1 + $0x478] sm:$0xff]
      %v1279 = vld [vmem:[%s1 + $0x480] sm:$0xff]
      %v1280 = vld [vmem:[%s1 + $0x488] sm:$0xff]
      %v1281 = vld [vmem:[%s1 + $0x490] sm:$0xff]
      %v1282 = vld [vmem:[%s1 + $0x498] sm:$0xff]
      %v1283 = vld [vmem:[%s1 + $0x4a0] sm:$0xff]
      %v1284 = vld [vmem:[%s1 + $0x4a8] sm:$0xff]
      %v1285 = vld [vmem:[%s1 + $0x4b0] sm:$0xff]
      %v1286 = vld [vmem:[%s1 + $0x4b8] sm:$0xff]
      %v1287 = vld [vmem:[%s1 + $0x4c0] sm:$0xff]
      %v1288 = vld [vmem:[%s1 + $0x4c8] sm:$0xff]
      %v1289 = vld [vmem:[%s1 + $0x4d0] sm:$0xff]
      %v1290 = vld [vmem:[%s1 + $0x4d8] sm:$0xff]
      %v1291 = vld [vmem:[%s1 + $0x4e0] sm:$0xff]
      %v1292 = vld [vmem:[%s1 + $0x4e8] sm:$0xff]
      %v1293 = vld [vmem:[%s1 + $0x4f0] sm:$0xff]
      %v1294 = vld [vmem:[%s1 + $0x4f8] sm:$0xff]
      %v1295 = vld [vmem:[%s1 + $0x500] sm:$0xff]
      %v1296 = vld [vmem:[%s1 + $0x508] sm:$0xff]
      %v1297 = vld [vmem:[%s1 + $0x510] sm:$0xff]
      %v1298 = vld [vmem:[%s1 + $0x518] sm:$0xff]
      %v1299 = vld [vmem:[%s1 + $0x520] sm:$0xff]
      %v1300 = vld [vmem:[%s1 + $0x528] sm:$0xff]
      %v1301 = vld [vmem:[%s1 + $0x530] sm:$0xff]
      %v1302 = vld [vmem:[%s1 + $0x538] sm:$0xff]
      %v1303 = vld [vmem:[%s1 + $0x540] sm:$0xff]
      %v1304 = vld [vmem:[%s1 + $0x548] sm:$0xff]
      %v1305 = vld [vmem:[%s1 + $0x550] sm:$0xff]
      %v1306 = vld [vmem:[%s1 + $0x558] sm:$0xff]
      %v1307 = vld [vmem:[%s1 + $0x560] sm:$0xff]
      %v1308 = vld [vmem:[%s1 + $0x568] sm:$0xff]
      %v1309 = vld [vmem:[%s1 + $0x570] sm:$0xff]
      %v1310 = vld [vmem:[%s1 + $0x578] sm:$0xff]
      %v1311 = vld [vmem:[%s1 + $0x580] sm:$0xff]
      %v1312 = vld [vmem:[%s1 + $0x588] sm:$0xff]
      %v1313 = vld [vmem:[%s1 + $0x590] sm:$0xff]
      %v1314 = vld [vmem:[%s1 + $0x598] sm:$0xff]
      %v1315 = vld [vmem:[%s1 + $0x5a0] sm:$0xff]
      %v1316 = vld [vmem:[%s1 + $0x5a8] sm:$0xff]
      %v1317 = vld [vmem:[%s1 + $0x5b0] sm:$0xff]
      %v1318 = vld [vmem:[%s1 + $0x5b8] sm:$0xff]
      %v1319 = vld [vmem:[%s1 + $0x5c0] sm:$0xff]
      %v1320 = vld [vmem:[%s1 + $0x5c8] sm:$0xff]
      %v1321 = vld [vmem:[%s1 + $0x5d0] sm:$0xff]
      %v1322 = vld [vmem:[%s1 + $0x5d8] sm:$0xff]
      %v1323 = vld [vmem:[%s1 + $0x5e0] sm:$0xff]
      %v1324 = vld [vmem:[%s1 + $0x5e8] sm:$0xff]
      %v1325 = vld [vmem:[%s1 + $0x5f0] sm:$0xff]
      %v1326 = vld [vmem:[%s1 + $0x5f8] sm:$0xff]
      %v1327 = vld [vmem:[%s1 + $0x600] sm:$0xff]
      %v1328 = vld [vmem:[%s1 + $0x608] sm:$0xff]
      %v1329 = vld [vmem:[%s1 + $0x610] sm:$0xff]
      %v1330 = vld [vmem:[%s1 + $0x618] sm:$0xff]
      %v1331 = vld [vmem:[%s1 + $0x620] sm:$0xff]
      %v1332 = vld [vmem:[%s1 + $0x628] sm:$0xff]
      %v1333 = vld [vmem:[%s1 + $0x630] sm:$0xff]
      %v1334 = vld [vmem:[%s1 + $0x638] sm:$0xff]
      %v1335 = vld [vmem:[%s1 + $0x640] sm:$0xff]
      %v1336 = vld [vmem:[%s1 + $0x648] sm:$0xff]
      %v1337 = vld [vmem:[%s1 + $0x650] sm:$0xff]
      %v1338 = vld [vmem:[%s1 + $0x658] sm:$0xff]
      %v1339 = vld [vmem:[%s1 + $0x660] sm:$0xff]
      %v1340 = vld [vmem:[%s1 + $0x668] sm:$0xff]
      %v1341 = vld [vmem:[%s1 + $0x670] sm:$0xff]
      %v1342 = vld [vmem:[%s1 + $0x678] sm:$0xff]
      %v1343 = vld [vmem:[%s1 + $0x680] sm:$0xff]
      %v1344 = vld [vmem:[%s1 + $0x688] sm:$0xff]
      %v1345 = vld [vmem:[%s1 + $0x690] sm:$0xff]
      %v1346 = vld [vmem:[%s1 + $0x698] sm:$0xff]
      %v1347 = vld [vmem:[%s1 + $0x6a0] sm:$0xff]
      %v1348 = vld [vmem:[%s1 + $0x6a8] sm:$0xff]
      %v1349 = vld [vmem:[%s1 + $0x6b0] sm:$0xff]
      %v1350 = vld [vmem:[%s1 + $0x6b8] sm:$0xff]
      %v1351 = vld [vmem:[%s1 + $0x6c0] sm:$0xff]
      %v1352 = vld [vmem:[%s1 + $0x6c8] sm:$0xff]
      %v1353 = vld [vmem:[%s1 + $0x6d0] sm:$0xff]
      %v1354 = vld [vmem:[%s1 + $0x6d8] sm:$0xff]
      %v1355 = vld [vmem:[%s1 + $0x6e0] sm:$0xff]
      %v1356 = vld [vmem:[%s1 + $0x6e8] sm:$0xff]
      %v1357 = vld [vmem:[%s1 + $0x6f0] sm:$0xff]
      %v1358 = vld [vmem:[%s1 + $0x6f8] sm:$0xff]
      %v1359 = vld [vmem:[%s1 + $0x700] sm:$0xff]
      %v1360 = vld [vmem:[%s1 + $0x708] sm:$0xff]
      %v1361 = vld [vmem:[%s1 + $0x710] sm:$0xff]
      %v1362 = vld [vmem:[%s1 + $0x718] sm:$0xff]
      %v1363 = vld [vmem:[%s1 + $0x720] sm:$0xff]
      %v1364 = vld [vmem:[%s1 + $0x728] sm:$0xff]
      %v1365 = vld [vmem:[%s1 + $0x730] sm:$0xff]
      %v1366 = vld [vmem:[%s1 + $0x738] sm:$0xff]
      %v1367 = vld [vmem:[%s1 + $0x740] sm:$0xff]
      %v1368 = vld [vmem:[%s1 + $0x748] sm:$0xff]
      %v1369 = vld [vmem:[%s1 + $0x750] sm:$0xff]
      %v1370 = vld [vmem:[%s1 + $0x758] sm:$0xff]
      %v1371 = vld [vmem:[%s1 + $0x760] sm:$0xff]
      %v1372 = vld [vmem:[%s1 + $0x768] sm:$0xff]
      %v1373 = vld [vmem:[%s1 + $0x770] sm:$0xff]
      %v1374 = vld [vmem:[%s1 + $0x778] sm:$0xff]
      %v1375 = vld [vmem:[%s1 + $0x780] sm:$0xff]
      %v1376 = vld [vmem:[%s1 + $0x788] sm:$0xff]
      %v1377 = vld [vmem:[%s1 + $0x790] sm:$0xff]
      %v1378 = vld [vmem:[%s1 + $0x798] sm:$0xff]
      %v1379 = vld [vmem:[%s1 + $0x7a0] sm:$0xff]
      %v1380 = vld [vmem:[%s1 + $0x7a8] sm:$0xff]
      %v1381 = vld [vmem:[%s1 + $0x7b0] sm:$0xff]
      %v1382 = vld [vmem:[%s1 + $0x7b8] sm:$0xff]
      %v1383 = vld [vmem:[%s1 + $0x7c0] sm:$0xff]
      %v1384 = vld [vmem:[%s1 + $0x7c8] sm:$0xff]
      %v1385 = vld [vmem:[%s1 + $0x7d0] sm:$0xff]
      %v1386 = vld [vmem:[%s1 + $0x7d8] sm:$0xff]
      %v1387 = vld [vmem:[%s1 + $0x7e0] sm:$0xff]
      %v1388 = vld [vmem:[%s1 + $0x7e8] sm:$0xff]
      %v1389 = vld [vmem:[%s1 + $0x7f0] sm:$0xff]
      %v1390 = vld [vmem:[%s1 + $0x7f8] sm:$0xff]
      %v1391 = vld [vmem:[%s1 + $0x800] sm:$0xff]
      %v1392 = vld [vmem:[%s1 + $0x808] sm:$0xff]
      %v1393 = vld [vmem:[%s1 + $0x810] sm:$0xff]
      %v1394 = vld [vmem:[%s1 + $0x818] sm:$0xff]
      %v1395 = vld [vmem:[%s1 + $0x820] sm:$0xff]
      %v1396 = vld [vmem:[%s1 + $0x828] sm:$0xff]
      %v1397 = vld [vmem:[%s1 + $0x830] sm:$0xff]
      %v1398 = vld [vmem:[%s1 + $0x838] sm:$0xff]
      %v1399 = vld [vmem:[%s1 + $0x840] sm:$0xff]
      %v1400 = vld [vmem:[%s1 + $0x848] sm:$0xff]
      %v1401 = vld [vmem:[%s1 + $0x850] sm:$0xff]
      %v1402 = vld [vmem:[%s1 + $0x858] sm:$0xff]
      %v1403 = vld [vmem:[%s1 + $0x860] sm:$0xff]
      %v1404 = vld [vmem:[%s1 + $0x868] sm:$0xff]
      %v1405 = vld [vmem:[%s1 + $0x870] sm:$0xff]
      %v1406 = vld [vmem:[%s1 + $0x878] sm:$0xff]
      %v1407 = vld [vmem:[%s1 + $0x880] sm:$0xff]
      %v1408 = vld [vmem:[%s1 + $0x888] sm:$0xff]
      %v1409 = vld [vmem:[%s1 + $0x890] sm:$0xff]
      %v1410 = vld [vmem:[%s1 + $0x898] sm:$0xff]
      %v1411 = vld [vmem:[%s1 + $0x8a0] sm:$0xff]
      %v1412 = vld [vmem:[%s1 + $0x8a8] sm:$0xff]
      %v1413 = vld [vmem:[%s1 + $0x8b0] sm:$0xff]
      %v1414 = vld [vmem:[%s1 + $0x8b8] sm:$0xff]
      %v1415 = vld [vmem:[%s1 + $0x8c0] sm:$0xff]
      %v1416 = vld [vmem:[%s1 + $0x8c8] sm:$0xff]
      %v1417 = vld [vmem:[%s1 + $0x8d0] sm:$0xff]
      %v1418 = vld [vmem:[%s1 + $0x8d8] sm:$0xff]
      %v1419 = vld [vmem:[%s1 + $0x8e0] sm:$0xff]
      %v1420 = vld [vmem:[%s1 + $0x8e8] sm:$0xff]
      %v1421 = vld [vmem:[%s1 + $0x8f0] sm:$0xff]
      %v1422 = vld [vmem:[%s1 + $0x8f8] sm:$0xff]
      %v1423 = vld [vmem:[%s1 + $0x900] sm:$0xff]
      %v1424 = vld [vmem:[%s1 + $0x908] sm:$0xff]
      %v1425 = vld [vmem:[%s1 + $0x910] sm:$0xff]
      %v1426 = vld [vmem:[%s1 + $0x918] sm:$0xff]
      %v1427 = vld [vmem:[%s1 + $0x920] sm:$0xff]
      %v1428 = vld [vmem:[%s1 + $0x928] sm:$0xff]
      %v1429 = vld [vmem:[%s1 + $0x930] sm:$0xff]
      %v1430 = vld [vmem:[%s1 + $0x938] sm:$0xff]
      %v1431 = vld [vmem:[%s1 + $0x940] sm:$0xff]
      %v1432 = vld [vmem:[%s1 + $0x948] sm:$0xff]
      %v1433 = vld [vmem:[%s1 + $0x950] sm:$0xff]
      %v1434 = vld [vmem:[%s1 + $0x958] sm:$0xff]
      %v1435 = vld [vmem:[%s1 + $0x960] sm:$0xff]
      %v1436 = vld [vmem:[%s1 + $0x968] sm:$0xff]
      %v1437 = vld [vmem:[%s1 + $0x970] sm:$0xff]
      %v1438 = vld [vmem:[%s1 + $0x978] sm:$0xff]
      %v1439 = vld [vmem:[%s1 + $0x980] sm:$0xff]
      %v1440 = vld [vmem:[%s1 + $0x988] sm:$0xff]
      %v1441 = vld [vmem:[%s1 + $0x990] sm:$0xff]
      %v1442 = vld [vmem:[%s1 + $0x998] sm:$0xff]
      %v1443 = vld [vmem:[%s1 + $0x9a0] sm:$0xff]
      %v1444 = vld [vmem:[%s1 + $0x9a8] sm:$0xff]
      %v1445 = vld [vmem:[%s1 + $0x9b0] sm:$0xff]
      %v1446 = vld [vmem:[%s1 + $0x9b8] sm:$0xff]
      %v1447 = vld [vmem:[%s1 + $0x9c0] sm:$0xff]
      %v1448 = vld [vmem:[%s1 + $0x9c8] sm:$0xff]
      %v1449 = vld [vmem:[%s1 + $0x9d0] sm:$0xff]
      %v1450 = vld [vmem:[%s1 + $0x9d8] sm:$0xff]
      %v1451 = vld [vmem:[%s1 + $0x9e0] sm:$0xff]
      %v1452 = vld [vmem:[%s1 + $0x9e8] sm:$0xff]
      %v1453 = vld [vmem:[%s1 + $0x9f0] sm:$0xff]
      %v1454 = vld [vmem:[%s1 + $0x9f8] sm:$0xff]
      %v1455 = vld [vmem:[%s1 + $0xa00] sm:$0xff]
      %v1456 = vld [vmem:[%s1 + $0xa08] sm:$0xff]
      %v1457 = vld [vmem:[%s1 + $0xa10] sm:$0xff]
      %v1458 = vld [vmem:[%s1 + $0xa18] sm:$0xff]
      %v1459 = vld [vmem:[%s1 + $0xa20] sm:$0xff]
      %v1460 = vld [vmem:[%s1 + $0xa28] sm:$0xff]
      %v1461 = vld [vmem:[%s1 + $0xa30] sm:$0xff]
      %v1462 = vld [vmem:[%s1 + $0xa38] sm:$0xff]
      %v1463 = vld [vmem:[%s1 + $0xa40] sm:$0xff]
      %v1464 = vld [vmem:[%s1 + $0xa48] sm:$0xff]
      %v1465 = vld [vmem:[%s1 + $0xa50] sm:$0xff]
      %v1466 = vld [vmem:[%s1 + $0xa58] sm:$0xff]
      %v1467 = vld [vmem:[%s1 + $0xa60] sm:$0xff]
      %v1468 = vld [vmem:[%s1 + $0xa68] sm:$0xff]
      %v1469 = vld [vmem:[%s1 + $0xa70] sm:$0xff]
      %v1470 = vld [vmem:[%s1 + $0xa78] sm:$0xff]
      %v1471 = vld [vmem:[%s1 + $0xa80] sm:$0xff]
      %v1472 = vld [vmem:[%s1 + $0xa88] sm:$0xff]
      %v1473 = vld [vmem:[%s1 + $0xa90] sm:$0xff]
      %v1474 = vld [vmem:[%s1 + $0xa98] sm:$0xff]
      %v1475 = vld [vmem:[%s1 + $0xaa0] sm:$0xff]
      %v1476 = vld [vmem:[%s1 + $0xaa8] sm:$0xff]
      %v1477 = vld [vmem:[%s1 + $0xab0] sm:$0xff]
      %v1478 = vld [vmem:[%s1 + $0xab8] sm:$0xff]
      %v1479 = vld [vmem:[%s1 + $0xac0] sm:$0xff]
      %v1480 = vld [vmem:[%s1 + $0xac8] sm:$0xff]
      %v1481 = vld [vmem:[%s1 + $0xad0] sm:$0xff]
      %v1482 = vld [vmem:[%s1 + $0xad8] sm:$0xff]
      %v1483 = vld [vmem:[%s1 + $0xae0] sm:$0xff]
      %v1484 = vld [vmem:[%s1 + $0xae8] sm:$0xff]
      %v1485 = vld [vmem:[%s1 + $0xaf0] sm:$0xff]
      %v1486 = vld [vmem:[%s1 + $0xaf8] sm:$0xff]
      %v1487 = vld [vmem:[%s1 + $0xb00] sm:$0xff]
      %v1488 = vld [vmem:[%s1 + $0xb08] sm:$0xff]
      %v1489 = vld [vmem:[%s1 + $0xb10] sm:$0xff]
      %v1490 = vld [vmem:[%s1 + $0xb18] sm:$0xff]
      %v1491 = vld [vmem:[%s1 + $0xb20] sm:$0xff]
      %v1492 = vld [vmem:[%s1 + $0xb28] sm:$0xff]
      %v1493 = vld [vmem:[%s1 + $0xb30] sm:$0xff]
      %v1494 = vld [vmem:[%s1 + $0xb38] sm:$0xff]
      %v1495 = vld [vmem:[%s1 + $0xb40] sm:$0xff]
      %v1496 = vld [vmem:[%s1 + $0xb48] sm:$0xff]
      %v1497 = vld [vmem:[%s1 + $0xb50] sm:$0xff]
      %v1498 = vld [vmem:[%s1 + $0xb58] sm:$0xff]
      %v1499 = vld [vmem:[%s1 + $0xb60] sm:$0xff]
      %v1500 = vld [vmem:[%s1 + $0xb68] sm:$0xff]
      %v1501 = vld [vmem:[%s1 + $0xb70] sm:$0xff]
      %v1502 = vld [vmem:[%s1 + $0xb78] sm:$0xff]
      %v1503 = vld [vmem:[%s1 + $0xb80] sm:$0xff]
      %v1504 = vld [vmem:[%s1 + $0xb88] sm:$0xff]
      %v1505 = vld [vmem:[%s1 + $0xb90] sm:$0xff]
      %v1506 = vld [vmem:[%s1 + $0xb98] sm:$0xff]
      %v1507 = vld [vmem:[%s1 + $0xba0] sm:$0xff]
      %v1508 = vld [vmem:[%s1 + $0xba8] sm:$0xff]
      %v1509 = vld [vmem:[%s1 + $0xbb0] sm:$0xff]
      %v1510 = vld [vmem:[%s1 + $0xbb8] sm:$0xff]
      %v1511 = vld [vmem:[%s1 + $0xbc0] sm:$0xff]
      %v1512 = vld [vmem:[%s1 + $0xbc8] sm:$0xff]
      %v1513 = vld [vmem:[%s1 + $0xbd0] sm:$0xff]
      %v1514 = vld [vmem:[%s1 + $0xbd8] sm:$0xff]
      %v1515 = vld [vmem:[%s1 + $0xbe0] sm:$0xff]
      %v1516 = vld [vmem:[%s1 + $0xbe8] sm:$0xff]
      %v1517 = vld [vmem:[%s1 + $0xbf0] sm:$0xff]
      %v1518 = vld [vmem:[%s1 + $0xbf8] sm:$0xff]
      %v1519 = vld [vmem:[%s1 + $0xc00] sm:$0xff]
      %v1520 = vld [vmem:[%s1 + $0xc08] sm:$0xff]
      %v1521 = vld [vmem:[%s1 + $0xc10] sm:$0xff]
      %v1522 = vld [vmem:[%s1 + $0xc18] sm:$0xff]
      %v1523 = vld [vmem:[%s1 + $0xc20] sm:$0xff]
      %v1524 = vld [vmem:[%s1 + $0xc28] sm:$0xff]
      %v1525 = vld [vmem:[%s1 + $0xc30] sm:$0xff]
      %v1526 = vld [vmem:[%s1 + $0xc38] sm:$0xff]
      %v1527 = vld [vmem:[%s1 + $0xc40] sm:$0xff]
      %v1528 = vld [vmem:[%s1 + $0xc48] sm:$0xff]
      %v1529 = vld [vmem:[%s1 + $0xc50] sm:$0xff]
      %v1530 = vld [vmem:[%s1 + $0xc58] sm:$0xff]
      %v1531 = vld [vmem:[%s1 + $0xc60] sm:$0xff]
      %v1532 = vld [vmem:[%s1 + $0xc68] sm:$0xff]
      %v1533 = vld [vmem:[%s1 + $0xc70] sm:$0xff]
      %v1534 = vld [vmem:[%s1 + $0xc78] sm:$0xff]
      %v1535 = vld [vmem:[%s1 + $0xc80] sm:$0xff]
      %v1536 = vld [vmem:[%s1 + $0xc88] sm:$0xff]
      %v1537 = vld [vmem:[%s1 + $0xc90] sm:$0xff]
      %v1538 = vld [vmem:[%s1 + $0xc98] sm:$0xff]
      %v1539 = vld [vmem:[%s1 + $0xca0] sm:$0xff]
      %v1540 = vld [vmem:[%s1 + $0xca8] sm:$0xff]
      %v1541 = vld [vmem:[%s1 + $0xcb0] sm:$0xff]
      %v1542 = vld [vmem:[%s1 + $0xcb8] sm:$0xff]
      %v1543 = vld [vmem:[%s1 + $0xcc0] sm:$0xff]
      %v1544 = vld [vmem:[%s1 + $0xcc8] sm:$0xff]
      %v1545 = vld [vmem:[%s1 + $0xcd0] sm:$0xff]
      %v1546 = vld [vmem:[%s1 + $0xcd8] sm:$0xff]
      %v1547 = vld [vmem:[%s1 + $0xce0] sm:$0xff]
      %v1548 = vld [vmem:[%s1 + $0xce8] sm:$0xff]
      %v1549 = vld [vmem:[%s1 + $0xcf0] sm:$0xff]
      %v1550 = vld [vmem:[%s1 + $0xcf8] sm:$0xff]
      %v1551 = vld [vmem:[%s1 + $0xd00] sm:$0xff]
      %v1552 = vld [vmem:[%s1 + $0xd08] sm:$0xff]
      %v1553 = vld [vmem:[%s1 + $0xd10] sm:$0xff]
      %v1554 = vld [vmem:[%s1 + $0xd18] sm:$0xff]
      %v1555 = vld [vmem:[%s1 + $0xd20] sm:$0xff]
      %v1556 = vld [vmem:[%s1 + $0xd28] sm:$0xff]
      %v1557 = vld [vmem:[%s1 + $0xd30] sm:$0xff]
      %v1558 = vld [vmem:[%s1 + $0xd38] sm:$0xff]
      %v1559 = vld [vmem:[%s1 + $0xd40] sm:$0xff]
      %v1560 = vld [vmem:[%s1 + $0xd48] sm:$0xff]
      %v1561 = vld [vmem:[%s1 + $0xd50] sm:$0xff]
      %v1562 = vld [vmem:[%s1 + $0xd58] sm:$0xff]
      %v1563 = vld [vmem:[%s1 + $0xd60] sm:$0xff]
      %v1564 = vld [vmem:[%s1 + $0xd68] sm:$0xff]
      %v1565 = vld [vmem:[%s1 + $0xd70] sm:$0xff]
      %v1566 = vld [vmem:[%s1 + $0xd78] sm:$0xff]
      %v1567 = vld [vmem:[%s1 + $0xd80] sm:$0xff]
      %v1568 = vld [vmem:[%s1 + $0xd88] sm:$0xff]
      %v1569 = vld [vmem:[%s1 + $0xd90] sm:$0xff]
      %v1570 = vld [vmem:[%s1 + $0xd98] sm:$0xff]
      %v1571 = vld [vmem:[%s1 + $0xda0] sm:$0xff]
      %v1572 = vld [vmem:[%s1 + $0xda8] sm:$0xff]
      %v1573 = vld [vmem:[%s1 + $0xdb0] sm:$0xff]
      %v1574 = vld [vmem:[%s1 + $0xdb8] sm:$0xff]
      %v1575 = vld [vmem:[%s1 + $0xdc0] sm:$0xff]
      %v1576 = vld [vmem:[%s1 + $0xdc8] sm:$0xff]
      %v1577 = vld [vmem:[%s1 + $0xdd0] sm:$0xff]
      %v1578 = vld [vmem:[%s1 + $0xdd8] sm:$0xff]
      %v1579 = vld [vmem:[%s1 + $0xde0] sm:$0xff]
      %v1580 = vld [vmem:[%s1 + $0xde8] sm:$0xff]
      %v1581 = vld [vmem:[%s1 + $0xdf0] sm:$0xff]
      %v1582 = vld [vmem:[%s1 + $0xdf8] sm:$0xff]
      %v1583 = vld [vmem:[%s1 + $0xe00] sm:$0xff]
      %v1584 = vld [vmem:[%s1 + $0xe08] sm:$0xff]
      %v1585 = vld [vmem:[%s1 + $0xe10] sm:$0xff]
      %v1586 = vld [vmem:[%s1 + $0xe18] sm:$0xff]
      %v1587 = vld [vmem:[%s1 + $0xe20] sm:$0xff]
      %v1588 = vld [vmem:[%s1 + $0xe28] sm:$0xff]
      %v1589 = vld [vmem:[%s1 + $0xe30] sm:$0xff]
      %v1590 = vld [vmem:[%s1 + $0xe38] sm:$0xff]
      %v1591 = vld [vmem:[%s1 + $0xe40] sm:$0xff]
      %v1592 = vld [vmem:[%s1 + $0xe48] sm:$0xff]
      %v1593 = vld [vmem:[%s1 + $0xe50] sm:$0xff]
      %v1594 = vld [vmem:[%s1 + $0xe58] sm:$0xff]
      %v1595 = vld [vmem:[%s1 + $0xe60] sm:$0xff]
      %v1596 = vld [vmem:[%s1 + $0xe68] sm:$0xff]
      %v1597 = vld [vmem:[%s1 + $0xe70] sm:$0xff]
      %v1598 = vld [vmem:[%s1 + $0xe78] sm:$0xff]
      %v1599 = vld [vmem:[%s1 + $0xe80] sm:$0xff]
      %v1600 = vld [vmem:[%s1 + $0xe88] sm:$0xff]
      %v1601 = vld [vmem:[%s1 + $0xe90] sm:$0xff]
      %v1602 = vld [vmem:[%s1 + $0xe98] sm:$0xff]
      %v1603 = vld [vmem:[%s1 + $0xea0] sm:$0xff]
      %v1604 = vld [vmem:[%s1 + $0xea8] sm:$0xff]
      %v1605 = vld [vmem:[%s1 + $0xeb0] sm:$0xff]
      %v1606 = vld [vmem:[%s1 + $0xeb8] sm:$0xff]
      %v1607 = vld [vmem:[%s1 + $0xec0] sm:$0xff]
      %v1608 = vld [vmem:[%s1 + $0xec8] sm:$0xff]
      %v1609 = vld [vmem:[%s1 + $0xed0] sm:$0xff]
      %v1610 = vld [vmem:[%s1 + $0xed8] sm:$0xff]
      %v1611 = vld [vmem:[%s1 + $0xee0] sm:$0xff]
      %v1612 = vld [vmem:[%s1 + $0xee8] sm:$0xff]
      %v1613 = vld [vmem:[%s1 + $0xef0] sm:$0xff]
      %v1614 = vld [vmem:[%s1 + $0xef8] sm:$0xff]
      %v1615 = vld [vmem:[%s1 + $0xf00] sm:$0xff]
      %v1616 = vld [vmem:[%s1 + $0xf08] sm:$0xff]
      %v1617 = vld [vmem:[%s1 + $0xf10] sm:$0xff]
      %v1618 = vld [vmem:[%s1 + $0xf18] sm:$0xff]
      %v1619 = vld [vmem:[%s1 + $0xf20] sm:$0xff]
      %v1620 = vld [vmem:[%s1 + $0xf28] sm:$0xff]
      %v1621 = vld [vmem:[%s1 + $0xf30] sm:$0xff]
      %v1622 = vld [vmem:[%s1 + $0xf38] sm:$0xff]
      %v1623 = vld [vmem:[%s1 + $0xf40] sm:$0xff]
      %v1624 = vld [vmem:[%s1 + $0xf48] sm:$0xff]
      %v1625 = vld [vmem:[%s1 + $0xf50] sm:$0xff]
      %v1626 = vld [vmem:[%s1 + $0xf58] sm:$0xff]
      %v1627 = vld [vmem:[%s1 + $0xf60] sm:$0xff]
      %v1628 = vld [vmem:[%s1 + $0xf68] sm:$0xff]
      %v1629 = vld [vmem:[%s1 + $0xf70] sm:$0xff]
      %v1630 = vld [vmem:[%s1 + $0xf78] sm:$0xff]
      %v1631 = vld [vmem:[%s1 + $0xf80] sm:$0xff]
      %v1632 = vld [vmem:[%s1 + $0xf88] sm:$0xff]
      %v1633 = vld [vmem:[%s1 + $0xf90] sm:$0xff]
      %v1634 = vld [vmem:[%s1 + $0xf98] sm:$0xff]
      %v1635 = vld [vmem:[%s1 + $0xfa0] sm:$0xff]
      %v1636 = vld [vmem:[%s1 + $0xfa8] sm:$0xff]
      %v1637 = vld [vmem:[%s1 + $0xfb0] sm:$0xff]
      %v1638 = vld [vmem:[%s1 + $0xfb8] sm:$0xff]
      %v1639 = vld [vmem:[%s1 + $0xfc0] sm:$0xff]
      %v1640 = vld [vmem:[%s1 + $0xfc8] sm:$0xff]
      %v1641 = vld [vmem:[%s1 + $0xfd0] sm:$0xff]
      %v1642 = vld [vmem:[%s1 + $0xfd8] sm:$0xff]
      %v1643 = vld [vmem:[%s1 + $0xfe0] sm:$0xff]
      %v1644 = vld [vmem:[%s1 + $0xfe8] sm:$0xff]
      %v1645 = vld [vmem:[%s1 + $0xff0] sm:$0xff]
      %v1646 = vld [vmem:[%s1 + $0xff8] sm:$0xff]
      %v1647 = vld [vmem:[%s1 + $0x1000] sm:$0xff]
      %v1648 = vld [vmem:[%s1 + $0x1008] sm:$0xff]
      %v1649 = vld [vmem:[%s1 + $0x1010] sm:$0xff]
      %v1650 = vld [vmem:[%s1 + $0x1018] sm:$0xff]
      %v1651 = vld [vmem:[%s1 + $0x1020] sm:$0xff]
      %v1652 = vld [vmem:[%s1 + $0x1028] sm:$0xff]
      %v1653 = vld [vmem:[%s1 + $0x1030] sm:$0xff]
      %v1654 = vld [vmem:[%s1 + $0x1038] sm:$0xff]
      %v1655 = vld [vmem:[%s1 + $0x1040] sm:$0xff]
      %v1656 = vld [vmem:[%s1 + $0x1048] sm:$0xff]
      %v1657 = vld [vmem:[%s1 + $0x1050] sm:$0xff]
      %v1658 = vld [vmem:[%s1 + $0x1058] sm:$0xff]
      %v1659 = vld [vmem:[%s1 + $0x1060] sm:$0xff]
      %v1660 = vld [vmem:[%s1 + $0x1068] sm:$0xff]
      %v1661 = vld [vmem:[%s1 + $0x1070] sm:$0xff]
      %v1662 = vld [vmem:[%s1 + $0x1078] sm:$0xff]
      %v1663 = vld [vmem:[%s1 + $0x1080] sm:$0xff]
      %v1664 = vld [vmem:[%s1 + $0x1088] sm:$0xff]
      %v1665 = vld [vmem:[%s1 + $0x1090] sm:$0xff]
      %v1666 = vld [vmem:[%s1 + $0x1098] sm:$0xff]
      %v1667 = vld [vmem:[%s1 + $0x10a0] sm:$0xff]
      %v1668 = vld [vmem:[%s1 + $0x10a8] sm:$0xff]
      %v1669 = vld [vmem:[%s1 + $0x10b0] sm:$0xff]
      %v1670 = vld [vmem:[%s1 + $0x10b8] sm:$0xff]
      %v1671 = vld [vmem:[%s1 + $0x10c0] sm:$0xff]
      %v1672 = vld [vmem:[%s1 + $0x10c8] sm:$0xff]
      %v1673 = vld [vmem:[%s1 + $0x10d0] sm:$0xff]
      %v1674 = vld [vmem:[%s1 + $0x10d8] sm:$0xff]
      %v1675 = vld [vmem:[%s1 + $0x10e0] sm:$0xff]
      %v1676 = vld [vmem:[%s1 + $0x10e8] sm:$0xff]
      %v1677 = vld [vmem:[%s1 + $0x10f0] sm:$0xff]
      %v1678 = vld [vmem:[%s1 + $0x10f8] sm:$0xff]
      %v1679 = vld [vmem:[%s1 + $0x1100] sm:$0xff]
      %v1680 = vld [vmem:[%s1 + $0x1108] sm:$0xff]
      %v1681 = vld [vmem:[%s1 + $0x1110] sm:$0xff]
      %v1682 = vld [vmem:[%s1 + $0x1118] sm:$0xff]
      %v1683 = vld [vmem:[%s1 + $0x1120] sm:$0xff]
      %v1684 = vld [vmem:[%s1 + $0x1128] sm:$0xff]
      %v1685 = vld [vmem:[%s1 + $0x1130] sm:$0xff]
      %v1686 = vld [vmem:[%s1 + $0x1138] sm:$0xff]
      %v1687 = vld [vmem:[%s1 + $0x1140] sm:$0xff]
      %v1688 = vld [vmem:[%s1 + $0x1148] sm:$0xff]
      %v1689 = vld [vmem:[%s1 + $0x1150] sm:$0xff]
      %v1690 = vld [vmem:[%s1 + $0x1158] sm:$0xff]
      %v1691 = vld [vmem:[%s1 + $0x1160] sm:$0xff]
      %v1692 = vld [vmem:[%s1 + $0x1168] sm:$0xff]
      %v1693 = vld [vmem:[%s1 + $0x1170] sm:$0xff]
      %v1694 = vld [vmem:[%s1 + $0x1178] sm:$0xff]
      %v1695 = vld [vmem:[%s1 + $0x1180] sm:$0xff]
      %v1696 = vld [vmem:[%s1 + $0x1188] sm:$0xff]
      %v1697 = vld [vmem:[%s1 + $0x1190] sm:$0xff]
      %v1698 = vld [vmem:[%s1 + $0x1198] sm:$0xff]
      %v1699 = vld [vmem:[%s1 + $0x11a0] sm:$0xff]
      %v1700 = vld [vmem:[%s1 + $0x11a8] sm:$0xff]
      %v1701 = vld [vmem:[%s1 + $0x11b0] sm:$0xff]
      %v1702 = vld [vmem:[%s1 + $0x11b8] sm:$0xff]
      %v1703 = vld [vmem:[%s1 + $0x11c0] sm:$0xff]
      %v1704 = vld [vmem:[%s1 + $0x11c8] sm:$0xff]
      %v1705 = vld [vmem:[%s1 + $0x11d0] sm:$0xff]
      %v1706 = vld [vmem:[%s1 + $0x11d8] sm:$0xff]
      %v1707 = vld [vmem:[%s1 + $0x11e0] sm:$0xff]
      %v1708 = vld [vmem:[%s1 + $0x11e8] sm:$0xff]
      %v1709 = vld [vmem:[%s1 + $0x11f0] sm:$0xff]
      %v1710 = vld [vmem:[%s1 + $0x11f8] sm:$0xff]
      %1711 = vmatprep.subr.mxu0 0.0
      %1712 = vmatpush1.msra.mxu0 %v1071
      %1713 = vmatprep.subr.mxu0 0.0
      %1714 = vmatpush1.msra.mxu0 %v1072
      %1715 = vmatprep.subr.mxu0 0.0
      %1716 = vmatpush1.msra.mxu0 %v1073
      %1717 = vmatprep.subr.mxu0 0.0
      %1718 = vmatpush1.msra.mxu0 %v1074
      %1719 = vmatprep.subr.mxu0 0.0
      %1720 = vmatpush1.msra.mxu0 %v1075
      %1721 = vmatprep.subr.mxu0 0.0
      %1722 = vmatpush1.msra.mxu0 %v1076
      %1723 = vmatprep.subr.mxu0 0.0
      %1724 = vmatpush1.msra.mxu0 %v1077
      %1725 = vmatprep.subr.mxu0 0.0
      %1726 = vmatpush1.msra.mxu0 %v1078
      %1727 = vmatprep.subr.mxu0 0.0
      %1728 = vmatpush1.msra.mxu0 %v1079
      %1729 = vmatprep.subr.mxu0 0.0
      %1730 = vmatpush1.msra.mxu0 %v1080
      %1731 = vmatprep.subr.mxu0 0.0
      %1732 = vmatpush1.msra.mxu0 %v1081
      %1733 = vmatprep.subr.mxu0 0.0
      %1734 = vmatpush1.msra.mxu0 %v1082
      %1735 = vmatprep.subr.mxu0 0.0
      %1736 = vmatpush1.msra.mxu0 %v1083
      %1737 = vmatprep.subr.mxu0 0.0
      %1738 = vmatpush1.msra.mxu0 %v1084
      %1739 = vmatprep.subr.mxu0 0.0
      %1740 = vmatpush1.msra.mxu0 %v1085
      %1741 = vmatprep.subr.mxu0 0.0
      %1742 = vmatpush1.msra.mxu0 %v1086
      %1743 = vmatprep.subr.mxu0 0.0
      %1744 = vmatpush1.msra.mxu0 %v1087
      %1745 = vmatprep.subr.mxu0 0.0
      %1746 = vmatpush1.msra.mxu0 %v1088
      %1747 = vmatprep.subr.mxu0 0.0
      %1748 = vmatpush1.msra.mxu0 %v1089
      %1749 = vmatprep.subr.mxu0 0.0
      %1750 = vmatpush1.msra.mxu0 %v1090
      %1751 = vmatprep.subr.mxu0 0.0
      %1752 = vmatpush1.msra.mxu0 %v1091
      %1753 = vmatprep.subr.mxu0 0.0
      %1754 = vmatpush1.msra.mxu0 %v1092
      %1755 = vmatprep.subr.mxu0 0.0
      %1756 = vmatpush1.msra.mxu0 %v1093
      %1757 = vmatprep.subr.mxu0 0.0
      %1758 = vmatpush1.msra.mxu0 %v1094
      %1759 = vmatprep.subr.mxu0 0.0
      %1760 = vmatpush1.msra.mxu0 %v1095
      %1761 = vmatprep.subr.mxu0 0.0
      %1762 = vmatpush1.msra.mxu0 %v1096
      %1763 = vmatprep.subr.mxu0 0.0
      %1764 = vmatpush1.msra.mxu0 %v1097
      %1765 = vmatprep.subr.mxu0 0.0
      %1766 = vmatpush1.msra.mxu0 %v1098
      %1767 = vmatprep.subr.mxu0 0.0
      %1768 = vmatpush1.msra.mxu0 %v1099
      %1769 = vmatprep.subr.mxu0 0.0
      %1770 = vmatpush1.msra.mxu0 %v1100
      %1771 = vmatprep.subr.mxu0 0.0
      %1772 = vmatpush1.msra.mxu0 %v1101
      %1773 = vmatprep.subr.mxu0 0.0
      %1774 = vmatpush1.msra.mxu0 %v1102
      %1775 = vmatprep.mubr.f32.mxu0 %v1136
      %1776 = vmatmul.mubr.f32.gmra.mrb[0].mxu0 %v1135
      %v1777 = vpop.f32.mrb[0].mxu0
      %v1778 = vadd.f32 0.0, %v1777
      %v1779 = vpop.f32.mrb[0].mxu0
      %1780 = vmatprep.mubr.f32.mxu0 %v1140
      %1781 = vmatmul.mubr.f32.gmra.mrb[0].mxu0 %v1139
      %v1782 = vpop.f32.mrb[0].mxu0
      %v1783 = vadd.f32 0.0, %v1782
      %v1784 = vpop.f32.mrb[0].mxu0
      %1785 = vmatprep.mubr.f32.mxu0 %v1144
      %1786 = vmatmul.mubr.f32.gmra.mrb[0].mxu0 %v1143
      %v1787 = vpop.f32.mrb[0].mxu0
      %v1788 = vadd.f32 0.0, %v1787
      %v1789 = vpop.f32.mrb[0].mxu0
      %1790 = vmatprep.mubr.f32.mxu0 %v1148
      %1791 = vmatmul.mubr.f32.gmra.mrb[0].mxu0 %v1147
      %v1792 = vpop.f32.mrb[0].mxu0
      %v1793 = vadd.f32 0.0, %v1792
      %v1794 = vpop.f32.mrb[0].mxu0
      %1795 = vmatprep.mubr.f32.mxu0 %v1152
      %1796 = vmatmul.mubr.f32.gmra.mrb[0].mxu0 %v1151
      %v1797 = vpop.f32.mrb[0].mxu0
      %v1798 = vadd.f32 0.0, %v1797
      %v1799 = vpop.f32.mrb[0].mxu0
      %1800 = vmatprep.mubr.f32.mxu0 %v1156
      %1801 = vmatmul.mubr.f32.gmra.mrb[0].mxu0 %v1155
      %v1802 = vpop.f32.mrb[0].mxu0
      %v1803 = vadd.f32 0.0, %v1802
      %v1804 = vpop.f32.mrb[0].mxu0
      %1805 = vmatprep.mubr.f32.mxu0 %v1160
      %1806 = vmatmul.mubr.f32.gmra.mrb[0].mxu0 %v1159
      %v1807 = vpop.f32.mrb[0].mxu0
      %v1808 = vadd.f32 0.0, %v1807
      %v1809 = vpop.f32.mrb[0].mxu0
      %1810 = vmatprep.mubr.f32.mxu0 %v1164
      %1811 = vmatmul.mubr.f32.gmra.mrb[0].mxu0 %v1163
      %v1812 = vpop.f32.mrb[0].mxu0
      %v1813 = vadd.f32 0.0, %v1812
      %v1814 = vpop.f32.mrb[0].mxu0
      %1815 = vmatprep.mubr.f32.mxu0 %v1168
      %1816 = vmatmul.mubr.f32.gmra.mrb[0].mxu0 %v1167
      %v1817 = vpop.f32.mrb[0].mxu0
      %v1818 = vadd.f32 0.0, %v1817
      %v1819 = vpop.f32.mrb[0].mxu0
      %1820 = vmatprep.mubr.f32.mxu0 %v1172
      %1821 = vmatmul.mubr.f32.gmra.mrb[0].mxu0 %v1171
      %v1822 = vpop.f32.mrb[0].mxu0
      %v1823 = vadd.f32 0.0, %v1822
      %v1824 = vpop.f32.mrb[0].mxu0
      %1825 = vmatprep.mubr.f32.mxu0 %v1176
      %1826 = vmatmul.mubr.f32.gmra.mrb[0].mxu0 %v1175
      %v1827 = vpop.f32.mrb[0].mxu0
      %v1828 = vadd.f32 0.0, %v1827
      %v1829 = vpop.f32.mrb[0].mxu0
      %1830 = vmatprep.mubr.f32.mxu0 %v1180
      %1831 = vmatmul.mubr.f32.gmra.mrb[0].mxu0 %v1179
      %v1832 = vpop.f32.mrb[0].mxu0
      %v1833 = vadd.f32 0.0, %v1832
      %v1834 = vpop.f32.mrb[0].mxu0
      %1835 = vmatprep.mubr.f32.mxu0 %v1184
      %1836 = vmatmul.mubr.f32.gmra.mrb[0].mxu0 %v1183
      %v1837 = vpop.f32.mrb[0].mxu0
      %v1838 = vadd.f32 0.0, %v1837
      %v1839 = vpop.f32.mrb[0].mxu0
      %1840 = vmatprep.mubr.f32.mxu0 %v1188
      %1841 = vmatmul.mubr.f32.gmra.mrb[0].mxu0 %v1187
      %v1842 = vpop.f32.mrb[0].mxu0
      %v1843 = vadd.f32 0.0, %v1842
      %v1844 = vpop.f32.mrb[0].mxu0
      %1845 = vmatprep.mubr.f32.mxu0 %v1192
      %1846 = vmatmul.mubr.f32.gmra.mrb[0].mxu0 %v1191
      %v1847 = vpop.f32.mrb[0].mxu0
      %v1848 = vadd.f32 0.0, %v1847
      %v1849 = vpop.f32.mrb[0].mxu0
      %1850 = vmatprep.mubr.f32.mxu0 %v1196
      %1851 = vmatmul.mubr.f32.gmra.mrb[0].mxu0 %v1195
      %v1852 = vpop.f32.mrb[0].mxu0
      %v1853 = vadd.f32 0.0, %v1852
      %v1854 = vpop.f32.mrb[0].mxu0
      %1855 = vmatprep.mubr.f32.mxu0 %v1200
      %1856 = vmatmul.mubr.f32.gmra.mrb[0].mxu0 %v1199
      %v1857 = vpop.f32.mrb[0].mxu0
      %v1858 = vadd.f32 0.0, %v1857
      %v1859 = vpop.f32.mrb[0].mxu0
      %1860 = vmatprep.mubr.f32.mxu0 %v1204
      %1861 = vmatmul.mubr.f32.gmra.mrb[0].mxu0 %v1203
      %v1862 = vpop.f32.mrb[0].mxu0
      %v1863 = vadd.f32 0.0, %v1862
      %v1864 = vpop.f32.mrb[0].mxu0
      %1865 = vmatprep.mubr.f32.mxu0 %v1208
      %1866 = vmatmul.mubr.f32.gmra.mrb[0].mxu0 %v1207
      %v1867 = vpop.f32.mrb[0].mxu0
      %v1868 = vadd.f32 0.0, %v1867
      %v1869 = vpop.f32.mrb[0].mxu0
      %1870 = vmatprep.mubr.f32.mxu0 %v1212
      %1871 = vmatmul.mubr.f32.gmra.mrb[0].mxu0 %v1211
      %v1872 = vpop.f32.mrb[0].mxu0
      %v1873 = vadd.f32 0.0, %v1872
      %v1874 = vpop.f32.mrb[0].mxu0
      %1875 = vmatprep.mubr.f32.mxu0 %v1216
      %1876 = vmatmul.mubr.f32.gmra.mrb[0].mxu0 %v1215
      %v1877 = vpop.f32.mrb[0].mxu0
      %v1878 = vadd.f32 0.0, %v1877
      %v1879 = vpop.f32.mrb[0].mxu0
      %1880 = vmatprep.mubr.f32.mxu0 %v1220
      %1881 = vmatmul.mubr.f32.gmra.mrb[0].mxu0 %v1219
      %v1882 = vpop.f32.mrb[0].mxu0
      %v1883 = vadd.f32 0.0, %v1882
      %v1884 = vpop.f32.mrb[0].mxu0
      %1885 = vmatprep.mubr.f32.mxu0 %v1224
      %1886 = vmatmul.mubr.f32.gmra.mrb[0].mxu0 %v1223
      %v1887 = vpop.f32.mrb[0].mxu0
      %v1888 = vadd.f32 0.0, %v1887
      %v1889 = vpop.f32.mrb[0].mxu0
      %1890 = vmatprep.mubr.f32.mxu0 %v1228
      %1891 = vmatmul.mubr.f32.gmra.mrb[0].mxu0 %v1227
      %v1892 = vpop.f32.mrb[0].mxu0
      %v1893 = vadd.f32 0.0, %v1892
      %v1894 = vpop.f32.mrb[0].mxu0
      %1895 = vmatprep.mubr.f32.mxu0 %v1232
      %1896 = vmatmul.mubr.f32.gmra.mrb[0].mxu0 %v1231
      %v1897 = vpop.f32.mrb[0].mxu0
      %v1898 = vadd.f32 0.0, %v1897
      %v1899 = vpop.f32.mrb[0].mxu0
      %1900 = vmatprep.mubr.f32.mxu0 %v1236
      %1901 = vmatmul.mubr.f32.gmra.mrb[0].mxu0 %v1235
      %v1902 = vpop.f32.mrb[0].mxu0
      %v1903 = vadd.f32 0.0, %v1902
      %v1904 = vpop.f32.mrb[0].mxu0
      %1905 = vmatprep.mubr.f32.mxu0 %v1240
      %1906 = vmatmul.mubr.f32.gmra.mrb[0].mxu0 %v1239
      %v1907 = vpop.f32.mrb[0].mxu0
      %v1908 = vadd.f32 0.0, %v1907
      %v1909 = vpop.f32.mrb[0].mxu0
      %1910 = vmatprep.mubr.f32.mxu0 %v1244
      %1911 = vmatmul.mubr.f32.gmra.mrb[0].mxu0 %v1243
      %v1912 = vpop.f32.mrb[0].mxu0
      %v1913 = vadd.f32 0.0, %v1912
      %v1914 = vpop.f32.mrb[0].mxu0
      %1915 = vmatprep.mubr.f32.mxu0 %v1248
      %1916 = vmatmul.mubr.f32.gmra.mrb[0].mxu0 %v1247
      %v1917 = vpop.f32.mrb[0].mxu0
      %v1918 = vadd.f32 0.0, %v1917
      %v1919 = vpop.f32.mrb[0].mxu0
      %1920 = vmatprep.mubr.f32.mxu0 %v1252
      %1921 = vmatmul.mubr.f32.gmra.mrb[0].mxu0 %v1251
      %v1922 = vpop.f32.mrb[0].mxu0
      %v1923 = vadd.f32 0.0, %v1922
      %v1924 = vpop.f32.mrb[0].mxu0
      %1925 = vmatprep.mubr.f32.mxu0 %v1256
      %1926 = vmatmul.mubr.f32.gmra.mrb[0].mxu0 %v1255
      %v1927 = vpop.f32.mrb[0].mxu0
      %v1928 = vadd.f32 0.0, %v1927
      %v1929 = vpop.f32.mrb[0].mxu0
      %1930 = vmatprep.mubr.f32.mxu0 %v1260
      %1931 = vmatmul.mubr.f32.gmra.mrb[0].mxu0 %v1259
      %v1932 = vpop.f32.mrb[0].mxu0
      %v1933 = vadd.f32 0.0, %v1932
      %v1934 = vpop.f32.mrb[0].mxu0
      %1935 = vmatprep.mubr.f32.mxu0 %v1264
      %1936 = vmatmul.mubr.f32.gmra.mrb[0].mxu0 %v1263
      %v1937 = vpop.f32.mrb[0].mxu0
      %v1938 = vadd.f32 0.0, %v1937
      %v1939 = vpop.f32.mrb[0].mxu0
      %1940 = vmatprep.mubr.f32.mxu0 %v1268
      %1941 = vmatmul.mubr.f32.gmra.mrb[0].mxu0 %v1267
      %v1942 = vpop.f32.mrb[0].mxu0
      %v1943 = vadd.f32 0.0, %v1942
      %v1944 = vpop.f32.mrb[0].mxu0
      %1945 = vmatprep.mubr.f32.mxu0 %v1272
      %1946 = vmatmul.mubr.f32.gmra.mrb[0].mxu0 %v1271
      %v1947 = vpop.f32.mrb[0].mxu0
      %v1948 = vadd.f32 0.0, %v1947
      %v1949 = vpop.f32.mrb[0].mxu0
      %1950 = vmatprep.mubr.f32.mxu0 %v1276
      %1951 = vmatmul.mubr.f32.gmra.mrb[0].mxu0 %v1275
      %v1952 = vpop.f32.mrb[0].mxu0
      %v1953 = vadd.f32 0.0, %v1952
      %v1954 = vpop.f32.mrb[0].mxu0
      %1955 = vmatprep.mubr.f32.mxu0 %v1280
      %1956 = vmatmul.mubr.f32.gmra.mrb[0].mxu0 %v1279
      %v1957 = vpop.f32.mrb[0].mxu0
      %v1958 = vadd.f32 0.0, %v1957
      %v1959 = vpop.f32.mrb[0].mxu0
      %1960 = vmatprep.mubr.f32.mxu0 %v1284
      %1961 = vmatmul.mubr.f32.gmra.mrb[0].mxu0 %v1283
      %v1962 = vpop.f32.mrb[0].mxu0
      %v1963 = vadd.f32 0.0, %v1962
      %v1964 = vpop.f32.mrb[0].mxu0
      %1965 = vmatprep.mubr.f32.mxu0 %v1288
      %1966 = vmatmul.mubr.f32.gmra.mrb[0].mxu0 %v1287
      %v1967 = vpop.f32.mrb[0].mxu0
      %v1968 = vadd.f32 0.0, %v1967
      %v1969 = vpop.f32.mrb[0].mxu0
      %1970 = vmatprep.mubr.f32.mxu0 %v1292
      %1971 = vmatmul.mubr.f32.gmra.mrb[0].mxu0 %v1291
      %v1972 = vpop.f32.mrb[0].mxu0
      %v1973 = vadd.f32 0.0, %v1972
      %v1974 = vpop.f32.mrb[0].mxu0
      %1975 = vmatprep.mubr.f32.mxu0 %v1296
      %1976 = vmatmul.mubr.f32.gmra.mrb[0].mxu0 %v1295
      %v1977 = vpop.f32.mrb[0].mxu0
      %v1978 = vadd.f32 0.0, %v1977
      %v1979 = vpop.f32.mrb[0].mxu0
      %1980 = vmatprep.mubr.f32.mxu0 %v1300
      %1981 = vmatmul.mubr.f32.gmra.mrb[0].mxu0 %v1299
      %v1982 = vpop.f32.mrb[0].mxu0
      %v1983 = vadd.f32 0.0, %v1982
      %v1984 = vpop.f32.mrb[0].mxu0
      %1985 = vmatprep.mubr.f32.mxu0 %v1304
      %1986 = vmatmul.mubr.f32.gmra.mrb[0].mxu0 %v1303
      %v1987 = vpop.f32.mrb[0].mxu0
      %v1988 = vadd.f32 0.0, %v1987
      %v1989 = vpop.f32.mrb[0].mxu0
      %1990 = vmatprep.mubr.f32.mxu0 %v1308
      %1991 = vmatmul.mubr.f32.gmra.mrb[0].mxu0 %v1307
      %v1992 = vpop.f32.mrb[0].mxu0
      %v1993 = vadd.f32 0.0, %v1992
      %v1994 = vpop.f32.mrb[0].mxu0
      %1995 = vmatprep.mubr.f32.mxu0 %v1312
      %1996 = vmatmul.mubr.f32.gmra.mrb[0].mxu0 %v1311
      %v1997 = vpop.f32.mrb[0].mxu0
      %v1998 = vadd.f32 0.0, %v1997
      %v1999 = vpop.f32.mrb[0].mxu0
      %2000 = vmatprep.mubr.f32.mxu0 %v1316
      %2001 = vmatmul.mubr.f32.gmra.mrb[0].mxu0 %v1315
      %v2002 = vpop.f32.mrb[0].mxu0
      %v2003 = vadd.f32 0.0, %v2002
      %v2004 = vpop.f32.mrb[0].mxu0
      %2005 = vmatprep.mubr.f32.mxu0 %v1320
      %2006 = vmatmul.mubr.f32.gmra.mrb[0].mxu0 %v1319
      %v2007 = vpop.f32.mrb[0].mxu0
      %v2008 = vadd.f32 0.0, %v2007
      %v2009 = vpop.f32.mrb[0].mxu0
      %2010 = vmatprep.mubr.f32.mxu0 %v1324
      %2011 = vmatmul.mubr.f32.gmra.mrb[0].mxu0 %v1323
      %v2012 = vpop.f32.mrb[0].mxu0
      %v2013 = vadd.f32 0.0, %v2012
      %v2014 = vpop.f32.mrb[0].mxu0
      %2015 = vmatprep.mubr.f32.mxu0 %v1328
      %2016 = vmatmul.mubr.f32.gmra.mrb[0].mxu0 %v1327
      %v2017 = vpop.f32.mrb[0].mxu0
      %v2018 = vadd.f32 0.0, %v2017
      %v2019 = vpop.f32.mrb[0].mxu0
      %2020 = vmatprep.mubr.f32.mxu0 %v1332
      %2021 = vmatmul.mubr.f32.gmra.mrb[0].mxu0 %v1331
      %v2022 = vpop.f32.mrb[0].mxu0
      %v2023 = vadd.f32 0.0, %v2022
      %v2024 = vpop.f32.mrb[0].mxu0
      %2025 = vmatprep.mubr.f32.mxu0 %v1336
      %2026 = vmatmul.mubr.f32.gmra.mrb[0].mxu0 %v1335
      %v2027 = vpop.f32.mrb[0].mxu0
      %v2028 = vadd.f32 0.0, %v2027
      %v2029 = vpop.f32.mrb[0].mxu0
      %2030 = vmatprep.mubr.f32.mxu0 %v1340
      %2031 = vmatmul.mubr.f32.gmra.mrb[0].mxu0 %v1339
      %v2032 = vpop.f32.mrb[0].mxu0
      %v2033 = vadd.f32 0.0, %v2032
      %v2034 = vpop.f32.mrb[0].mxu0
      %2035 = vmatprep.mubr.f32.mxu0 %v1344
      %2036 = vmatmul.mubr.f32.gmra.mrb[0].mxu0 %v1343
      %v2037 = vpop.f32.mrb[0].mxu0
      %v2038 = vadd.f32 0.0, %v2037
      %v2039 = vpop.f32.mrb[0].mxu0
      %2040 = vmatprep.mubr.f32.mxu0 %v1348
      %2041 = vmatmul.mubr.f32.gmra.mrb[0].mxu0 %v1347
      %v2042 = vpop.f32.mrb[0].mxu0
      %v2043 = vadd.f32 0.0, %v2042
      %v2044 = vpop.f32.mrb[0].mxu0
      %2045 = vmatprep.mubr.f32.mxu0 %v1352
      %2046 = vmatmul.mubr.f32.gmra.mrb[0].mxu0 %v1351
      %v2047 = vpop.f32.mrb[0].mxu0
      %v2048 = vadd.f32 0.0, %v2047
      %v2049 = vpop.f32.mrb[0].mxu0
      %2050 = vmatprep.mubr.f32.mxu0 %v1356
      %2051 = vmatmul.mubr.f32.gmra.mrb[0].mxu0 %v1355
      %v2052 = vpop.f32.mrb[0].mxu0
      %v2053 = vadd.f32 0.0, %v2052
      %v2054 = vpop.f32.mrb[0].mxu0
      %2055 = vmatprep.mubr.f32.mxu0 %v1360
      %2056 = vmatmul.mubr.f32.gmra.mrb[0].mxu0 %v1359
      %v2057 = vpop.f32.mrb[0].mxu0
      %v2058 = vadd.f32 0.0, %v2057
      %v2059 = vpop.f32.mrb[0].mxu0
      %2060 = vmatprep.mubr.f32.mxu0 %v1364
      %2061 = vmatmul.mubr.f32.gmra.mrb[0].mxu0 %v1363
      %v2062 = vpop.f32.mrb[0].mxu0
      %v2063 = vadd.f32 0.0, %v2062
      %v2064 = vpop.f32.mrb[0].mxu0
      %2065 = vmatprep.mubr.f32.mxu0 %v1368
      %2066 = vmatmul.mubr.f32.gmra.mrb[0].mxu0 %v1367
      %v2067 = vpop.f32.mrb[0].mxu0
      %v2068 = vadd.f32 0.0, %v2067
      %v2069 = vpop.f32.mrb[0].mxu0
      %2070 = vmatprep.mubr.f32.mxu0 %v1372
      %2071 = vmatmul.mubr.f32.gmra.mrb[0].mxu0 %v1371
      %v2072 = vpop.f32.mrb[0].mxu0
      %v2073 = vadd.f32 0.0, %v2072
      %v2074 = vpop.f32.mrb[0].mxu0
      %2075 = vmatprep.mubr.f32.mxu0 %v1376
      %2076 = vmatmul.mubr.f32.gmra.mrb[0].mxu0 %v1375
      %v2077 = vpop.f32.mrb[0].mxu0
      %v2078 = vadd.f32 0.0, %v2077
      %v2079 = vpop.f32.mrb[0].mxu0
      %2080 = vmatprep.mubr.f32.mxu0 %v1380
      %2081 = vmatmul.mubr.f32.gmra.mrb[0].mxu0 %v1379
      %v2082 = vpop.f32.mrb[0].mxu0
      %v2083 = vadd.f32 0.0, %v2082
      %v2084 = vpop.f32.mrb[0].mxu0
      %2085 = vmatprep.mubr.f32.mxu0 %v1384
      %2086 = vmatmul.mubr.f32.gmra.mrb[0].mxu0 %v1383
      %v2087 = vpop.f32.mrb[0].mxu0
      %v2088 = vadd.f32 0.0, %v2087
      %v2089 = vpop.f32.mrb[0].mxu0
      %2090 = vmatprep.mubr.f32.mxu0 %v1388
      %2091 = vmatmul.mubr.f32.gmra.mrb[0].mxu0 %v1387
      %v2092 = vpop.f32.mrb[0].mxu0
      %v2093 = vadd.f32 0.0, %v2092
      %v2094 = vpop.f32.mrb[0].mxu0
      %2095 = vmatprep.mubr.f32.mxu0 %v1392
      %2096 = vmatmul.mubr.f32.gmra.mrb[0].mxu0 %v1391
      %v2097 = vpop.f32.mrb[0].mxu0
      %v2098 = vadd.f32 0.0, %v2097
      %v2099 = vpop.f32.mrb[0].mxu0
      %2100 = vmatprep.mubr.f32.mxu0 %v1396
      %2101 = vmatmul.mubr.f32.gmra.mrb[0].mxu0 %v1395
      %v2102 = vpop.f32.mrb[0].mxu0
      %v2103 = vadd.f32 0.0, %v2102
      %v2104 = vpop.f32.mrb[0].mxu0
      %2105 = vmatprep.mubr.f32.mxu0 %v1400
      %2106 = vmatmul.mubr.f32.gmra.mrb[0].mxu0 %v1399
      %v2107 = vpop.f32.mrb[0].mxu0
      %v2108 = vadd.f32 0.0, %v2107
      %v2109 = vpop.f32.mrb[0].mxu0
      %2110 = vmatprep.mubr.f32.mxu0 %v1404
      %2111 = vmatmul.mubr.f32.gmra.mrb[0].mxu0 %v1403
      %v2112 = vpop.f32.mrb[0].mxu0
      %v2113 = vadd.f32 0.0, %v2112
      %v2114 = vpop.f32.mrb[0].mxu0
      %2115 = vmatprep.mubr.f32.mxu0 %v1408
      %2116 = vmatmul.mubr.f32.gmra.mrb[0].mxu0 %v1407
      %v2117 = vpop.f32.mrb[0].mxu0
      %v2118 = vadd.f32 0.0, %v2117
      %v2119 = vpop.f32.mrb[0].mxu0
      %2120 = vmatprep.mubr.f32.mxu0 %v1412
      %2121 = vmatmul.mubr.f32.gmra.mrb[0].mxu0 %v1411
      %v2122 = vpop.f32.mrb[0].mxu0
      %v2123 = vadd.f32 0.0, %v2122
      %v2124 = vpop.f32.mrb[0].mxu0
      %2125 = vmatprep.mubr.f32.mxu0 %v1416
      %2126 = vmatmul.mubr.f32.gmra.mrb[0].mxu0 %v1415
      %v2127 = vpop.f32.mrb[0].mxu0
      %v2128 = vadd.f32 0.0, %v2127
      %v2129 = vpop.f32.mrb[0].mxu0
      %2130 = vmatprep.mubr.f32.mxu0 %v1420
      %2131 = vmatmul.mubr.f32.gmra.mrb[0].mxu0 %v1419
      %v2132 = vpop.f32.mrb[0].mxu0
      %v2133 = vadd.f32 0.0, %v2132
      %v2134 = vpop.f32.mrb[0].mxu0
      %2135 = vmatprep.mubr.f32.mxu0 %v1424
      %2136 = vmatmul.mubr.f32.gmra.mrb[0].mxu0 %v1423
      %v2137 = vpop.f32.mrb[0].mxu0
      %v2138 = vadd.f32 0.0, %v2137
      %v2139 = vpop.f32.mrb[0].mxu0
      %2140 = vmatprep.mubr.f32.mxu0 %v1428
      %2141 = vmatmul.mubr.f32.gmra.mrb[0].mxu0 %v1427
      %v2142 = vpop.f32.mrb[0].mxu0
      %v2143 = vadd.f32 0.0, %v2142
      %v2144 = vpop.f32.mrb[0].mxu0
      %2145 = vmatprep.mubr.f32.mxu0 %v1432
      %2146 = vmatmul.mubr.f32.gmra.mrb[0].mxu0 %v1431
      %v2147 = vpop.f32.mrb[0].mxu0
      %v2148 = vadd.f32 0.0, %v2147
      %v2149 = vpop.f32.mrb[0].mxu0
      %2150 = vmatprep.mubr.f32.mxu0 %v1436
      %2151 = vmatmul.mubr.f32.gmra.mrb[0].mxu0 %v1435
      %v2152 = vpop.f32.mrb[0].mxu0
      %v2153 = vadd.f32 0.0, %v2152
      %v2154 = vpop.f32.mrb[0].mxu0
      %2155 = vmatprep.mubr.f32.mxu0 %v1440
      %2156 = vmatmul.mubr.f32.gmra.mrb[0].mxu0 %v1439
      %v2157 = vpop.f32.mrb[0].mxu0
      %v2158 = vadd.f32 0.0, %v2157
      %v2159 = vpop.f32.mrb[0].mxu0
      %2160 = vmatprep.mubr.f32.mxu0 %v1444
      %2161 = vmatmul.mubr.f32.gmra.mrb[0].mxu0 %v1443
      %v2162 = vpop.f32.mrb[0].mxu0
      %v2163 = vadd.f32 0.0, %v2162
      %v2164 = vpop.f32.mrb[0].mxu0
      %2165 = vmatprep.mubr.f32.mxu0 %v1448
      %2166 = vmatmul.mubr.f32.gmra.mrb[0].mxu0 %v1447
      %v2167 = vpop.f32.mrb[0].mxu0
      %v2168 = vadd.f32 0.0, %v2167
      %v2169 = vpop.f32.mrb[0].mxu0
      %2170 = vmatprep.mubr.f32.mxu0 %v1452
      %2171 = vmatmul.mubr.f32.gmra.mrb[0].mxu0 %v1451
      %v2172 = vpop.f32.mrb[0].mxu0
      %v2173 = vadd.f32 0.0, %v2172
      %v2174 = vpop.f32.mrb[0].mxu0
      %2175 = vmatprep.mubr.f32.mxu0 %v1456
      %2176 = vmatmul.mubr.f32.gmra.mrb[0].mxu0 %v1455
      %v2177 = vpop.f32.mrb[0].mxu0
      %v2178 = vadd.f32 0.0, %v2177
      %v2179 = vpop.f32.mrb[0].mxu0
      %2180 = vmatprep.mubr.f32.mxu0 %v1460
      %2181 = vmatmul.mubr.f32.gmra.mrb[0].mxu0 %v1459
      %v2182 = vpop.f32.mrb[0].mxu0
      %v2183 = vadd.f32 0.0, %v2182
      %v2184 = vpop.f32.mrb[0].mxu0
      %2185 = vmatprep.mubr.f32.mxu0 %v1464
      %2186 = vmatmul.mubr.f32.gmra.mrb[0].mxu0 %v1463
      %v2187 = vpop.f32.mrb[0].mxu0
      %v2188 = vadd.f32 0.0, %v2187
      %v2189 = vpop.f32.mrb[0].mxu0
      %2190 = vmatprep.mubr.f32.mxu0 %v1468
      %2191 = vmatmul.mubr.f32.gmra.mrb[0].mxu0 %v1467
      %v2192 = vpop.f32.mrb[0].mxu0
      %v2193 = vadd.f32 0.0, %v2192
      %v2194 = vpop.f32.mrb[0].mxu0
      %2195 = vmatprep.mubr.f32.mxu0 %v1472
      %2196 = vmatmul.mubr.f32.gmra.mrb[0].mxu0 %v1471
      %v2197 = vpop.f32.mrb[0].mxu0
      %v2198 = vadd.f32 0.0, %v2197
      %v2199 = vpop.f32.mrb[0].mxu0
      %2200 = vmatprep.mubr.f32.mxu0 %v1476
      %2201 = vmatmul.mubr.f32.gmra.mrb[0].mxu0 %v1475
      %v2202 = vpop.f32.mrb[0].mxu0
      %v2203 = vadd.f32 0.0, %v2202
      %v2204 = vpop.f32.mrb[0].mxu0
      %2205 = vmatprep.mubr.f32.mxu0 %v1480
      %2206 = vmatmul.mubr.f32.gmra.mrb[0].mxu0 %v1479
      %v2207 = vpop.f32.mrb[0].mxu0
      %v2208 = vadd.f32 0.0, %v2207
      %v2209 = vpop.f32.mrb[0].mxu0
      %2210 = vmatprep.mubr.f32.mxu0 %v1484
      %2211 = vmatmul.mubr.f32.gmra.mrb[0].mxu0 %v1483
      %v2212 = vpop.f32.mrb[0].mxu0
      %v2213 = vadd.f32 0.0, %v2212
      %v2214 = vpop.f32.mrb[0].mxu0
      %2215 = vmatprep.mubr.f32.mxu0 %v1488
      %2216 = vmatmul.mubr.f32.gmra.mrb[0].mxu0 %v1487
      %v2217 = vpop.f32.mrb[0].mxu0
      %v2218 = vadd.f32 0.0, %v2217
      %v2219 = vpop.f32.mrb[0].mxu0
      %2220 = vmatprep.mubr.f32.mxu0 %v1492
      %2221 = vmatmul.mubr.f32.gmra.mrb[0].mxu0 %v1491
      %v2222 = vpop.f32.mrb[0].mxu0
      %v2223 = vadd.f32 0.0, %v2222
      %v2224 = vpop.f32.mrb[0].mxu0
      %2225 = vmatprep.mubr.f32.mxu0 %v1496
      %2226 = vmatmul.mubr.f32.gmra.mrb[0].mxu0 %v1495
      %v2227 = vpop.f32.mrb[0].mxu0
      %v2228 = vadd.f32 0.0, %v2227
      %v2229 = vpop.f32.mrb[0].mxu0
      %2230 = vmatprep.mubr.f32.mxu0 %v1500
      %2231 = vmatmul.mubr.f32.gmra.mrb[0].mxu0 %v1499
      %v2232 = vpop.f32.mrb[0].mxu0
      %v2233 = vadd.f32 0.0, %v2232
      %v2234 = vpop.f32.mrb[0].mxu0
      %2235 = vmatprep.mubr.f32.mxu0 %v1504
      %2236 = vmatmul.mubr.f32.gmra.mrb[0].mxu0 %v1503
      %v2237 = vpop.f32.mrb[0].mxu0
      %v2238 = vadd.f32 0.0, %v2237
      %v2239 = vpop.f32.mrb[0].mxu0
      %2240 = vmatprep.mubr.f32.mxu0 %v1508
      %2241 = vmatmul.mubr.f32.gmra.mrb[0].mxu0 %v1507
      %v2242 = vpop.f32.mrb[0].mxu0
      %v2243 = vadd.f32 0.0, %v2242
      %v2244 = vpop.f32.mrb[0].mxu0
      %2245 = vmatprep.mubr.f32.mxu0 %v1512
      %2246 = vmatmul.mubr.f32.gmra.mrb[0].mxu0 %v1511
      %v2247 = vpop.f32.mrb[0].mxu0
      %v2248 = vadd.f32 0.0, %v2247
      %v2249 = vpop.f32.mrb[0].mxu0
      %2250 = vmatprep.mubr.f32.mxu0 %v1516
      %2251 = vmatmul.mubr.f32.gmra.mrb[0].mxu0 %v1515
      %v2252 = vpop.f32.mrb[0].mxu0
      %v2253 = vadd.f32 0.0, %v2252
      %v2254 = vpop.f32.mrb[0].mxu0
      %2255 = vmatprep.mubr.f32.mxu0 %v1520
      %2256 = vmatmul.mubr.f32.gmra.mrb[0].mxu0 %v1519
      %v2257 = vpop.f32.mrb[0].mxu0
      %v2258 = vadd.f32 0.0, %v2257
      %v2259 = vpop.f32.mrb[0].mxu0
      %2260 = vmatprep.mubr.f32.mxu0 %v1524
      %2261 = vmatmul.mubr.f32.gmra.mrb[0].mxu0 %v1523
      %v2262 = vpop.f32.mrb[0].mxu0
      %v2263 = vadd.f32 0.0, %v2262
      %v2264 = vpop.f32.mrb[0].mxu0
      %2265 = vmatprep.mubr.f32.mxu0 %v1528
      %2266 = vmatmul.mubr.f32.gmra.mrb[0].mxu0 %v1527
      %v2267 = vpop.f32.mrb[0].mxu0
      %v2268 = vadd.f32 0.0, %v2267
      %v2269 = vpop.f32.mrb[0].mxu0
      %2270 = vmatprep.mubr.f32.mxu0 %v1532
      %2271 = vmatmul.mubr.f32.gmra.mrb[0].mxu0 %v1531
      %v2272 = vpop.f32.mrb[0].mxu0
      %v2273 = vadd.f32 0.0, %v2272
      %v2274 = vpop.f32.mrb[0].mxu0
      %2275 = vmatprep.mubr.f32.mxu0 %v1536
      %2276 = vmatmul.mubr.f32.gmra.mrb[0].mxu0 %v1535
      %v2277 = vpop.f32.mrb[0].mxu0
      %v2278 = vadd.f32 0.0, %v2277
      %v2279 = vpop.f32.mrb[0].mxu0
      %2280 = vmatprep.mubr.f32.mxu0 %v1540
      %2281 = vmatmul.mubr.f32.gmra.mrb[0].mxu0 %v1539
      %v2282 = vpop.f32.mrb[0].mxu0
      %v2283 = vadd.f32 0.0, %v2282
      %v2284 = vpop.f32.mrb[0].mxu0
      %2285 = vmatprep.mubr.f32.mxu0 %v1544
      %2286 = vmatmul.mubr.f32.gmra.mrb[0].mxu0 %v1543
      %v2287 = vpop.f32.mrb[0].mxu0
      %v2288 = vadd.f32 0.0, %v2287
      %v2289 = vpop.f32.mrb[0].mxu0
      %2290 = vmatprep.mubr.f32.mxu0 %v1548
      %2291 = vmatmul.mubr.f32.gmra.mrb[0].mxu0 %v1547
      %v2292 = vpop.f32.mrb[0].mxu0
      %v2293 = vadd.f32 0.0, %v2292
      %v2294 = vpop.f32.mrb[0].mxu0
      %2295 = vmatprep.mubr.f32.mxu0 %v1552
      %2296 = vmatmul.mubr.f32.gmra.mrb[0].mxu0 %v1551
      %v2297 = vpop.f32.mrb[0].mxu0
      %v2298 = vadd.f32 0.0, %v2297
      %v2299 = vpop.f32.mrb[0].mxu0
      %2300 = vmatprep.mubr.f32.mxu0 %v1556
      %2301 = vmatmul.mubr.f32.gmra.mrb[0].mxu0 %v1555
      %v2302 = vpop.f32.mrb[0].mxu0
      %v2303 = vadd.f32 0.0, %v2302
      %v2304 = vpop.f32.mrb[0].mxu0
      %2305 = vmatprep.mubr.f32.mxu0 %v1560
      %2306 = vmatmul.mubr.f32.gmra.mrb[0].mxu0 %v1559
      %v2307 = vpop.f32.mrb[0].mxu0
      %v2308 = vadd.f32 0.0, %v2307
      %v2309 = vpop.f32.mrb[0].mxu0
      %2310 = vmatprep.mubr.f32.mxu0 %v1564
      %2311 = vmatmul.mubr.f32.gmra.mrb[0].mxu0 %v1563
      %v2312 = vpop.f32.mrb[0].mxu0
      %v2313 = vadd.f32 0.0, %v2312
      %v2314 = vpop.f32.mrb[0].mxu0
      %2315 = vmatprep.mubr.f32.mxu0 %v1568
      %2316 = vmatmul.mubr.f32.gmra.mrb[0].mxu0 %v1567
      %v2317 = vpop.f32.mrb[0].mxu0
      %v2318 = vadd.f32 0.0, %v2317
      %v2319 = vpop.f32.mrb[0].mxu0
      %2320 = vmatprep.mubr.f32.mxu0 %v1572
      %2321 = vmatmul.mubr.f32.gmra.mrb[0].mxu0 %v1571
      %v2322 = vpop.f32.mrb[0].mxu0
      %v2323 = vadd.f32 0.0, %v2322
      %v2324 = vpop.f32.mrb[0].mxu0
      %2325 = vmatprep.mubr.f32.mxu0 %v1576
      %2326 = vmatmul.mubr.f32.gmra.mrb[0].mxu0 %v1575
      %v2327 = vpop.f32.mrb[0].mxu0
      %v2328 = vadd.f32 0.0, %v2327
      %v2329 = vpop.f32.mrb[0].mxu0
      %2330 = vmatprep.mubr.f32.mxu0 %v1580
      %2331 = vmatmul.mubr.f32.gmra.mrb[0].mxu0 %v1579
      %v2332 = vpop.f32.mrb[0].mxu0
      %v2333 = vadd.f32 0.0, %v2332
      %v2334 = vpop.f32.mrb[0].mxu0
      %2335 = vmatprep.mubr.f32.mxu0 %v1584
      %2336 = vmatmul.mubr.f32.gmra.mrb[0].mxu0 %v1583
      %v2337 = vpop.f32.mrb[0].mxu0
      %v2338 = vadd.f32 0.0, %v2337
      %v2339 = vpop.f32.mrb[0].mxu0
      %2340 = vmatprep.mubr.f32.mxu0 %v1588
      %2341 = vmatmul.mubr.f32.gmra.mrb[0].mxu0 %v1587
      %v2342 = vpop.f32.mrb[0].mxu0
      %v2343 = vadd.f32 0.0, %v2342
      %v2344 = vpop.f32.mrb[0].mxu0
      %2345 = vmatprep.mubr.f32.mxu0 %v1592
      %2346 = vmatmul.mubr.f32.gmra.mrb[0].mxu0 %v1591
      %v2347 = vpop.f32.mrb[0].mxu0
      %v2348 = vadd.f32 0.0, %v2347
      %v2349 = vpop.f32.mrb[0].mxu0
      %2350 = vmatprep.mubr.f32.mxu0 %v1596
      %2351 = vmatmul.mubr.f32.gmra.mrb[0].mxu0 %v1595
      %v2352 = vpop.f32.mrb[0].mxu0
      %v2353 = vadd.f32 0.0, %v2352
      %v2354 = vpop.f32.mrb[0].mxu0
      %2355 = vmatprep.mubr.f32.mxu0 %v1600
      %2356 = vmatmul.mubr.f32.gmra.mrb[0].mxu0 %v1599
      %v2357 = vpop.f32.mrb[0].mxu0
      %v2358 = vadd.f32 0.0, %v2357
      %v2359 = vpop.f32.mrb[0].mxu0
      %2360 = vmatprep.mubr.f32.mxu0 %v1604
      %2361 = vmatmul.mubr.f32.gmra.mrb[0].mxu0 %v1603
      %v2362 = vpop.f32.mrb[0].mxu0
      %v2363 = vadd.f32 0.0, %v2362
      %v2364 = vpop.f32.mrb[0].mxu0
      %2365 = vmatprep.mubr.f32.mxu0 %v1608
      %2366 = vmatmul.mubr.f32.gmra.mrb[0].mxu0 %v1607
      %v2367 = vpop.f32.mrb[0].mxu0
      %v2368 = vadd.f32 0.0, %v2367
      %v2369 = vpop.f32.mrb[0].mxu0
      %2370 = vmatprep.mubr.f32.mxu0 %v1612
      %2371 = vmatmul.mubr.f32.gmra.mrb[0].mxu0 %v1611
      %v2372 = vpop.f32.mrb[0].mxu0
      %v2373 = vadd.f32 0.0, %v2372
      %v2374 = vpop.f32.mrb[0].mxu0
      %2375 = vmatprep.mubr.f32.mxu0 %v1616
      %2376 = vmatmul.mubr.f32.gmra.mrb[0].mxu0 %v1615
      %v2377 = vpop.f32.mrb[0].mxu0
      %v2378 = vadd.f32 0.0, %v2377
      %v2379 = vpop.f32.mrb[0].mxu0
      %2380 = vmatprep.mubr.f32.mxu0 %v1620
      %2381 = vmatmul.mubr.f32.gmra.mrb[0].mxu0 %v1619
      %v2382 = vpop.f32.mrb[0].mxu0
      %v2383 = vadd.f32 0.0, %v2382
      %v2384 = vpop.f32.mrb[0].mxu0
      %2385 = vmatprep.mubr.f32.mxu0 %v1624
      %2386 = vmatmul.mubr.f32.gmra.mrb[0].mxu0 %v1623
      %v2387 = vpop.f32.mrb[0].mxu0
      %v2388 = vadd.f32 0.0, %v2387
      %v2389 = vpop.f32.mrb[0].mxu0
      %2390 = vmatprep.mubr.f32.mxu0 %v1628
      %2391 = vmatmul.mubr.f32.gmra.mrb[0].mxu0 %v1627
      %v2392 = vpop.f32.mrb[0].mxu0
      %v2393 = vadd.f32 0.0, %v2392
      %v2394 = vpop.f32.mrb[0].mxu0
      %2395 = vmatprep.mubr.f32.mxu0 %v1632
      %2396 = vmatmul.mubr.f32.gmra.mrb[0].mxu0 %v1631
      %v2397 = vpop.f32.mrb[0].mxu0
      %v2398 = vadd.f32 0.0, %v2397
      %v2399 = vpop.f32.mrb[0].mxu0
      %2400 = vmatprep.mubr.f32.mxu0 %v1636
      %2401 = vmatmul.mubr.f32.gmra.mrb[0].mxu0 %v1635
      %v2402 = vpop.f32.mrb[0].mxu0
      %v2403 = vadd.f32 0.0, %v2402
      %v2404 = vpop.f32.mrb[0].mxu0
      %2405 = vmatprep.mubr.f32.mxu0 %v1640
      %2406 = vmatmul.mubr.f32.gmra.mrb[0].mxu0 %v1639
      %v2407 = vpop.f32.mrb[0].mxu0
      %v2408 = vadd.f32 0.0, %v2407
      %v2409 = vpop.f32.mrb[0].mxu0
      %2410 = vmatprep.mubr.f32.mxu0 %v1644
      %2411 = vmatmul.mubr.f32.gmra.mrb[0].mxu0 %v1643
      %v2412 = vpop.f32.mrb[0].mxu0
      %v2413 = vadd.f32 0.0, %v2412
      %v2414 = vpop.f32.mrb[0].mxu0
      %2415 = vmatprep.mubr.f32.mxu0 %v1648
      %2416 = vmatmul.mubr.f32.gmra.mrb[0].mxu0 %v1647
      %v2417 = vpop.f32.mrb[0].mxu0
      %v2418 = vadd.f32 0.0, %v2417
      %v2419 = vpop.f32.mrb[0].mxu0
      %2420 = vmatprep.mubr.f32.mxu0 %v1652
      %2421 = vmatmul.mubr.f32.gmra.mrb[0].mxu0 %v1651
      %v2422 = vpop.f32.mrb[0].mxu0
      %v2423 = vadd.f32 0.0, %v2422
      %v2424 = vpop.f32.mrb[0].mxu0
      %2425 = vmatprep.mubr.f32.mxu0 %v1656
      %2426 = vmatmul.mubr.f32.gmra.mrb[0].mxu0 %v1655
      %v2427 = vpop.f32.mrb[0].mxu0
      %v2428 = vadd.f32 0.0, %v2427
      %v2429 = vpop.f32.mrb[0].mxu0
      %2430 = vmatprep.mubr.f32.mxu0 %v1660
      %2431 = vmatmul.mubr.f32.gmra.mrb[0].mxu0 %v1659
      %v2432 = vpop.f32.mrb[0].mxu0
      %v2433 = vadd.f32 0.0, %v2432
      %v2434 = vpop.f32.mrb[0].mxu0
      %2435 = vmatprep.mubr.f32.mxu0 %v1664
      %2436 = vmatmul.mubr.f32.gmra.mrb[0].mxu0 %v1663
      %v2437 = vpop.f32.mrb[0].mxu0
      %v2438 = vadd.f32 0.0, %v2437
      %v2439 = vpop.f32.mrb[0].mxu0
      %2440 = vmatprep.mubr.f32.mxu0 %v1668
      %2441 = vmatmul.mubr.f32.gmra.mrb[0].mxu0 %v1667
      %v2442 = vpop.f32.mrb[0].mxu0
      %v2443 = vadd.f32 0.0, %v2442
      %v2444 = vpop.f32.mrb[0].mxu0
      %2445 = vmatprep.mubr.f32.mxu0 %v1672
      %2446 = vmatmul.mubr.f32.gmra.mrb[0].mxu0 %v1671
      %v2447 = vpop.f32.mrb[0].mxu0
      %v2448 = vadd.f32 0.0, %v2447
      %v2449 = vpop.f32.mrb[0].mxu0
      %2450 = vmatprep.mubr.f32.mxu0 %v1676
      %2451 = vmatmul.mubr.f32.gmra.mrb[0].mxu0 %v1675
      %v2452 = vpop.f32.mrb[0].mxu0
      %v2453 = vadd.f32 0.0, %v2452
      %v2454 = vpop.f32.mrb[0].mxu0
      %2455 = vmatprep.mubr.f32.mxu0 %v1680
      %2456 = vmatmul.mubr.f32.gmra.mrb[0].mxu0 %v1679
      %v2457 = vpop.f32.mrb[0].mxu0
      %v2458 = vadd.f32 0.0, %v2457
      %v2459 = vpop.f32.mrb[0].mxu0
      %2460 = vmatprep.mubr.f32.mxu0 %v1684
      %2461 = vmatmul.mubr.f32.gmra.mrb[0].mxu0 %v1683
      %v2462 = vpop.f32.mrb[0].mxu0
      %v2463 = vadd.f32 0.0, %v2462
      %v2464 = vpop.f32.mrb[0].mxu0
      %2465 = vmatprep.mubr.f32.mxu0 %v1688
      %2466 = vmatmul.mubr.f32.gmra.mrb[0].mxu0 %v1687
      %v2467 = vpop.f32.mrb[0].mxu0
      %v2468 = vadd.f32 0.0, %v2467
      %v2469 = vpop.f32.mrb[0].mxu0
      %2470 = vmatprep.mubr.f32.mxu0 %v1692
      %2471 = vmatmul.mubr.f32.gmra.mrb[0].mxu0 %v1691
      %v2472 = vpop.f32.mrb[0].mxu0
      %v2473 = vadd.f32 0.0, %v2472
      %v2474 = vpop.f32.mrb[0].mxu0
      %2475 = vmatprep.mubr.f32.mxu0 %v1696
      %2476 = vmatmul.mubr.f32.gmra.mrb[0].mxu0 %v1695
      %v2477 = vpop.f32.mrb[0].mxu0
      %v2478 = vadd.f32 0.0, %v2477
      %v2479 = vpop.f32.mrb[0].mxu0
      %2480 = vmatprep.mubr.f32.mxu0 %v1700
      %2481 = vmatmul.mubr.f32.gmra.mrb[0].mxu0 %v1699
      %v2482 = vpop.f32.mrb[0].mxu0
      %v2483 = vadd.f32 0.0, %v2482
      %v2484 = vpop.f32.mrb[0].mxu0
      %2485 = vmatprep.mubr.f32.mxu0 %v1704
      %2486 = vmatmul.mubr.f32.gmra.mrb[0].mxu0 %v1703
      %v2487 = vpop.f32.mrb[0].mxu0
      %v2488 = vadd.f32 0.0, %v2487
      %v2489 = vpop.f32.mrb[0].mxu0
      %2490 = vmatprep.mubr.f32.mxu0 %v1708
      %2491 = vmatmul.mubr.f32.gmra.mrb[0].mxu0 %v1707
      %v2492 = vpop.f32.mrb[0].mxu0
      %v2493 = vadd.f32 0.0, %v2492
      %v2494 = vpop.f32.mrb[0].mxu0
      %2495 = vdwg.mxu0
      %2496 = vmatprep.subr.mxu0 0.0
      %2497 = vmatpush1.msra.mxu0 %v1103
      %2498 = vmatprep.subr.mxu0 0.0
      %2499 = vmatpush1.msra.mxu0 %v1104
      %2500 = vmatprep.subr.mxu0 0.0
      %2501 = vmatpush1.msra.mxu0 %v1105
      %2502 = vmatprep.subr.mxu0 0.0
      %2503 = vmatpush1.msra.mxu0 %v1106
      %2504 = vmatprep.subr.mxu0 0.0
      %2505 = vmatpush1.msra.mxu0 %v1107
      %2506 = vmatprep.subr.mxu0 0.0
      %2507 = vmatpush1.msra.mxu0 %v1108
      %2508 = vmatprep.subr.mxu0 0.0
      %2509 = vmatpush1.msra.mxu0 %v1109
      %2510 = vmatprep.subr.mxu0 0.0
      %2511 = vmatpush1.msra.mxu0 %v1110
      %2512 = vmatprep.subr.mxu0 0.0
      %2513 = vmatpush1.msra.mxu0 %v1111
      %2514 = vmatprep.subr.mxu0 0.0
      %2515 = vmatpush1.msra.mxu0 %v1112
      %2516 = vmatprep.subr.mxu0 0.0
      %2517 = vmatpush1.msra.mxu0 %v1113
      %2518 = vmatprep.subr.mxu0 0.0
      %2519 = vmatpush1.msra.mxu0 %v1114
      %2520 = vmatprep.subr.mxu0 0.0
      %2521 = vmatpush1.msra.mxu0 %v1115
      %2522 = vmatprep.subr.mxu0 0.0
      %2523 = vmatpush1.msra.mxu0 %v1116
      %2524 = vmatprep.subr.mxu0 0.0
      %2525 = vmatpush1.msra.mxu0 %v1117
      %2526 = vmatprep.subr.mxu0 0.0
      %2527 = vmatpush1.msra.mxu0 %v1118
      %2528 = vmatprep.subr.mxu0 0.0
      %2529 = vmatpush1.msra.mxu0 %v1119
      %2530 = vmatprep.subr.mxu0 0.0
      %2531 = vmatpush1.msra.mxu0 %v1120
      %2532 = vmatprep.subr.mxu0 0.0
      %2533 = vmatpush1.msra.mxu0 %v1121
      %2534 = vmatprep.subr.mxu0 0.0
      %2535 = vmatpush1.msra.mxu0 %v1122
      %2536 = vmatprep.subr.mxu0 0.0
      %2537 = vmatpush1.msra.mxu0 %v1123
      %2538 = vmatprep.subr.mxu0 0.0
      %2539 = vmatpush1.msra.mxu0 %v1124
      %2540 = vmatprep.subr.mxu0 0.0
      %2541 = vmatpush1.msra.mxu0 %v1125
      %2542 = vmatprep.subr.mxu0 0.0
      %2543 = vmatpush1.msra.mxu0 %v1126
      %2544 = vmatprep.subr.mxu0 0.0
      %2545 = vmatpush1.msra.mxu0 %v1127
      %2546 = vmatprep.subr.mxu0 0.0
      %2547 = vmatpush1.msra.mxu0 %v1128
      %2548 = vmatprep.subr.mxu0 0.0
      %2549 = vmatpush1.msra.mxu0 %v1129
      %2550 = vmatprep.subr.mxu0 0.0
      %2551 = vmatpush1.msra.mxu0 %v1130
      %2552 = vmatprep.subr.mxu0 0.0
      %2553 = vmatpush1.msra.mxu0 %v1131
      %2554 = vmatprep.subr.mxu0 0.0
      %2555 = vmatpush1.msra.mxu0 %v1132
      %2556 = vmatprep.subr.mxu0 0.0
      %2557 = vmatpush1.msra.mxu0 %v1133
      %2558 = vmatprep.subr.mxu0 0.0
      %2559 = vmatpush1.msra.mxu0 %v1134
      %2560 = vmatprep.mubr.f32.mxu0 %v1138
      %2561 = vmatmul.mubr.f32.gmra.mrb[0].mxu0 %v1137
      %v2562 = vpop.f32.mrb[0].mxu0
      %v2563 = vadd.f32 %v1778, %v2562
      %v2564 = vpop.f32.mrb[0].mxu0
      %2565 = vmatprep.mubr.f32.mxu0 %v1142
      %2566 = vmatmul.mubr.f32.gmra.mrb[0].mxu0 %v1141
      %v2567 = vpop.f32.mrb[0].mxu0
      %v2568 = vadd.f32 %v1783, %v2567
      %v2569 = vpop.f32.mrb[0].mxu0
      %2570 = vmatprep.mubr.f32.mxu0 %v1146
      %2571 = vmatmul.mubr.f32.gmra.mrb[0].mxu0 %v1145
      %v2572 = vpop.f32.mrb[0].mxu0
      %v2573 = vadd.f32 %v1788, %v2572
      %v2574 = vpop.f32.mrb[0].mxu0
      %2575 = vmatprep.mubr.f32.mxu0 %v1150
      %2576 = vmatmul.mubr.f32.gmra.mrb[0].mxu0 %v1149
      %v2577 = vpop.f32.mrb[0].mxu0
      %v2578 = vadd.f32 %v1793, %v2577
      %v2579 = vpop.f32.mrb[0].mxu0
      %2580 = vmatprep.mubr.f32.mxu0 %v1154
      %2581 = vmatmul.mubr.f32.gmra.mrb[0].mxu0 %v1153
      %v2582 = vpop.f32.mrb[0].mxu0
      %v2583 = vadd.f32 %v1798, %v2582
      %v2584 = vpop.f32.mrb[0].mxu0
      %2585 = vmatprep.mubr.f32.mxu0 %v1158
      %2586 = vmatmul.mubr.f32.gmra.mrb[0].mxu0 %v1157
      %v2587 = vpop.f32.mrb[0].mxu0
      %v2588 = vadd.f32 %v1803, %v2587
      %v2589 = vpop.f32.mrb[0].mxu0
      %2590 = vmatprep.mubr.f32.mxu0 %v1162
      %2591 = vmatmul.mubr.f32.gmra.mrb[0].mxu0 %v1161
      %v2592 = vpop.f32.mrb[0].mxu0
      %v2593 = vadd.f32 %v1808, %v2592
      %v2594 = vpop.f32.mrb[0].mxu0
      %2595 = vmatprep.mubr.f32.mxu0 %v1166
      %2596 = vmatmul.mubr.f32.gmra.mrb[0].mxu0 %v1165
      %v2597 = vpop.f32.mrb[0].mxu0
      %v2598 = vadd.f32 %v1813, %v2597
      %v2599 = vpop.f32.mrb[0].mxu0
      %2600 = vmatprep.mubr.f32.mxu0 %v1170
      %2601 = vmatmul.mubr.f32.gmra.mrb[0].mxu0 %v1169
      %v2602 = vpop.f32.mrb[0].mxu0
      %v2603 = vadd.f32 %v1818, %v2602
      %v2604 = vpop.f32.mrb[0].mxu0
      %2605 = vmatprep.mubr.f32.mxu0 %v1174
      %2606 = vmatmul.mubr.f32.gmra.mrb[0].mxu0 %v1173
      %v2607 = vpop.f32.mrb[0].mxu0
      %v2608 = vadd.f32 %v1823, %v2607
      %v2609 = vpop.f32.mrb[0].mxu0
      %2610 = vmatprep.mubr.f32.mxu0 %v1178
      %2611 = vmatmul.mubr.f32.gmra.mrb[0].mxu0 %v1177
      %v2612 = vpop.f32.mrb[0].mxu0
      %v2613 = vadd.f32 %v1828, %v2612
      %v2614 = vpop.f32.mrb[0].mxu0
      %2615 = vmatprep.mubr.f32.mxu0 %v1182
      %2616 = vmatmul.mubr.f32.gmra.mrb[0].mxu0 %v1181
      %v2617 = vpop.f32.mrb[0].mxu0
      %v2618 = vadd.f32 %v1833, %v2617
      %v2619 = vpop.f32.mrb[0].mxu0
      %2620 = vmatprep.mubr.f32.mxu0 %v1186
      %2621 = vmatmul.mubr.f32.gmra.mrb[0].mxu0 %v1185
      %v2622 = vpop.f32.mrb[0].mxu0
      %v2623 = vadd.f32 %v1838, %v2622
      %v2624 = vpop.f32.mrb[0].mxu0
      %2625 = vmatprep.mubr.f32.mxu0 %v1190
      %2626 = vmatmul.mubr.f32.gmra.mrb[0].mxu0 %v1189
      %v2627 = vpop.f32.mrb[0].mxu0
      %v2628 = vadd.f32 %v1843, %v2627
      %v2629 = vpop.f32.mrb[0].mxu0
      %2630 = vmatprep.mubr.f32.mxu0 %v1194
      %2631 = vmatmul.mubr.f32.gmra.mrb[0].mxu0 %v1193
      %v2632 = vpop.f32.mrb[0].mxu0
      %v2633 = vadd.f32 %v1848, %v2632
      %v2634 = vpop.f32.mrb[0].mxu0
      %2635 = vmatprep.mubr.f32.mxu0 %v1198
      %2636 = vmatmul.mubr.f32.gmra.mrb[0].mxu0 %v1197
      %v2637 = vpop.f32.mrb[0].mxu0
      %v2638 = vadd.f32 %v1853, %v2637
      %v2639 = vpop.f32.mrb[0].mxu0
      %2640 = vmatprep.mubr.f32.mxu0 %v1202
      %2641 = vmatmul.mubr.f32.gmra.mrb[0].mxu0 %v1201
      %v2642 = vpop.f32.mrb[0].mxu0
      %v2643 = vadd.f32 %v1858, %v2642
      %v2644 = vpop.f32.mrb[0].mxu0
      %2645 = vmatprep.mubr.f32.mxu0 %v1206
      %2646 = vmatmul.mubr.f32.gmra.mrb[0].mxu0 %v1205
      %v2647 = vpop.f32.mrb[0].mxu0
      %v2648 = vadd.f32 %v1863, %v2647
      %v2649 = vpop.f32.mrb[0].mxu0
      %2650 = vmatprep.mubr.f32.mxu0 %v1210
      %2651 = vmatmul.mubr.f32.gmra.mrb[0].mxu0 %v1209
      %v2652 = vpop.f32.mrb[0].mxu0
      %v2653 = vadd.f32 %v1868, %v2652
      %v2654 = vpop.f32.mrb[0].mxu0
      %2655 = vmatprep.mubr.f32.mxu0 %v1214
      %2656 = vmatmul.mubr.f32.gmra.mrb[0].mxu0 %v1213
      %v2657 = vpop.f32.mrb[0].mxu0
      %v2658 = vadd.f32 %v1873, %v2657
      %v2659 = vpop.f32.mrb[0].mxu0
      %2660 = vmatprep.mubr.f32.mxu0 %v1218
      %2661 = vmatmul.mubr.f32.gmra.mrb[0].mxu0 %v1217
      %v2662 = vpop.f32.mrb[0].mxu0
      %v2663 = vadd.f32 %v1878, %v2662
      %v2664 = vpop.f32.mrb[0].mxu0
      %2665 = vmatprep.mubr.f32.mxu0 %v1222
      %2666 = vmatmul.mubr.f32.gmra.mrb[0].mxu0 %v1221
      %v2667 = vpop.f32.mrb[0].mxu0
      %v2668 = vadd.f32 %v1883, %v2667
      %v2669 = vpop.f32.mrb[0].mxu0
      %2670 = vmatprep.mubr.f32.mxu0 %v1226
      %2671 = vmatmul.mubr.f32.gmra.mrb[0].mxu0 %v1225
      %v2672 = vpop.f32.mrb[0].mxu0
      %v2673 = vadd.f32 %v1888, %v2672
      %v2674 = vpop.f32.mrb[0].mxu0
      %2675 = vmatprep.mubr.f32.mxu0 %v1230
      %2676 = vmatmul.mubr.f32.gmra.mrb[0].mxu0 %v1229
      %v2677 = vpop.f32.mrb[0].mxu0
      %v2678 = vadd.f32 %v1893, %v2677
      %v2679 = vpop.f32.mrb[0].mxu0
      %2680 = vmatprep.mubr.f32.mxu0 %v1234
      %2681 = vmatmul.mubr.f32.gmra.mrb[0].mxu0 %v1233
      %v2682 = vpop.f32.mrb[0].mxu0
      %v2683 = vadd.f32 %v1898, %v2682
      %v2684 = vpop.f32.mrb[0].mxu0
      %2685 = vmatprep.mubr.f32.mxu0 %v1238
      %2686 = vmatmul.mubr.f32.gmra.mrb[0].mxu0 %v1237
      %v2687 = vpop.f32.mrb[0].mxu0
      %v2688 = vadd.f32 %v1903, %v2687
      %v2689 = vpop.f32.mrb[0].mxu0
      %2690 = vmatprep.mubr.f32.mxu0 %v1242
      %2691 = vmatmul.mubr.f32.gmra.mrb[0].mxu0 %v1241
      %v2692 = vpop.f32.mrb[0].mxu0
      %v2693 = vadd.f32 %v1908, %v2692
      %v2694 = vpop.f32.mrb[0].mxu0
      %2695 = vmatprep.mubr.f32.mxu0 %v1246
      %2696 = vmatmul.mubr.f32.gmra.mrb[0].mxu0 %v1245
      %v2697 = vpop.f32.mrb[0].mxu0
      %v2698 = vadd.f32 %v1913, %v2697
      %v2699 = vpop.f32.mrb[0].mxu0
      %2700 = vmatprep.mubr.f32.mxu0 %v1250
      %2701 = vmatmul.mubr.f32.gmra.mrb[0].mxu0 %v1249
      %v2702 = vpop.f32.mrb[0].mxu0
      %v2703 = vadd.f32 %v1918, %v2702
      %v2704 = vpop.f32.mrb[0].mxu0
      %2705 = vmatprep.mubr.f32.mxu0 %v1254
      %2706 = vmatmul.mubr.f32.gmra.mrb[0].mxu0 %v1253
      %v2707 = vpop.f32.mrb[0].mxu0
      %v2708 = vadd.f32 %v1923, %v2707
      %v2709 = vpop.f32.mrb[0].mxu0
      %2710 = vmatprep.mubr.f32.mxu0 %v1258
      %2711 = vmatmul.mubr.f32.gmra.mrb[0].mxu0 %v1257
      %v2712 = vpop.f32.mrb[0].mxu0
      %v2713 = vadd.f32 %v1928, %v2712
      %v2714 = vpop.f32.mrb[0].mxu0
      %2715 = vmatprep.mubr.f32.mxu0 %v1262
      %2716 = vmatmul.mubr.f32.gmra.mrb[0].mxu0 %v1261
      %v2717 = vpop.f32.mrb[0].mxu0
      %v2718 = vadd.f32 %v1933, %v2717
      %v2719 = vpop.f32.mrb[0].mxu0
      %2720 = vmatprep.mubr.f32.mxu0 %v1266
      %2721 = vmatmul.mubr.f32.gmra.mrb[0].mxu0 %v1265
      %v2722 = vpop.f32.mrb[0].mxu0
      %v2723 = vadd.f32 %v1938, %v2722
      %v2724 = vpop.f32.mrb[0].mxu0
      %2725 = vmatprep.mubr.f32.mxu0 %v1270
      %2726 = vmatmul.mubr.f32.gmra.mrb[0].mxu0 %v1269
      %v2727 = vpop.f32.mrb[0].mxu0
      %v2728 = vadd.f32 %v1943, %v2727
      %v2729 = vpop.f32.mrb[0].mxu0
      %2730 = vmatprep.mubr.f32.mxu0 %v1274
      %2731 = vmatmul.mubr.f32.gmra.mrb[0].mxu0 %v1273
      %v2732 = vpop.f32.mrb[0].mxu0
      %v2733 = vadd.f32 %v1948, %v2732
      %v2734 = vpop.f32.mrb[0].mxu0
      %2735 = vmatprep.mubr.f32.mxu0 %v1278
      %2736 = vmatmul.mubr.f32.gmra.mrb[0].mxu0 %v1277
      %v2737 = vpop.f32.mrb[0].mxu0
      %v2738 = vadd.f32 %v1953, %v2737
      %v2739 = vpop.f32.mrb[0].mxu0
      %2740 = vmatprep.mubr.f32.mxu0 %v1282
      %2741 = vmatmul.mubr.f32.gmra.mrb[0].mxu0 %v1281
      %v2742 = vpop.f32.mrb[0].mxu0
      %v2743 = vadd.f32 %v1958, %v2742
      %v2744 = vpop.f32.mrb[0].mxu0
      %2745 = vmatprep.mubr.f32.mxu0 %v1286
      %2746 = vmatmul.mubr.f32.gmra.mrb[0].mxu0 %v1285
      %v2747 = vpop.f32.mrb[0].mxu0
      %v2748 = vadd.f32 %v1963, %v2747
      %v2749 = vpop.f32.mrb[0].mxu0
      %2750 = vmatprep.mubr.f32.mxu0 %v1290
      %2751 = vmatmul.mubr.f32.gmra.mrb[0].mxu0 %v1289
      %v2752 = vpop.f32.mrb[0].mxu0
      %v2753 = vadd.f32 %v1968, %v2752
      %v2754 = vpop.f32.mrb[0].mxu0
      %2755 = vmatprep.mubr.f32.mxu0 %v1294
      %2756 = vmatmul.mubr.f32.gmra.mrb[0].mxu0 %v1293
      %v2757 = vpop.f32.mrb[0].mxu0
      %v2758 = vadd.f32 %v1973, %v2757
      %v2759 = vpop.f32.mrb[0].mxu0
      %2760 = vmatprep.mubr.f32.mxu0 %v1298
      %2761 = vmatmul.mubr.f32.gmra.mrb[0].mxu0 %v1297
      %v2762 = vpop.f32.mrb[0].mxu0
      %v2763 = vadd.f32 %v1978, %v2762
      %v2764 = vpop.f32.mrb[0].mxu0
      %2765 = vmatprep.mubr.f32.mxu0 %v1302
      %2766 = vmatmul.mubr.f32.gmra.mrb[0].mxu0 %v1301
      %v2767 = vpop.f32.mrb[0].mxu0
      %v2768 = vadd.f32 %v1983, %v2767
      %v2769 = vpop.f32.mrb[0].mxu0
      %2770 = vmatprep.mubr.f32.mxu0 %v1306
      %2771 = vmatmul.mubr.f32.gmra.mrb[0].mxu0 %v1305
      %v2772 = vpop.f32.mrb[0].mxu0
      %v2773 = vadd.f32 %v1988, %v2772
      %v2774 = vpop.f32.mrb[0].mxu0
      %2775 = vmatprep.mubr.f32.mxu0 %v1310
      %2776 = vmatmul.mubr.f32.gmra.mrb[0].mxu0 %v1309
      %v2777 = vpop.f32.mrb[0].mxu0
      %v2778 = vadd.f32 %v1993, %v2777
      %v2779 = vpop.f32.mrb[0].mxu0
      %2780 = vmatprep.mubr.f32.mxu0 %v1314
      %2781 = vmatmul.mubr.f32.gmra.mrb[0].mxu0 %v1313
      %v2782 = vpop.f32.mrb[0].mxu0
      %v2783 = vadd.f32 %v1998, %v2782
      %v2784 = vpop.f32.mrb[0].mxu0
      %2785 = vmatprep.mubr.f32.mxu0 %v1318
      %2786 = vmatmul.mubr.f32.gmra.mrb[0].mxu0 %v1317
      %v2787 = vpop.f32.mrb[0].mxu0
      %v2788 = vadd.f32 %v2003, %v2787
      %v2789 = vpop.f32.mrb[0].mxu0
      %2790 = vmatprep.mubr.f32.mxu0 %v1322
      %2791 = vmatmul.mubr.f32.gmra.mrb[0].mxu0 %v1321
      %v2792 = vpop.f32.mrb[0].mxu0
      %v2793 = vadd.f32 %v2008, %v2792
      %v2794 = vpop.f32.mrb[0].mxu0
      %2795 = vmatprep.mubr.f32.mxu0 %v1326
      %2796 = vmatmul.mubr.f32.gmra.mrb[0].mxu0 %v1325
      %v2797 = vpop.f32.mrb[0].mxu0
      %v2798 = vadd.f32 %v2013, %v2797
      %v2799 = vpop.f32.mrb[0].mxu0
      %2800 = vmatprep.mubr.f32.mxu0 %v1330
      %2801 = vmatmul.mubr.f32.gmra.mrb[0].mxu0 %v1329
      %v2802 = vpop.f32.mrb[0].mxu0
      %v2803 = vadd.f32 %v2018, %v2802
      %v2804 = vpop.f32.mrb[0].mxu0
      %2805 = vmatprep.mubr.f32.mxu0 %v1334
      %2806 = vmatmul.mubr.f32.gmra.mrb[0].mxu0 %v1333
      %v2807 = vpop.f32.mrb[0].mxu0
      %v2808 = vadd.f32 %v2023, %v2807
      %v2809 = vpop.f32.mrb[0].mxu0
      %2810 = vmatprep.mubr.f32.mxu0 %v1338
      %2811 = vmatmul.mubr.f32.gmra.mrb[0].mxu0 %v1337
      %v2812 = vpop.f32.mrb[0].mxu0
      %v2813 = vadd.f32 %v2028, %v2812
      %v2814 = vpop.f32.mrb[0].mxu0
      %2815 = vmatprep.mubr.f32.mxu0 %v1342
      %2816 = vmatmul.mubr.f32.gmra.mrb[0].mxu0 %v1341
      %v2817 = vpop.f32.mrb[0].mxu0
      %v2818 = vadd.f32 %v2033, %v2817
      %v2819 = vpop.f32.mrb[0].mxu0
      %2820 = vmatprep.mubr.f32.mxu0 %v1346
      %2821 = vmatmul.mubr.f32.gmra.mrb[0].mxu0 %v1345
      %v2822 = vpop.f32.mrb[0].mxu0
      %v2823 = vadd.f32 %v2038, %v2822
      %v2824 = vpop.f32.mrb[0].mxu0
      %2825 = vmatprep.mubr.f32.mxu0 %v1350
      %2826 = vmatmul.mubr.f32.gmra.mrb[0].mxu0 %v1349
      %v2827 = vpop.f32.mrb[0].mxu0
      %v2828 = vadd.f32 %v2043, %v2827
      %v2829 = vpop.f32.mrb[0].mxu0
      %2830 = vmatprep.mubr.f32.mxu0 %v1354
      %2831 = vmatmul.mubr.f32.gmra.mrb[0].mxu0 %v1353
      %v2832 = vpop.f32.mrb[0].mxu0
      %v2833 = vadd.f32 %v2048, %v2832
      %v2834 = vpop.f32.mrb[0].mxu0
      %2835 = vmatprep.mubr.f32.mxu0 %v1358
      %2836 = vmatmul.mubr.f32.gmra.mrb[0].mxu0 %v1357
      %v2837 = vpop.f32.mrb[0].mxu0
      %v2838 = vadd.f32 %v2053, %v2837
      %v2839 = vpop.f32.mrb[0].mxu0
      %2840 = vmatprep.mubr.f32.mxu0 %v1362
      %2841 = vmatmul.mubr.f32.gmra.mrb[0].mxu0 %v1361
      %v2842 = vpop.f32.mrb[0].mxu0
      %v2843 = vadd.f32 %v2058, %v2842
      %v2844 = vpop.f32.mrb[0].mxu0
      %2845 = vmatprep.mubr.f32.mxu0 %v1366
      %2846 = vmatmul.mubr.f32.gmra.mrb[0].mxu0 %v1365
      %v2847 = vpop.f32.mrb[0].mxu0
      %v2848 = vadd.f32 %v2063, %v2847
      %v2849 = vpop.f32.mrb[0].mxu0
      %2850 = vmatprep.mubr.f32.mxu0 %v1370
      %2851 = vmatmul.mubr.f32.gmra.mrb[0].mxu0 %v1369
      %v2852 = vpop.f32.mrb[0].mxu0
      %v2853 = vadd.f32 %v2068, %v2852
      %v2854 = vpop.f32.mrb[0].mxu0
      %2855 = vmatprep.mubr.f32.mxu0 %v1374
      %2856 = vmatmul.mubr.f32.gmra.mrb[0].mxu0 %v1373
      %v2857 = vpop.f32.mrb[0].mxu0
      %v2858 = vadd.f32 %v2073, %v2857
      %v2859 = vpop.f32.mrb[0].mxu0
      %2860 = vmatprep.mubr.f32.mxu0 %v1378
      %2861 = vmatmul.mubr.f32.gmra.mrb[0].mxu0 %v1377
      %v2862 = vpop.f32.mrb[0].mxu0
      %v2863 = vadd.f32 %v2078, %v2862
      %v2864 = vpop.f32.mrb[0].mxu0
      %2865 = vmatprep.mubr.f32.mxu0 %v1382
      %2866 = vmatmul.mubr.f32.gmra.mrb[0].mxu0 %v1381
      %v2867 = vpop.f32.mrb[0].mxu0
      %v2868 = vadd.f32 %v2083, %v2867
      %v2869 = vpop.f32.mrb[0].mxu0
      %2870 = vmatprep.mubr.f32.mxu0 %v1386
      %2871 = vmatmul.mubr.f32.gmra.mrb[0].mxu0 %v1385
      %v2872 = vpop.f32.mrb[0].mxu0
      %v2873 = vadd.f32 %v2088, %v2872
      %v2874 = vpop.f32.mrb[0].mxu0
      %2875 = vmatprep.mubr.f32.mxu0 %v1390
      %2876 = vmatmul.mubr.f32.gmra.mrb[0].mxu0 %v1389
      %v2877 = vpop.f32.mrb[0].mxu0
      %v2878 = vadd.f32 %v2093, %v2877
      %v2879 = vpop.f32.mrb[0].mxu0
      %2880 = vmatprep.mubr.f32.mxu0 %v1394
      %2881 = vmatmul.mubr.f32.gmra.mrb[0].mxu0 %v1393
      %v2882 = vpop.f32.mrb[0].mxu0
      %v2883 = vadd.f32 %v2098, %v2882
      %v2884 = vpop.f32.mrb[0].mxu0
      %2885 = vmatprep.mubr.f32.mxu0 %v1398
      %2886 = vmatmul.mubr.f32.gmra.mrb[0].mxu0 %v1397
      %v2887 = vpop.f32.mrb[0].mxu0
      %v2888 = vadd.f32 %v2103, %v2887
      %v2889 = vpop.f32.mrb[0].mxu0
      %2890 = vmatprep.mubr.f32.mxu0 %v1402
      %2891 = vmatmul.mubr.f32.gmra.mrb[0].mxu0 %v1401
      %v2892 = vpop.f32.mrb[0].mxu0
      %v2893 = vadd.f32 %v2108, %v2892
      %v2894 = vpop.f32.mrb[0].mxu0
      %2895 = vmatprep.mubr.f32.mxu0 %v1406
      %2896 = vmatmul.mubr.f32.gmra.mrb[0].mxu0 %v1405
      %v2897 = vpop.f32.mrb[0].mxu0
      %v2898 = vadd.f32 %v2113, %v2897
      %v2899 = vpop.f32.mrb[0].mxu0
      %2900 = vmatprep.mubr.f32.mxu0 %v1410
      %2901 = vmatmul.mubr.f32.gmra.mrb[0].mxu0 %v1409
      %v2902 = vpop.f32.mrb[0].mxu0
      %v2903 = vadd.f32 %v2118, %v2902
      %v2904 = vpop.f32.mrb[0].mxu0
      %2905 = vmatprep.mubr.f32.mxu0 %v1414
      %2906 = vmatmul.mubr.f32.gmra.mrb[0].mxu0 %v1413
      %v2907 = vpop.f32.mrb[0].mxu0
      %v2908 = vadd.f32 %v2123, %v2907
      %v2909 = vpop.f32.mrb[0].mxu0
      %2910 = vmatprep.mubr.f32.mxu0 %v1418
      %2911 = vmatmul.mubr.f32.gmra.mrb[0].mxu0 %v1417
      %v2912 = vpop.f32.mrb[0].mxu0
      %v2913 = vadd.f32 %v2128, %v2912
      %v2914 = vpop.f32.mrb[0].mxu0
      %2915 = vmatprep.mubr.f32.mxu0 %v1422
      %2916 = vmatmul.mubr.f32.gmra.mrb[0].mxu0 %v1421
      %v2917 = vpop.f32.mrb[0].mxu0
      %v2918 = vadd.f32 %v2133, %v2917
      %v2919 = vpop.f32.mrb[0].mxu0
      %2920 = vmatprep.mubr.f32.mxu0 %v1426
      %2921 = vmatmul.mubr.f32.gmra.mrb[0].mxu0 %v1425
      %v2922 = vpop.f32.mrb[0].mxu0
      %v2923 = vadd.f32 %v2138, %v2922
      %v2924 = vpop.f32.mrb[0].mxu0
      %2925 = vmatprep.mubr.f32.mxu0 %v1430
      %2926 = vmatmul.mubr.f32.gmra.mrb[0].mxu0 %v1429
      %v2927 = vpop.f32.mrb[0].mxu0
      %v2928 = vadd.f32 %v2143, %v2927
      %v2929 = vpop.f32.mrb[0].mxu0
      %2930 = vmatprep.mubr.f32.mxu0 %v1434
      %2931 = vmatmul.mubr.f32.gmra.mrb[0].mxu0 %v1433
      %v2932 = vpop.f32.mrb[0].mxu0
      %v2933 = vadd.f32 %v2148, %v2932
      %v2934 = vpop.f32.mrb[0].mxu0
      %2935 = vmatprep.mubr.f32.mxu0 %v1438
      %2936 = vmatmul.mubr.f32.gmra.mrb[0].mxu0 %v1437
      %v2937 = vpop.f32.mrb[0].mxu0
      %v2938 = vadd.f32 %v2153, %v2937
      %v2939 = vpop.f32.mrb[0].mxu0
      %2940 = vmatprep.mubr.f32.mxu0 %v1442
      %2941 = vmatmul.mubr.f32.gmra.mrb[0].mxu0 %v1441
      %v2942 = vpop.f32.mrb[0].mxu0
      %v2943 = vadd.f32 %v2158, %v2942
      %v2944 = vpop.f32.mrb[0].mxu0
      %2945 = vmatprep.mubr.f32.mxu0 %v1446
      %2946 = vmatmul.mubr.f32.gmra.mrb[0].mxu0 %v1445
      %v2947 = vpop.f32.mrb[0].mxu0
      %v2948 = vadd.f32 %v2163, %v2947
      %v2949 = vpop.f32.mrb[0].mxu0
      %2950 = vmatprep.mubr.f32.mxu0 %v1450
      %2951 = vmatmul.mubr.f32.gmra.mrb[0].mxu0 %v1449
      %v2952 = vpop.f32.mrb[0].mxu0
      %v2953 = vadd.f32 %v2168, %v2952
      %v2954 = vpop.f32.mrb[0].mxu0
      %2955 = vmatprep.mubr.f32.mxu0 %v1454
      %2956 = vmatmul.mubr.f32.gmra.mrb[0].mxu0 %v1453
      %v2957 = vpop.f32.mrb[0].mxu0
      %v2958 = vadd.f32 %v2173, %v2957
      %v2959 = vpop.f32.mrb[0].mxu0
      %2960 = vmatprep.mubr.f32.mxu0 %v1458
      %2961 = vmatmul.mubr.f32.gmra.mrb[0].mxu0 %v1457
      %v2962 = vpop.f32.mrb[0].mxu0
      %v2963 = vadd.f32 %v2178, %v2962
      %v2964 = vpop.f32.mrb[0].mxu0
      %2965 = vmatprep.mubr.f32.mxu0 %v1462
      %2966 = vmatmul.mubr.f32.gmra.mrb[0].mxu0 %v1461
      %v2967 = vpop.f32.mrb[0].mxu0
      %v2968 = vadd.f32 %v2183, %v2967
      %v2969 = vpop.f32.mrb[0].mxu0
      %2970 = vmatprep.mubr.f32.mxu0 %v1466
      %2971 = vmatmul.mubr.f32.gmra.mrb[0].mxu0 %v1465
      %v2972 = vpop.f32.mrb[0].mxu0
      %v2973 = vadd.f32 %v2188, %v2972
      %v2974 = vpop.f32.mrb[0].mxu0
      %2975 = vmatprep.mubr.f32.mxu0 %v1470
      %2976 = vmatmul.mubr.f32.gmra.mrb[0].mxu0 %v1469
      %v2977 = vpop.f32.mrb[0].mxu0
      %v2978 = vadd.f32 %v2193, %v2977
      %v2979 = vpop.f32.mrb[0].mxu0
      %2980 = vmatprep.mubr.f32.mxu0 %v1474
      %2981 = vmatmul.mubr.f32.gmra.mrb[0].mxu0 %v1473
      %v2982 = vpop.f32.mrb[0].mxu0
      %v2983 = vadd.f32 %v2198, %v2982
      %v2984 = vpop.f32.mrb[0].mxu0
      %2985 = vmatprep.mubr.f32.mxu0 %v1478
      %2986 = vmatmul.mubr.f32.gmra.mrb[0].mxu0 %v1477
      %v2987 = vpop.f32.mrb[0].mxu0
      %v2988 = vadd.f32 %v2203, %v2987
      %v2989 = vpop.f32.mrb[0].mxu0
      %2990 = vmatprep.mubr.f32.mxu0 %v1482
      %2991 = vmatmul.mubr.f32.gmra.mrb[0].mxu0 %v1481
      %v2992 = vpop.f32.mrb[0].mxu0
      %v2993 = vadd.f32 %v2208, %v2992
      %v2994 = vpop.f32.mrb[0].mxu0
      %2995 = vmatprep.mubr.f32.mxu0 %v1486
      %2996 = vmatmul.mubr.f32.gmra.mrb[0].mxu0 %v1485
      %v2997 = vpop.f32.mrb[0].mxu0
      %v2998 = vadd.f32 %v2213, %v2997
      %v2999 = vpop.f32.mrb[0].mxu0
      %3000 = vmatprep.mubr.f32.mxu0 %v1490
      %3001 = vmatmul.mubr.f32.gmra.mrb[0].mxu0 %v1489
      %v3002 = vpop.f32.mrb[0].mxu0
      %v3003 = vadd.f32 %v2218, %v3002
      %v3004 = vpop.f32.mrb[0].mxu0
      %3005 = vmatprep.mubr.f32.mxu0 %v1494
      %3006 = vmatmul.mubr.f32.gmra.mrb[0].mxu0 %v1493
      %v3007 = vpop.f32.mrb[0].mxu0
      %v3008 = vadd.f32 %v2223, %v3007
      %v3009 = vpop.f32.mrb[0].mxu0
      %3010 = vmatprep.mubr.f32.mxu0 %v1498
      %3011 = vmatmul.mubr.f32.gmra.mrb[0].mxu0 %v1497
      %v3012 = vpop.f32.mrb[0].mxu0
      %v3013 = vadd.f32 %v2228, %v3012
      %v3014 = vpop.f32.mrb[0].mxu0
      %3015 = vmatprep.mubr.f32.mxu0 %v1502
      %3016 = vmatmul.mubr.f32.gmra.mrb[0].mxu0 %v1501
      %v3017 = vpop.f32.mrb[0].mxu0
      %v3018 = vadd.f32 %v2233, %v3017
      %v3019 = vpop.f32.mrb[0].mxu0
      %3020 = vmatprep.mubr.f32.mxu0 %v1506
      %3021 = vmatmul.mubr.f32.gmra.mrb[0].mxu0 %v1505
      %v3022 = vpop.f32.mrb[0].mxu0
      %v3023 = vadd.f32 %v2238, %v3022
      %v3024 = vpop.f32.mrb[0].mxu0
      %3025 = vmatprep.mubr.f32.mxu0 %v1510
      %3026 = vmatmul.mubr.f32.gmra.mrb[0].mxu0 %v1509
      %v3027 = vpop.f32.mrb[0].mxu0
      %v3028 = vadd.f32 %v2243, %v3027
      %v3029 = vpop.f32.mrb[0].mxu0
      %3030 = vmatprep.mubr.f32.mxu0 %v1514
      %3031 = vmatmul.mubr.f32.gmra.mrb[0].mxu0 %v1513
      %v3032 = vpop.f32.mrb[0].mxu0
      %v3033 = vadd.f32 %v2248, %v3032
      %v3034 = vpop.f32.mrb[0].mxu0
      %3035 = vmatprep.mubr.f32.mxu0 %v1518
      %3036 = vmatmul.mubr.f32.gmra.mrb[0].mxu0 %v1517
      %v3037 = vpop.f32.mrb[0].mxu0
      %v3038 = vadd.f32 %v2253, %v3037
      %v3039 = vpop.f32.mrb[0].mxu0
      %3040 = vmatprep.mubr.f32.mxu0 %v1522
      %3041 = vmatmul.mubr.f32.gmra.mrb[0].mxu0 %v1521
      %v3042 = vpop.f32.mrb[0].mxu0
      %v3043 = vadd.f32 %v2258, %v3042
      %v3044 = vpop.f32.mrb[0].mxu0
      %3045 = vmatprep.mubr.f32.mxu0 %v1526
      %3046 = vmatmul.mubr.f32.gmra.mrb[0].mxu0 %v1525
      %v3047 = vpop.f32.mrb[0].mxu0
      %v3048 = vadd.f32 %v2263, %v3047
      %v3049 = vpop.f32.mrb[0].mxu0
      %3050 = vmatprep.mubr.f32.mxu0 %v1530
      %3051 = vmatmul.mubr.f32.gmra.mrb[0].mxu0 %v1529
      %v3052 = vpop.f32.mrb[0].mxu0
      %v3053 = vadd.f32 %v2268, %v3052
      %v3054 = vpop.f32.mrb[0].mxu0
      %3055 = vmatprep.mubr.f32.mxu0 %v1534
      %3056 = vmatmul.mubr.f32.gmra.mrb[0].mxu0 %v1533
      %v3057 = vpop.f32.mrb[0].mxu0
      %v3058 = vadd.f32 %v2273, %v3057
      %v3059 = vpop.f32.mrb[0].mxu0
      %3060 = vmatprep.mubr.f32.mxu0 %v1538
      %3061 = vmatmul.mubr.f32.gmra.mrb[0].mxu0 %v1537
      %v3062 = vpop.f32.mrb[0].mxu0
      %v3063 = vadd.f32 %v2278, %v3062
      %v3064 = vpop.f32.mrb[0].mxu0
      %3065 = vmatprep.mubr.f32.mxu0 %v1542
      %3066 = vmatmul.mubr.f32.gmra.mrb[0].mxu0 %v1541
      %v3067 = vpop.f32.mrb[0].mxu0
      %v3068 = vadd.f32 %v2283, %v3067
      %v3069 = vpop.f32.mrb[0].mxu0
      %3070 = vmatprep.mubr.f32.mxu0 %v1546
      %3071 = vmatmul.mubr.f32.gmra.mrb[0].mxu0 %v1545
      %v3072 = vpop.f32.mrb[0].mxu0
      %v3073 = vadd.f32 %v2288, %v3072
      %v3074 = vpop.f32.mrb[0].mxu0
      %3075 = vmatprep.mubr.f32.mxu0 %v1550
      %3076 = vmatmul.mubr.f32.gmra.mrb[0].mxu0 %v1549
      %v3077 = vpop.f32.mrb[0].mxu0
      %v3078 = vadd.f32 %v2293, %v3077
      %v3079 = vpop.f32.mrb[0].mxu0
      %3080 = vmatprep.mubr.f32.mxu0 %v1554
      %3081 = vmatmul.mubr.f32.gmra.mrb[0].mxu0 %v1553
      %v3082 = vpop.f32.mrb[0].mxu0
      %v3083 = vadd.f32 %v2298, %v3082
      %v3084 = vpop.f32.mrb[0].mxu0
      %3085 = vmatprep.mubr.f32.mxu0 %v1558
      %3086 = vmatmul.mubr.f32.gmra.mrb[0].mxu0 %v1557
      %v3087 = vpop.f32.mrb[0].mxu0
      %v3088 = vadd.f32 %v2303, %v3087
      %v3089 = vpop.f32.mrb[0].mxu0
      %3090 = vmatprep.mubr.f32.mxu0 %v1562
      %3091 = vmatmul.mubr.f32.gmra.mrb[0].mxu0 %v1561
      %v3092 = vpop.f32.mrb[0].mxu0
      %v3093 = vadd.f32 %v2308, %v3092
      %v3094 = vpop.f32.mrb[0].mxu0
      %3095 = vmatprep.mubr.f32.mxu0 %v1566
      %3096 = vmatmul.mubr.f32.gmra.mrb[0].mxu0 %v1565
      %v3097 = vpop.f32.mrb[0].mxu0
      %v3098 = vadd.f32 %v2313, %v3097
      %v3099 = vpop.f32.mrb[0].mxu0
      %3100 = vmatprep.mubr.f32.mxu0 %v1570
      %3101 = vmatmul.mubr.f32.gmra.mrb[0].mxu0 %v1569
      %v3102 = vpop.f32.mrb[0].mxu0
      %v3103 = vadd.f32 %v2318, %v3102
      %v3104 = vpop.f32.mrb[0].mxu0
      %3105 = vmatprep.mubr.f32.mxu0 %v1574
      %3106 = vmatmul.mubr.f32.gmra.mrb[0].mxu0 %v1573
      %v3107 = vpop.f32.mrb[0].mxu0
      %v3108 = vadd.f32 %v2323, %v3107
      %v3109 = vpop.f32.mrb[0].mxu0
      %3110 = vmatprep.mubr.f32.mxu0 %v1578
      %3111 = vmatmul.mubr.f32.gmra.mrb[0].mxu0 %v1577
      %v3112 = vpop.f32.mrb[0].mxu0
      %v3113 = vadd.f32 %v2328, %v3112
      %v3114 = vpop.f32.mrb[0].mxu0
      %3115 = vmatprep.mubr.f32.mxu0 %v1582
      %3116 = vmatmul.mubr.f32.gmra.mrb[0].mxu0 %v1581
      %v3117 = vpop.f32.mrb[0].mxu0
      %v3118 = vadd.f32 %v2333, %v3117
      %v3119 = vpop.f32.mrb[0].mxu0
      %3120 = vmatprep.mubr.f32.mxu0 %v1586
      %3121 = vmatmul.mubr.f32.gmra.mrb[0].mxu0 %v1585
      %v3122 = vpop.f32.mrb[0].mxu0
      %v3123 = vadd.f32 %v2338, %v3122
      %v3124 = vpop.f32.mrb[0].mxu0
      %3125 = vmatprep.mubr.f32.mxu0 %v1590
      %3126 = vmatmul.mubr.f32.gmra.mrb[0].mxu0 %v1589
      %v3127 = vpop.f32.mrb[0].mxu0
      %v3128 = vadd.f32 %v2343, %v3127
      %v3129 = vpop.f32.mrb[0].mxu0
      %3130 = vmatprep.mubr.f32.mxu0 %v1594
      %3131 = vmatmul.mubr.f32.gmra.mrb[0].mxu0 %v1593
      %v3132 = vpop.f32.mrb[0].mxu0
      %v3133 = vadd.f32 %v2348, %v3132
      %v3134 = vpop.f32.mrb[0].mxu0
      %3135 = vmatprep.mubr.f32.mxu0 %v1598
      %3136 = vmatmul.mubr.f32.gmra.mrb[0].mxu0 %v1597
      %v3137 = vpop.f32.mrb[0].mxu0
      %v3138 = vadd.f32 %v2353, %v3137
      %v3139 = vpop.f32.mrb[0].mxu0
      %3140 = vmatprep.mubr.f32.mxu0 %v1602
      %3141 = vmatmul.mubr.f32.gmra.mrb[0].mxu0 %v1601
      %v3142 = vpop.f32.mrb[0].mxu0
      %v3143 = vadd.f32 %v2358, %v3142
      %v3144 = vpop.f32.mrb[0].mxu0
      %3145 = vmatprep.mubr.f32.mxu0 %v1606
      %3146 = vmatmul.mubr.f32.gmra.mrb[0].mxu0 %v1605
      %v3147 = vpop.f32.mrb[0].mxu0
      %v3148 = vadd.f32 %v2363, %v3147
      %v3149 = vpop.f32.mrb[0].mxu0
      %3150 = vmatprep.mubr.f32.mxu0 %v1610
      %3151 = vmatmul.mubr.f32.gmra.mrb[0].mxu0 %v1609
      %v3152 = vpop.f32.mrb[0].mxu0
      %v3153 = vadd.f32 %v2368, %v3152
      %v3154 = vpop.f32.mrb[0].mxu0
      %3155 = vmatprep.mubr.f32.mxu0 %v1614
      %3156 = vmatmul.mubr.f32.gmra.mrb[0].mxu0 %v1613
      %v3157 = vpop.f32.mrb[0].mxu0
      %v3158 = vadd.f32 %v2373, %v3157
      %v3159 = vpop.f32.mrb[0].mxu0
      %3160 = vmatprep.mubr.f32.mxu0 %v1618
      %3161 = vmatmul.mubr.f32.gmra.mrb[0].mxu0 %v1617
      %v3162 = vpop.f32.mrb[0].mxu0
      %v3163 = vadd.f32 %v2378, %v3162
      %v3164 = vpop.f32.mrb[0].mxu0
      %3165 = vmatprep.mubr.f32.mxu0 %v1622
      %3166 = vmatmul.mubr.f32.gmra.mrb[0].mxu0 %v1621
      %v3167 = vpop.f32.mrb[0].mxu0
      %v3168 = vadd.f32 %v2383, %v3167
      %v3169 = vpop.f32.mrb[0].mxu0
      %3170 = vmatprep.mubr.f32.mxu0 %v1626
      %3171 = vmatmul.mubr.f32.gmra.mrb[0].mxu0 %v1625
      %v3172 = vpop.f32.mrb[0].mxu0
      %v3173 = vadd.f32 %v2388, %v3172
      %v3174 = vpop.f32.mrb[0].mxu0
      %3175 = vmatprep.mubr.f32.mxu0 %v1630
      %3176 = vmatmul.mubr.f32.gmra.mrb[0].mxu0 %v1629
      %v3177 = vpop.f32.mrb[0].mxu0
      %v3178 = vadd.f32 %v2393, %v3177
      %v3179 = vpop.f32.mrb[0].mxu0
      %3180 = vmatprep.mubr.f32.mxu0 %v1634
      %3181 = vmatmul.mubr.f32.gmra.mrb[0].mxu0 %v1633
      %v3182 = vpop.f32.mrb[0].mxu0
      %v3183 = vadd.f32 %v2398, %v3182
      %v3184 = vpop.f32.mrb[0].mxu0
      %3185 = vmatprep.mubr.f32.mxu0 %v1638
      %3186 = vmatmul.mubr.f32.gmra.mrb[0].mxu0 %v1637
      %v3187 = vpop.f32.mrb[0].mxu0
      %v3188 = vadd.f32 %v2403, %v3187
      %v3189 = vpop.f32.mrb[0].mxu0
      %3190 = vmatprep.mubr.f32.mxu0 %v1642
      %3191 = vmatmul.mubr.f32.gmra.mrb[0].mxu0 %v1641
      %v3192 = vpop.f32.mrb[0].mxu0
      %v3193 = vadd.f32 %v2408, %v3192
      %v3194 = vpop.f32.mrb[0].mxu0
      %3195 = vmatprep.mubr.f32.mxu0 %v1646
      %3196 = vmatmul.mubr.f32.gmra.mrb[0].mxu0 %v1645
      %v3197 = vpop.f32.mrb[0].mxu0
      %v3198 = vadd.f32 %v2413, %v3197
      %v3199 = vpop.f32.mrb[0].mxu0
      %3200 = vmatprep.mubr.f32.mxu0 %v1650
      %3201 = vmatmul.mubr.f32.gmra.mrb[0].mxu0 %v1649
      %v3202 = vpop.f32.mrb[0].mxu0
      %v3203 = vadd.f32 %v2418, %v3202
      %v3204 = vpop.f32.mrb[0].mxu0
      %3205 = vmatprep.mubr.f32.mxu0 %v1654
      %3206 = vmatmul.mubr.f32.gmra.mrb[0].mxu0 %v1653
      %v3207 = vpop.f32.mrb[0].mxu0
      %v3208 = vadd.f32 %v2423, %v3207
      %v3209 = vpop.f32.mrb[0].mxu0
      %3210 = vmatprep.mubr.f32.mxu0 %v1658
      %3211 = vmatmul.mubr.f32.gmra.mrb[0].mxu0 %v1657
      %v3212 = vpop.f32.mrb[0].mxu0
      %v3213 = vadd.f32 %v2428, %v3212
      %v3214 = vpop.f32.mrb[0].mxu0
      %3215 = vmatprep.mubr.f32.mxu0 %v1662
      %3216 = vmatmul.mubr.f32.gmra.mrb[0].mxu0 %v1661
      %v3217 = vpop.f32.mrb[0].mxu0
      %v3218 = vadd.f32 %v2433, %v3217
      %v3219 = vpop.f32.mrb[0].mxu0
      %3220 = vmatprep.mubr.f32.mxu0 %v1666
      %3221 = vmatmul.mubr.f32.gmra.mrb[0].mxu0 %v1665
      %v3222 = vpop.f32.mrb[0].mxu0
      %v3223 = vadd.f32 %v2438, %v3222
      %v3224 = vpop.f32.mrb[0].mxu0
      %3225 = vmatprep.mubr.f32.mxu0 %v1670
      %3226 = vmatmul.mubr.f32.gmra.mrb[0].mxu0 %v1669
      %v3227 = vpop.f32.mrb[0].mxu0
      %v3228 = vadd.f32 %v2443, %v3227
      %v3229 = vpop.f32.mrb[0].mxu0
      %3230 = vmatprep.mubr.f32.mxu0 %v1674
      %3231 = vmatmul.mubr.f32.gmra.mrb[0].mxu0 %v1673
      %v3232 = vpop.f32.mrb[0].mxu0
      %v3233 = vadd.f32 %v2448, %v3232
      %v3234 = vpop.f32.mrb[0].mxu0
      %3235 = vmatprep.mubr.f32.mxu0 %v1678
      %3236 = vmatmul.mubr.f32.gmra.mrb[0].mxu0 %v1677
      %v3237 = vpop.f32.mrb[0].mxu0
      %v3238 = vadd.f32 %v2453, %v3237
      %v3239 = vpop.f32.mrb[0].mxu0
      %3240 = vmatprep.mubr.f32.mxu0 %v1682
      %3241 = vmatmul.mubr.f32.gmra.mrb[0].mxu0 %v1681
      %v3242 = vpop.f32.mrb[0].mxu0
      %v3243 = vadd.f32 %v2458, %v3242
      %v3244 = vpop.f32.mrb[0].mxu0
      %3245 = vmatprep.mubr.f32.mxu0 %v1686
      %3246 = vmatmul.mubr.f32.gmra.mrb[0].mxu0 %v1685
      %v3247 = vpop.f32.mrb[0].mxu0
      %v3248 = vadd.f32 %v2463, %v3247
      %v3249 = vpop.f32.mrb[0].mxu0
      %3250 = vmatprep.mubr.f32.mxu0 %v1690
      %3251 = vmatmul.mubr.f32.gmra.mrb[0].mxu0 %v1689
      %v3252 = vpop.f32.mrb[0].mxu0
      %v3253 = vadd.f32 %v2468, %v3252
      %v3254 = vpop.f32.mrb[0].mxu0
      %3255 = vmatprep.mubr.f32.mxu0 %v1694
      %3256 = vmatmul.mubr.f32.gmra.mrb[0].mxu0 %v1693
      %v3257 = vpop.f32.mrb[0].mxu0
      %v3258 = vadd.f32 %v2473, %v3257
      %v3259 = vpop.f32.mrb[0].mxu0
      %3260 = vmatprep.mubr.f32.mxu0 %v1698
      %3261 = vmatmul.mubr.f32.gmra.mrb[0].mxu0 %v1697
      %v3262 = vpop.f32.mrb[0].mxu0
      %v3263 = vadd.f32 %v2478, %v3262
      %v3264 = vpop.f32.mrb[0].mxu0
      %3265 = vmatprep.mubr.f32.mxu0 %v1702
      %3266 = vmatmul.mubr.f32.gmra.mrb[0].mxu0 %v1701
      %v3267 = vpop.f32.mrb[0].mxu0
      %v3268 = vadd.f32 %v2483, %v3267
      %v3269 = vpop.f32.mrb[0].mxu0
      %3270 = vmatprep.mubr.f32.mxu0 %v1706
      %3271 = vmatmul.mubr.f32.gmra.mrb[0].mxu0 %v1705
      %v3272 = vpop.f32.mrb[0].mxu0
      %v3273 = vadd.f32 %v2488, %v3272
      %v3274 = vpop.f32.mrb[0].mxu0
      %3275 = vmatprep.mubr.f32.mxu0 %v1710
      %3276 = vmatmul.mubr.f32.gmra.mrb[0].mxu0 %v1709
      %v3277 = vpop.f32.mrb[0].mxu0
      %v3278 = vadd.f32 %v2493, %v3277
      %v3279 = vpop.f32.mrb[0].mxu0
      %3280 = vdwg.mxu0
      %v3281 = vld [vmem:[%s6] sm:$0xff]
      %v3282 = vld [vmem:[%s6 + $0x8] sm:$0xff]
      %v3283 = vld [vmem:[%s6 + $0x10] sm:$0xff]
      %v3284 = vld [vmem:[%s6 + $0x18] sm:$0xff]
      %s3285 = scalar_lea.vmem %s6, 32
      %v3286 = vld [vmem:[%s3285] sm:$0xff]
      %v3287 = vld [vmem:[%s3285 + $0x8] sm:$0xff]
      %v3288 = vld [vmem:[%s3285 + $0x10] sm:$0xff]
      %v3289 = vld [vmem:[%s3285 + $0x18] sm:$0xff]
      %vm3290 = vcmask 261120
      %v3292 = vsel %vm3290, %v2643, 0
      %v3295 = vsel %vm3290, %v2648, 0
      %v3298 = vsel %vm3290, %v2653, 0
      %v3301 = vsel %vm3290, %v2658, 0
      %v3304 = vsel %vm3290, %v2663, 0
      %v3307 = vsel %vm3290, %v2668, 0
      %v3310 = vsel %vm3290, %v2673, 0
      %v3313 = vsel %vm3290, %v2678, 0
      %v3316 = vsel %vm3290, %v2683, 0
      %v3319 = vsel %vm3290, %v2688, 0
      %v3322 = vsel %vm3290, %v2693, 0
      %v3325 = vsel %vm3290, %v2698, 0
      %v3328 = vsel %vm3290, %v2703, 0
      %v3331 = vsel %vm3290, %v2708, 0
      %v3334 = vsel %vm3290, %v2713, 0
      %v3337 = vsel %vm3290, %v2718, 0
      %3339 = vmatprep.subr.mxu0 0.0
      %3340 = vmatpush1.msra.mxu0 %v3286
      %3341 = vmatprep.subr.mxu0 0.0
      %3342 = vmatpush1.msra.mxu0 %v3287
      %3343 = vmatprep.subr.mxu0 0.0
      %3344 = vmatpush1.msra.mxu0 %v3288
      %3345 = vmatprep.subr.mxu0 0.0
      %3346 = vmatpush1.msra.mxu0 %v3289
      %3347 = vmatprep.subr.mxu0 0.0
      %3348 = vmatpush1.msra.mxu0 0.0
      %3349 = vmatprep.subr.mxu0 0.0
      %3350 = vmatpush1.msra.mxu0 0.0
      %3351 = vmatprep.subr.mxu0 0.0
      %3352 = vmatpush1.msra.mxu0 0.0
      %3353 = vmatprep.subr.mxu0 0.0
      %3354 = vmatpush1.msra.mxu0 0.0
      %3355 = vmatprep.subr.mxu0 0.0
      %3356 = vmatpush1.msra.mxu0 0.0
      %3357 = vmatprep.subr.mxu0 0.0
      %3358 = vmatpush1.msra.mxu0 0.0
      %3359 = vmatprep.subr.mxu0 0.0
      %3360 = vmatpush1.msra.mxu0 0.0
      %3361 = vmatprep.subr.mxu0 0.0
      %3362 = vmatpush1.msra.mxu0 0.0
      %3363 = vmatprep.subr.mxu0 0.0
      %3364 = vmatpush1.msra.mxu0 0.0
      %3365 = vmatprep.subr.mxu0 0.0
      %3366 = vmatpush1.msra.mxu0 0.0
      %3367 = vmatprep.subr.mxu0 0.0
      %3368 = vmatpush1.msra.mxu0 0.0
      %3369 = vmatprep.subr.mxu0 0.0
      %3370 = vmatpush1.msra.mxu0 0.0
      %3371 = vmatprep.subr.mxu0 0.0
      %3372 = vmatpush1.msra.mxu0 0.0
      %3373 = vmatprep.subr.mxu0 0.0
      %3374 = vmatpush1.msra.mxu0 0.0
      %3375 = vmatprep.subr.mxu0 0.0
      %3376 = vmatpush1.msra.mxu0 0.0
      %3377 = vmatprep.subr.mxu0 0.0
      %3378 = vmatpush1.msra.mxu0 0.0
      %3379 = vmatprep.subr.mxu0 0.0
      %3380 = vmatpush1.msra.mxu0 0.0
      %3381 = vmatprep.subr.mxu0 0.0
      %3382 = vmatpush1.msra.mxu0 0.0
      %3383 = vmatprep.subr.mxu0 0.0
      %3384 = vmatpush1.msra.mxu0 0.0
      %3385 = vmatprep.subr.mxu0 0.0
      %3386 = vmatpush1.msra.mxu0 0.0
      %3387 = vmatprep.subr.mxu0 0.0
      %3388 = vmatpush1.msra.mxu0 0.0
      %3389 = vmatprep.subr.mxu0 0.0
      %3390 = vmatpush1.msra.mxu0 0.0
      %3391 = vmatprep.subr.mxu0 0.0
      %3392 = vmatpush1.msra.mxu0 0.0
      %3393 = vmatprep.subr.mxu0 0.0
      %3394 = vmatpush1.msra.mxu0 0.0
      %3395 = vmatprep.subr.mxu0 0.0
      %3396 = vmatpush1.msra.mxu0 0.0
      %3397 = vmatprep.subr.mxu0 0.0
      %3398 = vmatpush1.msra.mxu0 0.0
      %3399 = vmatprep.subr.mxu0 0.0
      %3400 = vmatpush1.msra.mxu0 0.0
      %3401 = vmatprep.subr.mxu0 0.0
      %3402 = vmatpush1.msra.mxu0 0.0
      %3403 = vmatprep.mubr.f32.mxu0 0.0
      %3404 = vmatmul.mubr.f32.gmra.mrb[0].mxu0 %v3292
      %v3405 = vpop.f32.mrb[0].mxu0
      %v3406 = vadd.f32 0.0, %v3405
      %v3407 = vpop.f32.mrb[0].mxu0
      %3408 = vmatprep.mubr.f32.mxu0 0.0
      %3409 = vmatmul.mubr.f32.gmra.mrb[0].mxu0 %v3295
      %v3410 = vpop.f32.mrb[0].mxu0
      %v3411 = vadd.f32 0.0, %v3410
      %v3412 = vpop.f32.mrb[0].mxu0
      %3413 = vmatprep.mubr.f32.mxu0 0.0
      %3414 = vmatmul.mubr.f32.gmra.mrb[0].mxu0 %v3298
      %v3415 = vpop.f32.mrb[0].mxu0
      %v3416 = vadd.f32 0.0, %v3415
      %v3417 = vpop.f32.mrb[0].mxu0
      %3418 = vmatprep.mubr.f32.mxu0 0.0
      %3419 = vmatmul.mubr.f32.gmra.mrb[0].mxu0 %v3301
      %v3420 = vpop.f32.mrb[0].mxu0
      %v3421 = vadd.f32 0.0, %v3420
      %v3422 = vpop.f32.mrb[0].mxu0
      %3423 = vmatprep.mubr.f32.mxu0 0.0
      %3424 = vmatmul.mubr.f32.gmra.mrb[0].mxu0 %v3304
      %v3425 = vpop.f32.mrb[0].mxu0
      %v3426 = vadd.f32 0.0, %v3425
      %v3427 = vpop.f32.mrb[0].mxu0
      %3428 = vmatprep.mubr.f32.mxu0 0.0
      %3429 = vmatmul.mubr.f32.gmra.mrb[0].mxu0 %v3307
      %v3430 = vpop.f32.mrb[0].mxu0
      %v3431 = vadd.f32 0.0, %v3430
      %v3432 = vpop.f32.mrb[0].mxu0
      %3433 = vmatprep.mubr.f32.mxu0 0.0
      %3434 = vmatmul.mubr.f32.gmra.mrb[0].mxu0 %v3310
      %v3435 = vpop.f32.mrb[0].mxu0
      %v3436 = vadd.f32 0.0, %v3435
      %v3437 = vpop.f32.mrb[0].mxu0
      %3438 = vmatprep.mubr.f32.mxu0 0.0
      %3439 = vmatmul.mubr.f32.gmra.mrb[0].mxu0 %v3313
      %v3440 = vpop.f32.mrb[0].mxu0
      %v3441 = vadd.f32 0.0, %v3440
      %v3442 = vpop.f32.mrb[0].mxu0
      %3443 = vmatprep.mubr.f32.mxu0 0.0
      %3444 = vmatmul.mubr.f32.gmra.mrb[0].mxu0 %v3316
      %v3445 = vpop.f32.mrb[0].mxu0
      %v3446 = vadd.f32 0.0, %v3445
      %v3447 = vpop.f32.mrb[0].mxu0
      %3448 = vmatprep.mubr.f32.mxu0 0.0
      %3449 = vmatmul.mubr.f32.gmra.mrb[0].mxu0 %v3319
      %v3450 = vpop.f32.mrb[0].mxu0
      %v3451 = vadd.f32 0.0, %v3450
      %v3452 = vpop.f32.mrb[0].mxu0
      %3453 = vmatprep.mubr.f32.mxu0 0.0
      %3454 = vmatmul.mubr.f32.gmra.mrb[0].mxu0 %v3322
      %v3455 = vpop.f32.mrb[0].mxu0
      %v3456 = vadd.f32 0.0, %v3455
      %v3457 = vpop.f32.mrb[0].mxu0
      %3458 = vmatprep.mubr.f32.mxu0 0.0
      %3459 = vmatmul.mubr.f32.gmra.mrb[0].mxu0 %v3325
      %v3460 = vpop.f32.mrb[0].mxu0
      %v3461 = vadd.f32 0.0, %v3460
      %v3462 = vpop.f32.mrb[0].mxu0
      %3463 = vmatprep.mubr.f32.mxu0 0.0
      %3464 = vmatmul.mubr.f32.gmra.mrb[0].mxu0 %v3328
      %v3465 = vpop.f32.mrb[0].mxu0
      %v3466 = vadd.f32 0.0, %v3465
      %v3467 = vpop.f32.mrb[0].mxu0
      %3468 = vmatprep.mubr.f32.mxu0 0.0
      %3469 = vmatmul.mubr.f32.gmra.mrb[0].mxu0 %v3331
      %v3470 = vpop.f32.mrb[0].mxu0
      %v3471 = vadd.f32 0.0, %v3470
      %v3472 = vpop.f32.mrb[0].mxu0
      %3473 = vmatprep.mubr.f32.mxu0 0.0
      %3474 = vmatmul.mubr.f32.gmra.mrb[0].mxu0 %v3334
      %v3475 = vpop.f32.mrb[0].mxu0
      %v3476 = vadd.f32 0.0, %v3475
      %v3477 = vpop.f32.mrb[0].mxu0
      %3478 = vmatprep.mubr.f32.mxu0 0.0
      %3479 = vmatmul.mubr.f32.gmra.mrb[0].mxu0 %v3337
      %v3480 = vpop.f32.mrb[0].mxu0
      %v3481 = vadd.f32 0.0, %v3480
      %v3482 = vpop.f32.mrb[0].mxu0
      %3483 = vdwg.mxu0
      %v3485 = vsel %vm3290, %v2563, 0
      %v3488 = vsel %vm3290, %v2568, 0
      %v3491 = vsel %vm3290, %v2573, 0
      %v3494 = vsel %vm3290, %v2578, 0
      %v3497 = vsel %vm3290, %v2583, 0
      %v3500 = vsel %vm3290, %v2588, 0
      %v3503 = vsel %vm3290, %v2593, 0
      %v3506 = vsel %vm3290, %v2598, 0
      %v3509 = vsel %vm3290, %v2603, 0
      %v3512 = vsel %vm3290, %v2608, 0
      %v3515 = vsel %vm3290, %v2613, 0
      %v3518 = vsel %vm3290, %v2618, 0
      %v3521 = vsel %vm3290, %v2623, 0
      %v3524 = vsel %vm3290, %v2628, 0
      %v3527 = vsel %vm3290, %v2633, 0
      %v3530 = vsel %vm3290, %v2638, 0
      %3532 = vmatprep.subr.mxu0 0.0
      %3533 = vmatpush1.msra.mxu0 %v3281
      %3534 = vmatprep.subr.mxu0 0.0
      %3535 = vmatpush1.msra.mxu0 %v3282
      %3536 = vmatprep.subr.mxu0 0.0
      %3537 = vmatpush1.msra.mxu0 %v3283
      %3538 = vmatprep.subr.mxu0 0.0
      %3539 = vmatpush1.msra.mxu0 %v3284
      %3540 = vmatprep.subr.mxu0 0.0
      %3541 = vmatpush1.msra.mxu0 0.0
      %3542 = vmatprep.subr.mxu0 0.0
      %3543 = vmatpush1.msra.mxu0 0.0
      %3544 = vmatprep.subr.mxu0 0.0
      %3545 = vmatpush1.msra.mxu0 0.0
      %3546 = vmatprep.subr.mxu0 0.0
      %3547 = vmatpush1.msra.mxu0 0.0
      %3548 = vmatprep.subr.mxu0 0.0
      %3549 = vmatpush1.msra.mxu0 0.0
      %3550 = vmatprep.subr.mxu0 0.0
      %3551 = vmatpush1.msra.mxu0 0.0
      %3552 = vmatprep.subr.mxu0 0.0
      %3553 = vmatpush1.msra.mxu0 0.0
      %3554 = vmatprep.subr.mxu0 0.0
      %3555 = vmatpush1.msra.mxu0 0.0
      %3556 = vmatprep.subr.mxu0 0.0
      %3557 = vmatpush1.msra.mxu0 0.0
      %3558 = vmatprep.subr.mxu0 0.0
      %3559 = vmatpush1.msra.mxu0 0.0
      %3560 = vmatprep.subr.mxu0 0.0
      %3561 = vmatpush1.msra.mxu0 0.0
      %3562 = vmatprep.subr.mxu0 0.0
      %3563 = vmatpush1.msra.mxu0 0.0
      %3564 = vmatprep.subr.mxu0 0.0
      %3565 = vmatpush1.msra.mxu0 0.0
      %3566 = vmatprep.subr.mxu0 0.0
      %3567 = vmatpush1.msra.mxu0 0.0
      %3568 = vmatprep.subr.mxu0 0.0
      %3569 = vmatpush1.msra.mxu0 0.0
      %3570 = vmatprep.subr.mxu0 0.0
      %3571 = vmatpush1.msra.mxu0 0.0
      %3572 = vmatprep.subr.mxu0 0.0
      %3573 = vmatpush1.msra.mxu0 0.0
      %3574 = vmatprep.subr.mxu0 0.0
      %3575 = vmatpush1.msra.mxu0 0.0
      %3576 = vmatprep.subr.mxu0 0.0
      %3577 = vmatpush1.msra.mxu0 0.0
      %3578 = vmatprep.subr.mxu0 0.0
      %3579 = vmatpush1.msra.mxu0 0.0
      %3580 = vmatprep.subr.mxu0 0.0
      %3581 = vmatpush1.msra.mxu0 0.0
      %3582 = vmatprep.subr.mxu0 0.0
      %3583 = vmatpush1.msra.mxu0 0.0
      %3584 = vmatprep.subr.mxu0 0.0
      %3585 = vmatpush1.msra.mxu0 0.0
      %3586 = vmatprep.subr.mxu0 0.0
      %3587 = vmatpush1.msra.mxu0 0.0
      %3588 = vmatprep.subr.mxu0 0.0
      %3589 = vmatpush1.msra.mxu0 0.0
      %3590 = vmatprep.subr.mxu0 0.0
      %3591 = vmatpush1.msra.mxu0 0.0
      %3592 = vmatprep.subr.mxu0 0.0
      %3593 = vmatpush1.msra.mxu0 0.0
      %3594 = vmatprep.subr.mxu0 0.0
      %3595 = vmatpush1.msra.mxu0 0.0
      %3596 = vmatprep.mubr.f32.mxu0 0.0
      %3597 = vmatmul.mubr.f32.gmra.mrb[0].mxu0 %v3485
      %v3598 = vpop.f32.mrb[0].mxu0
      %v3599 = vadd.f32 %v3406, %v3598
      %v3600 = vpop.f32.mrb[0].mxu0
      %3601 = vmatprep.mubr.f32.mxu0 0.0
      %3602 = vmatmul.mubr.f32.gmra.mrb[0].mxu0 %v3488
      %v3603 = vpop.f32.mrb[0].mxu0
      %v3604 = vadd.f32 %v3411, %v3603
      %v3605 = vpop.f32.mrb[0].mxu0
      %3606 = vmatprep.mubr.f32.mxu0 0.0
      %3607 = vmatmul.mubr.f32.gmra.mrb[0].mxu0 %v3491
      %v3608 = vpop.f32.mrb[0].mxu0
      %v3609 = vadd.f32 %v3416, %v3608
      %v3610 = vpop.f32.mrb[0].mxu0
      %3611 = vmatprep.mubr.f32.mxu0 0.0
      %3612 = vmatmul.mubr.f32.gmra.mrb[0].mxu0 %v3494
      %v3613 = vpop.f32.mrb[0].mxu0
      %v3614 = vadd.f32 %v3421, %v3613
      %v3615 = vpop.f32.mrb[0].mxu0
      %3616 = vmatprep.mubr.f32.mxu0 0.0
      %3617 = vmatmul.mubr.f32.gmra.mrb[0].mxu0 %v3497
      %v3618 = vpop.f32.mrb[0].mxu0
      %v3619 = vadd.f32 %v3426, %v3618
      %v3620 = vpop.f32.mrb[0].mxu0
      %3621 = vmatprep.mubr.f32.mxu0 0.0
      %3622 = vmatmul.mubr.f32.gmra.mrb[0].mxu0 %v3500
      %v3623 = vpop.f32.mrb[0].mxu0
      %v3624 = vadd.f32 %v3431, %v3623
      %v3625 = vpop.f32.mrb[0].mxu0
      %3626 = vmatprep.mubr.f32.mxu0 0.0
      %3627 = vmatmul.mubr.f32.gmra.mrb[0].mxu0 %v3503
      %v3628 = vpop.f32.mrb[0].mxu0
      %v3629 = vadd.f32 %v3436, %v3628
      %v3630 = vpop.f32.mrb[0].mxu0
      %3631 = vmatprep.mubr.f32.mxu0 0.0
      %3632 = vmatmul.mubr.f32.gmra.mrb[0].mxu0 %v3506
      %v3633 = vpop.f32.mrb[0].mxu0
      %v3634 = vadd.f32 %v3441, %v3633
      %v3635 = vpop.f32.mrb[0].mxu0
      %3636 = vmatprep.mubr.f32.mxu0 0.0
      %3637 = vmatmul.mubr.f32.gmra.mrb[0].mxu0 %v3509
      %v3638 = vpop.f32.mrb[0].mxu0
      %v3639 = vadd.f32 %v3446, %v3638
      %v3640 = vpop.f32.mrb[0].mxu0
      %3641 = vmatprep.mubr.f32.mxu0 0.0
      %3642 = vmatmul.mubr.f32.gmra.mrb[0].mxu0 %v3512
      %v3643 = vpop.f32.mrb[0].mxu0
      %v3644 = vadd.f32 %v3451, %v3643
      %v3645 = vpop.f32.mrb[0].mxu0
      %3646 = vmatprep.mubr.f32.mxu0 0.0
      %3647 = vmatmul.mubr.f32.gmra.mrb[0].mxu0 %v3515
      %v3648 = vpop.f32.mrb[0].mxu0
      %v3649 = vadd.f32 %v3456, %v3648
      %v3650 = vpop.f32.mrb[0].mxu0
      %3651 = vmatprep.mubr.f32.mxu0 0.0
      %3652 = vmatmul.mubr.f32.gmra.mrb[0].mxu0 %v3518
      %v3653 = vpop.f32.mrb[0].mxu0
      %v3654 = vadd.f32 %v3461, %v3653
      %v3655 = vpop.f32.mrb[0].mxu0
      %3656 = vmatprep.mubr.f32.mxu0 0.0
      %3657 = vmatmul.mubr.f32.gmra.mrb[0].mxu0 %v3521
      %v3658 = vpop.f32.mrb[0].mxu0
      %v3659 = vadd.f32 %v3466, %v3658
      %v3660 = vpop.f32.mrb[0].mxu0
      %3661 = vmatprep.mubr.f32.mxu0 0.0
      %3662 = vmatmul.mubr.f32.gmra.mrb[0].mxu0 %v3524
      %v3663 = vpop.f32.mrb[0].mxu0
      %v3664 = vadd.f32 %v3471, %v3663
      %v3665 = vpop.f32.mrb[0].mxu0
      %3666 = vmatprep.mubr.f32.mxu0 0.0
      %3667 = vmatmul.mubr.f32.gmra.mrb[0].mxu0 %v3527
      %v3668 = vpop.f32.mrb[0].mxu0
      %v3669 = vadd.f32 %v3476, %v3668
      %v3670 = vpop.f32.mrb[0].mxu0
      %3671 = vmatprep.mubr.f32.mxu0 0.0
      %3672 = vmatmul.mubr.f32.gmra.mrb[0].mxu0 %v3530
      %v3673 = vpop.f32.mrb[0].mxu0
      %v3674 = vadd.f32 %v3481, %v3673
      %v3675 = vpop.f32.mrb[0].mxu0
      %3676 = vdwg.mxu0
      %s3677 = scalar_lea.vmem %s6, 64
      %v3678 = vld [vmem:[%s3677] sm:$0xff]
      %v3679 = vld [vmem:[%s3677 + $0x8] sm:$0xff]
      %v3680 = vld [vmem:[%s3677 + $0x10] sm:$0xff]
      %v3681 = vld [vmem:[%s3677 + $0x18] sm:$0xff]
      %v3683 = vsel %vm3290, %v2723, 0
      %v3686 = vsel %vm3290, %v2728, 0
      %v3689 = vsel %vm3290, %v2733, 0
      %v3692 = vsel %vm3290, %v2738, 0
      %v3695 = vsel %vm3290, %v2743, 0
      %v3698 = vsel %vm3290, %v2748, 0
      %v3701 = vsel %vm3290, %v2753, 0
      %v3704 = vsel %vm3290, %v2758, 0
      %v3707 = vsel %vm3290, %v2763, 0
      %v3710 = vsel %vm3290, %v2768, 0
      %v3713 = vsel %vm3290, %v2773, 0
      %v3716 = vsel %vm3290, %v2778, 0
      %v3719 = vsel %vm3290, %v2783, 0
      %v3722 = vsel %vm3290, %v2788, 0
      %v3725 = vsel %vm3290, %v2793, 0
      %v3728 = vsel %vm3290, %v2798, 0
      %3730 = vmatprep.subr.mxu0 0.0
      %3731 = vmatpush1.msra.mxu0 %v3678
      %3732 = vmatprep.subr.mxu0 0.0
      %3733 = vmatpush1.msra.mxu0 %v3679
      %3734 = vmatprep.subr.mxu0 0.0
      %3735 = vmatpush1.msra.mxu0 %v3680
      %3736 = vmatprep.subr.mxu0 0.0
      %3737 = vmatpush1.msra.mxu0 %v3681
      %3738 = vmatprep.subr.mxu0 0.0
      %3739 = vmatpush1.msra.mxu0 0.0
      %3740 = vmatprep.subr.mxu0 0.0
      %3741 = vmatpush1.msra.mxu0 0.0
      %3742 = vmatprep.subr.mxu0 0.0
      %3743 = vmatpush1.msra.mxu0 0.0
      %3744 = vmatprep.subr.mxu0 0.0
      %3745 = vmatpush1.msra.mxu0 0.0
      %3746 = vmatprep.subr.mxu0 0.0
      %3747 = vmatpush1.msra.mxu0 0.0
      %3748 = vmatprep.subr.mxu0 0.0
      %3749 = vmatpush1.msra.mxu0 0.0
      %3750 = vmatprep.subr.mxu0 0.0
      %3751 = vmatpush1.msra.mxu0 0.0
      %3752 = vmatprep.subr.mxu0 0.0
      %3753 = vmatpush1.msra.mxu0 0.0
      %3754 = vmatprep.subr.mxu0 0.0
      %3755 = vmatpush1.msra.mxu0 0.0
      %3756 = vmatprep.subr.mxu0 0.0
      %3757 = vmatpush1.msra.mxu0 0.0
      %3758 = vmatprep.subr.mxu0 0.0
      %3759 = vmatpush1.msra.mxu0 0.0
      %3760 = vmatprep.subr.mxu0 0.0
      %3761 = vmatpush1.msra.mxu0 0.0
      %3762 = vmatprep.subr.mxu0 0.0
      %3763 = vmatpush1.msra.mxu0 0.0
      %3764 = vmatprep.subr.mxu0 0.0
      %3765 = vmatpush1.msra.mxu0 0.0
      %3766 = vmatprep.subr.mxu0 0.0
      %3767 = vmatpush1.msra.mxu0 0.0
      %3768 = vmatprep.subr.mxu0 0.0
      %3769 = vmatpush1.msra.mxu0 0.0
      %3770 = vmatprep.subr.mxu0 0.0
      %3771 = vmatpush1.msra.mxu0 0.0
      %3772 = vmatprep.subr.mxu0 0.0
      %3773 = vmatpush1.msra.mxu0 0.0
      %3774 = vmatprep.subr.mxu0 0.0
      %3775 = vmatpush1.msra.mxu0 0.0
      %3776 = vmatprep.subr.mxu0 0.0
      %3777 = vmatpush1.msra.mxu0 0.0
      %3778 = vmatprep.subr.mxu0 0.0
      %3779 = vmatpush1.msra.mxu0 0.0
      %3780 = vmatprep.subr.mxu0 0.0
      %3781 = vmatpush1.msra.mxu0 0.0
      %3782 = vmatprep.subr.mxu0 0.0
      %3783 = vmatpush1.msra.mxu0 0.0
      %3784 = vmatprep.subr.mxu0 0.0
      %3785 = vmatpush1.msra.mxu0 0.0
      %3786 = vmatprep.subr.mxu0 0.0
      %3787 = vmatpush1.msra.mxu0 0.0
      %3788 = vmatprep.subr.mxu0 0.0
      %3789 = vmatpush1.msra.mxu0 0.0
      %3790 = vmatprep.subr.mxu0 0.0
      %3791 = vmatpush1.msra.mxu0 0.0
      %3792 = vmatprep.subr.mxu0 0.0
      %3793 = vmatpush1.msra.mxu0 0.0
      %3794 = vmatprep.mubr.f32.mxu0 0.0
      %3795 = vmatmul.mubr.f32.gmra.mrb[0].mxu0 %v3683
      %v3796 = vpop.f32.mrb[0].mxu0
      %v3797 = vadd.f32 0.0, %v3796
      %v3798 = vpop.f32.mrb[0].mxu0
      %3799 = vmatprep.mubr.f32.mxu0 0.0
      %3800 = vmatmul.mubr.f32.gmra.mrb[0].mxu0 %v3686
      %v3801 = vpop.f32.mrb[0].mxu0
      %v3802 = vadd.f32 0.0, %v3801
      %v3803 = vpop.f32.mrb[0].mxu0
      %3804 = vmatprep.mubr.f32.mxu0 0.0
      %3805 = vmatmul.mubr.f32.gmra.mrb[0].mxu0 %v3689
      %v3806 = vpop.f32.mrb[0].mxu0
      %v3807 = vadd.f32 0.0, %v3806
      %v3808 = vpop.f32.mrb[0].mxu0
      %3809 = vmatprep.mubr.f32.mxu0 0.0
      %3810 = vmatmul.mubr.f32.gmra.mrb[0].mxu0 %v3692
      %v3811 = vpop.f32.mrb[0].mxu0
      %v3812 = vadd.f32 0.0, %v3811
      %v3813 = vpop.f32.mrb[0].mxu0
      %3814 = vmatprep.mubr.f32.mxu0 0.0
      %3815 = vmatmul.mubr.f32.gmra.mrb[0].mxu0 %v3695
      %v3816 = vpop.f32.mrb[0].mxu0
      %v3817 = vadd.f32 0.0, %v3816
      %v3818 = vpop.f32.mrb[0].mxu0
      %3819 = vmatprep.mubr.f32.mxu0 0.0
      %3820 = vmatmul.mubr.f32.gmra.mrb[0].mxu0 %v3698
      %v3821 = vpop.f32.mrb[0].mxu0
      %v3822 = vadd.f32 0.0, %v3821
      %v3823 = vpop.f32.mrb[0].mxu0
      %3824 = vmatprep.mubr.f32.mxu0 0.0
      %3825 = vmatmul.mubr.f32.gmra.mrb[0].mxu0 %v3701
      %v3826 = vpop.f32.mrb[0].mxu0
      %v3827 = vadd.f32 0.0, %v3826
      %v3828 = vpop.f32.mrb[0].mxu0
      %3829 = vmatprep.mubr.f32.mxu0 0.0
      %3830 = vmatmul.mubr.f32.gmra.mrb[0].mxu0 %v3704
      %v3831 = vpop.f32.mrb[0].mxu0
      %v3832 = vadd.f32 0.0, %v3831
      %v3833 = vpop.f32.mrb[0].mxu0
      %3834 = vmatprep.mubr.f32.mxu0 0.0
      %3835 = vmatmul.mubr.f32.gmra.mrb[0].mxu0 %v3707
      %v3836 = vpop.f32.mrb[0].mxu0
      %v3837 = vadd.f32 0.0, %v3836
      %v3838 = vpop.f32.mrb[0].mxu0
      %3839 = vmatprep.mubr.f32.mxu0 0.0
      %3840 = vmatmul.mubr.f32.gmra.mrb[0].mxu0 %v3710
      %v3841 = vpop.f32.mrb[0].mxu0
      %v3842 = vadd.f32 0.0, %v3841
      %v3843 = vpop.f32.mrb[0].mxu0
      %3844 = vmatprep.mubr.f32.mxu0 0.0
      %3845 = vmatmul.mubr.f32.gmra.mrb[0].mxu0 %v3713
      %v3846 = vpop.f32.mrb[0].mxu0
      %v3847 = vadd.f32 0.0, %v3846
      %v3848 = vpop.f32.mrb[0].mxu0
      %3849 = vmatprep.mubr.f32.mxu0 0.0
      %3850 = vmatmul.mubr.f32.gmra.mrb[0].mxu0 %v3716
      %v3851 = vpop.f32.mrb[0].mxu0
      %v3852 = vadd.f32 0.0, %v3851
      %v3853 = vpop.f32.mrb[0].mxu0
      %3854 = vmatprep.mubr.f32.mxu0 0.0
      %3855 = vmatmul.mubr.f32.gmra.mrb[0].mxu0 %v3719
      %v3856 = vpop.f32.mrb[0].mxu0
      %v3857 = vadd.f32 0.0, %v3856
      %v3858 = vpop.f32.mrb[0].mxu0
      %3859 = vmatprep.mubr.f32.mxu0 0.0
      %3860 = vmatmul.mubr.f32.gmra.mrb[0].mxu0 %v3722
      %v3861 = vpop.f32.mrb[0].mxu0
      %v3862 = vadd.f32 0.0, %v3861
      %v3863 = vpop.f32.mrb[0].mxu0
      %3864 = vmatprep.mubr.f32.mxu0 0.0
      %3865 = vmatmul.mubr.f32.gmra.mrb[0].mxu0 %v3725
      %v3866 = vpop.f32.mrb[0].mxu0
      %v3867 = vadd.f32 0.0, %v3866
      %v3868 = vpop.f32.mrb[0].mxu0
      %3869 = vmatprep.mubr.f32.mxu0 0.0
      %3870 = vmatmul.mubr.f32.gmra.mrb[0].mxu0 %v3728
      %v3871 = vpop.f32.mrb[0].mxu0
      %v3872 = vadd.f32 0.0, %v3871
      %v3873 = vpop.f32.mrb[0].mxu0
      %3874 = vdwg.mxu0
      %v3875 = vadd.f32 %v3599, %v3797
      %v3876 = vadd.f32 %v3604, %v3802
      %v3877 = vadd.f32 %v3609, %v3807
      %v3878 = vadd.f32 %v3614, %v3812
      %v3879 = vadd.f32 %v3619, %v3817
      %v3880 = vadd.f32 %v3624, %v3822
      %v3881 = vadd.f32 %v3629, %v3827
      %v3882 = vadd.f32 %v3634, %v3832
      %v3883 = vadd.f32 %v3639, %v3837
      %v3884 = vadd.f32 %v3644, %v3842
      %v3885 = vadd.f32 %v3649, %v3847
      %v3886 = vadd.f32 %v3654, %v3852
      %v3887 = vadd.f32 %v3659, %v3857
      %v3888 = vadd.f32 %v3664, %v3862
      %v3889 = vadd.f32 %v3669, %v3867
      %v3890 = vadd.f32 %v3674, %v3872
      %s3891 = scalar_lea.vmem %s6, 96
      %v3892 = vld [vmem:[%s3891] sm:$0xff]
      %v3893 = vld [vmem:[%s3891 + $0x8] sm:$0xff]
      %v3894 = vld [vmem:[%s3891 + $0x10] sm:$0xff]
      %v3895 = vld [vmem:[%s3891 + $0x18] sm:$0xff]
      %v3897 = vsel %vm3290, %v2803, 0
      %v3900 = vsel %vm3290, %v2808, 0
      %v3903 = vsel %vm3290, %v2813, 0
      %v3906 = vsel %vm3290, %v2818, 0
      %v3909 = vsel %vm3290, %v2823, 0
      %v3912 = vsel %vm3290, %v2828, 0
      %v3915 = vsel %vm3290, %v2833, 0
      %v3918 = vsel %vm3290, %v2838, 0
      %v3921 = vsel %vm3290, %v2843, 0
      %v3924 = vsel %vm3290, %v2848, 0
      %v3927 = vsel %vm3290, %v2853, 0
      %v3930 = vsel %vm3290, %v2858, 0
      %v3933 = vsel %vm3290, %v2863, 0
      %v3936 = vsel %vm3290, %v2868, 0
      %v3939 = vsel %vm3290, %v2873, 0
      %v3942 = vsel %vm3290, %v2878, 0
      %3944 = vmatprep.subr.mxu0 0.0
      %3945 = vmatpush1.msra.mxu0 %v3892
      %3946 = vmatprep.subr.mxu0 0.0
      %3947 = vmatpush1.msra.mxu0 %v3893
      %3948 = vmatprep.subr.mxu0 0.0
      %3949 = vmatpush1.msra.mxu0 %v3894
      %3950 = vmatprep.subr.mxu0 0.0
      %3951 = vmatpush1.msra.mxu0 %v3895
      %3952 = vmatprep.subr.mxu0 0.0
      %3953 = vmatpush1.msra.mxu0 0.0
      %3954 = vmatprep.subr.mxu0 0.0
      %3955 = vmatpush1.msra.mxu0 0.0
      %3956 = vmatprep.subr.mxu0 0.0
      %3957 = vmatpush1.msra.mxu0 0.0
      %3958 = vmatprep.subr.mxu0 0.0
      %3959 = vmatpush1.msra.mxu0 0.0
      %3960 = vmatprep.subr.mxu0 0.0
      %3961 = vmatpush1.msra.mxu0 0.0
      %3962 = vmatprep.subr.mxu0 0.0
      %3963 = vmatpush1.msra.mxu0 0.0
      %3964 = vmatprep.subr.mxu0 0.0
      %3965 = vmatpush1.msra.mxu0 0.0
      %3966 = vmatprep.subr.mxu0 0.0
      %3967 = vmatpush1.msra.mxu0 0.0
      %3968 = vmatprep.subr.mxu0 0.0
      %3969 = vmatpush1.msra.mxu0 0.0
      %3970 = vmatprep.subr.mxu0 0.0
      %3971 = vmatpush1.msra.mxu0 0.0
      %3972 = vmatprep.subr.mxu0 0.0
      %3973 = vmatpush1.msra.mxu0 0.0
      %3974 = vmatprep.subr.mxu0 0.0
      %3975 = vmatpush1.msra.mxu0 0.0
      %3976 = vmatprep.subr.mxu0 0.0
      %3977 = vmatpush1.msra.mxu0 0.0
      %3978 = vmatprep.subr.mxu0 0.0
      %3979 = vmatpush1.msra.mxu0 0.0
      %3980 = vmatprep.subr.mxu0 0.0
      %3981 = vmatpush1.msra.mxu0 0.0
      %3982 = vmatprep.subr.mxu0 0.0
      %3983 = vmatpush1.msra.mxu0 0.0
      %3984 = vmatprep.subr.mxu0 0.0
      %3985 = vmatpush1.msra.mxu0 0.0
      %3986 = vmatprep.subr.mxu0 0.0
      %3987 = vmatpush1.msra.mxu0 0.0
      %3988 = vmatprep.subr.mxu0 0.0
      %3989 = vmatpush1.msra.mxu0 0.0
      %3990 = vmatprep.subr.mxu0 0.0
      %3991 = vmatpush1.msra.mxu0 0.0
      %3992 = vmatprep.subr.mxu0 0.0
      %3993 = vmatpush1.msra.mxu0 0.0
      %3994 = vmatprep.subr.mxu0 0.0
      %3995 = vmatpush1.msra.mxu0 0.0
      %3996 = vmatprep.subr.mxu0 0.0
      %3997 = vmatpush1.msra.mxu0 0.0
      %3998 = vmatprep.subr.mxu0 0.0
      %3999 = vmatpush1.msra.mxu0 0.0
      %4000 = vmatprep.subr.mxu0 0.0
      %4001 = vmatpush1.msra.mxu0 0.0
      %4002 = vmatprep.subr.mxu0 0.0
      %4003 = vmatpush1.msra.mxu0 0.0
      %4004 = vmatprep.subr.mxu0 0.0
      %4005 = vmatpush1.msra.mxu0 0.0
      %4006 = vmatprep.subr.mxu0 0.0
      %4007 = vmatpush1.msra.mxu0 0.0
      %4008 = vmatprep.mubr.f32.mxu0 0.0
      %4009 = vmatmul.mubr.f32.gmra.mrb[0].mxu0 %v3897
      %v4010 = vpop.f32.mrb[0].mxu0
      %v4011 = vadd.f32 0.0, %v4010
      %v4012 = vpop.f32.mrb[0].mxu0
      %4013 = vmatprep.mubr.f32.mxu0 0.0
      %4014 = vmatmul.mubr.f32.gmra.mrb[0].mxu0 %v3900
      %v4015 = vpop.f32.mrb[0].mxu0
      %v4016 = vadd.f32 0.0, %v4015
      %v4017 = vpop.f32.mrb[0].mxu0
      %4018 = vmatprep.mubr.f32.mxu0 0.0
      %4019 = vmatmul.mubr.f32.gmra.mrb[0].mxu0 %v3903
      %v4020 = vpop.f32.mrb[0].mxu0
      %v4021 = vadd.f32 0.0, %v4020
      %v4022 = vpop.f32.mrb[0].mxu0
      %4023 = vmatprep.mubr.f32.mxu0 0.0
      %4024 = vmatmul.mubr.f32.gmra.mrb[0].mxu0 %v3906
      %v4025 = vpop.f32.mrb[0].mxu0
      %v4026 = vadd.f32 0.0, %v4025
      %v4027 = vpop.f32.mrb[0].mxu0
      %4028 = vmatprep.mubr.f32.mxu0 0.0
      %4029 = vmatmul.mubr.f32.gmra.mrb[0].mxu0 %v3909
      %v4030 = vpop.f32.mrb[0].mxu0
      %v4031 = vadd.f32 0.0, %v4030
      %v4032 = vpop.f32.mrb[0].mxu0
      %4033 = vmatprep.mubr.f32.mxu0 0.0
      %4034 = vmatmul.mubr.f32.gmra.mrb[0].mxu0 %v3912
      %v4035 = vpop.f32.mrb[0].mxu0
      %v4036 = vadd.f32 0.0, %v4035
      %v4037 = vpop.f32.mrb[0].mxu0
      %4038 = vmatprep.mubr.f32.mxu0 0.0
      %4039 = vmatmul.mubr.f32.gmra.mrb[0].mxu0 %v3915
      %v4040 = vpop.f32.mrb[0].mxu0
      %v4041 = vadd.f32 0.0, %v4040
      %v4042 = vpop.f32.mrb[0].mxu0
      %4043 = vmatprep.mubr.f32.mxu0 0.0
      %4044 = vmatmul.mubr.f32.gmra.mrb[0].mxu0 %v3918
      %v4045 = vpop.f32.mrb[0].mxu0
      %v4046 = vadd.f32 0.0, %v4045
      %v4047 = vpop.f32.mrb[0].mxu0
      %4048 = vmatprep.mubr.f32.mxu0 0.0
      %4049 = vmatmul.mubr.f32.gmra.mrb[0].mxu0 %v3921
      %v4050 = vpop.f32.mrb[0].mxu0
      %v4051 = vadd.f32 0.0, %v4050
      %v4052 = vpop.f32.mrb[0].mxu0
      %4053 = vmatprep.mubr.f32.mxu0 0.0
      %4054 = vmatmul.mubr.f32.gmra.mrb[0].mxu0 %v3924
      %v4055 = vpop.f32.mrb[0].mxu0
      %v4056 = vadd.f32 0.0, %v4055
      %v4057 = vpop.f32.mrb[0].mxu0
      %4058 = vmatprep.mubr.f32.mxu0 0.0
      %4059 = vmatmul.mubr.f32.gmra.mrb[0].mxu0 %v3927
      %v4060 = vpop.f32.mrb[0].mxu0
      %v4061 = vadd.f32 0.0, %v4060
      %v4062 = vpop.f32.mrb[0].mxu0
      %4063 = vmatprep.mubr.f32.mxu0 0.0
      %4064 = vmatmul.mubr.f32.gmra.mrb[0].mxu0 %v3930
      %v4065 = vpop.f32.mrb[0].mxu0
      %v4066 = vadd.f32 0.0, %v4065
      %v4067 = vpop.f32.mrb[0].mxu0
      %4068 = vmatprep.mubr.f32.mxu0 0.0
      %4069 = vmatmul.mubr.f32.gmra.mrb[0].mxu0 %v3933
      %v4070 = vpop.f32.mrb[0].mxu0
      %v4071 = vadd.f32 0.0, %v4070
      %v4072 = vpop.f32.mrb[0].mxu0
      %4073 = vmatprep.mubr.f32.mxu0 0.0
      %4074 = vmatmul.mubr.f32.gmra.mrb[0].mxu0 %v3936
      %v4075 = vpop.f32.mrb[0].mxu0
      %v4076 = vadd.f32 0.0, %v4075
      %v4077 = vpop.f32.mrb[0].mxu0
      %4078 = vmatprep.mubr.f32.mxu0 0.0
      %4079 = vmatmul.mubr.f32.gmra.mrb[0].mxu0 %v3939
      %v4080 = vpop.f32.mrb[0].mxu0
      %v4081 = vadd.f32 0.0, %v4080
      %v4082 = vpop.f32.mrb[0].mxu0
      %4083 = vmatprep.mubr.f32.mxu0 0.0
      %4084 = vmatmul.mubr.f32.gmra.mrb[0].mxu0 %v3942
      %v4085 = vpop.f32.mrb[0].mxu0
      %v4086 = vadd.f32 0.0, %v4085
      %v4087 = vpop.f32.mrb[0].mxu0
      %4088 = vdwg.mxu0
      %v4089 = vadd.f32 %v3875, %v4011
      %v4090 = vadd.f32 %v3876, %v4016
      %v4091 = vadd.f32 %v3877, %v4021
      %v4092 = vadd.f32 %v3878, %v4026
      %v4093 = vadd.f32 %v3879, %v4031
      %v4094 = vadd.f32 %v3880, %v4036
      %v4095 = vadd.f32 %v3881, %v4041
      %v4096 = vadd.f32 %v3882, %v4046
      %v4097 = vadd.f32 %v3883, %v4051
      %v4098 = vadd.f32 %v3884, %v4056
      %v4099 = vadd.f32 %v3885, %v4061
      %v4100 = vadd.f32 %v3886, %v4066
      %v4101 = vadd.f32 %v3887, %v4071
      %v4102 = vadd.f32 %v3888, %v4076
      %v4103 = vadd.f32 %v3889, %v4081
      %v4104 = vadd.f32 %v3890, %v4086
      %s4105 = scalar_lea.vmem %s6, 128
      %v4106 = vld [vmem:[%s4105] sm:$0xff]
      %v4107 = vld [vmem:[%s4105 + $0x8] sm:$0xff]
      %v4108 = vld [vmem:[%s4105 + $0x10] sm:$0xff]
      %v4109 = vld [vmem:[%s4105 + $0x18] sm:$0xff]
      %v4111 = vsel %vm3290, %v2883, 0
      %v4114 = vsel %vm3290, %v2888, 0
      %v4117 = vsel %vm3290, %v2893, 0
      %v4120 = vsel %vm3290, %v2898, 0
      %v4123 = vsel %vm3290, %v2903, 0
      %v4126 = vsel %vm3290, %v2908, 0
      %v4129 = vsel %vm3290, %v2913, 0
      %v4132 = vsel %vm3290, %v2918, 0
      %v4135 = vsel %vm3290, %v2923, 0
      %v4138 = vsel %vm3290, %v2928, 0
      %v4141 = vsel %vm3290, %v2933, 0
      %v4144 = vsel %vm3290, %v2938, 0
      %v4147 = vsel %vm3290, %v2943, 0
      %v4150 = vsel %vm3290, %v2948, 0
      %v4153 = vsel %vm3290, %v2953, 0
      %v4156 = vsel %vm3290, %v2958, 0
      %4158 = vmatprep.subr.mxu0 0.0
      %4159 = vmatpush1.msra.mxu0 %v4106
      %4160 = vmatprep.subr.mxu0 0.0
      %4161 = vmatpush1.msra.mxu0 %v4107
      %4162 = vmatprep.subr.mxu0 0.0
      %4163 = vmatpush1.msra.mxu0 %v4108
      %4164 = vmatprep.subr.mxu0 0.0
      %4165 = vmatpush1.msra.mxu0 %v4109
      %4166 = vmatprep.subr.mxu0 0.0
      %4167 = vmatpush1.msra.mxu0 0.0
      %4168 = vmatprep.subr.mxu0 0.0
      %4169 = vmatpush1.msra.mxu0 0.0
      %4170 = vmatprep.subr.mxu0 0.0
      %4171 = vmatpush1.msra.mxu0 0.0
      %4172 = vmatprep.subr.mxu0 0.0
      %4173 = vmatpush1.msra.mxu0 0.0
      %4174 = vmatprep.subr.mxu0 0.0
      %4175 = vmatpush1.msra.mxu0 0.0
      %4176 = vmatprep.subr.mxu0 0.0
      %4177 = vmatpush1.msra.mxu0 0.0
      %4178 = vmatprep.subr.mxu0 0.0
      %4179 = vmatpush1.msra.mxu0 0.0
      %4180 = vmatprep.subr.mxu0 0.0
      %4181 = vmatpush1.msra.mxu0 0.0
      %4182 = vmatprep.subr.mxu0 0.0
      %4183 = vmatpush1.msra.mxu0 0.0
      %4184 = vmatprep.subr.mxu0 0.0
      %4185 = vmatpush1.msra.mxu0 0.0
      %4186 = vmatprep.subr.mxu0 0.0
      %4187 = vmatpush1.msra.mxu0 0.0
      %4188 = vmatprep.subr.mxu0 0.0
      %4189 = vmatpush1.msra.mxu0 0.0
      %4190 = vmatprep.subr.mxu0 0.0
      %4191 = vmatpush1.msra.mxu0 0.0
      %4192 = vmatprep.subr.mxu0 0.0
      %4193 = vmatpush1.msra.mxu0 0.0
      %4194 = vmatprep.subr.mxu0 0.0
      %4195 = vmatpush1.msra.mxu0 0.0
      %4196 = vmatprep.subr.mxu0 0.0
      %4197 = vmatpush1.msra.mxu0 0.0
      %4198 = vmatprep.subr.mxu0 0.0
      %4199 = vmatpush1.msra.mxu0 0.0
      %4200 = vmatprep.subr.mxu0 0.0
      %4201 = vmatpush1.msra.mxu0 0.0
      %4202 = vmatprep.subr.mxu0 0.0
      %4203 = vmatpush1.msra.mxu0 0.0
      %4204 = vmatprep.subr.mxu0 0.0
      %4205 = vmatpush1.msra.mxu0 0.0
      %4206 = vmatprep.subr.mxu0 0.0
      %4207 = vmatpush1.msra.mxu0 0.0
      %4208 = vmatprep.subr.mxu0 0.0
      %4209 = vmatpush1.msra.mxu0 0.0
      %4210 = vmatprep.subr.mxu0 0.0
      %4211 = vmatpush1.msra.mxu0 0.0
      %4212 = vmatprep.subr.mxu0 0.0
      %4213 = vmatpush1.msra.mxu0 0.0
      %4214 = vmatprep.subr.mxu0 0.0
      %4215 = vmatpush1.msra.mxu0 0.0
      %4216 = vmatprep.subr.mxu0 0.0
      %4217 = vmatpush1.msra.mxu0 0.0
      %4218 = vmatprep.subr.mxu0 0.0
      %4219 = vmatpush1.msra.mxu0 0.0
      %4220 = vmatprep.subr.mxu0 0.0
      %4221 = vmatpush1.msra.mxu0 0.0
      %4222 = vmatprep.mubr.f32.mxu0 0.0
      %4223 = vmatmul.mubr.f32.gmra.mrb[0].mxu0 %v4111
      %v4224 = vpop.f32.mrb[0].mxu0
      %v4225 = vadd.f32 0.0, %v4224
      %v4226 = vpop.f32.mrb[0].mxu0
      %4227 = vmatprep.mubr.f32.mxu0 0.0
      %4228 = vmatmul.mubr.f32.gmra.mrb[0].mxu0 %v4114
      %v4229 = vpop.f32.mrb[0].mxu0
      %v4230 = vadd.f32 0.0, %v4229
      %v4231 = vpop.f32.mrb[0].mxu0
      %4232 = vmatprep.mubr.f32.mxu0 0.0
      %4233 = vmatmul.mubr.f32.gmra.mrb[0].mxu0 %v4117
      %v4234 = vpop.f32.mrb[0].mxu0
      %v4235 = vadd.f32 0.0, %v4234
      %v4236 = vpop.f32.mrb[0].mxu0
      %4237 = vmatprep.mubr.f32.mxu0 0.0
      %4238 = vmatmul.mubr.f32.gmra.mrb[0].mxu0 %v4120
      %v4239 = vpop.f32.mrb[0].mxu0
      %v4240 = vadd.f32 0.0, %v4239
      %v4241 = vpop.f32.mrb[0].mxu0
      %4242 = vmatprep.mubr.f32.mxu0 0.0
      %4243 = vmatmul.mubr.f32.gmra.mrb[0].mxu0 %v4123
      %v4244 = vpop.f32.mrb[0].mxu0
      %v4245 = vadd.f32 0.0, %v4244
      %v4246 = vpop.f32.mrb[0].mxu0
      %4247 = vmatprep.mubr.f32.mxu0 0.0
      %4248 = vmatmul.mubr.f32.gmra.mrb[0].mxu0 %v4126
      %v4249 = vpop.f32.mrb[0].mxu0
      %v4250 = vadd.f32 0.0, %v4249
      %v4251 = vpop.f32.mrb[0].mxu0
      %4252 = vmatprep.mubr.f32.mxu0 0.0
      %4253 = vmatmul.mubr.f32.gmra.mrb[0].mxu0 %v4129
      %v4254 = vpop.f32.mrb[0].mxu0
      %v4255 = vadd.f32 0.0, %v4254
      %v4256 = vpop.f32.mrb[0].mxu0
      %4257 = vmatprep.mubr.f32.mxu0 0.0
      %4258 = vmatmul.mubr.f32.gmra.mrb[0].mxu0 %v4132
      %v4259 = vpop.f32.mrb[0].mxu0
      %v4260 = vadd.f32 0.0, %v4259
      %v4261 = vpop.f32.mrb[0].mxu0
      %4262 = vmatprep.mubr.f32.mxu0 0.0
      %4263 = vmatmul.mubr.f32.gmra.mrb[0].mxu0 %v4135
      %v4264 = vpop.f32.mrb[0].mxu0
      %v4265 = vadd.f32 0.0, %v4264
      %v4266 = vpop.f32.mrb[0].mxu0
      %4267 = vmatprep.mubr.f32.mxu0 0.0
      %4268 = vmatmul.mubr.f32.gmra.mrb[0].mxu0 %v4138
      %v4269 = vpop.f32.mrb[0].mxu0
      %v4270 = vadd.f32 0.0, %v4269
      %v4271 = vpop.f32.mrb[0].mxu0
      %4272 = vmatprep.mubr.f32.mxu0 0.0
      %4273 = vmatmul.mubr.f32.gmra.mrb[0].mxu0 %v4141
      %v4274 = vpop.f32.mrb[0].mxu0
      %v4275 = vadd.f32 0.0, %v4274
      %v4276 = vpop.f32.mrb[0].mxu0
      %4277 = vmatprep.mubr.f32.mxu0 0.0
      %4278 = vmatmul.mubr.f32.gmra.mrb[0].mxu0 %v4144
      %v4279 = vpop.f32.mrb[0].mxu0
      %v4280 = vadd.f32 0.0, %v4279
      %v4281 = vpop.f32.mrb[0].mxu0
      %4282 = vmatprep.mubr.f32.mxu0 0.0
      %4283 = vmatmul.mubr.f32.gmra.mrb[0].mxu0 %v4147
      %v4284 = vpop.f32.mrb[0].mxu0
      %v4285 = vadd.f32 0.0, %v4284
      %v4286 = vpop.f32.mrb[0].mxu0
      %4287 = vmatprep.mubr.f32.mxu0 0.0
      %4288 = vmatmul.mubr.f32.gmra.mrb[0].mxu0 %v4150
      %v4289 = vpop.f32.mrb[0].mxu0
      %v4290 = vadd.f32 0.0, %v4289
      %v4291 = vpop.f32.mrb[0].mxu0
      %4292 = vmatprep.mubr.f32.mxu0 0.0
      %4293 = vmatmul.mubr.f32.gmra.mrb[0].mxu0 %v4153
      %v4294 = vpop.f32.mrb[0].mxu0
      %v4295 = vadd.f32 0.0, %v4294
      %v4296 = vpop.f32.mrb[0].mxu0
      %4297 = vmatprep.mubr.f32.mxu0 0.0
      %4298 = vmatmul.mubr.f32.gmra.mrb[0].mxu0 %v4156
      %v4299 = vpop.f32.mrb[0].mxu0
      %v4300 = vadd.f32 0.0, %v4299
      %v4301 = vpop.f32.mrb[0].mxu0
      %4302 = vdwg.mxu0
      %v4303 = vadd.f32 %v4089, %v4225
      %v4304 = vadd.f32 %v4090, %v4230
      %v4305 = vadd.f32 %v4091, %v4235
      %v4306 = vadd.f32 %v4092, %v4240
      %v4307 = vadd.f32 %v4093, %v4245
      %v4308 = vadd.f32 %v4094, %v4250
      %v4309 = vadd.f32 %v4095, %v4255
      %v4310 = vadd.f32 %v4096, %v4260
      %v4311 = vadd.f32 %v4097, %v4265
      %v4312 = vadd.f32 %v4098, %v4270
      %v4313 = vadd.f32 %v4099, %v4275
      %v4314 = vadd.f32 %v4100, %v4280
      %v4315 = vadd.f32 %v4101, %v4285
      %v4316 = vadd.f32 %v4102, %v4290
      %v4317 = vadd.f32 %v4103, %v4295
      %v4318 = vadd.f32 %v4104, %v4300
      %s4319 = scalar_lea.vmem %s6, 160
      %v4320 = vld [vmem:[%s4319] sm:$0xff]
      %v4321 = vld [vmem:[%s4319 + $0x8] sm:$0xff]
      %v4322 = vld [vmem:[%s4319 + $0x10] sm:$0xff]
      %v4323 = vld [vmem:[%s4319 + $0x18] sm:$0xff]
      %v4325 = vsel %vm3290, %v2963, 0
      %v4328 = vsel %vm3290, %v2968, 0
      %v4331 = vsel %vm3290, %v2973, 0
      %v4334 = vsel %vm3290, %v2978, 0
      %v4337 = vsel %vm3290, %v2983, 0
      %v4340 = vsel %vm3290, %v2988, 0
      %v4343 = vsel %vm3290, %v2993, 0
      %v4346 = vsel %vm3290, %v2998, 0
      %v4349 = vsel %vm3290, %v3003, 0
      %v4352 = vsel %vm3290, %v3008, 0
      %v4355 = vsel %vm3290, %v3013, 0
      %v4358 = vsel %vm3290, %v3018, 0
      %v4361 = vsel %vm3290, %v3023, 0
      %v4364 = vsel %vm3290, %v3028, 0
      %v4367 = vsel %vm3290, %v3033, 0
      %v4370 = vsel %vm3290, %v3038, 0
      %4372 = vmatprep.subr.mxu0 0.0
      %4373 = vmatpush1.msra.mxu0 %v4320
      %4374 = vmatprep.subr.mxu0 0.0
      %4375 = vmatpush1.msra.mxu0 %v4321
      %4376 = vmatprep.subr.mxu0 0.0
      %4377 = vmatpush1.msra.mxu0 %v4322
      %4378 = vmatprep.subr.mxu0 0.0
      %4379 = vmatpush1.msra.mxu0 %v4323
      %4380 = vmatprep.subr.mxu0 0.0
      %4381 = vmatpush1.msra.mxu0 0.0
      %4382 = vmatprep.subr.mxu0 0.0
      %4383 = vmatpush1.msra.mxu0 0.0
      %4384 = vmatprep.subr.mxu0 0.0
      %4385 = vmatpush1.msra.mxu0 0.0
      %4386 = vmatprep.subr.mxu0 0.0
      %4387 = vmatpush1.msra.mxu0 0.0
      %4388 = vmatprep.subr.mxu0 0.0
      %4389 = vmatpush1.msra.mxu0 0.0
      %4390 = vmatprep.subr.mxu0 0.0
      %4391 = vmatpush1.msra.mxu0 0.0
      %4392 = vmatprep.subr.mxu0 0.0
      %4393 = vmatpush1.msra.mxu0 0.0
      %4394 = vmatprep.subr.mxu0 0.0
      %4395 = vmatpush1.msra.mxu0 0.0
      %4396 = vmatprep.subr.mxu0 0.0
      %4397 = vmatpush1.msra.mxu0 0.0
      %4398 = vmatprep.subr.mxu0 0.0
      %4399 = vmatpush1.msra.mxu0 0.0
      %4400 = vmatprep.subr.mxu0 0.0
      %4401 = vmatpush1.msra.mxu0 0.0
      %4402 = vmatprep.subr.mxu0 0.0
      %4403 = vmatpush1.msra.mxu0 0.0
      %4404 = vmatprep.subr.mxu0 0.0
      %4405 = vmatpush1.msra.mxu0 0.0
      %4406 = vmatprep.subr.mxu0 0.0
      %4407 = vmatpush1.msra.mxu0 0.0
      %4408 = vmatprep.subr.mxu0 0.0
      %4409 = vmatpush1.msra.mxu0 0.0
      %4410 = vmatprep.subr.mxu0 0.0
      %4411 = vmatpush1.msra.mxu0 0.0
      %4412 = vmatprep.subr.mxu0 0.0
      %4413 = vmatpush1.msra.mxu0 0.0
      %4414 = vmatprep.subr.mxu0 0.0
      %4415 = vmatpush1.msra.mxu0 0.0
      %4416 = vmatprep.subr.mxu0 0.0
      %4417 = vmatpush1.msra.mxu0 0.0
      %4418 = vmatprep.subr.mxu0 0.0
      %4419 = vmatpush1.msra.mxu0 0.0
      %4420 = vmatprep.subr.mxu0 0.0
      %4421 = vmatpush1.msra.mxu0 0.0
      %4422 = vmatprep.subr.mxu0 0.0
      %4423 = vmatpush1.msra.mxu0 0.0
      %4424 = vmatprep.subr.mxu0 0.0
      %4425 = vmatpush1.msra.mxu0 0.0
      %4426 = vmatprep.subr.mxu0 0.0
      %4427 = vmatpush1.msra.mxu0 0.0
      %4428 = vmatprep.subr.mxu0 0.0
      %4429 = vmatpush1.msra.mxu0 0.0
      %4430 = vmatprep.subr.mxu0 0.0
      %4431 = vmatpush1.msra.mxu0 0.0
      %4432 = vmatprep.subr.mxu0 0.0
      %4433 = vmatpush1.msra.mxu0 0.0
      %4434 = vmatprep.subr.mxu0 0.0
      %4435 = vmatpush1.msra.mxu0 0.0
      %4436 = vmatprep.mubr.f32.mxu0 0.0
      %4437 = vmatmul.mubr.f32.gmra.mrb[0].mxu0 %v4325
      %v4438 = vpop.f32.mrb[0].mxu0
      %v4439 = vadd.f32 0.0, %v4438
      %v4440 = vpop.f32.mrb[0].mxu0
      %4441 = vmatprep.mubr.f32.mxu0 0.0
      %4442 = vmatmul.mubr.f32.gmra.mrb[0].mxu0 %v4328
      %v4443 = vpop.f32.mrb[0].mxu0
      %v4444 = vadd.f32 0.0, %v4443
      %v4445 = vpop.f32.mrb[0].mxu0
      %4446 = vmatprep.mubr.f32.mxu0 0.0
      %4447 = vmatmul.mubr.f32.gmra.mrb[0].mxu0 %v4331
      %v4448 = vpop.f32.mrb[0].mxu0
      %v4449 = vadd.f32 0.0, %v4448
      %v4450 = vpop.f32.mrb[0].mxu0
      %4451 = vmatprep.mubr.f32.mxu0 0.0
      %4452 = vmatmul.mubr.f32.gmra.mrb[0].mxu0 %v4334
      %v4453 = vpop.f32.mrb[0].mxu0
      %v4454 = vadd.f32 0.0, %v4453
      %v4455 = vpop.f32.mrb[0].mxu0
      %4456 = vmatprep.mubr.f32.mxu0 0.0
      %4457 = vmatmul.mubr.f32.gmra.mrb[0].mxu0 %v4337
      %v4458 = vpop.f32.mrb[0].mxu0
      %v4459 = vadd.f32 0.0, %v4458
      %v4460 = vpop.f32.mrb[0].mxu0
      %4461 = vmatprep.mubr.f32.mxu0 0.0
      %4462 = vmatmul.mubr.f32.gmra.mrb[0].mxu0 %v4340
      %v4463 = vpop.f32.mrb[0].mxu0
      %v4464 = vadd.f32 0.0, %v4463
      %v4465 = vpop.f32.mrb[0].mxu0
      %4466 = vmatprep.mubr.f32.mxu0 0.0
      %4467 = vmatmul.mubr.f32.gmra.mrb[0].mxu0 %v4343
      %v4468 = vpop.f32.mrb[0].mxu0
      %v4469 = vadd.f32 0.0, %v4468
      %v4470 = vpop.f32.mrb[0].mxu0
      %4471 = vmatprep.mubr.f32.mxu0 0.0
      %4472 = vmatmul.mubr.f32.gmra.mrb[0].mxu0 %v4346
      %v4473 = vpop.f32.mrb[0].mxu0
      %v4474 = vadd.f32 0.0, %v4473
      %v4475 = vpop.f32.mrb[0].mxu0
      %4476 = vmatprep.mubr.f32.mxu0 0.0
      %4477 = vmatmul.mubr.f32.gmra.mrb[0].mxu0 %v4349
      %v4478 = vpop.f32.mrb[0].mxu0
      %v4479 = vadd.f32 0.0, %v4478
      %v4480 = vpop.f32.mrb[0].mxu0
      %4481 = vmatprep.mubr.f32.mxu0 0.0
      %4482 = vmatmul.mubr.f32.gmra.mrb[0].mxu0 %v4352
      %v4483 = vpop.f32.mrb[0].mxu0
      %v4484 = vadd.f32 0.0, %v4483
      %v4485 = vpop.f32.mrb[0].mxu0
      %4486 = vmatprep.mubr.f32.mxu0 0.0
      %4487 = vmatmul.mubr.f32.gmra.mrb[0].mxu0 %v4355
      %v4488 = vpop.f32.mrb[0].mxu0
      %v4489 = vadd.f32 0.0, %v4488
      %v4490 = vpop.f32.mrb[0].mxu0
      %4491 = vmatprep.mubr.f32.mxu0 0.0
      %4492 = vmatmul.mubr.f32.gmra.mrb[0].mxu0 %v4358
      %v4493 = vpop.f32.mrb[0].mxu0
      %v4494 = vadd.f32 0.0, %v4493
      %v4495 = vpop.f32.mrb[0].mxu0
      %4496 = vmatprep.mubr.f32.mxu0 0.0
      %4497 = vmatmul.mubr.f32.gmra.mrb[0].mxu0 %v4361
      %v4498 = vpop.f32.mrb[0].mxu0
      %v4499 = vadd.f32 0.0, %v4498
      %v4500 = vpop.f32.mrb[0].mxu0
      %4501 = vmatprep.mubr.f32.mxu0 0.0
      %4502 = vmatmul.mubr.f32.gmra.mrb[0].mxu0 %v4364
      %v4503 = vpop.f32.mrb[0].mxu0
      %v4504 = vadd.f32 0.0, %v4503
      %v4505 = vpop.f32.mrb[0].mxu0
      %4506 = vmatprep.mubr.f32.mxu0 0.0
      %4507 = vmatmul.mubr.f32.gmra.mrb[0].mxu0 %v4367
      %v4508 = vpop.f32.mrb[0].mxu0
      %v4509 = vadd.f32 0.0, %v4508
      %v4510 = vpop.f32.mrb[0].mxu0
      %4511 = vmatprep.mubr.f32.mxu0 0.0
      %4512 = vmatmul.mubr.f32.gmra.mrb[0].mxu0 %v4370
      %v4513 = vpop.f32.mrb[0].mxu0
      %v4514 = vadd.f32 0.0, %v4513
      %v4515 = vpop.f32.mrb[0].mxu0
      %4516 = vdwg.mxu0
      %v4517 = vadd.f32 %v4303, %v4439
      %v4518 = vadd.f32 %v4304, %v4444
      %v4519 = vadd.f32 %v4305, %v4449
      %v4520 = vadd.f32 %v4306, %v4454
      %v4521 = vadd.f32 %v4307, %v4459
      %v4522 = vadd.f32 %v4308, %v4464
      %v4523 = vadd.f32 %v4309, %v4469
      %v4524 = vadd.f32 %v4310, %v4474
      %v4525 = vadd.f32 %v4311, %v4479
      %v4526 = vadd.f32 %v4312, %v4484
      %v4527 = vadd.f32 %v4313, %v4489
      %v4528 = vadd.f32 %v4314, %v4494
      %v4529 = vadd.f32 %v4315, %v4499
      %v4530 = vadd.f32 %v4316, %v4504
      %v4531 = vadd.f32 %v4317, %v4509
      %v4532 = vadd.f32 %v4318, %v4514
      %s4533 = scalar_lea.vmem %s6, 192
      %v4534 = vld [vmem:[%s4533] sm:$0xff]
      %v4535 = vld [vmem:[%s4533 + $0x8] sm:$0xff]
      %v4536 = vld [vmem:[%s4533 + $0x10] sm:$0xff]
      %v4537 = vld [vmem:[%s4533 + $0x18] sm:$0xff]
      %v4539 = vsel %vm3290, %v3043, 0
      %v4542 = vsel %vm3290, %v3048, 0
      %v4545 = vsel %vm3290, %v3053, 0
      %v4548 = vsel %vm3290, %v3058, 0
      %v4551 = vsel %vm3290, %v3063, 0
      %v4554 = vsel %vm3290, %v3068, 0
      %v4557 = vsel %vm3290, %v3073, 0
      %v4560 = vsel %vm3290, %v3078, 0
      %v4563 = vsel %vm3290, %v3083, 0
      %v4566 = vsel %vm3290, %v3088, 0
      %v4569 = vsel %vm3290, %v3093, 0
      %v4572 = vsel %vm3290, %v3098, 0
      %v4575 = vsel %vm3290, %v3103, 0
      %v4578 = vsel %vm3290, %v3108, 0
      %v4581 = vsel %vm3290, %v3113, 0
      %v4584 = vsel %vm3290, %v3118, 0
      %4586 = vmatprep.subr.mxu0 0.0
      %4587 = vmatpush1.msra.mxu0 %v4534
      %4588 = vmatprep.subr.mxu0 0.0
      %4589 = vmatpush1.msra.mxu0 %v4535
      %4590 = vmatprep.subr.mxu0 0.0
      %4591 = vmatpush1.msra.mxu0 %v4536
      %4592 = vmatprep.subr.mxu0 0.0
      %4593 = vmatpush1.msra.mxu0 %v4537
      %4594 = vmatprep.subr.mxu0 0.0
      %4595 = vmatpush1.msra.mxu0 0.0
      %4596 = vmatprep.subr.mxu0 0.0
      %4597 = vmatpush1.msra.mxu0 0.0
      %4598 = vmatprep.subr.mxu0 0.0
      %4599 = vmatpush1.msra.mxu0 0.0
      %4600 = vmatprep.subr.mxu0 0.0
      %4601 = vmatpush1.msra.mxu0 0.0
      %4602 = vmatprep.subr.mxu0 0.0
      %4603 = vmatpush1.msra.mxu0 0.0
      %4604 = vmatprep.subr.mxu0 0.0
      %4605 = vmatpush1.msra.mxu0 0.0
      %4606 = vmatprep.subr.mxu0 0.0
      %4607 = vmatpush1.msra.mxu0 0.0
      %4608 = vmatprep.subr.mxu0 0.0
      %4609 = vmatpush1.msra.mxu0 0.0
      %4610 = vmatprep.subr.mxu0 0.0
      %4611 = vmatpush1.msra.mxu0 0.0
      %4612 = vmatprep.subr.mxu0 0.0
      %4613 = vmatpush1.msra.mxu0 0.0
      %4614 = vmatprep.subr.mxu0 0.0
      %4615 = vmatpush1.msra.mxu0 0.0
      %4616 = vmatprep.subr.mxu0 0.0
      %4617 = vmatpush1.msra.mxu0 0.0
      %4618 = vmatprep.subr.mxu0 0.0
      %4619 = vmatpush1.msra.mxu0 0.0
      %4620 = vmatprep.subr.mxu0 0.0
      %4621 = vmatpush1.msra.mxu0 0.0
      %4622 = vmatprep.subr.mxu0 0.0
      %4623 = vmatpush1.msra.mxu0 0.0
      %4624 = vmatprep.subr.mxu0 0.0
      %4625 = vmatpush1.msra.mxu0 0.0
      %4626 = vmatprep.subr.mxu0 0.0
      %4627 = vmatpush1.msra.mxu0 0.0
      %4628 = vmatprep.subr.mxu0 0.0
      %4629 = vmatpush1.msra.mxu0 0.0
      %4630 = vmatprep.subr.mxu0 0.0
      %4631 = vmatpush1.msra.mxu0 0.0
      %4632 = vmatprep.subr.mxu0 0.0
      %4633 = vmatpush1.msra.mxu0 0.0
      %4634 = vmatprep.subr.mxu0 0.0
      %4635 = vmatpush1.msra.mxu0 0.0
      %4636 = vmatprep.subr.mxu0 0.0
      %4637 = vmatpush1.msra.mxu0 0.0
      %4638 = vmatprep.subr.mxu0 0.0
      %4639 = vmatpush1.msra.mxu0 0.0
      %4640 = vmatprep.subr.mxu0 0.0
      %4641 = vmatpush1.msra.mxu0 0.0
      %4642 = vmatprep.subr.mxu0 0.0
      %4643 = vmatpush1.msra.mxu0 0.0
      %4644 = vmatprep.subr.mxu0 0.0
      %4645 = vmatpush1.msra.mxu0 0.0
      %4646 = vmatprep.subr.mxu0 0.0
      %4647 = vmatpush1.msra.mxu0 0.0
      %4648 = vmatprep.subr.mxu0 0.0
      %4649 = vmatpush1.msra.mxu0 0.0
      %4650 = vmatprep.mubr.f32.mxu0 0.0
      %4651 = vmatmul.mubr.f32.gmra.mrb[0].mxu0 %v4539
      %v4652 = vpop.f32.mrb[0].mxu0
      %v4653 = vadd.f32 0.0, %v4652
      %v4654 = vpop.f32.mrb[0].mxu0
      %4655 = vmatprep.mubr.f32.mxu0 0.0
      %4656 = vmatmul.mubr.f32.gmra.mrb[0].mxu0 %v4542
      %v4657 = vpop.f32.mrb[0].mxu0
      %v4658 = vadd.f32 0.0, %v4657
      %v4659 = vpop.f32.mrb[0].mxu0
      %4660 = vmatprep.mubr.f32.mxu0 0.0
      %4661 = vmatmul.mubr.f32.gmra.mrb[0].mxu0 %v4545
      %v4662 = vpop.f32.mrb[0].mxu0
      %v4663 = vadd.f32 0.0, %v4662
      %v4664 = vpop.f32.mrb[0].mxu0
      %4665 = vmatprep.mubr.f32.mxu0 0.0
      %4666 = vmatmul.mubr.f32.gmra.mrb[0].mxu0 %v4548
      %v4667 = vpop.f32.mrb[0].mxu0
      %v4668 = vadd.f32 0.0, %v4667
      %v4669 = vpop.f32.mrb[0].mxu0
      %4670 = vmatprep.mubr.f32.mxu0 0.0
      %4671 = vmatmul.mubr.f32.gmra.mrb[0].mxu0 %v4551
      %v4672 = vpop.f32.mrb[0].mxu0
      %v4673 = vadd.f32 0.0, %v4672
      %v4674 = vpop.f32.mrb[0].mxu0
      %4675 = vmatprep.mubr.f32.mxu0 0.0
      %4676 = vmatmul.mubr.f32.gmra.mrb[0].mxu0 %v4554
      %v4677 = vpop.f32.mrb[0].mxu0
      %v4678 = vadd.f32 0.0, %v4677
      %v4679 = vpop.f32.mrb[0].mxu0
      %4680 = vmatprep.mubr.f32.mxu0 0.0
      %4681 = vmatmul.mubr.f32.gmra.mrb[0].mxu0 %v4557
      %v4682 = vpop.f32.mrb[0].mxu0
      %v4683 = vadd.f32 0.0, %v4682
      %v4684 = vpop.f32.mrb[0].mxu0
      %4685 = vmatprep.mubr.f32.mxu0 0.0
      %4686 = vmatmul.mubr.f32.gmra.mrb[0].mxu0 %v4560
      %v4687 = vpop.f32.mrb[0].mxu0
      %v4688 = vadd.f32 0.0, %v4687
      %v4689 = vpop.f32.mrb[0].mxu0
      %4690 = vmatprep.mubr.f32.mxu0 0.0
      %4691 = vmatmul.mubr.f32.gmra.mrb[0].mxu0 %v4563
      %v4692 = vpop.f32.mrb[0].mxu0
      %v4693 = vadd.f32 0.0, %v4692
      %v4694 = vpop.f32.mrb[0].mxu0
      %4695 = vmatprep.mubr.f32.mxu0 0.0
      %4696 = vmatmul.mubr.f32.gmra.mrb[0].mxu0 %v4566
      %v4697 = vpop.f32.mrb[0].mxu0
      %v4698 = vadd.f32 0.0, %v4697
      %v4699 = vpop.f32.mrb[0].mxu0
      %4700 = vmatprep.mubr.f32.mxu0 0.0
      %4701 = vmatmul.mubr.f32.gmra.mrb[0].mxu0 %v4569
      %v4702 = vpop.f32.mrb[0].mxu0
      %v4703 = vadd.f32 0.0, %v4702
      %v4704 = vpop.f32.mrb[0].mxu0
      %4705 = vmatprep.mubr.f32.mxu0 0.0
      %4706 = vmatmul.mubr.f32.gmra.mrb[0].mxu0 %v4572
      %v4707 = vpop.f32.mrb[0].mxu0
      %v4708 = vadd.f32 0.0, %v4707
      %v4709 = vpop.f32.mrb[0].mxu0
      %4710 = vmatprep.mubr.f32.mxu0 0.0
      %4711 = vmatmul.mubr.f32.gmra.mrb[0].mxu0 %v4575
      %v4712 = vpop.f32.mrb[0].mxu0
      %v4713 = vadd.f32 0.0, %v4712
      %v4714 = vpop.f32.mrb[0].mxu0
      %4715 = vmatprep.mubr.f32.mxu0 0.0
      %4716 = vmatmul.mubr.f32.gmra.mrb[0].mxu0 %v4578
      %v4717 = vpop.f32.mrb[0].mxu0
      %v4718 = vadd.f32 0.0, %v4717
      %v4719 = vpop.f32.mrb[0].mxu0
      %4720 = vmatprep.mubr.f32.mxu0 0.0
      %4721 = vmatmul.mubr.f32.gmra.mrb[0].mxu0 %v4581
      %v4722 = vpop.f32.mrb[0].mxu0
      %v4723 = vadd.f32 0.0, %v4722
      %v4724 = vpop.f32.mrb[0].mxu0
      %4725 = vmatprep.mubr.f32.mxu0 0.0
      %4726 = vmatmul.mubr.f32.gmra.mrb[0].mxu0 %v4584
      %v4727 = vpop.f32.mrb[0].mxu0
      %v4728 = vadd.f32 0.0, %v4727
      %v4729 = vpop.f32.mrb[0].mxu0
      %4730 = vdwg.mxu0
      %v4731 = vadd.f32 %v4517, %v4653
      %v4732 = vadd.f32 %v4518, %v4658
      %v4733 = vadd.f32 %v4519, %v4663
      %v4734 = vadd.f32 %v4520, %v4668
      %v4735 = vadd.f32 %v4521, %v4673
      %v4736 = vadd.f32 %v4522, %v4678
      %v4737 = vadd.f32 %v4523, %v4683
      %v4738 = vadd.f32 %v4524, %v4688
      %v4739 = vadd.f32 %v4525, %v4693
      %v4740 = vadd.f32 %v4526, %v4698
      %v4741 = vadd.f32 %v4527, %v4703
      %v4742 = vadd.f32 %v4528, %v4708
      %v4743 = vadd.f32 %v4529, %v4713
      %v4744 = vadd.f32 %v4530, %v4718
      %v4745 = vadd.f32 %v4531, %v4723
      %v4746 = vadd.f32 %v4532, %v4728
      %s4747 = scalar_lea.vmem %s6, 224
      %v4748 = vld [vmem:[%s4747] sm:$0xff]
      %v4749 = vld [vmem:[%s4747 + $0x8] sm:$0xff]
      %v4750 = vld [vmem:[%s4747 + $0x10] sm:$0xff]
      %v4751 = vld [vmem:[%s4747 + $0x18] sm:$0xff]
      %v4753 = vsel %vm3290, %v3123, 0
      %v4756 = vsel %vm3290, %v3128, 0
      %v4759 = vsel %vm3290, %v3133, 0
      %v4762 = vsel %vm3290, %v3138, 0
      %v4765 = vsel %vm3290, %v3143, 0
      %v4768 = vsel %vm3290, %v3148, 0
      %v4771 = vsel %vm3290, %v3153, 0
      %v4774 = vsel %vm3290, %v3158, 0
      %v4777 = vsel %vm3290, %v3163, 0
      %v4780 = vsel %vm3290, %v3168, 0
      %v4783 = vsel %vm3290, %v3173, 0
      %v4786 = vsel %vm3290, %v3178, 0
      %v4789 = vsel %vm3290, %v3183, 0
      %v4792 = vsel %vm3290, %v3188, 0
      %v4795 = vsel %vm3290, %v3193, 0
      %v4798 = vsel %vm3290, %v3198, 0
      %4800 = vmatprep.subr.mxu0 0.0
      %4801 = vmatpush1.msra.mxu0 %v4748
      %4802 = vmatprep.subr.mxu0 0.0
      %4803 = vmatpush1.msra.mxu0 %v4749
      %4804 = vmatprep.subr.mxu0 0.0
      %4805 = vmatpush1.msra.mxu0 %v4750
      %4806 = vmatprep.subr.mxu0 0.0
      %4807 = vmatpush1.msra.mxu0 %v4751
      %4808 = vmatprep.subr.mxu0 0.0
      %4809 = vmatpush1.msra.mxu0 0.0
      %4810 = vmatprep.subr.mxu0 0.0
      %4811 = vmatpush1.msra.mxu0 0.0
      %4812 = vmatprep.subr.mxu0 0.0
      %4813 = vmatpush1.msra.mxu0 0.0
      %4814 = vmatprep.subr.mxu0 0.0
      %4815 = vmatpush1.msra.mxu0 0.0
      %4816 = vmatprep.subr.mxu0 0.0
      %4817 = vmatpush1.msra.mxu0 0.0
      %4818 = vmatprep.subr.mxu0 0.0
      %4819 = vmatpush1.msra.mxu0 0.0
      %4820 = vmatprep.subr.mxu0 0.0
      %4821 = vmatpush1.msra.mxu0 0.0
      %4822 = vmatprep.subr.mxu0 0.0
      %4823 = vmatpush1.msra.mxu0 0.0
      %4824 = vmatprep.subr.mxu0 0.0
      %4825 = vmatpush1.msra.mxu0 0.0
      %4826 = vmatprep.subr.mxu0 0.0
      %4827 = vmatpush1.msra.mxu0 0.0
      %4828 = vmatprep.subr.mxu0 0.0
      %4829 = vmatpush1.msra.mxu0 0.0
      %4830 = vmatprep.subr.mxu0 0.0
      %4831 = vmatpush1.msra.mxu0 0.0
      %4832 = vmatprep.subr.mxu0 0.0
      %4833 = vmatpush1.msra.mxu0 0.0
      %4834 = vmatprep.subr.mxu0 0.0
      %4835 = vmatpush1.msra.mxu0 0.0
      %4836 = vmatprep.subr.mxu0 0.0
      %4837 = vmatpush1.msra.mxu0 0.0
      %4838 = vmatprep.subr.mxu0 0.0
      %4839 = vmatpush1.msra.mxu0 0.0
      %4840 = vmatprep.subr.mxu0 0.0
      %4841 = vmatpush1.msra.mxu0 0.0
      %4842 = vmatprep.subr.mxu0 0.0
      %4843 = vmatpush1.msra.mxu0 0.0
      %4844 = vmatprep.subr.mxu0 0.0
      %4845 = vmatpush1.msra.mxu0 0.0
      %4846 = vmatprep.subr.mxu0 0.0
      %4847 = vmatpush1.msra.mxu0 0.0
      %4848 = vmatprep.subr.mxu0 0.0
      %4849 = vmatpush1.msra.mxu0 0.0
      %4850 = vmatprep.subr.mxu0 0.0
      %4851 = vmatpush1.msra.mxu0 0.0
      %4852 = vmatprep.subr.mxu0 0.0
      %4853 = vmatpush1.msra.mxu0 0.0
      %4854 = vmatprep.subr.mxu0 0.0
      %4855 = vmatpush1.msra.mxu0 0.0
      %4856 = vmatprep.subr.mxu0 0.0
      %4857 = vmatpush1.msra.mxu0 0.0
      %4858 = vmatprep.subr.mxu0 0.0
      %4859 = vmatpush1.msra.mxu0 0.0
      %4860 = vmatprep.subr.mxu0 0.0
      %4861 = vmatpush1.msra.mxu0 0.0
      %4862 = vmatprep.subr.mxu0 0.0
      %4863 = vmatpush1.msra.mxu0 0.0
      %4864 = vmatprep.mubr.f32.mxu0 0.0
      %4865 = vmatmul.mubr.f32.gmra.mrb[0].mxu0 %v4753
      %v4866 = vpop.f32.mrb[0].mxu0
      %v4867 = vadd.f32 0.0, %v4866
      %v4868 = vpop.f32.mrb[0].mxu0
      %4869 = vmatprep.mubr.f32.mxu0 0.0
      %4870 = vmatmul.mubr.f32.gmra.mrb[0].mxu0 %v4756
      %v4871 = vpop.f32.mrb[0].mxu0
      %v4872 = vadd.f32 0.0, %v4871
      %v4873 = vpop.f32.mrb[0].mxu0
      %4874 = vmatprep.mubr.f32.mxu0 0.0
      %4875 = vmatmul.mubr.f32.gmra.mrb[0].mxu0 %v4759
      %v4876 = vpop.f32.mrb[0].mxu0
      %v4877 = vadd.f32 0.0, %v4876
      %v4878 = vpop.f32.mrb[0].mxu0
      %4879 = vmatprep.mubr.f32.mxu0 0.0
      %4880 = vmatmul.mubr.f32.gmra.mrb[0].mxu0 %v4762
      %v4881 = vpop.f32.mrb[0].mxu0
      %v4882 = vadd.f32 0.0, %v4881
      %v4883 = vpop.f32.mrb[0].mxu0
      %4884 = vmatprep.mubr.f32.mxu0 0.0
      %4885 = vmatmul.mubr.f32.gmra.mrb[0].mxu0 %v4765
      %v4886 = vpop.f32.mrb[0].mxu0
      %v4887 = vadd.f32 0.0, %v4886
      %v4888 = vpop.f32.mrb[0].mxu0
      %4889 = vmatprep.mubr.f32.mxu0 0.0
      %4890 = vmatmul.mubr.f32.gmra.mrb[0].mxu0 %v4768
      %v4891 = vpop.f32.mrb[0].mxu0
      %v4892 = vadd.f32 0.0, %v4891
      %v4893 = vpop.f32.mrb[0].mxu0
      %4894 = vmatprep.mubr.f32.mxu0 0.0
      %4895 = vmatmul.mubr.f32.gmra.mrb[0].mxu0 %v4771
      %v4896 = vpop.f32.mrb[0].mxu0
      %v4897 = vadd.f32 0.0, %v4896
      %v4898 = vpop.f32.mrb[0].mxu0
      %4899 = vmatprep.mubr.f32.mxu0 0.0
      %4900 = vmatmul.mubr.f32.gmra.mrb[0].mxu0 %v4774
      %v4901 = vpop.f32.mrb[0].mxu0
      %v4902 = vadd.f32 0.0, %v4901
      %v4903 = vpop.f32.mrb[0].mxu0
      %4904 = vmatprep.mubr.f32.mxu0 0.0
      %4905 = vmatmul.mubr.f32.gmra.mrb[0].mxu0 %v4777
      %v4906 = vpop.f32.mrb[0].mxu0
      %v4907 = vadd.f32 0.0, %v4906
      %v4908 = vpop.f32.mrb[0].mxu0
      %4909 = vmatprep.mubr.f32.mxu0 0.0
      %4910 = vmatmul.mubr.f32.gmra.mrb[0].mxu0 %v4780
      %v4911 = vpop.f32.mrb[0].mxu0
      %v4912 = vadd.f32 0.0, %v4911
      %v4913 = vpop.f32.mrb[0].mxu0
      %4914 = vmatprep.mubr.f32.mxu0 0.0
      %4915 = vmatmul.mubr.f32.gmra.mrb[0].mxu0 %v4783
      %v4916 = vpop.f32.mrb[0].mxu0
      %v4917 = vadd.f32 0.0, %v4916
      %v4918 = vpop.f32.mrb[0].mxu0
      %4919 = vmatprep.mubr.f32.mxu0 0.0
      %4920 = vmatmul.mubr.f32.gmra.mrb[0].mxu0 %v4786
      %v4921 = vpop.f32.mrb[0].mxu0
      %v4922 = vadd.f32 0.0, %v4921
      %v4923 = vpop.f32.mrb[0].mxu0
      %4924 = vmatprep.mubr.f32.mxu0 0.0
      %4925 = vmatmul.mubr.f32.gmra.mrb[0].mxu0 %v4789
      %v4926 = vpop.f32.mrb[0].mxu0
      %v4927 = vadd.f32 0.0, %v4926
      %v4928 = vpop.f32.mrb[0].mxu0
      %4929 = vmatprep.mubr.f32.mxu0 0.0
      %4930 = vmatmul.mubr.f32.gmra.mrb[0].mxu0 %v4792
      %v4931 = vpop.f32.mrb[0].mxu0
      %v4932 = vadd.f32 0.0, %v4931
      %v4933 = vpop.f32.mrb[0].mxu0
      %4934 = vmatprep.mubr.f32.mxu0 0.0
      %4935 = vmatmul.mubr.f32.gmra.mrb[0].mxu0 %v4795
      %v4936 = vpop.f32.mrb[0].mxu0
      %v4937 = vadd.f32 0.0, %v4936
      %v4938 = vpop.f32.mrb[0].mxu0
      %4939 = vmatprep.mubr.f32.mxu0 0.0
      %4940 = vmatmul.mubr.f32.gmra.mrb[0].mxu0 %v4798
      %v4941 = vpop.f32.mrb[0].mxu0
      %v4942 = vadd.f32 0.0, %v4941
      %v4943 = vpop.f32.mrb[0].mxu0
      %4944 = vdwg.mxu0
      %v4945 = vadd.f32 %v4731, %v4867
      %v4946 = vadd.f32 %v4732, %v4872
      %v4947 = vadd.f32 %v4733, %v4877
      %v4948 = vadd.f32 %v4734, %v4882
      %v4949 = vadd.f32 %v4735, %v4887
      %v4950 = vadd.f32 %v4736, %v4892
      %v4951 = vadd.f32 %v4737, %v4897
      %v4952 = vadd.f32 %v4738, %v4902
      %v4953 = vadd.f32 %v4739, %v4907
      %v4954 = vadd.f32 %v4740, %v4912
      %v4955 = vadd.f32 %v4741, %v4917
      %v4956 = vadd.f32 %v4742, %v4922
      %v4957 = vadd.f32 %v4743, %v4927
      %v4958 = vadd.f32 %v4744, %v4932
      %v4959 = vadd.f32 %v4745, %v4937
      %v4960 = vadd.f32 %v4746, %v4942
      %s4961 = scalar_lea.vmem %s6, 256
      %v4962 = vld [vmem:[%s4961] sm:$0xff]
      %v4963 = vld [vmem:[%s4961 + $0x8] sm:$0xff]
      %v4964 = vld [vmem:[%s4961 + $0x10] sm:$0xff]
      %v4965 = vld [vmem:[%s4961 + $0x18] sm:$0xff]
      %v4967 = vsel %vm3290, %v3203, 0
      %v4970 = vsel %vm3290, %v3208, 0
      %v4973 = vsel %vm3290, %v3213, 0
      %v4976 = vsel %vm3290, %v3218, 0
      %v4979 = vsel %vm3290, %v3223, 0
      %v4982 = vsel %vm3290, %v3228, 0
      %v4985 = vsel %vm3290, %v3233, 0
      %v4988 = vsel %vm3290, %v3238, 0
      %v4991 = vsel %vm3290, %v3243, 0
      %v4994 = vsel %vm3290, %v3248, 0
      %v4997 = vsel %vm3290, %v3253, 0
      %v5000 = vsel %vm3290, %v3258, 0
      %v5003 = vsel %vm3290, %v3263, 0
      %v5006 = vsel %vm3290, %v3268, 0
      %v5009 = vsel %vm3290, %v3273, 0
      %v5012 = vsel %vm3290, %v3278, 0
      %5014 = vmatprep.subr.mxu0 0.0
      %5015 = vmatpush1.msra.mxu0 %v4962
      %5016 = vmatprep.subr.mxu0 0.0
      %5017 = vmatpush1.msra.mxu0 %v4963
      %5018 = vmatprep.subr.mxu0 0.0
      %5019 = vmatpush1.msra.mxu0 %v4964
      %5020 = vmatprep.subr.mxu0 0.0
      %5021 = vmatpush1.msra.mxu0 %v4965
      %5022 = vmatprep.subr.mxu0 0.0
      %5023 = vmatpush1.msra.mxu0 0.0
      %5024 = vmatprep.subr.mxu0 0.0
      %5025 = vmatpush1.msra.mxu0 0.0
      %5026 = vmatprep.subr.mxu0 0.0
      %5027 = vmatpush1.msra.mxu0 0.0
      %5028 = vmatprep.subr.mxu0 0.0
      %5029 = vmatpush1.msra.mxu0 0.0
      %5030 = vmatprep.subr.mxu0 0.0
      %5031 = vmatpush1.msra.mxu0 0.0
      %5032 = vmatprep.subr.mxu0 0.0
      %5033 = vmatpush1.msra.mxu0 0.0
      %5034 = vmatprep.subr.mxu0 0.0
      %5035 = vmatpush1.msra.mxu0 0.0
      %5036 = vmatprep.subr.mxu0 0.0
      %5037 = vmatpush1.msra.mxu0 0.0
      %5038 = vmatprep.subr.mxu0 0.0
      %5039 = vmatpush1.msra.mxu0 0.0
      %5040 = vmatprep.subr.mxu0 0.0
      %5041 = vmatpush1.msra.mxu0 0.0
      %5042 = vmatprep.subr.mxu0 0.0
      %5043 = vmatpush1.msra.mxu0 0.0
      %5044 = vmatprep.subr.mxu0 0.0
      %5045 = vmatpush1.msra.mxu0 0.0
      %5046 = vmatprep.subr.mxu0 0.0
      %5047 = vmatpush1.msra.mxu0 0.0
      %5048 = vmatprep.subr.mxu0 0.0
      %5049 = vmatpush1.msra.mxu0 0.0
      %5050 = vmatprep.subr.mxu0 0.0
      %5051 = vmatpush1.msra.mxu0 0.0
      %5052 = vmatprep.subr.mxu0 0.0
      %5053 = vmatpush1.msra.mxu0 0.0
      %5054 = vmatprep.subr.mxu0 0.0
      %5055 = vmatpush1.msra.mxu0 0.0
      %5056 = vmatprep.subr.mxu0 0.0
      %5057 = vmatpush1.msra.mxu0 0.0
      %5058 = vmatprep.subr.mxu0 0.0
      %5059 = vmatpush1.msra.mxu0 0.0
      %5060 = vmatprep.subr.mxu0 0.0
      %5061 = vmatpush1.msra.mxu0 0.0
      %5062 = vmatprep.subr.mxu0 0.0
      %5063 = vmatpush1.msra.mxu0 0.0
      %5064 = vmatprep.subr.mxu0 0.0
      %5065 = vmatpush1.msra.mxu0 0.0
      %5066 = vmatprep.subr.mxu0 0.0
      %5067 = vmatpush1.msra.mxu0 0.0
      %5068 = vmatprep.subr.mxu0 0.0
      %5069 = vmatpush1.msra.mxu0 0.0
      %5070 = vmatprep.subr.mxu0 0.0
      %5071 = vmatpush1.msra.mxu0 0.0
      %5072 = vmatprep.subr.mxu0 0.0
      %5073 = vmatpush1.msra.mxu0 0.0
      %5074 = vmatprep.subr.mxu0 0.0
      %5075 = vmatpush1.msra.mxu0 0.0
      %5076 = vmatprep.subr.mxu0 0.0
      %5077 = vmatpush1.msra.mxu0 0.0
      %5078 = vmatprep.mubr.f32.mxu0 0.0
      %5079 = vmatmul.mubr.f32.gmra.mrb[0].mxu0 %v4967
      %v5080 = vpop.f32.mrb[0].mxu0
      %v5081 = vadd.f32 0.0, %v5080
      %v5082 = vpop.f32.mrb[0].mxu0
      %5083 = vmatprep.mubr.f32.mxu0 0.0
      %5084 = vmatmul.mubr.f32.gmra.mrb[0].mxu0 %v4970
      %v5085 = vpop.f32.mrb[0].mxu0
      %v5086 = vadd.f32 0.0, %v5085
      %v5087 = vpop.f32.mrb[0].mxu0
      %5088 = vmatprep.mubr.f32.mxu0 0.0
      %5089 = vmatmul.mubr.f32.gmra.mrb[0].mxu0 %v4973
      %v5090 = vpop.f32.mrb[0].mxu0
      %v5091 = vadd.f32 0.0, %v5090
      %v5092 = vpop.f32.mrb[0].mxu0
      %5093 = vmatprep.mubr.f32.mxu0 0.0
      %5094 = vmatmul.mubr.f32.gmra.mrb[0].mxu0 %v4976
      %v5095 = vpop.f32.mrb[0].mxu0
      %v5096 = vadd.f32 0.0, %v5095
      %v5097 = vpop.f32.mrb[0].mxu0
      %5098 = vmatprep.mubr.f32.mxu0 0.0
      %5099 = vmatmul.mubr.f32.gmra.mrb[0].mxu0 %v4979
      %v5100 = vpop.f32.mrb[0].mxu0
      %v5101 = vadd.f32 0.0, %v5100
      %v5102 = vpop.f32.mrb[0].mxu0
      %5103 = vmatprep.mubr.f32.mxu0 0.0
      %5104 = vmatmul.mubr.f32.gmra.mrb[0].mxu0 %v4982
      %v5105 = vpop.f32.mrb[0].mxu0
      %v5106 = vadd.f32 0.0, %v5105
      %v5107 = vpop.f32.mrb[0].mxu0
      %5108 = vmatprep.mubr.f32.mxu0 0.0
      %5109 = vmatmul.mubr.f32.gmra.mrb[0].mxu0 %v4985
      %v5110 = vpop.f32.mrb[0].mxu0
      %v5111 = vadd.f32 0.0, %v5110
      %v5112 = vpop.f32.mrb[0].mxu0
      %5113 = vmatprep.mubr.f32.mxu0 0.0
      %5114 = vmatmul.mubr.f32.gmra.mrb[0].mxu0 %v4988
      %v5115 = vpop.f32.mrb[0].mxu0
      %v5116 = vadd.f32 0.0, %v5115
      %v5117 = vpop.f32.mrb[0].mxu0
      %5118 = vmatprep.mubr.f32.mxu0 0.0
      %5119 = vmatmul.mubr.f32.gmra.mrb[0].mxu0 %v4991
      %v5120 = vpop.f32.mrb[0].mxu0
      %v5121 = vadd.f32 0.0, %v5120
      %v5122 = vpop.f32.mrb[0].mxu0
      %5123 = vmatprep.mubr.f32.mxu0 0.0
      %5124 = vmatmul.mubr.f32.gmra.mrb[0].mxu0 %v4994
      %v5125 = vpop.f32.mrb[0].mxu0
      %v5126 = vadd.f32 0.0, %v5125
      %v5127 = vpop.f32.mrb[0].mxu0
      %5128 = vmatprep.mubr.f32.mxu0 0.0
      %5129 = vmatmul.mubr.f32.gmra.mrb[0].mxu0 %v4997
      %v5130 = vpop.f32.mrb[0].mxu0
      %v5131 = vadd.f32 0.0, %v5130
      %v5132 = vpop.f32.mrb[0].mxu0
      %5133 = vmatprep.mubr.f32.mxu0 0.0
      %5134 = vmatmul.mubr.f32.gmra.mrb[0].mxu0 %v5000
      %v5135 = vpop.f32.mrb[0].mxu0
      %v5136 = vadd.f32 0.0, %v5135
      %v5137 = vpop.f32.mrb[0].mxu0
      %5138 = vmatprep.mubr.f32.mxu0 0.0
      %5139 = vmatmul.mubr.f32.gmra.mrb[0].mxu0 %v5003
      %v5140 = vpop.f32.mrb[0].mxu0
      %v5141 = vadd.f32 0.0, %v5140
      %v5142 = vpop.f32.mrb[0].mxu0
      %5143 = vmatprep.mubr.f32.mxu0 0.0
      %5144 = vmatmul.mubr.f32.gmra.mrb[0].mxu0 %v5006
      %v5145 = vpop.f32.mrb[0].mxu0
      %v5146 = vadd.f32 0.0, %v5145
      %v5147 = vpop.f32.mrb[0].mxu0
      %5148 = vmatprep.mubr.f32.mxu0 0.0
      %5149 = vmatmul.mubr.f32.gmra.mrb[0].mxu0 %v5009
      %v5150 = vpop.f32.mrb[0].mxu0
      %v5151 = vadd.f32 0.0, %v5150
      %v5152 = vpop.f32.mrb[0].mxu0
      %5153 = vmatprep.mubr.f32.mxu0 0.0
      %5154 = vmatmul.mubr.f32.gmra.mrb[0].mxu0 %v5012
      %v5155 = vpop.f32.mrb[0].mxu0
      %v5156 = vadd.f32 0.0, %v5155
      %v5157 = vpop.f32.mrb[0].mxu0
      %5158 = vdwg.mxu0
      %v5159 = vadd.f32 %v4945, %v5081
      %v5160 = vadd.f32 %v4946, %v5086
      %v5161 = vadd.f32 %v4947, %v5091
      %v5162 = vadd.f32 %v4948, %v5096
      %v5163 = vadd.f32 %v4949, %v5101
      %v5164 = vadd.f32 %v4950, %v5106
      %v5165 = vadd.f32 %v4951, %v5111
      %v5166 = vadd.f32 %v4952, %v5116
      %v5167 = vadd.f32 %v4953, %v5121
      %v5168 = vadd.f32 %v4954, %v5126
      %v5169 = vadd.f32 %v4955, %v5131
      %v5170 = vadd.f32 %v4956, %v5136
      %v5171 = vadd.f32 %v4957, %v5141
      %v5172 = vadd.f32 %v4958, %v5146
      %v5173 = vadd.f32 %v4959, %v5151
      %v5174 = vadd.f32 %v4960, %v5156
      %v5175 = vld [vmem:[%s7] sm:$0x1]
      %v5177 = vlaneseq
      %v5178 = vshrl.u32 %v5177, 7
      %v5179 = vsub.s32 0, %v5178
      %v5180 = vrot.slane %v5175, %v5179
      %v5182 = vadd.f32 %v5159, %v5180
      %v5183 = vadd.f32 %v5160, %v5180
      %v5184 = vadd.f32 %v5161, %v5180
      %v5185 = vadd.f32 %v5162, %v5180
      %v5186 = vadd.f32 %v5163, %v5180
      %v5187 = vadd.f32 %v5164, %v5180
      %v5188 = vadd.f32 %v5165, %v5180
      %v5189 = vadd.f32 %v5166, %v5180
      %v5190 = vadd.f32 %v5167, %v5180
      %v5191 = vadd.f32 %v5168, %v5180
      %v5192 = vadd.f32 %v5169, %v5180
      %v5193 = vadd.f32 %v5170, %v5180
      %v5194 = vadd.f32 %v5171, %v5180
      %v5195 = vadd.f32 %v5172, %v5180
      %v5196 = vadd.f32 %v5173, %v5180
      %v5197 = vadd.f32 %v5174, %v5180
      %v5198 = vmax.f32 %v5182, 0.0
      %v5199 = vmax.f32 %v5183, 0.0
      %v5200 = vmax.f32 %v5184, 0.0
      %v5201 = vmax.f32 %v5185, 0.0
      %v5202 = vmax.f32 %v5186, 0.0
      %v5203 = vmax.f32 %v5187, 0.0
      %v5204 = vmax.f32 %v5188, 0.0
      %v5205 = vmax.f32 %v5189, 0.0
      %v5206 = vmax.f32 %v5190, 0.0
      %v5207 = vmax.f32 %v5191, 0.0
      %v5208 = vmax.f32 %v5192, 0.0
      %v5209 = vmax.f32 %v5193, 0.0
      %v5210 = vmax.f32 %v5194, 0.0
      %v5211 = vmax.f32 %v5195, 0.0
      %v5212 = vmax.f32 %v5196, 0.0
      %v5213 = vmax.f32 %v5197, 0.0
      %v5214 = vld [vmem:[%s2] sm:$0xff]
      %v5215 = vld [vmem:[%s2 + $0x8] sm:$0xff]
      %v5216 = vld [vmem:[%s2 + $0x10] sm:$0xff]
      %v5217 = vld [vmem:[%s2 + $0x18] sm:$0xff]
      %v5218 = vld [vmem:[%s2 + $0x20] sm:$0xff]
      %v5219 = vld [vmem:[%s2 + $0x28] sm:$0xff]
      %v5220 = vld [vmem:[%s2 + $0x30] sm:$0xff]
      %v5221 = vld [vmem:[%s2 + $0x38] sm:$0xff]
      %v5222 = vld [vmem:[%s2 + $0x40] sm:$0xff]
      %v5223 = vld [vmem:[%s2 + $0x48] sm:$0xff]
      %v5224 = vld [vmem:[%s2 + $0x50] sm:$0xff]
      %v5225 = vld [vmem:[%s2 + $0x58] sm:$0xff]
      %v5226 = vld [vmem:[%s2 + $0x60] sm:$0xff]
      %v5227 = vld [vmem:[%s2 + $0x68] sm:$0xff]
      %v5228 = vld [vmem:[%s2 + $0x70] sm:$0xff]
      %v5229 = vld [vmem:[%s2 + $0x78] sm:$0xff]
      %v5230 = vld [vmem:[%s2 + $0x80] sm:$0xff]
      %v5231 = vld [vmem:[%s2 + $0x88] sm:$0xff]
      %v5232 = vld [vmem:[%s2 + $0x90] sm:$0xff]
      %v5233 = vld [vmem:[%s2 + $0x98] sm:$0xff]
      %v5234 = vld [vmem:[%s2 + $0xa0] sm:$0xff]
      %v5235 = vld [vmem:[%s2 + $0xa8] sm:$0xff]
      %v5236 = vld [vmem:[%s2 + $0xb0] sm:$0xff]
      %v5237 = vld [vmem:[%s2 + $0xb8] sm:$0xff]
      %v5238 = vld [vmem:[%s2 + $0xc0] sm:$0xff]
      %v5239 = vld [vmem:[%s2 + $0xc8] sm:$0xff]
      %v5240 = vld [vmem:[%s2 + $0xd0] sm:$0xff]
      %v5241 = vld [vmem:[%s2 + $0xd8] sm:$0xff]
      %v5242 = vld [vmem:[%s2 + $0xe0] sm:$0xff]
      %v5243 = vld [vmem:[%s2 + $0xe8] sm:$0xff]
      %v5244 = vld [vmem:[%s2 + $0xf0] sm:$0xff]
      %v5245 = vld [vmem:[%s2 + $0xf8] sm:$0xff]
      %v5246 = vld [vmem:[%s2 + $0x100] sm:$0xff]
      %v5247 = vld [vmem:[%s2 + $0x108] sm:$0xff]
      %v5248 = vld [vmem:[%s2 + $0x110] sm:$0xff]
      %v5249 = vld [vmem:[%s2 + $0x118] sm:$0xff]
      %v5250 = vld [vmem:[%s2 + $0x120] sm:$0xff]
      %v5251 = vld [vmem:[%s2 + $0x128] sm:$0xff]
      %v5252 = vld [vmem:[%s2 + $0x130] sm:$0xff]
      %v5253 = vld [vmem:[%s2 + $0x138] sm:$0xff]
      %v5254 = vld [vmem:[%s2 + $0x140] sm:$0xff]
      %v5255 = vld [vmem:[%s2 + $0x148] sm:$0xff]
      %v5256 = vld [vmem:[%s2 + $0x150] sm:$0xff]
      %v5257 = vld [vmem:[%s2 + $0x158] sm:$0xff]
      %v5258 = vld [vmem:[%s2 + $0x160] sm:$0xff]
      %v5259 = vld [vmem:[%s2 + $0x168] sm:$0xff]
      %v5260 = vld [vmem:[%s2 + $0x170] sm:$0xff]
      %v5261 = vld [vmem:[%s2 + $0x178] sm:$0xff]
      %v5262 = vld [vmem:[%s2 + $0x180] sm:$0xff]
      %v5263 = vld [vmem:[%s2 + $0x188] sm:$0xff]
      %v5264 = vld [vmem:[%s2 + $0x190] sm:$0xff]
      %v5265 = vld [vmem:[%s2 + $0x198] sm:$0xff]
      %v5266 = vld [vmem:[%s2 + $0x1a0] sm:$0xff]
      %v5267 = vld [vmem:[%s2 + $0x1a8] sm:$0xff]
      %v5268 = vld [vmem:[%s2 + $0x1b0] sm:$0xff]
      %v5269 = vld [vmem:[%s2 + $0x1b8] sm:$0xff]
      %v5270 = vld [vmem:[%s2 + $0x1c0] sm:$0xff]
      %v5271 = vld [vmem:[%s2 + $0x1c8] sm:$0xff]
      %v5272 = vld [vmem:[%s2 + $0x1d0] sm:$0xff]
      %v5273 = vld [vmem:[%s2 + $0x1d8] sm:$0xff]
      %v5274 = vld [vmem:[%s2 + $0x1e0] sm:$0xff]
      %v5275 = vld [vmem:[%s2 + $0x1e8] sm:$0xff]
      %v5276 = vld [vmem:[%s2 + $0x1f0] sm:$0xff]
      %v5277 = vld [vmem:[%s2 + $0x1f8] sm:$0xff]
      %v5278 = vld [vmem:[%s2 + $0x200] sm:$0xff]
      %v5279 = vld [vmem:[%s2 + $0x208] sm:$0xff]
      %v5280 = vld [vmem:[%s2 + $0x210] sm:$0xff]
      %v5281 = vld [vmem:[%s2 + $0x218] sm:$0xff]
      %v5282 = vld [vmem:[%s2 + $0x220] sm:$0xff]
      %v5283 = vld [vmem:[%s2 + $0x228] sm:$0xff]
      %v5284 = vld [vmem:[%s2 + $0x230] sm:$0xff]
      %v5285 = vld [vmem:[%s2 + $0x238] sm:$0xff]
      %5286 = vmatprep.subr.mxu0 0.0
      %5287 = vmatpush1.msra.mxu0 %v5198
      %5288 = vmatprep.subr.mxu0 0.0
      %5289 = vmatpush1.msra.mxu0 %v5199
      %5290 = vmatprep.subr.mxu0 0.0
      %5291 = vmatpush1.msra.mxu0 %v5200
      %5292 = vmatprep.subr.mxu0 0.0
      %5293 = vmatpush1.msra.mxu0 %v5201
      %5294 = vmatprep.subr.mxu0 0.0
      %5295 = vmatpush1.msra.mxu0 %v5202
      %5296 = vmatprep.subr.mxu0 0.0
      %5297 = vmatpush1.msra.mxu0 %v5203
      %5298 = vmatprep.subr.mxu0 0.0
      %5299 = vmatpush1.msra.mxu0 %v5204
      %5300 = vmatprep.subr.mxu0 0.0
      %5301 = vmatpush1.msra.mxu0 %v5205
      %5302 = vmatprep.subr.mxu0 0.0
      %5303 = vmatpush1.msra.mxu0 %v5206
      %5304 = vmatprep.subr.mxu0 0.0
      %5305 = vmatpush1.msra.mxu0 %v5207
      %5306 = vmatprep.subr.mxu0 0.0
      %5307 = vmatpush1.msra.mxu0 %v5208
      %5308 = vmatprep.subr.mxu0 0.0
      %5309 = vmatpush1.msra.mxu0 %v5209
      %5310 = vmatprep.subr.mxu0 0.0
      %5311 = vmatpush1.msra.mxu0 %v5210
      %5312 = vmatprep.subr.mxu0 0.0
      %5313 = vmatpush1.msra.mxu0 %v5211
      %5314 = vmatprep.subr.mxu0 0.0
      %5315 = vmatpush1.msra.mxu0 %v5212
      %5316 = vmatprep.subr.mxu0 0.0
      %5317 = vmatpush1.msra.mxu0 %v5213
      %5318 = vmatprep.subr.mxu0 0.0
      %5319 = vmatpush1.msra.mxu0 0.0
      %5320 = vmatprep.subr.mxu0 0.0
      %5321 = vmatpush1.msra.mxu0 0.0
      %5322 = vmatprep.subr.mxu0 0.0
      %5323 = vmatpush1.msra.mxu0 0.0
      %5324 = vmatprep.subr.mxu0 0.0
      %5325 = vmatpush1.msra.mxu0 0.0
      %5326 = vmatprep.subr.mxu0 0.0
      %5327 = vmatpush1.msra.mxu0 0.0
      %5328 = vmatprep.subr.mxu0 0.0
      %5329 = vmatpush1.msra.mxu0 0.0
      %5330 = vmatprep.subr.mxu0 0.0
      %5331 = vmatpush1.msra.mxu0 0.0
      %5332 = vmatprep.subr.mxu0 0.0
      %5333 = vmatpush1.msra.mxu0 0.0
      %5334 = vmatprep.subr.mxu0 0.0
      %5335 = vmatpush1.msra.mxu0 0.0
      %5336 = vmatprep.subr.mxu0 0.0
      %5337 = vmatpush1.msra.mxu0 0.0
      %5338 = vmatprep.subr.mxu0 0.0
      %5339 = vmatpush1.msra.mxu0 0.0
      %5340 = vmatprep.subr.mxu0 0.0
      %5341 = vmatpush1.msra.mxu0 0.0
      %5342 = vmatprep.subr.mxu0 0.0
      %5343 = vmatpush1.msra.mxu0 0.0
      %5344 = vmatprep.subr.mxu0 0.0
      %5345 = vmatpush1.msra.mxu0 0.0
      %5346 = vmatprep.subr.mxu0 0.0
      %5347 = vmatpush1.msra.mxu0 0.0
      %5348 = vmatprep.subr.mxu0 0.0
      %5349 = vmatpush1.msra.mxu0 0.0
      %5350 = vmatprep.mubr.f32.mxu0 0.0
      %5351 = vmatmul.mubr.f32.gmra.mrb[0].mxu0 %v5214
      %v5352 = vpop.f32.mrb[0].mxu0
      %v5353 = vadd.f32 0.0, %v5352
      %v5354 = vpop.f32.mrb[0].mxu0
      %5355 = vmatprep.mubr.f32.mxu0 0.0
      %5356 = vmatmul.mubr.f32.gmra.mrb[0].mxu0 %v5215
      %v5357 = vpop.f32.mrb[0].mxu0
      %v5358 = vadd.f32 0.0, %v5357
      %v5359 = vpop.f32.mrb[0].mxu0
      %5360 = vmatprep.mubr.f32.mxu0 0.0
      %5361 = vmatmul.mubr.f32.gmra.mrb[0].mxu0 %v5216
      %v5362 = vpop.f32.mrb[0].mxu0
      %v5363 = vadd.f32 0.0, %v5362
      %v5364 = vpop.f32.mrb[0].mxu0
      %5365 = vmatprep.mubr.f32.mxu0 0.0
      %5366 = vmatmul.mubr.f32.gmra.mrb[0].mxu0 %v5217
      %v5367 = vpop.f32.mrb[0].mxu0
      %v5368 = vadd.f32 0.0, %v5367
      %v5369 = vpop.f32.mrb[0].mxu0
      %5370 = vmatprep.mubr.f32.mxu0 0.0
      %5371 = vmatmul.mubr.f32.gmra.mrb[0].mxu0 %v5218
      %v5372 = vpop.f32.mrb[0].mxu0
      %v5373 = vadd.f32 0.0, %v5372
      %v5374 = vpop.f32.mrb[0].mxu0
      %5375 = vmatprep.mubr.f32.mxu0 0.0
      %5376 = vmatmul.mubr.f32.gmra.mrb[0].mxu0 %v5219
      %v5377 = vpop.f32.mrb[0].mxu0
      %v5378 = vadd.f32 0.0, %v5377
      %v5379 = vpop.f32.mrb[0].mxu0
      %5380 = vmatprep.mubr.f32.mxu0 0.0
      %5381 = vmatmul.mubr.f32.gmra.mrb[0].mxu0 %v5220
      %v5382 = vpop.f32.mrb[0].mxu0
      %v5383 = vadd.f32 0.0, %v5382
      %v5384 = vpop.f32.mrb[0].mxu0
      %5385 = vmatprep.mubr.f32.mxu0 0.0
      %5386 = vmatmul.mubr.f32.gmra.mrb[0].mxu0 %v5221
      %v5387 = vpop.f32.mrb[0].mxu0
      %v5388 = vadd.f32 0.0, %v5387
      %v5389 = vpop.f32.mrb[0].mxu0
      %5390 = vmatprep.mubr.f32.mxu0 0.0
      %5391 = vmatmul.mubr.f32.gmra.mrb[0].mxu0 %v5222
      %v5392 = vpop.f32.mrb[0].mxu0
      %v5393 = vadd.f32 0.0, %v5392
      %v5394 = vpop.f32.mrb[0].mxu0
      %5395 = vmatprep.mubr.f32.mxu0 0.0
      %5396 = vmatmul.mubr.f32.gmra.mrb[0].mxu0 %v5223
      %v5397 = vpop.f32.mrb[0].mxu0
      %v5398 = vadd.f32 0.0, %v5397
      %v5399 = vpop.f32.mrb[0].mxu0
      %5400 = vmatprep.mubr.f32.mxu0 0.0
      %5401 = vmatmul.mubr.f32.gmra.mrb[0].mxu0 %v5224
      %v5402 = vpop.f32.mrb[0].mxu0
      %v5403 = vadd.f32 0.0, %v5402
      %v5404 = vpop.f32.mrb[0].mxu0
      %5405 = vmatprep.mubr.f32.mxu0 0.0
      %5406 = vmatmul.mubr.f32.gmra.mrb[0].mxu0 %v5225
      %v5407 = vpop.f32.mrb[0].mxu0
      %v5408 = vadd.f32 0.0, %v5407
      %v5409 = vpop.f32.mrb[0].mxu0
      %5410 = vmatprep.mubr.f32.mxu0 0.0
      %5411 = vmatmul.mubr.f32.gmra.mrb[0].mxu0 %v5226
      %v5412 = vpop.f32.mrb[0].mxu0
      %v5413 = vadd.f32 0.0, %v5412
      %v5414 = vpop.f32.mrb[0].mxu0
      %5415 = vmatprep.mubr.f32.mxu0 0.0
      %5416 = vmatmul.mubr.f32.gmra.mrb[0].mxu0 %v5227
      %v5417 = vpop.f32.mrb[0].mxu0
      %v5418 = vadd.f32 0.0, %v5417
      %v5419 = vpop.f32.mrb[0].mxu0
      %5420 = vmatprep.mubr.f32.mxu0 0.0
      %5421 = vmatmul.mubr.f32.gmra.mrb[0].mxu0 %v5228
      %v5422 = vpop.f32.mrb[0].mxu0
      %v5423 = vadd.f32 0.0, %v5422
      %v5424 = vpop.f32.mrb[0].mxu0
      %5425 = vmatprep.mubr.f32.mxu0 0.0
      %5426 = vmatmul.mubr.f32.gmra.mrb[0].mxu0 %v5229
      %v5427 = vpop.f32.mrb[0].mxu0
      %v5428 = vadd.f32 0.0, %v5427
      %v5429 = vpop.f32.mrb[0].mxu0
      %5430 = vmatprep.mubr.f32.mxu0 0.0
      %5431 = vmatmul.mubr.f32.gmra.mrb[0].mxu0 %v5230
      %v5432 = vpop.f32.mrb[0].mxu0
      %v5433 = vadd.f32 0.0, %v5432
      %v5434 = vpop.f32.mrb[0].mxu0
      %5435 = vmatprep.mubr.f32.mxu0 0.0
      %5436 = vmatmul.mubr.f32.gmra.mrb[0].mxu0 %v5231
      %v5437 = vpop.f32.mrb[0].mxu0
      %v5438 = vadd.f32 0.0, %v5437
      %v5439 = vpop.f32.mrb[0].mxu0
      %5440 = vmatprep.mubr.f32.mxu0 0.0
      %5441 = vmatmul.mubr.f32.gmra.mrb[0].mxu0 %v5232
      %v5442 = vpop.f32.mrb[0].mxu0
      %v5443 = vadd.f32 0.0, %v5442
      %v5444 = vpop.f32.mrb[0].mxu0
      %5445 = vmatprep.mubr.f32.mxu0 0.0
      %5446 = vmatmul.mubr.f32.gmra.mrb[0].mxu0 %v5233
      %v5447 = vpop.f32.mrb[0].mxu0
      %v5448 = vadd.f32 0.0, %v5447
      %v5449 = vpop.f32.mrb[0].mxu0
      %5450 = vmatprep.mubr.f32.mxu0 0.0
      %5451 = vmatmul.mubr.f32.gmra.mrb[0].mxu0 %v5234
      %v5452 = vpop.f32.mrb[0].mxu0
      %v5453 = vadd.f32 0.0, %v5452
      %v5454 = vpop.f32.mrb[0].mxu0
      %5455 = vmatprep.mubr.f32.mxu0 0.0
      %5456 = vmatmul.mubr.f32.gmra.mrb[0].mxu0 %v5235
      %v5457 = vpop.f32.mrb[0].mxu0
      %v5458 = vadd.f32 0.0, %v5457
      %v5459 = vpop.f32.mrb[0].mxu0
      %5460 = vmatprep.mubr.f32.mxu0 0.0
      %5461 = vmatmul.mubr.f32.gmra.mrb[0].mxu0 %v5236
      %v5462 = vpop.f32.mrb[0].mxu0
      %v5463 = vadd.f32 0.0, %v5462
      %v5464 = vpop.f32.mrb[0].mxu0
      %5465 = vmatprep.mubr.f32.mxu0 0.0
      %5466 = vmatmul.mubr.f32.gmra.mrb[0].mxu0 %v5237
      %v5467 = vpop.f32.mrb[0].mxu0
      %v5468 = vadd.f32 0.0, %v5467
      %v5469 = vpop.f32.mrb[0].mxu0
      %5470 = vmatprep.mubr.f32.mxu0 0.0
      %5471 = vmatmul.mubr.f32.gmra.mrb[0].mxu0 %v5238
      %v5472 = vpop.f32.mrb[0].mxu0
      %v5473 = vadd.f32 0.0, %v5472
      %v5474 = vpop.f32.mrb[0].mxu0
      %5475 = vmatprep.mubr.f32.mxu0 0.0
      %5476 = vmatmul.mubr.f32.gmra.mrb[0].mxu0 %v5239
      %v5477 = vpop.f32.mrb[0].mxu0
      %v5478 = vadd.f32 0.0, %v5477
      %v5479 = vpop.f32.mrb[0].mxu0
      %5480 = vmatprep.mubr.f32.mxu0 0.0
      %5481 = vmatmul.mubr.f32.gmra.mrb[0].mxu0 %v5240
      %v5482 = vpop.f32.mrb[0].mxu0
      %v5483 = vadd.f32 0.0, %v5482
      %v5484 = vpop.f32.mrb[0].mxu0
      %5485 = vmatprep.mubr.f32.mxu0 0.0
      %5486 = vmatmul.mubr.f32.gmra.mrb[0].mxu0 %v5241
      %v5487 = vpop.f32.mrb[0].mxu0
      %v5488 = vadd.f32 0.0, %v5487
      %v5489 = vpop.f32.mrb[0].mxu0
      %5490 = vmatprep.mubr.f32.mxu0 0.0
      %5491 = vmatmul.mubr.f32.gmra.mrb[0].mxu0 %v5242
      %v5492 = vpop.f32.mrb[0].mxu0
      %v5493 = vadd.f32 0.0, %v5492
      %v5494 = vpop.f32.mrb[0].mxu0
      %5495 = vmatprep.mubr.f32.mxu0 0.0
      %5496 = vmatmul.mubr.f32.gmra.mrb[0].mxu0 %v5243
      %v5497 = vpop.f32.mrb[0].mxu0
      %v5498 = vadd.f32 0.0, %v5497
      %v5499 = vpop.f32.mrb[0].mxu0
      %5500 = vmatprep.mubr.f32.mxu0 0.0
      %5501 = vmatmul.mubr.f32.gmra.mrb[0].mxu0 %v5244
      %v5502 = vpop.f32.mrb[0].mxu0
      %v5503 = vadd.f32 0.0, %v5502
      %v5504 = vpop.f32.mrb[0].mxu0
      %5505 = vmatprep.mubr.f32.mxu0 0.0
      %5506 = vmatmul.mubr.f32.gmra.mrb[0].mxu0 %v5245
      %v5507 = vpop.f32.mrb[0].mxu0
      %v5508 = vadd.f32 0.0, %v5507
      %v5509 = vpop.f32.mrb[0].mxu0
      %5510 = vmatprep.mubr.f32.mxu0 0.0
      %5511 = vmatmul.mubr.f32.gmra.mrb[0].mxu0 %v5246
      %v5512 = vpop.f32.mrb[0].mxu0
      %v5513 = vadd.f32 0.0, %v5512
      %v5514 = vpop.f32.mrb[0].mxu0
      %5515 = vmatprep.mubr.f32.mxu0 0.0
      %5516 = vmatmul.mubr.f32.gmra.mrb[0].mxu0 %v5247
      %v5517 = vpop.f32.mrb[0].mxu0
      %v5518 = vadd.f32 0.0, %v5517
      %v5519 = vpop.f32.mrb[0].mxu0
      %5520 = vmatprep.mubr.f32.mxu0 0.0
      %5521 = vmatmul.mubr.f32.gmra.mrb[0].mxu0 %v5248
      %v5522 = vpop.f32.mrb[0].mxu0
      %v5523 = vadd.f32 0.0, %v5522
      %v5524 = vpop.f32.mrb[0].mxu0
      %5525 = vmatprep.mubr.f32.mxu0 0.0
      %5526 = vmatmul.mubr.f32.gmra.mrb[0].mxu0 %v5249
      %v5527 = vpop.f32.mrb[0].mxu0
      %v5528 = vadd.f32 0.0, %v5527
      %v5529 = vpop.f32.mrb[0].mxu0
      %5530 = vmatprep.mubr.f32.mxu0 0.0
      %5531 = vmatmul.mubr.f32.gmra.mrb[0].mxu0 %v5250
      %v5532 = vpop.f32.mrb[0].mxu0
      %v5533 = vadd.f32 0.0, %v5532
      %v5534 = vpop.f32.mrb[0].mxu0
      %5535 = vmatprep.mubr.f32.mxu0 0.0
      %5536 = vmatmul.mubr.f32.gmra.mrb[0].mxu0 %v5251
      %v5537 = vpop.f32.mrb[0].mxu0
      %v5538 = vadd.f32 0.0, %v5537
      %v5539 = vpop.f32.mrb[0].mxu0
      %5540 = vmatprep.mubr.f32.mxu0 0.0
      %5541 = vmatmul.mubr.f32.gmra.mrb[0].mxu0 %v5252
      %v5542 = vpop.f32.mrb[0].mxu0
      %v5543 = vadd.f32 0.0, %v5542
      %v5544 = vpop.f32.mrb[0].mxu0
      %5545 = vmatprep.mubr.f32.mxu0 0.0
      %5546 = vmatmul.mubr.f32.gmra.mrb[0].mxu0 %v5253
      %v5547 = vpop.f32.mrb[0].mxu0
      %v5548 = vadd.f32 0.0, %v5547
      %v5549 = vpop.f32.mrb[0].mxu0
      %5550 = vmatprep.mubr.f32.mxu0 0.0
      %5551 = vmatmul.mubr.f32.gmra.mrb[0].mxu0 %v5254
      %v5552 = vpop.f32.mrb[0].mxu0
      %v5553 = vadd.f32 0.0, %v5552
      %v5554 = vpop.f32.mrb[0].mxu0
      %5555 = vmatprep.mubr.f32.mxu0 0.0
      %5556 = vmatmul.mubr.f32.gmra.mrb[0].mxu0 %v5255
      %v5557 = vpop.f32.mrb[0].mxu0
      %v5558 = vadd.f32 0.0, %v5557
      %v5559 = vpop.f32.mrb[0].mxu0
      %5560 = vmatprep.mubr.f32.mxu0 0.0
      %5561 = vmatmul.mubr.f32.gmra.mrb[0].mxu0 %v5256
      %v5562 = vpop.f32.mrb[0].mxu0
      %v5563 = vadd.f32 0.0, %v5562
      %v5564 = vpop.f32.mrb[0].mxu0
      %5565 = vmatprep.mubr.f32.mxu0 0.0
      %5566 = vmatmul.mubr.f32.gmra.mrb[0].mxu0 %v5257
      %v5567 = vpop.f32.mrb[0].mxu0
      %v5568 = vadd.f32 0.0, %v5567
      %v5569 = vpop.f32.mrb[0].mxu0
      %5570 = vmatprep.mubr.f32.mxu0 0.0
      %5571 = vmatmul.mubr.f32.gmra.mrb[0].mxu0 %v5258
      %v5572 = vpop.f32.mrb[0].mxu0
      %v5573 = vadd.f32 0.0, %v5572
      %v5574 = vpop.f32.mrb[0].mxu0
      %5575 = vmatprep.mubr.f32.mxu0 0.0
      %5576 = vmatmul.mubr.f32.gmra.mrb[0].mxu0 %v5259
      %v5577 = vpop.f32.mrb[0].mxu0
      %v5578 = vadd.f32 0.0, %v5577
      %v5579 = vpop.f32.mrb[0].mxu0
      %5580 = vmatprep.mubr.f32.mxu0 0.0
      %5581 = vmatmul.mubr.f32.gmra.mrb[0].mxu0 %v5260
      %v5582 = vpop.f32.mrb[0].mxu0
      %v5583 = vadd.f32 0.0, %v5582
      %v5584 = vpop.f32.mrb[0].mxu0
      %5585 = vmatprep.mubr.f32.mxu0 0.0
      %5586 = vmatmul.mubr.f32.gmra.mrb[0].mxu0 %v5261
      %v5587 = vpop.f32.mrb[0].mxu0
      %v5588 = vadd.f32 0.0, %v5587
      %v5589 = vpop.f32.mrb[0].mxu0
      %5590 = vmatprep.mubr.f32.mxu0 0.0
      %5591 = vmatmul.mubr.f32.gmra.mrb[0].mxu0 %v5262
      %v5592 = vpop.f32.mrb[0].mxu0
      %v5593 = vadd.f32 0.0, %v5592
      %v5594 = vpop.f32.mrb[0].mxu0
      %5595 = vmatprep.mubr.f32.mxu0 0.0
      %5596 = vmatmul.mubr.f32.gmra.mrb[0].mxu0 %v5263
      %v5597 = vpop.f32.mrb[0].mxu0
      %v5598 = vadd.f32 0.0, %v5597
      %v5599 = vpop.f32.mrb[0].mxu0
      %5600 = vmatprep.mubr.f32.mxu0 0.0
      %5601 = vmatmul.mubr.f32.gmra.mrb[0].mxu0 %v5264
      %v5602 = vpop.f32.mrb[0].mxu0
      %v5603 = vadd.f32 0.0, %v5602
      %v5604 = vpop.f32.mrb[0].mxu0
      %5605 = vmatprep.mubr.f32.mxu0 0.0
      %5606 = vmatmul.mubr.f32.gmra.mrb[0].mxu0 %v5265
      %v5607 = vpop.f32.mrb[0].mxu0
      %v5608 = vadd.f32 0.0, %v5607
      %v5609 = vpop.f32.mrb[0].mxu0
      %5610 = vmatprep.mubr.f32.mxu0 0.0
      %5611 = vmatmul.mubr.f32.gmra.mrb[0].mxu0 %v5266
      %v5612 = vpop.f32.mrb[0].mxu0
      %v5613 = vadd.f32 0.0, %v5612
      %v5614 = vpop.f32.mrb[0].mxu0
      %5615 = vmatprep.mubr.f32.mxu0 0.0
      %5616 = vmatmul.mubr.f32.gmra.mrb[0].mxu0 %v5267
      %v5617 = vpop.f32.mrb[0].mxu0
      %v5618 = vadd.f32 0.0, %v5617
      %v5619 = vpop.f32.mrb[0].mxu0
      %5620 = vmatprep.mubr.f32.mxu0 0.0
      %5621 = vmatmul.mubr.f32.gmra.mrb[0].mxu0 %v5268
      %v5622 = vpop.f32.mrb[0].mxu0
      %v5623 = vadd.f32 0.0, %v5622
      %v5624 = vpop.f32.mrb[0].mxu0
      %5625 = vmatprep.mubr.f32.mxu0 0.0
      %5626 = vmatmul.mubr.f32.gmra.mrb[0].mxu0 %v5269
      %v5627 = vpop.f32.mrb[0].mxu0
      %v5628 = vadd.f32 0.0, %v5627
      %v5629 = vpop.f32.mrb[0].mxu0
      %5630 = vmatprep.mubr.f32.mxu0 0.0
      %5631 = vmatmul.mubr.f32.gmra.mrb[0].mxu0 %v5270
      %v5632 = vpop.f32.mrb[0].mxu0
      %v5633 = vadd.f32 0.0, %v5632
      %v5634 = vpop.f32.mrb[0].mxu0
      %5635 = vmatprep.mubr.f32.mxu0 0.0
      %5636 = vmatmul.mubr.f32.gmra.mrb[0].mxu0 %v5271
      %v5637 = vpop.f32.mrb[0].mxu0
      %v5638 = vadd.f32 0.0, %v5637
      %v5639 = vpop.f32.mrb[0].mxu0
      %5640 = vmatprep.mubr.f32.mxu0 0.0
      %5641 = vmatmul.mubr.f32.gmra.mrb[0].mxu0 %v5272
      %v5642 = vpop.f32.mrb[0].mxu0
      %v5643 = vadd.f32 0.0, %v5642
      %v5644 = vpop.f32.mrb[0].mxu0
      %5645 = vmatprep.mubr.f32.mxu0 0.0
      %5646 = vmatmul.mubr.f32.gmra.mrb[0].mxu0 %v5273
      %v5647 = vpop.f32.mrb[0].mxu0
      %v5648 = vadd.f32 0.0, %v5647
      %v5649 = vpop.f32.mrb[0].mxu0
      %5650 = vmatprep.mubr.f32.mxu0 0.0
      %5651 = vmatmul.mubr.f32.gmra.mrb[0].mxu0 %v5274
      %v5652 = vpop.f32.mrb[0].mxu0
      %v5653 = vadd.f32 0.0, %v5652
      %v5654 = vpop.f32.mrb[0].mxu0
      %5655 = vmatprep.mubr.f32.mxu0 0.0
      %5656 = vmatmul.mubr.f32.gmra.mrb[0].mxu0 %v5275
      %v5657 = vpop.f32.mrb[0].mxu0
      %v5658 = vadd.f32 0.0, %v5657
      %v5659 = vpop.f32.mrb[0].mxu0
      %5660 = vmatprep.mubr.f32.mxu0 0.0
      %5661 = vmatmul.mubr.f32.gmra.mrb[0].mxu0 %v5276
      %v5662 = vpop.f32.mrb[0].mxu0
      %v5663 = vadd.f32 0.0, %v5662
      %v5664 = vpop.f32.mrb[0].mxu0
      %5665 = vmatprep.mubr.f32.mxu0 0.0
      %5666 = vmatmul.mubr.f32.gmra.mrb[0].mxu0 %v5277
      %v5667 = vpop.f32.mrb[0].mxu0
      %v5668 = vadd.f32 0.0, %v5667
      %v5669 = vpop.f32.mrb[0].mxu0
      %5670 = vmatprep.mubr.f32.mxu0 0.0
      %5671 = vmatmul.mubr.f32.gmra.mrb[0].mxu0 %v5278
      %v5672 = vpop.f32.mrb[0].mxu0
      %v5673 = vadd.f32 0.0, %v5672
      %v5674 = vpop.f32.mrb[0].mxu0
      %5675 = vmatprep.mubr.f32.mxu0 0.0
      %5676 = vmatmul.mubr.f32.gmra.mrb[0].mxu0 %v5279
      %v5677 = vpop.f32.mrb[0].mxu0
      %v5678 = vadd.f32 0.0, %v5677
      %v5679 = vpop.f32.mrb[0].mxu0
      %5680 = vmatprep.mubr.f32.mxu0 0.0
      %5681 = vmatmul.mubr.f32.gmra.mrb[0].mxu0 %v5280
      %v5682 = vpop.f32.mrb[0].mxu0
      %v5683 = vadd.f32 0.0, %v5682
      %v5684 = vpop.f32.mrb[0].mxu0
      %5685 = vmatprep.mubr.f32.mxu0 0.0
      %5686 = vmatmul.mubr.f32.gmra.mrb[0].mxu0 %v5281
      %v5687 = vpop.f32.mrb[0].mxu0
      %v5688 = vadd.f32 0.0, %v5687
      %v5689 = vpop.f32.mrb[0].mxu0
      %5690 = vmatprep.mubr.f32.mxu0 0.0
      %5691 = vmatmul.mubr.f32.gmra.mrb[0].mxu0 %v5282
      %v5692 = vpop.f32.mrb[0].mxu0
      %v5693 = vadd.f32 0.0, %v5692
      %v5694 = vpop.f32.mrb[0].mxu0
      %5695 = vmatprep.mubr.f32.mxu0 0.0
      %5696 = vmatmul.mubr.f32.gmra.mrb[0].mxu0 %v5283
      %v5697 = vpop.f32.mrb[0].mxu0
      %v5698 = vadd.f32 0.0, %v5697
      %v5699 = vpop.f32.mrb[0].mxu0
      %5700 = vmatprep.mubr.f32.mxu0 0.0
      %5701 = vmatmul.mubr.f32.gmra.mrb[0].mxu0 %v5284
      %v5702 = vpop.f32.mrb[0].mxu0
      %v5703 = vadd.f32 0.0, %v5702
      %v5704 = vpop.f32.mrb[0].mxu0
      %5705 = vmatprep.mubr.f32.mxu0 0.0
      %5706 = vmatmul.mubr.f32.gmra.mrb[0].mxu0 %v5285
      %v5707 = vpop.f32.mrb[0].mxu0
      %v5708 = vadd.f32 0.0, %v5707
      %v5709 = vpop.f32.mrb[0].mxu0
      %5710 = vdwg.mxu0
      %v5711 = vld [vmem:[%s8] sm:$0xff]
      %v5712 = vld [vmem:[%s8 + $0x8] sm:$0xff]
      %v5713 = vld [vmem:[%s8 + $0x10] sm:$0xff]
      %v5714 = vld [vmem:[%s8 + $0x18] sm:$0xff]
      %v5715 = vld [vmem:[%s8 + $0x20] sm:$0xff]
      %v5716 = vld [vmem:[%s8 + $0x28] sm:$0xff]
      %v5717 = vld [vmem:[%s8 + $0x30] sm:$0xff]
      %v5718 = vld [vmem:[%s8 + $0x38] sm:$0xff]
      %s5719 = scalar_lea.vmem %s8, 64
      %v5720 = vld [vmem:[%s5719] sm:$0xff]
      %v5721 = vld [vmem:[%s5719 + $0x8] sm:$0xff]
      %v5722 = vld [vmem:[%s5719 + $0x10] sm:$0xff]
      %v5723 = vld [vmem:[%s5719 + $0x18] sm:$0xff]
      %v5724 = vld [vmem:[%s5719 + $0x20] sm:$0xff]
      %v5725 = vld [vmem:[%s5719 + $0x28] sm:$0xff]
      %v5726 = vld [vmem:[%s5719 + $0x30] sm:$0xff]
      %v5727 = vld [vmem:[%s5719 + $0x38] sm:$0xff]
      %vm5728 = vcmask 523264
      %v5730 = vsel %vm5728, %v5393, 0
      %v5733 = vsel %vm5728, %v5398, 0
      %v5736 = vsel %vm5728, %v5403, 0
      %v5739 = vsel %vm5728, %v5408, 0
      %v5742 = vsel %vm5728, %v5413, 0
      %v5745 = vsel %vm5728, %v5418, 0
      %v5748 = vsel %vm5728, %v5423, 0
      %v5751 = vsel %vm5728, %v5428, 0
      %5753 = vmatprep.subr.mxu0 0.0
      %5754 = vmatpush1.msra.mxu0 %v5720
      %5755 = vmatprep.subr.mxu0 0.0
      %5756 = vmatpush1.msra.mxu0 %v5721
      %5757 = vmatprep.subr.mxu0 0.0
      %5758 = vmatpush1.msra.mxu0 %v5722
      %5759 = vmatprep.subr.mxu0 0.0
      %5760 = vmatpush1.msra.mxu0 %v5723
      %5761 = vmatprep.subr.mxu0 0.0
      %5762 = vmatpush1.msra.mxu0 %v5724
      %5763 = vmatprep.subr.mxu0 0.0
      %5764 = vmatpush1.msra.mxu0 %v5725
      %5765 = vmatprep.subr.mxu0 0.0
      %5766 = vmatpush1.msra.mxu0 %v5726
      %5767 = vmatprep.subr.mxu0 0.0
      %5768 = vmatpush1.msra.mxu0 %v5727
      %5769 = vmatprep.subr.mxu0 0.0
      %5770 = vmatpush1.msra.mxu0 0.0
      %5771 = vmatprep.subr.mxu0 0.0
      %5772 = vmatpush1.msra.mxu0 0.0
      %5773 = vmatprep.subr.mxu0 0.0
      %5774 = vmatpush1.msra.mxu0 0.0
      %5775 = vmatprep.subr.mxu0 0.0
      %5776 = vmatpush1.msra.mxu0 0.0
      %5777 = vmatprep.subr.mxu0 0.0
      %5778 = vmatpush1.msra.mxu0 0.0
      %5779 = vmatprep.subr.mxu0 0.0
      %5780 = vmatpush1.msra.mxu0 0.0
      %5781 = vmatprep.subr.mxu0 0.0
      %5782 = vmatpush1.msra.mxu0 0.0
      %5783 = vmatprep.subr.mxu0 0.0
      %5784 = vmatpush1.msra.mxu0 0.0
      %5785 = vmatprep.subr.mxu0 0.0
      %5786 = vmatpush1.msra.mxu0 0.0
      %5787 = vmatprep.subr.mxu0 0.0
      %5788 = vmatpush1.msra.mxu0 0.0
      %5789 = vmatprep.subr.mxu0 0.0
      %5790 = vmatpush1.msra.mxu0 0.0
      %5791 = vmatprep.subr.mxu0 0.0
      %5792 = vmatpush1.msra.mxu0 0.0
      %5793 = vmatprep.subr.mxu0 0.0
      %5794 = vmatpush1.msra.mxu0 0.0
      %5795 = vmatprep.subr.mxu0 0.0
      %5796 = vmatpush1.msra.mxu0 0.0
      %5797 = vmatprep.subr.mxu0 0.0
      %5798 = vmatpush1.msra.mxu0 0.0
      %5799 = vmatprep.subr.mxu0 0.0
      %5800 = vmatpush1.msra.mxu0 0.0
      %5801 = vmatprep.subr.mxu0 0.0
      %5802 = vmatpush1.msra.mxu0 0.0
      %5803 = vmatprep.subr.mxu0 0.0
      %5804 = vmatpush1.msra.mxu0 0.0
      %5805 = vmatprep.subr.mxu0 0.0
      %5806 = vmatpush1.msra.mxu0 0.0
      %5807 = vmatprep.subr.mxu0 0.0
      %5808 = vmatpush1.msra.mxu0 0.0
      %5809 = vmatprep.subr.mxu0 0.0
      %5810 = vmatpush1.msra.mxu0 0.0
      %5811 = vmatprep.subr.mxu0 0.0
      %5812 = vmatpush1.msra.mxu0 0.0
      %5813 = vmatprep.subr.mxu0 0.0
      %5814 = vmatpush1.msra.mxu0 0.0
      %5815 = vmatprep.subr.mxu0 0.0
      %5816 = vmatpush1.msra.mxu0 0.0
      %5817 = vmatprep.mubr.f32.mxu0 0.0
      %5818 = vmatmul.mubr.f32.gmra.mrb[0].mxu0 %v5730
      %v5819 = vpop.f32.mrb[0].mxu0
      %v5820 = vadd.f32 0.0, %v5819
      %v5821 = vpop.f32.mrb[0].mxu0
      %5822 = vmatprep.mubr.f32.mxu0 0.0
      %5823 = vmatmul.mubr.f32.gmra.mrb[0].mxu0 %v5733
      %v5824 = vpop.f32.mrb[0].mxu0
      %v5825 = vadd.f32 0.0, %v5824
      %v5826 = vpop.f32.mrb[0].mxu0
      %5827 = vmatprep.mubr.f32.mxu0 0.0
      %5828 = vmatmul.mubr.f32.gmra.mrb[0].mxu0 %v5736
      %v5829 = vpop.f32.mrb[0].mxu0
      %v5830 = vadd.f32 0.0, %v5829
      %v5831 = vpop.f32.mrb[0].mxu0
      %5832 = vmatprep.mubr.f32.mxu0 0.0
      %5833 = vmatmul.mubr.f32.gmra.mrb[0].mxu0 %v5739
      %v5834 = vpop.f32.mrb[0].mxu0
      %v5835 = vadd.f32 0.0, %v5834
      %v5836 = vpop.f32.mrb[0].mxu0
      %5837 = vmatprep.mubr.f32.mxu0 0.0
      %5838 = vmatmul.mubr.f32.gmra.mrb[0].mxu0 %v5742
      %v5839 = vpop.f32.mrb[0].mxu0
      %v5840 = vadd.f32 0.0, %v5839
      %v5841 = vpop.f32.mrb[0].mxu0
      %5842 = vmatprep.mubr.f32.mxu0 0.0
      %5843 = vmatmul.mubr.f32.gmra.mrb[0].mxu0 %v5745
      %v5844 = vpop.f32.mrb[0].mxu0
      %v5845 = vadd.f32 0.0, %v5844
      %v5846 = vpop.f32.mrb[0].mxu0
      %5847 = vmatprep.mubr.f32.mxu0 0.0
      %5848 = vmatmul.mubr.f32.gmra.mrb[0].mxu0 %v5748
      %v5849 = vpop.f32.mrb[0].mxu0
      %v5850 = vadd.f32 0.0, %v5849
      %v5851 = vpop.f32.mrb[0].mxu0
      %5852 = vmatprep.mubr.f32.mxu0 0.0
      %5853 = vmatmul.mubr.f32.gmra.mrb[0].mxu0 %v5751
      %v5854 = vpop.f32.mrb[0].mxu0
      %v5855 = vadd.f32 0.0, %v5854
      %v5856 = vpop.f32.mrb[0].mxu0
      %5857 = vdwg.mxu0
      %v5859 = vsel %vm5728, %v5353, 0
      %v5862 = vsel %vm5728, %v5358, 0
      %v5865 = vsel %vm5728, %v5363, 0
      %v5868 = vsel %vm5728, %v5368, 0
      %v5871 = vsel %vm5728, %v5373, 0
      %v5874 = vsel %vm5728, %v5378, 0
      %v5877 = vsel %vm5728, %v5383, 0
      %v5880 = vsel %vm5728, %v5388, 0
      %5882 = vmatprep.subr.mxu0 0.0
      %5883 = vmatpush1.msra.mxu0 %v5711
      %5884 = vmatprep.subr.mxu0 0.0
      %5885 = vmatpush1.msra.mxu0 %v5712
      %5886 = vmatprep.subr.mxu0 0.0
      %5887 = vmatpush1.msra.mxu0 %v5713
      %5888 = vmatprep.subr.mxu0 0.0
      %5889 = vmatpush1.msra.mxu0 %v5714
      %5890 = vmatprep.subr.mxu0 0.0
      %5891 = vmatpush1.msra.mxu0 %v5715
      %5892 = vmatprep.subr.mxu0 0.0
      %5893 = vmatpush1.msra.mxu0 %v5716
      %5894 = vmatprep.subr.mxu0 0.0
      %5895 = vmatpush1.msra.mxu0 %v5717
      %5896 = vmatprep.subr.mxu0 0.0
      %5897 = vmatpush1.msra.mxu0 %v5718
      %5898 = vmatprep.subr.mxu0 0.0
      %5899 = vmatpush1.msra.mxu0 0.0
      %5900 = vmatprep.subr.mxu0 0.0
      %5901 = vmatpush1.msra.mxu0 0.0
      %5902 = vmatprep.subr.mxu0 0.0
      %5903 = vmatpush1.msra.mxu0 0.0
      %5904 = vmatprep.subr.mxu0 0.0
      %5905 = vmatpush1.msra.mxu0 0.0
      %5906 = vmatprep.subr.mxu0 0.0
      %5907 = vmatpush1.msra.mxu0 0.0
      %5908 = vmatprep.subr.mxu0 0.0
      %5909 = vmatpush1.msra.mxu0 0.0
      %5910 = vmatprep.subr.mxu0 0.0
      %5911 = vmatpush1.msra.mxu0 0.0
      %5912 = vmatprep.subr.mxu0 0.0
      %5913 = vmatpush1.msra.mxu0 0.0
      %5914 = vmatprep.subr.mxu0 0.0
      %5915 = vmatpush1.msra.mxu0 0.0
      %5916 = vmatprep.subr.mxu0 0.0
      %5917 = vmatpush1.msra.mxu0 0.0
      %5918 = vmatprep.subr.mxu0 0.0
      %5919 = vmatpush1.msra.mxu0 0.0
      %5920 = vmatprep.subr.mxu0 0.0
      %5921 = vmatpush1.msra.mxu0 0.0
      %5922 = vmatprep.subr.mxu0 0.0
      %5923 = vmatpush1.msra.mxu0 0.0
      %5924 = vmatprep.subr.mxu0 0.0
      %5925 = vmatpush1.msra.mxu0 0.0
      %5926 = vmatprep.subr.mxu0 0.0
      %5927 = vmatpush1.msra.mxu0 0.0
      %5928 = vmatprep.subr.mxu0 0.0
      %5929 = vmatpush1.msra.mxu0 0.0
      %5930 = vmatprep.subr.mxu0 0.0
      %5931 = vmatpush1.msra.mxu0 0.0
      %5932 = vmatprep.subr.mxu0 0.0
      %5933 = vmatpush1.msra.mxu0 0.0
      %5934 = vmatprep.subr.mxu0 0.0
      %5935 = vmatpush1.msra.mxu0 0.0
      %5936 = vmatprep.subr.mxu0 0.0
      %5937 = vmatpush1.msra.mxu0 0.0
      %5938 = vmatprep.subr.mxu0 0.0
      %5939 = vmatpush1.msra.mxu0 0.0
      %5940 = vmatprep.subr.mxu0 0.0
      %5941 = vmatpush1.msra.mxu0 0.0
      %5942 = vmatprep.subr.mxu0 0.0
      %5943 = vmatpush1.msra.mxu0 0.0
      %5944 = vmatprep.subr.mxu0 0.0
      %5945 = vmatpush1.msra.mxu0 0.0
      %5946 = vmatprep.mubr.f32.mxu0 0.0
      %5947 = vmatmul.mubr.f32.gmra.mrb[0].mxu0 %v5859
      %v5948 = vpop.f32.mrb[0].mxu0
      %v5949 = vadd.f32 %v5820, %v5948
      %v5950 = vpop.f32.mrb[0].mxu0
      %5951 = vmatprep.mubr.f32.mxu0 0.0
      %5952 = vmatmul.mubr.f32.gmra.mrb[0].mxu0 %v5862
      %v5953 = vpop.f32.mrb[0].mxu0
      %v5954 = vadd.f32 %v5825, %v5953
      %v5955 = vpop.f32.mrb[0].mxu0
      %5956 = vmatprep.mubr.f32.mxu0 0.0
      %5957 = vmatmul.mubr.f32.gmra.mrb[0].mxu0 %v5865
      %v5958 = vpop.f32.mrb[0].mxu0
      %v5959 = vadd.f32 %v5830, %v5958
      %v5960 = vpop.f32.mrb[0].mxu0
      %5961 = vmatprep.mubr.f32.mxu0 0.0
      %5962 = vmatmul.mubr.f32.gmra.mrb[0].mxu0 %v5868
      %v5963 = vpop.f32.mrb[0].mxu0
      %v5964 = vadd.f32 %v5835, %v5963
      %v5965 = vpop.f32.mrb[0].mxu0
      %5966 = vmatprep.mubr.f32.mxu0 0.0
      %5967 = vmatmul.mubr.f32.gmra.mrb[0].mxu0 %v5871
      %v5968 = vpop.f32.mrb[0].mxu0
      %v5969 = vadd.f32 %v5840, %v5968
      %v5970 = vpop.f32.mrb[0].mxu0
      %5971 = vmatprep.mubr.f32.mxu0 0.0
      %5972 = vmatmul.mubr.f32.gmra.mrb[0].mxu0 %v5874
      %v5973 = vpop.f32.mrb[0].mxu0
      %v5974 = vadd.f32 %v5845, %v5973
      %v5975 = vpop.f32.mrb[0].mxu0
      %5976 = vmatprep.mubr.f32.mxu0 0.0
      %5977 = vmatmul.mubr.f32.gmra.mrb[0].mxu0 %v5877
      %v5978 = vpop.f32.mrb[0].mxu0
      %v5979 = vadd.f32 %v5850, %v5978
      %v5980 = vpop.f32.mrb[0].mxu0
      %5981 = vmatprep.mubr.f32.mxu0 0.0
      %5982 = vmatmul.mubr.f32.gmra.mrb[0].mxu0 %v5880
      %v5983 = vpop.f32.mrb[0].mxu0
      %v5984 = vadd.f32 %v5855, %v5983
      %v5985 = vpop.f32.mrb[0].mxu0
      %5986 = vdwg.mxu0
      %s5987 = scalar_lea.vmem %s8, 128
      %v5988 = vld [vmem:[%s5987] sm:$0xff]
      %v5989 = vld [vmem:[%s5987 + $0x8] sm:$0xff]
      %v5990 = vld [vmem:[%s5987 + $0x10] sm:$0xff]
      %v5991 = vld [vmem:[%s5987 + $0x18] sm:$0xff]
      %v5992 = vld [vmem:[%s5987 + $0x20] sm:$0xff]
      %v5993 = vld [vmem:[%s5987 + $0x28] sm:$0xff]
      %v5994 = vld [vmem:[%s5987 + $0x30] sm:$0xff]
      %v5995 = vld [vmem:[%s5987 + $0x38] sm:$0xff]
      %v5997 = vsel %vm5728, %v5433, 0
      %v6000 = vsel %vm5728, %v5438, 0
      %v6003 = vsel %vm5728, %v5443, 0
      %v6006 = vsel %vm5728, %v5448, 0
      %v6009 = vsel %vm5728, %v5453, 0
      %v6012 = vsel %vm5728, %v5458, 0
      %v6015 = vsel %vm5728, %v5463, 0
      %v6018 = vsel %vm5728, %v5468, 0
      %6020 = vmatprep.subr.mxu0 0.0
      %6021 = vmatpush1.msra.mxu0 %v5988
      %6022 = vmatprep.subr.mxu0 0.0
      %6023 = vmatpush1.msra.mxu0 %v5989
      %6024 = vmatprep.subr.mxu0 0.0
      %6025 = vmatpush1.msra.mxu0 %v5990
      %6026 = vmatprep.subr.mxu0 0.0
      %6027 = vmatpush1.msra.mxu0 %v5991
      %6028 = vmatprep.subr.mxu0 0.0
      %6029 = vmatpush1.msra.mxu0 %v5992
      %6030 = vmatprep.subr.mxu0 0.0
      %6031 = vmatpush1.msra.mxu0 %v5993
      %6032 = vmatprep.subr.mxu0 0.0
      %6033 = vmatpush1.msra.mxu0 %v5994
      %6034 = vmatprep.subr.mxu0 0.0
      %6035 = vmatpush1.msra.mxu0 %v5995
      %6036 = vmatprep.subr.mxu0 0.0
      %6037 = vmatpush1.msra.mxu0 0.0
      %6038 = vmatprep.subr.mxu0 0.0
      %6039 = vmatpush1.msra.mxu0 0.0
      %6040 = vmatprep.subr.mxu0 0.0
      %6041 = vmatpush1.msra.mxu0 0.0
      %6042 = vmatprep.subr.mxu0 0.0
      %6043 = vmatpush1.msra.mxu0 0.0
      %6044 = vmatprep.subr.mxu0 0.0
      %6045 = vmatpush1.msra.mxu0 0.0
      %6046 = vmatprep.subr.mxu0 0.0
      %6047 = vmatpush1.msra.mxu0 0.0
      %6048 = vmatprep.subr.mxu0 0.0
      %6049 = vmatpush1.msra.mxu0 0.0
      %6050 = vmatprep.subr.mxu0 0.0
      %6051 = vmatpush1.msra.mxu0 0.0
      %6052 = vmatprep.subr.mxu0 0.0
      %6053 = vmatpush1.msra.mxu0 0.0
      %6054 = vmatprep.subr.mxu0 0.0
      %6055 = vmatpush1.msra.mxu0 0.0
      %6056 = vmatprep.subr.mxu0 0.0
      %6057 = vmatpush1.msra.mxu0 0.0
      %6058 = vmatprep.subr.mxu0 0.0
      %6059 = vmatpush1.msra.mxu0 0.0
      %6060 = vmatprep.subr.mxu0 0.0
      %6061 = vmatpush1.msra.mxu0 0.0
      %6062 = vmatprep.subr.mxu0 0.0
      %6063 = vmatpush1.msra.mxu0 0.0
      %6064 = vmatprep.subr.mxu0 0.0
      %6065 = vmatpush1.msra.mxu0 0.0
      %6066 = vmatprep.subr.mxu0 0.0
      %6067 = vmatpush1.msra.mxu0 0.0
      %6068 = vmatprep.subr.mxu0 0.0
      %6069 = vmatpush1.msra.mxu0 0.0
      %6070 = vmatprep.subr.mxu0 0.0
      %6071 = vmatpush1.msra.mxu0 0.0
      %6072 = vmatprep.subr.mxu0 0.0
      %6073 = vmatpush1.msra.mxu0 0.0
      %6074 = vmatprep.subr.mxu0 0.0
      %6075 = vmatpush1.msra.mxu0 0.0
      %6076 = vmatprep.subr.mxu0 0.0
      %6077 = vmatpush1.msra.mxu0 0.0
      %6078 = vmatprep.subr.mxu0 0.0
      %6079 = vmatpush1.msra.mxu0 0.0
      %6080 = vmatprep.subr.mxu0 0.0
      %6081 = vmatpush1.msra.mxu0 0.0
      %6082 = vmatprep.subr.mxu0 0.0
      %6083 = vmatpush1.msra.mxu0 0.0
      %6084 = vmatprep.mubr.f32.mxu0 0.0
      %6085 = vmatmul.mubr.f32.gmra.mrb[0].mxu0 %v5997
      %v6086 = vpop.f32.mrb[0].mxu0
      %v6087 = vadd.f32 0.0, %v6086
      %v6088 = vpop.f32.mrb[0].mxu0
      %6089 = vmatprep.mubr.f32.mxu0 0.0
      %6090 = vmatmul.mubr.f32.gmra.mrb[0].mxu0 %v6000
      %v6091 = vpop.f32.mrb[0].mxu0
      %v6092 = vadd.f32 0.0, %v6091
      %v6093 = vpop.f32.mrb[0].mxu0
      %6094 = vmatprep.mubr.f32.mxu0 0.0
      %6095 = vmatmul.mubr.f32.gmra.mrb[0].mxu0 %v6003
      %v6096 = vpop.f32.mrb[0].mxu0
      %v6097 = vadd.f32 0.0, %v6096
      %v6098 = vpop.f32.mrb[0].mxu0
      %6099 = vmatprep.mubr.f32.mxu0 0.0
      %6100 = vmatmul.mubr.f32.gmra.mrb[0].mxu0 %v6006
      %v6101 = vpop.f32.mrb[0].mxu0
      %v6102 = vadd.f32 0.0, %v6101
      %v6103 = vpop.f32.mrb[0].mxu0
      %6104 = vmatprep.mubr.f32.mxu0 0.0
      %6105 = vmatmul.mubr.f32.gmra.mrb[0].mxu0 %v6009
      %v6106 = vpop.f32.mrb[0].mxu0
      %v6107 = vadd.f32 0.0, %v6106
      %v6108 = vpop.f32.mrb[0].mxu0
      %6109 = vmatprep.mubr.f32.mxu0 0.0
      %6110 = vmatmul.mubr.f32.gmra.mrb[0].mxu0 %v6012
      %v6111 = vpop.f32.mrb[0].mxu0
      %v6112 = vadd.f32 0.0, %v6111
      %v6113 = vpop.f32.mrb[0].mxu0
      %6114 = vmatprep.mubr.f32.mxu0 0.0
      %6115 = vmatmul.mubr.f32.gmra.mrb[0].mxu0 %v6015
      %v6116 = vpop.f32.mrb[0].mxu0
      %v6117 = vadd.f32 0.0, %v6116
      %v6118 = vpop.f32.mrb[0].mxu0
      %6119 = vmatprep.mubr.f32.mxu0 0.0
      %6120 = vmatmul.mubr.f32.gmra.mrb[0].mxu0 %v6018
      %v6121 = vpop.f32.mrb[0].mxu0
      %v6122 = vadd.f32 0.0, %v6121
      %v6123 = vpop.f32.mrb[0].mxu0
      %6124 = vdwg.mxu0
      %v6125 = vadd.f32 %v5949, %v6087
      %v6126 = vadd.f32 %v5954, %v6092
      %v6127 = vadd.f32 %v5959, %v6097
      %v6128 = vadd.f32 %v5964, %v6102
      %v6129 = vadd.f32 %v5969, %v6107
      %v6130 = vadd.f32 %v5974, %v6112
      %v6131 = vadd.f32 %v5979, %v6117
      %v6132 = vadd.f32 %v5984, %v6122
      %s6133 = scalar_lea.vmem %s8, 192
      %v6134 = vld [vmem:[%s6133] sm:$0xff]
      %v6135 = vld [vmem:[%s6133 + $0x8] sm:$0xff]
      %v6136 = vld [vmem:[%s6133 + $0x10] sm:$0xff]
      %v6137 = vld [vmem:[%s6133 + $0x18] sm:$0xff]
      %v6138 = vld [vmem:[%s6133 + $0x20] sm:$0xff]
      %v6139 = vld [vmem:[%s6133 + $0x28] sm:$0xff]
      %v6140 = vld [vmem:[%s6133 + $0x30] sm:$0xff]
      %v6141 = vld [vmem:[%s6133 + $0x38] sm:$0xff]
      %v6143 = vsel %vm5728, %v5473, 0
      %v6146 = vsel %vm5728, %v5478, 0
      %v6149 = vsel %vm5728, %v5483, 0
      %v6152 = vsel %vm5728, %v5488, 0
      %v6155 = vsel %vm5728, %v5493, 0
      %v6158 = vsel %vm5728, %v5498, 0
      %v6161 = vsel %vm5728, %v5503, 0
      %v6164 = vsel %vm5728, %v5508, 0
      %6166 = vmatprep.subr.mxu0 0.0
      %6167 = vmatpush1.msra.mxu0 %v6134
      %6168 = vmatprep.subr.mxu0 0.0
      %6169 = vmatpush1.msra.mxu0 %v6135
      %6170 = vmatprep.subr.mxu0 0.0
      %6171 = vmatpush1.msra.mxu0 %v6136
      %6172 = vmatprep.subr.mxu0 0.0
      %6173 = vmatpush1.msra.mxu0 %v6137
      %6174 = vmatprep.subr.mxu0 0.0
      %6175 = vmatpush1.msra.mxu0 %v6138
      %6176 = vmatprep.subr.mxu0 0.0
      %6177 = vmatpush1.msra.mxu0 %v6139
      %6178 = vmatprep.subr.mxu0 0.0
      %6179 = vmatpush1.msra.mxu0 %v6140
      %6180 = vmatprep.subr.mxu0 0.0
      %6181 = vmatpush1.msra.mxu0 %v6141
      %6182 = vmatprep.subr.mxu0 0.0
      %6183 = vmatpush1.msra.mxu0 0.0
      %6184 = vmatprep.subr.mxu0 0.0
      %6185 = vmatpush1.msra.mxu0 0.0
      %6186 = vmatprep.subr.mxu0 0.0
      %6187 = vmatpush1.msra.mxu0 0.0
      %6188 = vmatprep.subr.mxu0 0.0
      %6189 = vmatpush1.msra.mxu0 0.0
      %6190 = vmatprep.subr.mxu0 0.0
      %6191 = vmatpush1.msra.mxu0 0.0
      %6192 = vmatprep.subr.mxu0 0.0
      %6193 = vmatpush1.msra.mxu0 0.0
      %6194 = vmatprep.subr.mxu0 0.0
      %6195 = vmatpush1.msra.mxu0 0.0
      %6196 = vmatprep.subr.mxu0 0.0
      %6197 = vmatpush1.msra.mxu0 0.0
      %6198 = vmatprep.subr.mxu0 0.0
      %6199 = vmatpush1.msra.mxu0 0.0
      %6200 = vmatprep.subr.mxu0 0.0
      %6201 = vmatpush1.msra.mxu0 0.0
      %6202 = vmatprep.subr.mxu0 0.0
      %6203 = vmatpush1.msra.mxu0 0.0
      %6204 = vmatprep.subr.mxu0 0.0
      %6205 = vmatpush1.msra.mxu0 0.0
      %6206 = vmatprep.subr.mxu0 0.0
      %6207 = vmatpush1.msra.mxu0 0.0
      %6208 = vmatprep.subr.mxu0 0.0
      %6209 = vmatpush1.msra.mxu0 0.0
      %6210 = vmatprep.subr.mxu0 0.0
      %6211 = vmatpush1.msra.mxu0 0.0
      %6212 = vmatprep.subr.mxu0 0.0
      %6213 = vmatpush1.msra.mxu0 0.0
      %6214 = vmatprep.subr.mxu0 0.0
      %6215 = vmatpush1.msra.mxu0 0.0
      %6216 = vmatprep.subr.mxu0 0.0
      %6217 = vmatpush1.msra.mxu0 0.0
      %6218 = vmatprep.subr.mxu0 0.0
      %6219 = vmatpush1.msra.mxu0 0.0
      %6220 = vmatprep.subr.mxu0 0.0
      %6221 = vmatpush1.msra.mxu0 0.0
      %6222 = vmatprep.subr.mxu0 0.0
      %6223 = vmatpush1.msra.mxu0 0.0
      %6224 = vmatprep.subr.mxu0 0.0
      %6225 = vmatpush1.msra.mxu0 0.0
      %6226 = vmatprep.subr.mxu0 0.0
      %6227 = vmatpush1.msra.mxu0 0.0
      %6228 = vmatprep.subr.mxu0 0.0
      %6229 = vmatpush1.msra.mxu0 0.0
      %6230 = vmatprep.mubr.f32.mxu0 0.0
      %6231 = vmatmul.mubr.f32.gmra.mrb[0].mxu0 %v6143
      %v6232 = vpop.f32.mrb[0].mxu0
      %v6233 = vadd.f32 0.0, %v6232
      %v6234 = vpop.f32.mrb[0].mxu0
      %6235 = vmatprep.mubr.f32.mxu0 0.0
      %6236 = vmatmul.mubr.f32.gmra.mrb[0].mxu0 %v6146
      %v6237 = vpop.f32.mrb[0].mxu0
      %v6238 = vadd.f32 0.0, %v6237
      %v6239 = vpop.f32.mrb[0].mxu0
      %6240 = vmatprep.mubr.f32.mxu0 0.0
      %6241 = vmatmul.mubr.f32.gmra.mrb[0].mxu0 %v6149
      %v6242 = vpop.f32.mrb[0].mxu0
      %v6243 = vadd.f32 0.0, %v6242
      %v6244 = vpop.f32.mrb[0].mxu0
      %6245 = vmatprep.mubr.f32.mxu0 0.0
      %6246 = vmatmul.mubr.f32.gmra.mrb[0].mxu0 %v6152
      %v6247 = vpop.f32.mrb[0].mxu0
      %v6248 = vadd.f32 0.0, %v6247
      %v6249 = vpop.f32.mrb[0].mxu0
      %6250 = vmatprep.mubr.f32.mxu0 0.0
      %6251 = vmatmul.mubr.f32.gmra.mrb[0].mxu0 %v6155
      %v6252 = vpop.f32.mrb[0].mxu0
      %v6253 = vadd.f32 0.0, %v6252
      %v6254 = vpop.f32.mrb[0].mxu0
      %6255 = vmatprep.mubr.f32.mxu0 0.0
      %6256 = vmatmul.mubr.f32.gmra.mrb[0].mxu0 %v6158
      %v6257 = vpop.f32.mrb[0].mxu0
      %v6258 = vadd.f32 0.0, %v6257
      %v6259 = vpop.f32.mrb[0].mxu0
      %6260 = vmatprep.mubr.f32.mxu0 0.0
      %6261 = vmatmul.mubr.f32.gmra.mrb[0].mxu0 %v6161
      %v6262 = vpop.f32.mrb[0].mxu0
      %v6263 = vadd.f32 0.0, %v6262
      %v6264 = vpop.f32.mrb[0].mxu0
      %6265 = vmatprep.mubr.f32.mxu0 0.0
      %6266 = vmatmul.mubr.f32.gmra.mrb[0].mxu0 %v6164
      %v6267 = vpop.f32.mrb[0].mxu0
      %v6268 = vadd.f32 0.0, %v6267
      %v6269 = vpop.f32.mrb[0].mxu0
      %6270 = vdwg.mxu0
      %v6271 = vadd.f32 %v6125, %v6233
      %v6272 = vadd.f32 %v6126, %v6238
      %v6273 = vadd.f32 %v6127, %v6243
      %v6274 = vadd.f32 %v6128, %v6248
      %v6275 = vadd.f32 %v6129, %v6253
      %v6276 = vadd.f32 %v6130, %v6258
      %v6277 = vadd.f32 %v6131, %v6263
      %v6278 = vadd.f32 %v6132, %v6268
      %s6279 = scalar_lea.vmem %s8, 256
      %v6280 = vld [vmem:[%s6279] sm:$0xff]
      %v6281 = vld [vmem:[%s6279 + $0x8] sm:$0xff]
      %v6282 = vld [vmem:[%s6279 + $0x10] sm:$0xff]
      %v6283 = vld [vmem:[%s6279 + $0x18] sm:$0xff]
      %v6284 = vld [vmem:[%s6279 + $0x20] sm:$0xff]
      %v6285 = vld [vmem:[%s6279 + $0x28] sm:$0xff]
      %v6286 = vld [vmem:[%s6279 + $0x30] sm:$0xff]
      %v6287 = vld [vmem:[%s6279 + $0x38] sm:$0xff]
      %v6289 = vsel %vm5728, %v5513, 0
      %v6292 = vsel %vm5728, %v5518, 0
      %v6295 = vsel %vm5728, %v5523, 0
      %v6298 = vsel %vm5728, %v5528, 0
      %v6301 = vsel %vm5728, %v5533, 0
      %v6304 = vsel %vm5728, %v5538, 0
      %v6307 = vsel %vm5728, %v5543, 0
      %v6310 = vsel %vm5728, %v5548, 0
      %6312 = vmatprep.subr.mxu0 0.0
      %6313 = vmatpush1.msra.mxu0 %v6280
      %6314 = vmatprep.subr.mxu0 0.0
      %6315 = vmatpush1.msra.mxu0 %v6281
      %6316 = vmatprep.subr.mxu0 0.0
      %6317 = vmatpush1.msra.mxu0 %v6282
      %6318 = vmatprep.subr.mxu0 0.0
      %6319 = vmatpush1.msra.mxu0 %v6283
      %6320 = vmatprep.subr.mxu0 0.0
      %6321 = vmatpush1.msra.mxu0 %v6284
      %6322 = vmatprep.subr.mxu0 0.0
      %6323 = vmatpush1.msra.mxu0 %v6285
      %6324 = vmatprep.subr.mxu0 0.0
      %6325 = vmatpush1.msra.mxu0 %v6286
      %6326 = vmatprep.subr.mxu0 0.0
      %6327 = vmatpush1.msra.mxu0 %v6287
      %6328 = vmatprep.subr.mxu0 0.0
      %6329 = vmatpush1.msra.mxu0 0.0
      %6330 = vmatprep.subr.mxu0 0.0
      %6331 = vmatpush1.msra.mxu0 0.0
      %6332 = vmatprep.subr.mxu0 0.0
      %6333 = vmatpush1.msra.mxu0 0.0
      %6334 = vmatprep.subr.mxu0 0.0
      %6335 = vmatpush1.msra.mxu0 0.0
      %6336 = vmatprep.subr.mxu0 0.0
      %6337 = vmatpush1.msra.mxu0 0.0
      %6338 = vmatprep.subr.mxu0 0.0
      %6339 = vmatpush1.msra.mxu0 0.0
      %6340 = vmatprep.subr.mxu0 0.0
      %6341 = vmatpush1.msra.mxu0 0.0
      %6342 = vmatprep.subr.mxu0 0.0
      %6343 = vmatpush1.msra.mxu0 0.0
      %6344 = vmatprep.subr.mxu0 0.0
      %6345 = vmatpush1.msra.mxu0 0.0
      %6346 = vmatprep.subr.mxu0 0.0
      %6347 = vmatpush1.msra.mxu0 0.0
      %6348 = vmatprep.subr.mxu0 0.0
      %6349 = vmatpush1.msra.mxu0 0.0
      %6350 = vmatprep.subr.mxu0 0.0
      %6351 = vmatpush1.msra.mxu0 0.0
      %6352 = vmatprep.subr.mxu0 0.0
      %6353 = vmatpush1.msra.mxu0 0.0
      %6354 = vmatprep.subr.mxu0 0.0
      %6355 = vmatpush1.msra.mxu0 0.0
      %6356 = vmatprep.subr.mxu0 0.0
      %6357 = vmatpush1.msra.mxu0 0.0
      %6358 = vmatprep.subr.mxu0 0.0
      %6359 = vmatpush1.msra.mxu0 0.0
      %6360 = vmatprep.subr.mxu0 0.0
      %6361 = vmatpush1.msra.mxu0 0.0
      %6362 = vmatprep.subr.mxu0 0.0
      %6363 = vmatpush1.msra.mxu0 0.0
      %6364 = vmatprep.subr.mxu0 0.0
      %6365 = vmatpush1.msra.mxu0 0.0
      %6366 = vmatprep.subr.mxu0 0.0
      %6367 = vmatpush1.msra.mxu0 0.0
      %6368 = vmatprep.subr.mxu0 0.0
      %6369 = vmatpush1.msra.mxu0 0.0
      %6370 = vmatprep.subr.mxu0 0.0
      %6371 = vmatpush1.msra.mxu0 0.0
      %6372 = vmatprep.subr.mxu0 0.0
      %6373 = vmatpush1.msra.mxu0 0.0
      %6374 = vmatprep.subr.mxu0 0.0
      %6375 = vmatpush1.msra.mxu0 0.0
      %6376 = vmatprep.mubr.f32.mxu0 0.0
      %6377 = vmatmul.mubr.f32.gmra.mrb[0].mxu0 %v6289
      %v6378 = vpop.f32.mrb[0].mxu0
      %v6379 = vadd.f32 0.0, %v6378
      %v6380 = vpop.f32.mrb[0].mxu0
      %6381 = vmatprep.mubr.f32.mxu0 0.0
      %6382 = vmatmul.mubr.f32.gmra.mrb[0].mxu0 %v6292
      %v6383 = vpop.f32.mrb[0].mxu0
      %v6384 = vadd.f32 0.0, %v6383
      %v6385 = vpop.f32.mrb[0].mxu0
      %6386 = vmatprep.mubr.f32.mxu0 0.0
      %6387 = vmatmul.mubr.f32.gmra.mrb[0].mxu0 %v6295
      %v6388 = vpop.f32.mrb[0].mxu0
      %v6389 = vadd.f32 0.0, %v6388
      %v6390 = vpop.f32.mrb[0].mxu0
      %6391 = vmatprep.mubr.f32.mxu0 0.0
      %6392 = vmatmul.mubr.f32.gmra.mrb[0].mxu0 %v6298
      %v6393 = vpop.f32.mrb[0].mxu0
      %v6394 = vadd.f32 0.0, %v6393
      %v6395 = vpop.f32.mrb[0].mxu0
      %6396 = vmatprep.mubr.f32.mxu0 0.0
      %6397 = vmatmul.mubr.f32.gmra.mrb[0].mxu0 %v6301
      %v6398 = vpop.f32.mrb[0].mxu0
      %v6399 = vadd.f32 0.0, %v6398
      %v6400 = vpop.f32.mrb[0].mxu0
      %6401 = vmatprep.mubr.f32.mxu0 0.0
      %6402 = vmatmul.mubr.f32.gmra.mrb[0].mxu0 %v6304
      %v6403 = vpop.f32.mrb[0].mxu0
      %v6404 = vadd.f32 0.0, %v6403
      %v6405 = vpop.f32.mrb[0].mxu0
      %6406 = vmatprep.mubr.f32.mxu0 0.0
      %6407 = vmatmul.mubr.f32.gmra.mrb[0].mxu0 %v6307
      %v6408 = vpop.f32.mrb[0].mxu0
      %v6409 = vadd.f32 0.0, %v6408
      %v6410 = vpop.f32.mrb[0].mxu0
      %6411 = vmatprep.mubr.f32.mxu0 0.0
      %6412 = vmatmul.mubr.f32.gmra.mrb[0].mxu0 %v6310
      %v6413 = vpop.f32.mrb[0].mxu0
      %v6414 = vadd.f32 0.0, %v6413
      %v6415 = vpop.f32.mrb[0].mxu0
      %6416 = vdwg.mxu0
      %v6417 = vadd.f32 %v6271, %v6379
      %v6418 = vadd.f32 %v6272, %v6384
      %v6419 = vadd.f32 %v6273, %v6389
      %v6420 = vadd.f32 %v6274, %v6394
      %v6421 = vadd.f32 %v6275, %v6399
      %v6422 = vadd.f32 %v6276, %v6404
      %v6423 = vadd.f32 %v6277, %v6409
      %v6424 = vadd.f32 %v6278, %v6414
      %s6425 = scalar_lea.vmem %s8, 320
      %v6426 = vld [vmem:[%s6425] sm:$0xff]
      %v6427 = vld [vmem:[%s6425 + $0x8] sm:$0xff]
      %v6428 = vld [vmem:[%s6425 + $0x10] sm:$0xff]
      %v6429 = vld [vmem:[%s6425 + $0x18] sm:$0xff]
      %v6430 = vld [vmem:[%s6425 + $0x20] sm:$0xff]
      %v6431 = vld [vmem:[%s6425 + $0x28] sm:$0xff]
      %v6432 = vld [vmem:[%s6425 + $0x30] sm:$0xff]
      %v6433 = vld [vmem:[%s6425 + $0x38] sm:$0xff]
      %v6435 = vsel %vm5728, %v5553, 0
      %v6438 = vsel %vm5728, %v5558, 0
      %v6441 = vsel %vm5728, %v5563, 0
      %v6444 = vsel %vm5728, %v5568, 0
      %v6447 = vsel %vm5728, %v5573, 0
      %v6450 = vsel %vm5728, %v5578, 0
      %v6453 = vsel %vm5728, %v5583, 0
      %v6456 = vsel %vm5728, %v5588, 0
      %6458 = vmatprep.subr.mxu0 0.0
      %6459 = vmatpush1.msra.mxu0 %v6426
      %6460 = vmatprep.subr.mxu0 0.0
      %6461 = vmatpush1.msra.mxu0 %v6427
      %6462 = vmatprep.subr.mxu0 0.0
      %6463 = vmatpush1.msra.mxu0 %v6428
      %6464 = vmatprep.subr.mxu0 0.0
      %6465 = vmatpush1.msra.mxu0 %v6429
      %6466 = vmatprep.subr.mxu0 0.0
      %6467 = vmatpush1.msra.mxu0 %v6430
      %6468 = vmatprep.subr.mxu0 0.0
      %6469 = vmatpush1.msra.mxu0 %v6431
      %6470 = vmatprep.subr.mxu0 0.0
      %6471 = vmatpush1.msra.mxu0 %v6432
      %6472 = vmatprep.subr.mxu0 0.0
      %6473 = vmatpush1.msra.mxu0 %v6433
      %6474 = vmatprep.subr.mxu0 0.0
      %6475 = vmatpush1.msra.mxu0 0.0
      %6476 = vmatprep.subr.mxu0 0.0
      %6477 = vmatpush1.msra.mxu0 0.0
      %6478 = vmatprep.subr.mxu0 0.0
      %6479 = vmatpush1.msra.mxu0 0.0
      %6480 = vmatprep.subr.mxu0 0.0
      %6481 = vmatpush1.msra.mxu0 0.0
      %6482 = vmatprep.subr.mxu0 0.0
      %6483 = vmatpush1.msra.mxu0 0.0
      %6484 = vmatprep.subr.mxu0 0.0
      %6485 = vmatpush1.msra.mxu0 0.0
      %6486 = vmatprep.subr.mxu0 0.0
      %6487 = vmatpush1.msra.mxu0 0.0
      %6488 = vmatprep.subr.mxu0 0.0
      %6489 = vmatpush1.msra.mxu0 0.0
      %6490 = vmatprep.subr.mxu0 0.0
      %6491 = vmatpush1.msra.mxu0 0.0
      %6492 = vmatprep.subr.mxu0 0.0
      %6493 = vmatpush1.msra.mxu0 0.0
      %6494 = vmatprep.subr.mxu0 0.0
      %6495 = vmatpush1.msra.mxu0 0.0
      %6496 = vmatprep.subr.mxu0 0.0
      %6497 = vmatpush1.msra.mxu0 0.0
      %6498 = vmatprep.subr.mxu0 0.0
      %6499 = vmatpush1.msra.mxu0 0.0
      %6500 = vmatprep.subr.mxu0 0.0
      %6501 = vmatpush1.msra.mxu0 0.0
      %6502 = vmatprep.subr.mxu0 0.0
      %6503 = vmatpush1.msra.mxu0 0.0
      %6504 = vmatprep.subr.mxu0 0.0
      %6505 = vmatpush1.msra.mxu0 0.0
      %6506 = vmatprep.subr.mxu0 0.0
      %6507 = vmatpush1.msra.mxu0 0.0
      %6508 = vmatprep.subr.mxu0 0.0
      %6509 = vmatpush1.msra.mxu0 0.0
      %6510 = vmatprep.subr.mxu0 0.0
      %6511 = vmatpush1.msra.mxu0 0.0
      %6512 = vmatprep.subr.mxu0 0.0
      %6513 = vmatpush1.msra.mxu0 0.0
      %6514 = vmatprep.subr.mxu0 0.0
      %6515 = vmatpush1.msra.mxu0 0.0
      %6516 = vmatprep.subr.mxu0 0.0
      %6517 = vmatpush1.msra.mxu0 0.0
      %6518 = vmatprep.subr.mxu0 0.0
      %6519 = vmatpush1.msra.mxu0 0.0
      %6520 = vmatprep.subr.mxu0 0.0
      %6521 = vmatpush1.msra.mxu0 0.0
      %6522 = vmatprep.mubr.f32.mxu0 0.0
      %6523 = vmatmul.mubr.f32.gmra.mrb[0].mxu0 %v6435
      %v6524 = vpop.f32.mrb[0].mxu0
      %v6525 = vadd.f32 0.0, %v6524
      %v6526 = vpop.f32.mrb[0].mxu0
      %6527 = vmatprep.mubr.f32.mxu0 0.0
      %6528 = vmatmul.mubr.f32.gmra.mrb[0].mxu0 %v6438
      %v6529 = vpop.f32.mrb[0].mxu0
      %v6530 = vadd.f32 0.0, %v6529
      %v6531 = vpop.f32.mrb[0].mxu0
      %6532 = vmatprep.mubr.f32.mxu0 0.0
      %6533 = vmatmul.mubr.f32.gmra.mrb[0].mxu0 %v6441
      %v6534 = vpop.f32.mrb[0].mxu0
      %v6535 = vadd.f32 0.0, %v6534
      %v6536 = vpop.f32.mrb[0].mxu0
      %6537 = vmatprep.mubr.f32.mxu0 0.0
      %6538 = vmatmul.mubr.f32.gmra.mrb[0].mxu0 %v6444
      %v6539 = vpop.f32.mrb[0].mxu0
      %v6540 = vadd.f32 0.0, %v6539
      %v6541 = vpop.f32.mrb[0].mxu0
      %6542 = vmatprep.mubr.f32.mxu0 0.0
      %6543 = vmatmul.mubr.f32.gmra.mrb[0].mxu0 %v6447
      %v6544 = vpop.f32.mrb[0].mxu0
      %v6545 = vadd.f32 0.0, %v6544
      %v6546 = vpop.f32.mrb[0].mxu0
      %6547 = vmatprep.mubr.f32.mxu0 0.0
      %6548 = vmatmul.mubr.f32.gmra.mrb[0].mxu0 %v6450
      %v6549 = vpop.f32.mrb[0].mxu0
      %v6550 = vadd.f32 0.0, %v6549
      %v6551 = vpop.f32.mrb[0].mxu0
      %6552 = vmatprep.mubr.f32.mxu0 0.0
      %6553 = vmatmul.mubr.f32.gmra.mrb[0].mxu0 %v6453
      %v6554 = vpop.f32.mrb[0].mxu0
      %v6555 = vadd.f32 0.0, %v6554
      %v6556 = vpop.f32.mrb[0].mxu0
      %6557 = vmatprep.mubr.f32.mxu0 0.0
      %6558 = vmatmul.mubr.f32.gmra.mrb[0].mxu0 %v6456
      %v6559 = vpop.f32.mrb[0].mxu0
      %v6560 = vadd.f32 0.0, %v6559
      %v6561 = vpop.f32.mrb[0].mxu0
      %6562 = vdwg.mxu0
      %v6563 = vadd.f32 %v6417, %v6525
      %v6564 = vadd.f32 %v6418, %v6530
      %v6565 = vadd.f32 %v6419, %v6535
      %v6566 = vadd.f32 %v6420, %v6540
      %v6567 = vadd.f32 %v6421, %v6545
      %v6568 = vadd.f32 %v6422, %v6550
      %v6569 = vadd.f32 %v6423, %v6555
      %v6570 = vadd.f32 %v6424, %v6560
      %s6571 = scalar_lea.vmem %s8, 384
      %v6572 = vld [vmem:[%s6571] sm:$0xff]
      %v6573 = vld [vmem:[%s6571 + $0x8] sm:$0xff]
      %v6574 = vld [vmem:[%s6571 + $0x10] sm:$0xff]
      %v6575 = vld [vmem:[%s6571 + $0x18] sm:$0xff]
      %v6576 = vld [vmem:[%s6571 + $0x20] sm:$0xff]
      %v6577 = vld [vmem:[%s6571 + $0x28] sm:$0xff]
      %v6578 = vld [vmem:[%s6571 + $0x30] sm:$0xff]
      %v6579 = vld [vmem:[%s6571 + $0x38] sm:$0xff]
      %v6581 = vsel %vm5728, %v5593, 0
      %v6584 = vsel %vm5728, %v5598, 0
      %v6587 = vsel %vm5728, %v5603, 0
      %v6590 = vsel %vm5728, %v5608, 0
      %v6593 = vsel %vm5728, %v5613, 0
      %v6596 = vsel %vm5728, %v5618, 0
      %v6599 = vsel %vm5728, %v5623, 0
      %v6602 = vsel %vm5728, %v5628, 0
      %6604 = vmatprep.subr.mxu0 0.0
      %6605 = vmatpush1.msra.mxu0 %v6572
      %6606 = vmatprep.subr.mxu0 0.0
      %6607 = vmatpush1.msra.mxu0 %v6573
      %6608 = vmatprep.subr.mxu0 0.0
      %6609 = vmatpush1.msra.mxu0 %v6574
      %6610 = vmatprep.subr.mxu0 0.0
      %6611 = vmatpush1.msra.mxu0 %v6575
      %6612 = vmatprep.subr.mxu0 0.0
      %6613 = vmatpush1.msra.mxu0 %v6576
      %6614 = vmatprep.subr.mxu0 0.0
      %6615 = vmatpush1.msra.mxu0 %v6577
      %6616 = vmatprep.subr.mxu0 0.0
      %6617 = vmatpush1.msra.mxu0 %v6578
      %6618 = vmatprep.subr.mxu0 0.0
      %6619 = vmatpush1.msra.mxu0 %v6579
      %6620 = vmatprep.subr.mxu0 0.0
      %6621 = vmatpush1.msra.mxu0 0.0
      %6622 = vmatprep.subr.mxu0 0.0
      %6623 = vmatpush1.msra.mxu0 0.0
      %6624 = vmatprep.subr.mxu0 0.0
      %6625 = vmatpush1.msra.mxu0 0.0
      %6626 = vmatprep.subr.mxu0 0.0
      %6627 = vmatpush1.msra.mxu0 0.0
      %6628 = vmatprep.subr.mxu0 0.0
      %6629 = vmatpush1.msra.mxu0 0.0
      %6630 = vmatprep.subr.mxu0 0.0
      %6631 = vmatpush1.msra.mxu0 0.0
      %6632 = vmatprep.subr.mxu0 0.0
      %6633 = vmatpush1.msra.mxu0 0.0
      %6634 = vmatprep.subr.mxu0 0.0
      %6635 = vmatpush1.msra.mxu0 0.0
      %6636 = vmatprep.subr.mxu0 0.0
      %6637 = vmatpush1.msra.mxu0 0.0
      %6638 = vmatprep.subr.mxu0 0.0
      %6639 = vmatpush1.msra.mxu0 0.0
      %6640 = vmatprep.subr.mxu0 0.0
      %6641 = vmatpush1.msra.mxu0 0.0
      %6642 = vmatprep.subr.mxu0 0.0
      %6643 = vmatpush1.msra.mxu0 0.0
      %6644 = vmatprep.subr.mxu0 0.0
      %6645 = vmatpush1.msra.mxu0 0.0
      %6646 = vmatprep.subr.mxu0 0.0
      %6647 = vmatpush1.msra.mxu0 0.0
      %6648 = vmatprep.subr.mxu0 0.0
      %6649 = vmatpush1.msra.mxu0 0.0
      %6650 = vmatprep.subr.mxu0 0.0
      %6651 = vmatpush1.msra.mxu0 0.0
      %6652 = vmatprep.subr.mxu0 0.0
      %6653 = vmatpush1.msra.mxu0 0.0
      %6654 = vmatprep.subr.mxu0 0.0
      %6655 = vmatpush1.msra.mxu0 0.0
      %6656 = vmatprep.subr.mxu0 0.0
      %6657 = vmatpush1.msra.mxu0 0.0
      %6658 = vmatprep.subr.mxu0 0.0
      %6659 = vmatpush1.msra.mxu0 0.0
      %6660 = vmatprep.subr.mxu0 0.0
      %6661 = vmatpush1.msra.mxu0 0.0
      %6662 = vmatprep.subr.mxu0 0.0
      %6663 = vmatpush1.msra.mxu0 0.0
      %6664 = vmatprep.subr.mxu0 0.0
      %6665 = vmatpush1.msra.mxu0 0.0
      %6666 = vmatprep.subr.mxu0 0.0
      %6667 = vmatpush1.msra.mxu0 0.0
      %6668 = vmatprep.mubr.f32.mxu0 0.0
      %6669 = vmatmul.mubr.f32.gmra.mrb[0].mxu0 %v6581
      %v6670 = vpop.f32.mrb[0].mxu0
      %v6671 = vadd.f32 0.0, %v6670
      %v6672 = vpop.f32.mrb[0].mxu0
      %6673 = vmatprep.mubr.f32.mxu0 0.0
      %6674 = vmatmul.mubr.f32.gmra.mrb[0].mxu0 %v6584
      %v6675 = vpop.f32.mrb[0].mxu0
      %v6676 = vadd.f32 0.0, %v6675
      %v6677 = vpop.f32.mrb[0].mxu0
      %6678 = vmatprep.mubr.f32.mxu0 0.0
      %6679 = vmatmul.mubr.f32.gmra.mrb[0].mxu0 %v6587
      %v6680 = vpop.f32.mrb[0].mxu0
      %v6681 = vadd.f32 0.0, %v6680
      %v6682 = vpop.f32.mrb[0].mxu0
      %6683 = vmatprep.mubr.f32.mxu0 0.0
      %6684 = vmatmul.mubr.f32.gmra.mrb[0].mxu0 %v6590
      %v6685 = vpop.f32.mrb[0].mxu0
      %v6686 = vadd.f32 0.0, %v6685
      %v6687 = vpop.f32.mrb[0].mxu0
      %6688 = vmatprep.mubr.f32.mxu0 0.0
      %6689 = vmatmul.mubr.f32.gmra.mrb[0].mxu0 %v6593
      %v6690 = vpop.f32.mrb[0].mxu0
      %v6691 = vadd.f32 0.0, %v6690
      %v6692 = vpop.f32.mrb[0].mxu0
      %6693 = vmatprep.mubr.f32.mxu0 0.0
      %6694 = vmatmul.mubr.f32.gmra.mrb[0].mxu0 %v6596
      %v6695 = vpop.f32.mrb[0].mxu0
      %v6696 = vadd.f32 0.0, %v6695
      %v6697 = vpop.f32.mrb[0].mxu0
      %6698 = vmatprep.mubr.f32.mxu0 0.0
      %6699 = vmatmul.mubr.f32.gmra.mrb[0].mxu0 %v6599
      %v6700 = vpop.f32.mrb[0].mxu0
      %v6701 = vadd.f32 0.0, %v6700
      %v6702 = vpop.f32.mrb[0].mxu0
      %6703 = vmatprep.mubr.f32.mxu0 0.0
      %6704 = vmatmul.mubr.f32.gmra.mrb[0].mxu0 %v6602
      %v6705 = vpop.f32.mrb[0].mxu0
      %v6706 = vadd.f32 0.0, %v6705
      %v6707 = vpop.f32.mrb[0].mxu0
      %6708 = vdwg.mxu0
      %v6709 = vadd.f32 %v6563, %v6671
      %v6710 = vadd.f32 %v6564, %v6676
      %v6711 = vadd.f32 %v6565, %v6681
      %v6712 = vadd.f32 %v6566, %v6686
      %v6713 = vadd.f32 %v6567, %v6691
      %v6714 = vadd.f32 %v6568, %v6696
      %v6715 = vadd.f32 %v6569, %v6701
      %v6716 = vadd.f32 %v6570, %v6706
      %s6717 = scalar_lea.vmem %s8, 448
      %v6718 = vld [vmem:[%s6717] sm:$0xff]
      %v6719 = vld [vmem:[%s6717 + $0x8] sm:$0xff]
      %v6720 = vld [vmem:[%s6717 + $0x10] sm:$0xff]
      %v6721 = vld [vmem:[%s6717 + $0x18] sm:$0xff]
      %v6722 = vld [vmem:[%s6717 + $0x20] sm:$0xff]
      %v6723 = vld [vmem:[%s6717 + $0x28] sm:$0xff]
      %v6724 = vld [vmem:[%s6717 + $0x30] sm:$0xff]
      %v6725 = vld [vmem:[%s6717 + $0x38] sm:$0xff]
      %v6727 = vsel %vm5728, %v5633, 0
      %v6730 = vsel %vm5728, %v5638, 0
      %v6733 = vsel %vm5728, %v5643, 0
      %v6736 = vsel %vm5728, %v5648, 0
      %v6739 = vsel %vm5728, %v5653, 0
      %v6742 = vsel %vm5728, %v5658, 0
      %v6745 = vsel %vm5728, %v5663, 0
      %v6748 = vsel %vm5728, %v5668, 0
      %6750 = vmatprep.subr.mxu0 0.0
      %6751 = vmatpush1.msra.mxu0 %v6718
      %6752 = vmatprep.subr.mxu0 0.0
      %6753 = vmatpush1.msra.mxu0 %v6719
      %6754 = vmatprep.subr.mxu0 0.0
      %6755 = vmatpush1.msra.mxu0 %v6720
      %6756 = vmatprep.subr.mxu0 0.0
      %6757 = vmatpush1.msra.mxu0 %v6721
      %6758 = vmatprep.subr.mxu0 0.0
      %6759 = vmatpush1.msra.mxu0 %v6722
      %6760 = vmatprep.subr.mxu0 0.0
      %6761 = vmatpush1.msra.mxu0 %v6723
      %6762 = vmatprep.subr.mxu0 0.0
      %6763 = vmatpush1.msra.mxu0 %v6724
      %6764 = vmatprep.subr.mxu0 0.0
      %6765 = vmatpush1.msra.mxu0 %v6725
      %6766 = vmatprep.subr.mxu0 0.0
      %6767 = vmatpush1.msra.mxu0 0.0
      %6768 = vmatprep.subr.mxu0 0.0
      %6769 = vmatpush1.msra.mxu0 0.0
      %6770 = vmatprep.subr.mxu0 0.0
      %6771 = vmatpush1.msra.mxu0 0.0
      %6772 = vmatprep.subr.mxu0 0.0
      %6773 = vmatpush1.msra.mxu0 0.0
      %6774 = vmatprep.subr.mxu0 0.0
      %6775 = vmatpush1.msra.mxu0 0.0
      %6776 = vmatprep.subr.mxu0 0.0
      %6777 = vmatpush1.msra.mxu0 0.0
      %6778 = vmatprep.subr.mxu0 0.0
      %6779 = vmatpush1.msra.mxu0 0.0
      %6780 = vmatprep.subr.mxu0 0.0
      %6781 = vmatpush1.msra.mxu0 0.0
      %6782 = vmatprep.subr.mxu0 0.0
      %6783 = vmatpush1.msra.mxu0 0.0
      %6784 = vmatprep.subr.mxu0 0.0
      %6785 = vmatpush1.msra.mxu0 0.0
      %6786 = vmatprep.subr.mxu0 0.0
      %6787 = vmatpush1.msra.mxu0 0.0
      %6788 = vmatprep.subr.mxu0 0.0
      %6789 = vmatpush1.msra.mxu0 0.0
      %6790 = vmatprep.subr.mxu0 0.0
      %6791 = vmatpush1.msra.mxu0 0.0
      %6792 = vmatprep.subr.mxu0 0.0
      %6793 = vmatpush1.msra.mxu0 0.0
      %6794 = vmatprep.subr.mxu0 0.0
      %6795 = vmatpush1.msra.mxu0 0.0
      %6796 = vmatprep.subr.mxu0 0.0
      %6797 = vmatpush1.msra.mxu0 0.0
      %6798 = vmatprep.subr.mxu0 0.0
      %6799 = vmatpush1.msra.mxu0 0.0
      %6800 = vmatprep.subr.mxu0 0.0
      %6801 = vmatpush1.msra.mxu0 0.0
      %6802 = vmatprep.subr.mxu0 0.0
      %6803 = vmatpush1.msra.mxu0 0.0
      %6804 = vmatprep.subr.mxu0 0.0
      %6805 = vmatpush1.msra.mxu0 0.0
      %6806 = vmatprep.subr.mxu0 0.0
      %6807 = vmatpush1.msra.mxu0 0.0
      %6808 = vmatprep.subr.mxu0 0.0
      %6809 = vmatpush1.msra.mxu0 0.0
      %6810 = vmatprep.subr.mxu0 0.0
      %6811 = vmatpush1.msra.mxu0 0.0
      %6812 = vmatprep.subr.mxu0 0.0
      %6813 = vmatpush1.msra.mxu0 0.0
      %6814 = vmatprep.mubr.f32.mxu0 0.0
      %6815 = vmatmul.mubr.f32.gmra.mrb[0].mxu0 %v6727
      %v6816 = vpop.f32.mrb[0].mxu0
      %v6817 = vadd.f32 0.0, %v6816
      %v6818 = vpop.f32.mrb[0].mxu0
      %6819 = vmatprep.mubr.f32.mxu0 0.0
      %6820 = vmatmul.mubr.f32.gmra.mrb[0].mxu0 %v6730
      %v6821 = vpop.f32.mrb[0].mxu0
      %v6822 = vadd.f32 0.0, %v6821
      %v6823 = vpop.f32.mrb[0].mxu0
      %6824 = vmatprep.mubr.f32.mxu0 0.0
      %6825 = vmatmul.mubr.f32.gmra.mrb[0].mxu0 %v6733
      %v6826 = vpop.f32.mrb[0].mxu0
      %v6827 = vadd.f32 0.0, %v6826
      %v6828 = vpop.f32.mrb[0].mxu0
      %6829 = vmatprep.mubr.f32.mxu0 0.0
      %6830 = vmatmul.mubr.f32.gmra.mrb[0].mxu0 %v6736
      %v6831 = vpop.f32.mrb[0].mxu0
      %v6832 = vadd.f32 0.0, %v6831
      %v6833 = vpop.f32.mrb[0].mxu0
      %6834 = vmatprep.mubr.f32.mxu0 0.0
      %6835 = vmatmul.mubr.f32.gmra.mrb[0].mxu0 %v6739
      %v6836 = vpop.f32.mrb[0].mxu0
      %v6837 = vadd.f32 0.0, %v6836
      %v6838 = vpop.f32.mrb[0].mxu0
      %6839 = vmatprep.mubr.f32.mxu0 0.0
      %6840 = vmatmul.mubr.f32.gmra.mrb[0].mxu0 %v6742
      %v6841 = vpop.f32.mrb[0].mxu0
      %v6842 = vadd.f32 0.0, %v6841
      %v6843 = vpop.f32.mrb[0].mxu0
      %6844 = vmatprep.mubr.f32.mxu0 0.0
      %6845 = vmatmul.mubr.f32.gmra.mrb[0].mxu0 %v6745
      %v6846 = vpop.f32.mrb[0].mxu0
      %v6847 = vadd.f32 0.0, %v6846
      %v6848 = vpop.f32.mrb[0].mxu0
      %6849 = vmatprep.mubr.f32.mxu0 0.0
      %6850 = vmatmul.mubr.f32.gmra.mrb[0].mxu0 %v6748
      %v6851 = vpop.f32.mrb[0].mxu0
      %v6852 = vadd.f32 0.0, %v6851
      %v6853 = vpop.f32.mrb[0].mxu0
      %6854 = vdwg.mxu0
      %v6855 = vadd.f32 %v6709, %v6817
      %v6856 = vadd.f32 %v6710, %v6822
      %v6857 = vadd.f32 %v6711, %v6827
      %v6858 = vadd.f32 %v6712, %v6832
      %v6859 = vadd.f32 %v6713, %v6837
      %v6860 = vadd.f32 %v6714, %v6842
      %v6861 = vadd.f32 %v6715, %v6847
      %v6862 = vadd.f32 %v6716, %v6852
      %s6863 = scalar_lea.vmem %s8, 512
      %v6864 = vld [vmem:[%s6863] sm:$0xff]
      %v6865 = vld [vmem:[%s6863 + $0x8] sm:$0xff]
      %v6866 = vld [vmem:[%s6863 + $0x10] sm:$0xff]
      %v6867 = vld [vmem:[%s6863 + $0x18] sm:$0xff]
      %v6868 = vld [vmem:[%s6863 + $0x20] sm:$0xff]
      %v6869 = vld [vmem:[%s6863 + $0x28] sm:$0xff]
      %v6870 = vld [vmem:[%s6863 + $0x30] sm:$0xff]
      %v6871 = vld [vmem:[%s6863 + $0x38] sm:$0xff]
      %v6873 = vsel %vm5728, %v5673, 0
      %v6876 = vsel %vm5728, %v5678, 0
      %v6879 = vsel %vm5728, %v5683, 0
      %v6882 = vsel %vm5728, %v5688, 0
      %v6885 = vsel %vm5728, %v5693, 0
      %v6888 = vsel %vm5728, %v5698, 0
      %v6891 = vsel %vm5728, %v5703, 0
      %v6894 = vsel %vm5728, %v5708, 0
      %6896 = vmatprep.subr.mxu0 0.0
      %6897 = vmatpush1.msra.mxu0 %v6864
      %6898 = vmatprep.subr.mxu0 0.0
      %6899 = vmatpush1.msra.mxu0 %v6865
      %6900 = vmatprep.subr.mxu0 0.0
      %6901 = vmatpush1.msra.mxu0 %v6866
      %6902 = vmatprep.subr.mxu0 0.0
      %6903 = vmatpush1.msra.mxu0 %v6867
      %6904 = vmatprep.subr.mxu0 0.0
      %6905 = vmatpush1.msra.mxu0 %v6868
      %6906 = vmatprep.subr.mxu0 0.0
      %6907 = vmatpush1.msra.mxu0 %v6869
      %6908 = vmatprep.subr.mxu0 0.0
      %6909 = vmatpush1.msra.mxu0 %v6870
      %6910 = vmatprep.subr.mxu0 0.0
      %6911 = vmatpush1.msra.mxu0 %v6871
      %6912 = vmatprep.subr.mxu0 0.0
      %6913 = vmatpush1.msra.mxu0 0.0
      %6914 = vmatprep.subr.mxu0 0.0
      %6915 = vmatpush1.msra.mxu0 0.0
      %6916 = vmatprep.subr.mxu0 0.0
      %6917 = vmatpush1.msra.mxu0 0.0
      %6918 = vmatprep.subr.mxu0 0.0
      %6919 = vmatpush1.msra.mxu0 0.0
      %6920 = vmatprep.subr.mxu0 0.0
      %6921 = vmatpush1.msra.mxu0 0.0
      %6922 = vmatprep.subr.mxu0 0.0
      %6923 = vmatpush1.msra.mxu0 0.0
      %6924 = vmatprep.subr.mxu0 0.0
      %6925 = vmatpush1.msra.mxu0 0.0
      %6926 = vmatprep.subr.mxu0 0.0
      %6927 = vmatpush1.msra.mxu0 0.0
      %6928 = vmatprep.subr.mxu0 0.0
      %6929 = vmatpush1.msra.mxu0 0.0
      %6930 = vmatprep.subr.mxu0 0.0
      %6931 = vmatpush1.msra.mxu0 0.0
      %6932 = vmatprep.subr.mxu0 0.0
      %6933 = vmatpush1.msra.mxu0 0.0
      %6934 = vmatprep.subr.mxu0 0.0
      %6935 = vmatpush1.msra.mxu0 0.0
      %6936 = vmatprep.subr.mxu0 0.0
      %6937 = vmatpush1.msra.mxu0 0.0
      %6938 = vmatprep.subr.mxu0 0.0
      %6939 = vmatpush1.msra.mxu0 0.0
      %6940 = vmatprep.subr.mxu0 0.0
      %6941 = vmatpush1.msra.mxu0 0.0
      %6942 = vmatprep.subr.mxu0 0.0
      %6943 = vmatpush1.msra.mxu0 0.0
      %6944 = vmatprep.subr.mxu0 0.0
      %6945 = vmatpush1.msra.mxu0 0.0
      %6946 = vmatprep.subr.mxu0 0.0
      %6947 = vmatpush1.msra.mxu0 0.0
      %6948 = vmatprep.subr.mxu0 0.0
      %6949 = vmatpush1.msra.mxu0 0.0
      %6950 = vmatprep.subr.mxu0 0.0
      %6951 = vmatpush1.msra.mxu0 0.0
      %6952 = vmatprep.subr.mxu0 0.0
      %6953 = vmatpush1.msra.mxu0 0.0
      %6954 = vmatprep.subr.mxu0 0.0
      %6955 = vmatpush1.msra.mxu0 0.0
      %6956 = vmatprep.subr.mxu0 0.0
      %6957 = vmatpush1.msra.mxu0 0.0
      %6958 = vmatprep.subr.mxu0 0.0
      %6959 = vmatpush1.msra.mxu0 0.0
      %6960 = vmatprep.mubr.f32.mxu0 0.0
      %6961 = vmatmul.mubr.f32.gmra.mrb[0].mxu0 %v6873
      %v6962 = vpop.f32.mrb[0].mxu0
      %v6963 = vadd.f32 0.0, %v6962
      %v6964 = vpop.f32.mrb[0].mxu0
      %6965 = vmatprep.mubr.f32.mxu0 0.0
      %6966 = vmatmul.mubr.f32.gmra.mrb[0].mxu0 %v6876
      %v6967 = vpop.f32.mrb[0].mxu0
      %v6968 = vadd.f32 0.0, %v6967
      %v6969 = vpop.f32.mrb[0].mxu0
      %6970 = vmatprep.mubr.f32.mxu0 0.0
      %6971 = vmatmul.mubr.f32.gmra.mrb[0].mxu0 %v6879
      %v6972 = vpop.f32.mrb[0].mxu0
      %v6973 = vadd.f32 0.0, %v6972
      %v6974 = vpop.f32.mrb[0].mxu0
      %6975 = vmatprep.mubr.f32.mxu0 0.0
      %6976 = vmatmul.mubr.f32.gmra.mrb[0].mxu0 %v6882
      %v6977 = vpop.f32.mrb[0].mxu0
      %v6978 = vadd.f32 0.0, %v6977
      %v6979 = vpop.f32.mrb[0].mxu0
      %6980 = vmatprep.mubr.f32.mxu0 0.0
      %6981 = vmatmul.mubr.f32.gmra.mrb[0].mxu0 %v6885
      %v6982 = vpop.f32.mrb[0].mxu0
      %v6983 = vadd.f32 0.0, %v6982
      %v6984 = vpop.f32.mrb[0].mxu0
      %6985 = vmatprep.mubr.f32.mxu0 0.0
      %6986 = vmatmul.mubr.f32.gmra.mrb[0].mxu0 %v6888
      %v6987 = vpop.f32.mrb[0].mxu0
      %v6988 = vadd.f32 0.0, %v6987
      %v6989 = vpop.f32.mrb[0].mxu0
      %6990 = vmatprep.mubr.f32.mxu0 0.0
      %6991 = vmatmul.mubr.f32.gmra.mrb[0].mxu0 %v6891
      %v6992 = vpop.f32.mrb[0].mxu0
      %v6993 = vadd.f32 0.0, %v6992
      %v6994 = vpop.f32.mrb[0].mxu0
      %6995 = vmatprep.mubr.f32.mxu0 0.0
      %6996 = vmatmul.mubr.f32.gmra.mrb[0].mxu0 %v6894
      %v6997 = vpop.f32.mrb[0].mxu0
      %v6998 = vadd.f32 0.0, %v6997
      %v6999 = vpop.f32.mrb[0].mxu0
      %7000 = vdwg.mxu0
      %v7001 = vadd.f32 %v6855, %v6963
      %v7002 = vadd.f32 %v6856, %v6968
      %v7003 = vadd.f32 %v6857, %v6973
      %v7004 = vadd.f32 %v6858, %v6978
      %v7005 = vadd.f32 %v6859, %v6983
      %v7006 = vadd.f32 %v6860, %v6988
      %v7007 = vadd.f32 %v6861, %v6993
      %v7008 = vadd.f32 %v6862, %v6998
      %v7009 = vld [vmem:[%s9] sm:$0x1]
      %v7011 = vlaneseq
      %v7012 = vshrl.u32 %v7011, 7
      %v7013 = vsub.s32 0, %v7012
      %v7014 = vrot.slane %v7009, %v7013
      %v7016 = vadd.f32 %v7001, %v7014
      %v7017 = vadd.f32 %v7002, %v7014
      %v7018 = vadd.f32 %v7003, %v7014
      %v7019 = vadd.f32 %v7004, %v7014
      %v7020 = vadd.f32 %v7005, %v7014
      %v7021 = vadd.f32 %v7006, %v7014
      %v7022 = vadd.f32 %v7007, %v7014
      %v7023 = vadd.f32 %v7008, %v7014
      %v7024 = vmax.f32 %v7016, 0.0
      %v7025 = vmax.f32 %v7017, 0.0
      %v7026 = vmax.f32 %v7018, 0.0
      %v7027 = vmax.f32 %v7019, 0.0
      %v7028 = vmax.f32 %v7020, 0.0
      %v7029 = vmax.f32 %v7021, 0.0
      %v7030 = vmax.f32 %v7022, 0.0
      %v7031 = vmax.f32 %v7023, 0.0
      %v7032 = vld [vmem:[%s3] sm:$0xff]
      %v7034 = vsel %vm5728, %v7032, 0
      %7036 = vmatprep.subr.mxu0 0.0
      %7037 = vmatpush1.msra.mxu0 %v7024
      %7038 = vmatprep.subr.mxu0 0.0
      %7039 = vmatpush1.msra.mxu0 %v7025
      %7040 = vmatprep.subr.mxu0 0.0
      %7041 = vmatpush1.msra.mxu0 %v7026
      %7042 = vmatprep.subr.mxu0 0.0
      %7043 = vmatpush1.msra.mxu0 %v7027
      %7044 = vmatprep.subr.mxu0 0.0
      %7045 = vmatpush1.msra.mxu0 %v7028
      %7046 = vmatprep.subr.mxu0 0.0
      %7047 = vmatpush1.msra.mxu0 %v7029
      %7048 = vmatprep.subr.mxu0 0.0
      %7049 = vmatpush1.msra.mxu0 %v7030
      %7050 = vmatprep.subr.mxu0 0.0
      %7051 = vmatpush1.msra.mxu0 %v7031
      %7052 = vmatprep.subr.mxu0 0.0
      %7053 = vmatpush1.msra.mxu0 0.0
      %7054 = vmatprep.subr.mxu0 0.0
      %7055 = vmatpush1.msra.mxu0 0.0
      %7056 = vmatprep.subr.mxu0 0.0
      %7057 = vmatpush1.msra.mxu0 0.0
      %7058 = vmatprep.subr.mxu0 0.0
      %7059 = vmatpush1.msra.mxu0 0.0
      %7060 = vmatprep.subr.mxu0 0.0
      %7061 = vmatpush1.msra.mxu0 0.0
      %7062 = vmatprep.subr.mxu0 0.0
      %7063 = vmatpush1.msra.mxu0 0.0
      %7064 = vmatprep.subr.mxu0 0.0
      %7065 = vmatpush1.msra.mxu0 0.0
      %7066 = vmatprep.subr.mxu0 0.0
      %7067 = vmatpush1.msra.mxu0 0.0
      %7068 = vmatprep.subr.mxu0 0.0
      %7069 = vmatpush1.msra.mxu0 0.0
      %7070 = vmatprep.subr.mxu0 0.0
      %7071 = vmatpush1.msra.mxu0 0.0
      %7072 = vmatprep.subr.mxu0 0.0
      %7073 = vmatpush1.msra.mxu0 0.0
      %7074 = vmatprep.subr.mxu0 0.0
      %7075 = vmatpush1.msra.mxu0 0.0
      %7076 = vmatprep.subr.mxu0 0.0
      %7077 = vmatpush1.msra.mxu0 0.0
      %7078 = vmatprep.subr.mxu0 0.0
      %7079 = vmatpush1.msra.mxu0 0.0
      %7080 = vmatprep.subr.mxu0 0.0
      %7081 = vmatpush1.msra.mxu0 0.0
      %7082 = vmatprep.subr.mxu0 0.0
      %7083 = vmatpush1.msra.mxu0 0.0
      %7084 = vmatprep.subr.mxu0 0.0
      %7085 = vmatpush1.msra.mxu0 0.0
      %7086 = vmatprep.subr.mxu0 0.0
      %7087 = vmatpush1.msra.mxu0 0.0
      %7088 = vmatprep.subr.mxu0 0.0
      %7089 = vmatpush1.msra.mxu0 0.0
      %7090 = vmatprep.subr.mxu0 0.0
      %7091 = vmatpush1.msra.mxu0 0.0
      %7092 = vmatprep.subr.mxu0 0.0
      %7093 = vmatpush1.msra.mxu0 0.0
      %7094 = vmatprep.subr.mxu0 0.0
      %7095 = vmatpush1.msra.mxu0 0.0
      %7096 = vmatprep.subr.mxu0 0.0
      %7097 = vmatpush1.msra.mxu0 0.0
      %7098 = vmatprep.subr.mxu0 0.0
      %7099 = vmatpush1.msra.mxu0 0.0
      %7100 = vmatprep.mubr.f32.mxu0 0.0
      %7101 = vmatmul.mubr.f32.gmra.mrb[0].mxu0 %v7034
      %v7102 = vpop.f32.mrb[0].mxu0
      %v7103 = vadd.f32 0.0, %v7102
      %v7104 = vpop.f32.mrb[0].mxu0
      %7105 = vdwg.mxu0
      %v7106 = vld [vmem:[%s10] sm:$0xff]
      %v7107 = vld [vmem:[%s10 + $0x8] sm:$0xff]
      %v7108 = vld [vmem:[%s10 + $0x10] sm:$0xff]
      %v7109 = vld [vmem:[%s10 + $0x18] sm:$0xff]
      %v7110 = vld [vmem:[%s10 + $0x20] sm:$0xff]
      %v7111 = vld [vmem:[%s10 + $0x28] sm:$0xff]
      %v7112 = vld [vmem:[%s10 + $0x30] sm:$0xff]
      %v7113 = vld [vmem:[%s10 + $0x38] sm:$0xff]
      %v7114 = vld [vmem:[%s10 + $0x40] sm:$0xff]
      %v7115 = vld [vmem:[%s10 + $0x48] sm:$0xff]
      %v7116 = vld [vmem:[%s10 + $0x50] sm:$0xff]
      %v7117 = vld [vmem:[%s10 + $0x58] sm:$0xff]
      %v7118 = vld [vmem:[%s10 + $0x60] sm:$0xff]
      %v7119 = vld [vmem:[%s10 + $0x68] sm:$0xff]
      %v7120 = vld [vmem:[%s10 + $0x70] sm:$0xff]
      %v7121 = vld [vmem:[%s10 + $0x78] sm:$0xff]
      %v7122 = vld [vmem:[%s10 + $0x80] sm:$0xff]
      %v7123 = vld [vmem:[%s10 + $0x88] sm:$0xff]
      %v7124 = vld [vmem:[%s10 + $0x90] sm:$0xff]
      %v7125 = vld [vmem:[%s10 + $0x98] sm:$0xff]
      %v7126 = vld [vmem:[%s10 + $0xa0] sm:$0xff]
      %v7127 = vld [vmem:[%s10 + $0xa8] sm:$0xff]
      %v7128 = vld [vmem:[%s10 + $0xb0] sm:$0xff]
      %v7129 = vld [vmem:[%s10 + $0xb8] sm:$0xff]
      %v7130 = vld [vmem:[%s10 + $0xc0] sm:$0xff]
      %v7131 = vld [vmem:[%s10 + $0xc8] sm:$0xff]
      %v7132 = vld [vmem:[%s10 + $0xd0] sm:$0xff]
      %v7133 = vld [vmem:[%s10 + $0xd8] sm:$0xff]
      %v7134 = vld [vmem:[%s10 + $0xe0] sm:$0xff]
      %v7135 = vld [vmem:[%s10 + $0xe8] sm:$0xff]
      %v7136 = vld [vmem:[%s10 + $0xf0] sm:$0xff]
      %v7137 = vld [vmem:[%s10 + $0xf8] sm:$0xff]
      %v7138 = vld [vmem:[%s11] sm:$0x3]
      %v7140 = vlaneseq
      %v7141 = vshrl.u32 %v7140, 7
      %v7142 = vsub.s32 0, %v7141
      %v7143 = vrot.slane %v7138, %v7142
      %v7144 = vlaneseq
      %v7145 = vshrl.u32 %v7144, 7
      %v7146 = vsub.s32 1, %v7145
      %v7147 = vrot.slane %v7138, %v7146
      %7150 = vmatprep.subr.mxu0 %v7107
      %7151 = vmatpush1.msra.mxu0 %v7106
      %7152 = vmatprep.subr.mxu0 %v7109
      %7153 = vmatpush1.msra.mxu0 %v7108
      %7154 = vmatprep.subr.mxu0 %v7111
      %7155 = vmatpush1.msra.mxu0 %v7110
      %7156 = vmatprep.subr.mxu0 %v7113
      %7157 = vmatpush1.msra.mxu0 %v7112
      %7158 = vmatprep.subr.mxu0 %v7115
      %7159 = vmatpush1.msra.mxu0 %v7114
      %7160 = vmatprep.subr.mxu0 %v7117
      %7161 = vmatpush1.msra.mxu0 %v7116
      %7162 = vmatprep.subr.mxu0 %v7119
      %7163 = vmatpush1.msra.mxu0 %v7118
      %7164 = vmatprep.subr.mxu0 %v7121
      %7165 = vmatpush1.msra.mxu0 %v7120
      %7166 = vmatprep.subr.mxu0 %v7123
      %7167 = vmatpush1.msra.mxu0 %v7122
      %7168 = vmatprep.subr.mxu0 %v7125
      %7169 = vmatpush1.msra.mxu0 %v7124
      %7170 = vmatprep.subr.mxu0 %v7127
      %7171 = vmatpush1.msra.mxu0 %v7126
      %7172 = vmatprep.subr.mxu0 %v7129
      %7173 = vmatpush1.msra.mxu0 %v7128
      %7174 = vmatprep.subr.mxu0 %v7131
      %7175 = vmatpush1.msra.mxu0 %v7130
      %7176 = vmatprep.subr.mxu0 %v7133
      %7177 = vmatpush1.msra.mxu0 %v7132
      %7178 = vmatprep.subr.mxu0 %v7135
      %7179 = vmatpush1.msra.mxu0 %v7134
      %7180 = vmatprep.subr.mxu0 %v7137
      %7181 = vmatpush1.msra.mxu0 %v7136
      %7182 = vmatprep.subr.mxu0 0.0
      %7183 = vmatpush1.msra.mxu0 0.0
      %7184 = vmatprep.subr.mxu0 0.0
      %7185 = vmatpush1.msra.mxu0 0.0
      %7186 = vmatprep.subr.mxu0 0.0
      %7187 = vmatpush1.msra.mxu0 0.0
      %7188 = vmatprep.subr.mxu0 0.0
      %7189 = vmatpush1.msra.mxu0 0.0
      %7190 = vmatprep.subr.mxu0 0.0
      %7191 = vmatpush1.msra.mxu0 0.0
      %7192 = vmatprep.subr.mxu0 0.0
      %7193 = vmatpush1.msra.mxu0 0.0
      %7194 = vmatprep.subr.mxu0 0.0
      %7195 = vmatpush1.msra.mxu0 0.0
      %7196 = vmatprep.subr.mxu0 0.0
      %7197 = vmatpush1.msra.mxu0 0.0
      %7198 = vmatprep.subr.mxu0 0.0
      %7199 = vmatpush1.msra.mxu0 0.0
      %7200 = vmatprep.subr.mxu0 0.0
      %7201 = vmatpush1.msra.mxu0 0.0
      %7202 = vmatprep.subr.mxu0 0.0
      %7203 = vmatpush1.msra.mxu0 0.0
      %7204 = vmatprep.subr.mxu0 0.0
      %7205 = vmatpush1.msra.mxu0 0.0
      %7206 = vmatprep.subr.mxu0 0.0
      %7207 = vmatpush1.msra.mxu0 0.0
      %7208 = vmatprep.subr.mxu0 0.0
      %7209 = vmatpush1.msra.mxu0 0.0
      %7210 = vmatprep.subr.mxu0 0.0
      %7211 = vmatpush1.msra.mxu0 0.0
      %7212 = vmatprep.subr.mxu0 0.0
      %7213 = vmatpush1.msra.mxu0 0.0
      %7214 = vmatprep.mubr.f32.mxu0 0.0
      %7215 = vmatmul.mubr.f32.gmra.mrb[0].mxu0 %v7103
      %v7216 = vpop.f32.mrb[0].mxu0
      %v7217 = vadd.f32 %v7143, %v7216
      %v7218 = vpop.f32.mrb[0].mxu0
      %v7219 = vadd.f32 %v7147, %v7218
      %7220 = vdwg.mxu0
      %v7221 = vmul.f32 %v7217, %v7217
      %7222 = vadd.xlane.f32.xlu0 %v7221
      %v7223 = vpop.xlane.xlu0 %7222
      %v7224 = vmax.f32 %v7223, 1e-24
      %v7225 = vrsqrt.pop %v7224
      %v7226 = vmul.f32 %v7217, %v7225
      %7227 = vst [vmem:[%s415] sm:$0xff] %v7226
      %7228 = vst [vmem:[%s415 + $0x8] sm:$0xff] %v7219
      %p7229 = scmp.lt.s32.totalorder %s23, 1
      %s7230 = scalar_select %p7229, %s23, 1
      %s7231 = smul.addr %s7230, 2
      %s7232 = smul.addr %s7231, 8
      %s7233 = scalar_lea.vmem %s12, %s7232
      // Predicated region
      $region69: #{water_encoder_forward.1} parent=67 // pred_check
        %p7234 = pneg %p298
      $region70: #{water_encoder_forward.1} parent=67 // pred_check_branch
        %7236 = sbr.rel (%p7234) target = $region72
      $region71: #{water_encoder_forward.1} parent=67 // pred_region
        _
      $region72: #{water_encoder_forward.1} parent=67 // pred_fallthru
        _
    $region68: #{water_encoder_forward.1} parent=5 // pred_fallthru
      _
    %p7237 = scmp.le.s32.totalorder 2, %s18
    // Predicated region
    $region73: #{water_encoder_forward.1} parent=5 // pred_check
      %p7238 = pneg %p7237
    $region74: #{water_encoder_forward.1} parent=5 // pred_check_branch
      %7240 = sbr.rel (%p7238) target = $region76
    $region75: #{water_encoder_forward.1} parent=5 // pred_region
      %s7241 = ssub.s32 %s18, 2
      // Predicated region
      $region77: #{water_encoder_forward.1} parent=75 // pred_check
        %p7242 = pneg %p304
      $region78: #{water_encoder_forward.1} parent=75 // pred_check_branch
        %7244 = sbr.rel (%p7242) target = $region80
      $region79: #{water_encoder_forward.1} parent=75 // pred_region
        %p7245 = scmp.lt.s32.totalorder %s24, 1
        %s7246 = scalar_select %p7245, %s24, 1
        %s7247 = smul.addr %s7246, 2
        %s7248 = smul.addr %s7247, 8
        %s7249 = scalar_lea.vmem %s12, %s7248
      $region80: #{water_encoder_forward.1} parent=75 // pred_fallthru
        _
    $region76: #{water_encoder_forward.1} parent=5 // pred_fallthru
      _
  $region6: #{water_encoder_forward.1} parent=0 // loop_footer
    %s22 = sadd.s32 1, %s18
  $region7: #{water_encoder_forward.1} parent=0 // loop_footer_branch
    %17 = sbr.rel target = $region3
  $region8: #{water_encoder_forward.1} parent=0 // loop_exit
    _

</llo_original>
